<compile_context>
chip_gen: v6e
topology: v6e:2x2x1
jax: 0.10.0
libtpu: 0.0.40
codegen_flags: <defaults>
</compile_context>

<pallas_src>
import functools

import jax
import jax.numpy as jnp
from jax.experimental import pallas as pl
from jax.experimental.pallas import tpu as pltpu


def _round_up(x, m):
    return ((x + m - 1) // m) * m


def _vmem_limit_bytes():
    """~0.8x of this generation's physical VMEM; safe 51 MiB fallback."""
    try:
        cap = getattr(pltpu.get_tpu_info(), "vmem_capacity_bytes", None)
        if cap:
            return int(0.8 * cap)
    except Exception:
        pass
    return 51 << 20  # 0.8 * 64 MiB: safe on every generation (incl. v7x)


def _pick_row_tile(H, Wc, est_fn, target_rows, vmem_budget):
    """Largest divisor of H whose VMEM estimate fits, preferring >= 2 tiles."""
    divs = sorted(d for d in range(1, H + 1) if H % d == 0)
    fitting = [d for d in divs if est_fn(d) <= vmem_budget]
    if not fitting:
        return 1
    multi = [d for d in fitting if d < H and d * Wc <= target_rows]
    if multi:
        return max(multi)
    ok = [d for d in fitting if d * Wc <= target_rows]
    return max(ok) if ok else min(fitting)


# ----------------------------------------------------------------------------
# Fused ASPP kernel: 1x1 branch + dilated 3x3 branches + concat-free
# projection, all from one halo slab per (batch, row-tile) grid step.
# ----------------------------------------------------------------------------
def _fused_aspp_kernel(xw_ref, w0_ref, b0_ref, wr_ref, br_ref, wproj_ref,
                       pbias_ref, o_ref, *, TH, Wc, dmax, rates):
    # xw:    (1, 1, TH+2*dmax, Wc+2*dmax, Cinp)  bf16 halo slab (zero padded)
    # w0:    (Cinp, Coutp) bf16     b0: (1, Coutp) f32        (1x1 branch)
    # wr:    (R, 3, 3, Cinp, Coutp) bf16   br: (R, Coutp) f32 (dilated branches)
    # wproj: (R+1, Coutp, Coutp) bf16                         (projection rows)
    # pbias: (1, 1, Coutp) f32  = proj bias + pooling branch's projection (per batch)
    # o:     (1, TH, Wc, Coutp) f32
    Cinp = xw_ref.shape[-1]
    Coutp = o_ref.shape[-1]
    cdt = w0_ref.dtype

    def tap(r0, c0):
        # Static (TH, Wc) window of the halo slab.  Wc % 8 == 0 so the flatten
        # to (TH*Wc, Cinp) is layout-free (no sublane relayout copy).
        return xw_ref[0, 0, r0:r0 + TH, c0:c0 + Wc, :].reshape(TH * Wc, Cinp)

    # ---- branch 0: 1x1 conv (+ folded BN bias) + ReLU, projected immediately.
    y0 = jnp.maximum(
        jnp.dot(tap(dmax, dmax), w0_ref[...],
                preferred_element_type=jnp.float32) + b0_ref[...], 0.0)
    # Projection accumulator starts from branch 0's contribution; the
    # projection bias and the per-batch pooling contribution are folded in here
    # (no extra full-tile adds later).
    acc = jnp.dot(y0.astype(cdt), wproj_ref[0],
                  preferred_element_type=jnp.float32) + pbias_ref[0]

    # ---- dilated 3x3 branches: 9 shifted matmuls each, projected immediately.
    for bi, r in enumerate(rates):
        # Initialize with the (ky=0, kx=0) matmul + folded-BN bias (no zeros).
        acc_b = jnp.dot(tap(dmax - r, dmax - r), wr_ref[bi, 0, 0],
                        preferred_element_type=jnp.float32) + br_ref[bi:bi + 1, :]
        for ky in range(3):
            for kx in range(3):
                if ky == 0 and kx == 0:
                    continue
                acc_b = acc_b + jnp.dot(
                    tap(dmax + (ky - 1) * r, dmax + (kx - 1) * r),
                    wr_ref[bi, ky, kx], preferred_element_type=jnp.float32)
        yb = jnp.maximum(acc_b, 0.0)
        acc = acc + jnp.dot(yb.astype(cdt), wproj_ref[bi + 1],
                            preferred_element_type=jnp.float32)

    o_ref[...] = jnp.maximum(acc, 0.0).reshape(1, TH, Wc, Coutp).astype(o_ref.dtype)


# ----------------------------------------------------------------------------
# Builder: pads/casts weights ONCE, returns a jitted NCHW -> NCHW forward.
# ----------------------------------------------------------------------------
def build_aspp_forward(params, *, lane=128, compute_dtype=jnp.bfloat16,
                       target_rows=None):
    rates = tuple(int(r) for (_, _, r) in params["branches"])
    assert len(rates) >= 1
    R = len(rates)
    nb = R + 2
    Cin, Cout = params["w0"].shape
    dmax = max(rates)
    Cinp = _round_up(Cin, lane)
    Coutp = _round_up(Cout, lane)
    in_itemsize = 2 if compute_dtype == jnp.bfloat16 else 4

    def pad_w(w):  # (..., Cin, Cout) -> (..., Cinp, Coutp), compute dtype
        pads = [(0, 0)] * (w.ndim - 2) + [(0, Cinp - Cin), (0, Coutp - Cout)]
        return jnp.pad(w, pads).astype(compute_dtype)

    def pad_b(b):  # (Cout,) -> (1, Coutp), f32 (VPU math stays f32, item v5e)
        return jnp.pad(b, (0, Coutp - Cout)).reshape(1, Coutp).astype(jnp.float32)

    # One-time weight prep (lane-padded + cast), cached in this closure.
    w0 = pad_w(params["w0"])
    b0 = pad_b(params["b0"])
    wr = jnp.stack([pad_w(w) for (w, _, _) in params["branches"]])        # (R,3,3,Cinp,Coutp)
    br = jnp.concatenate([pad_b(b) for (_, b, _) in params["branches"]])  # (R,Coutp)
    wproj_full = params["wproj"].reshape(nb, Cout, Cout)                  # branch-major rows
    wproj = jnp.pad(wproj_full[:R + 1],
                    ((0, 0), (0, Coutp - Cout), (0, Coutp - Cout))).astype(compute_dtype)
    # Pooling branch weights kept f32 (tiny; computed outside the kernel).
    wp_f, bp_f = params["wp"], params["bp"]
    wproj_pool_f = wproj_full[R + 1]
    bproj_f = params["bproj"]

    vmem_limit = _vmem_limit_bytes()
    tgt_rows = target_rows if target_rows is not None else (
        1024 if vmem_limit > (56 << 20) else 512)

    def forward(x_nchw):
        x = jnp.transpose(x_nchw, (0, 2, 3, 1)).astype(jnp.float32)  # NHWC
        N, H, W, _ = x.shape
        Wc = _round_up(W, 8)          # lane/sublane-friendly compute width
        Wwin = Wc + 2 * dmax

        # ---- pooling branch hoisted out of the kernel (plain JAX, f32) ----
        pooled = jnp.mean(x, axis=(1, 2))                       # (N, Cin)
        yp = jax.nn.relu(pooled @ wp_f + bp_f)                  # (N, Cout)
        pbias = yp @ wproj_pool_f + bproj_f                     # (N, Cout)
        pbias = jnp.pad(pbias, ((0, 0), (0, Coutp - Cout)))
        pbias = pbias.reshape(N, 1, Coutp).astype(jnp.float32)  # per-batch bias

        # ---- row-tile selection from an explicit VMEM estimate ----
        weight_alloc = 2 * in_itemsize * (
            Cinp * Coutp * (1 + 9 * R) + (R + 1) * Coutp * Coutp)  # double-buffered

        def est(th):
            thalo = th + 2 * dmax
            inp = 2 * thalo * Wwin * Cinp * in_itemsize     # double-buffered slab
            outp = 2 * th * Wc * Coutp * 4                  # double-buffered out tile
            live = 2 * th * Wc * Coutp * 4 + th * Wc * Cinp * in_itemsize
            return weight_alloc + inp + outp + live + (2 << 20)

        TH = _pick_row_tile(H, Wc, est, tgt_rows, int(0.9 * vmem_limit))
        num_t = H // TH
        THalo = TH + 2 * dmax

        # ---- halo slabs: overlapping row windows gathered once in HBM so a
        # plain BlockSpec can pipeline them (no full-plane residency). ----
        xp = jnp.pad(x.astype(compute_dtype),
                     ((0, 0), (dmax, dmax), (dmax, dmax + Wc - W), (0, Cinp - Cin)))
        xwin = jnp.stack([xp[:, t * TH:t * TH + THalo] for t in range(num_t)],
                         axis=1)                 # (N, num_t, THalo, Wwin, Cinp)

        kern = functools.partial(_fused_aspp_kernel, TH=TH, Wc=Wc, dmax=dmax,
                                 rates=rates)
        out = pl.pallas_call(
            kern,
            out_shape=jax.ShapeDtypeStruct((N, H, Wc, Coutp), jnp.float32),
            grid=(N, num_t),
            in_specs=[
                pl.BlockSpec((1, 1, THalo, Wwin, Cinp),
                             lambda n, t: (n, t, 0, 0, 0)),
                pl.BlockSpec((Cinp, Coutp), lambda n, t: (0, 0)),
                pl.BlockSpec((1, Coutp), lambda n, t: (0, 0)),
                pl.BlockSpec((R, 3, 3, Cinp, Coutp),
                             lambda n, t: (0, 0, 0, 0, 0)),
                pl.BlockSpec((R, Coutp), lambda n, t: (0, 0)),
                pl.BlockSpec((R + 1, Coutp, Coutp), lambda n, t: (0, 0, 0)),
                pl.BlockSpec((1, 1, Coutp), lambda n, t: (n, 0, 0)),
            ],
            out_specs=pl.BlockSpec((1, TH, Wc, Coutp), lambda n, t: (n, t, 0, 0)),
            compiler_params=pltpu.CompilerParams(
                dimension_semantics=("parallel", "parallel"),
                vmem_limit_bytes=vmem_limit),
        )(xwin, w0, b0, wr, br, wproj, pbias)

        # Channel/width de-padding + NCHW only to match the PyTorch interface;
        # a fused downstream consumer should take the NHWC padded output as-is.
        out = out[:, :, :W, :Cout]
        # Dropout(0.5): identity (inference mode).
        return jnp.transpose(out, (0, 3, 1, 2))

    return jax.jit(forward)


# ----------------------------------------------------------------------------
# Parameter construction (deterministic, synthetic) with BN folding.
# ----------------------------------------------------------------------------
def _fold_bn(w, gamma, beta, mean, var, eps=1e-5):
    scale = gamma / jnp.sqrt(var + eps)
    return w * scale, beta - mean * scale


def _init_branch(key, kshape, cout):
    kw, kg, kb, km, kv = jax.random.split(key, 5)
    w = 0.1 * jax.random.normal(kw, kshape, jnp.float32)
    gamma = jax.random.uniform(kg, (cout,), jnp.float32, 0.8, 1.2)
    beta = 0.1 * jax.random.normal(kb, (cout,), jnp.float32)
    mean = 0.1 * jax.random.normal(km, (cout,), jnp.float32)
    var = jax.random.uniform(kv, (cout,), jnp.float32, 0.5, 1.5)
    return _fold_bn(w, gamma, beta, mean, var)


def make_aspp_params(key, in_channels, atrous_rates, out_channels):
    n_branches = 2 + len(atrous_rates)
    keys = jax.random.split(key, n_branches + 1)
    params = {}
    params["w0"], params["b0"] = _init_branch(
        keys[0], (in_channels, out_channels), out_channels)
    params["branches"] = []
    for i, rate in enumerate(atrous_rates):
        w, b = _init_branch(keys[1 + i], (3, 3, in_channels, out_channels),
                            out_channels)
        params["branches"].append((w, b, int(rate)))
    params["wp"], params["bp"] = _init_branch(
        keys[1 + len(atrous_rates)], (in_channels, out_channels), out_channels)
    params["wproj"], params["bproj"] = _init_branch(
        keys[-1], (n_branches * out_channels, out_channels), out_channels)
    return params


# ----------------------------------------------------------------------------
# Pure-JAX reference (sanity check for the fused Pallas path)
# ----------------------------------------------------------------------------
def _ref_forward(x_nchw, params):
    x = jnp.transpose(x_nchw, (0, 2, 3, 1))

    def conv1x1(xin, w, b):
        return jax.nn.relu(jnp.einsum("nhwc,co->nhwo", xin, w) + b)

    res = [conv1x1(x, params["w0"], params["b0"])]
    for (w, b, rate) in params["branches"]:
        y = jax.lax.conv_general_dilated(
            x, w, window_strides=(1, 1), padding=[(rate, rate), (rate, rate)],
            rhs_dilation=(rate, rate),
            dimension_numbers=("NHWC", "HWIO", "NHWC"))
        res.append(jax.nn.relu(y + b))
    pooled = jnp.mean(x, axis=(1, 2))                      # (N, Cin)
    y = jax.nn.relu(pooled @ params["wp"] + params["bp"])  # (N, Cout)
    res.append(jnp.broadcast_to(y[:, None, None, :],
                                (x.shape[0], x.shape[1], x.shape[2], y.shape[-1])))
    cat = jnp.concatenate(res, axis=-1)
    out = conv1x1(cat, params["wproj"], params["bproj"])
    return jnp.transpose(out, (0, 3, 1, 2))


if __name__ == "__main__":
    # ASPP(in_channels=8, atrous_rates=[2, 4, 6], out_channels=16), small shapes.
    N, C_IN, H, W = 2, 8, 16, 16
    RATES = [2, 4, 6]
    C_OUT = 16

    key = jax.random.PRNGKey(0)
    kx, kp = jax.random.split(key)
    x = jax.random.normal(kx, (N, C_IN, H, W), jnp.float32)
    params = make_aspp_params(kp, C_IN, RATES, C_OUT)

    aspp = build_aspp_forward(params)          # weight prep done once here
    out = jax.block_until_ready(aspp(x))
    assert out.shape == (N, C_OUT, H, W), out.shape

    ref = jax.block_until_ready(_ref_forward(x, params))
    max_err = float(jnp.max(jnp.abs(out - ref)))
    # bf16 MXU inputs with f32 accumulation: a few-percent tolerance vs f32 ref.
    assert jnp.allclose(out, ref, atol=5e-2, rtol=5e-2), max_err

    print("KERNEL_OK")
</pallas_src>

<mosaic_0001>
module attributes {stable_mosaic.version = 11 : i64} {
  func.func @_fused_aspp_kernel(%arg0: i32, %arg1: i32, %arg2: memref<1x1x20x28x128xbf16, #tpu.memory_space<vmem>>, %arg3: memref<128x128xbf16, #tpu.memory_space<vmem>>, %arg4: memref<1x128xf32, #tpu.memory_space<vmem>>, %arg5: memref<3x3x3x128x128xbf16, #tpu.memory_space<vmem>>, %arg6: memref<3x128xf32, #tpu.memory_space<vmem>>, %arg7: memref<4x128x128xbf16, #tpu.memory_space<vmem>>, %arg8: memref<1x1x128xf32, #tpu.memory_space<vmem>>, %arg9: memref<1x8x16x128xf32, #tpu.memory_space<vmem>>) attributes {dimension_semantics = [#tpu.dimension_semantics<parallel>, #tpu.dimension_semantics<parallel>], iteration_bounds = array<i64: 2, 2>, scalar_prefetch = 0 : i64, scratch_operands = 0 : i64, tpu.core_type = #tpu.core_type<tc>, window_params = [{transform_indices = @transform_0, window_bounds = array<i64: 1, 1, 20, 28, 128>}, {pipeline_mode = #tpu.pipeline_mode<synchronous>, transform_indices = @transform_1, window_bounds = array<i64: 128, 128>}, {pipeline_mode = #tpu.pipeline_mode<synchronous>, transform_indices = @transform_2, window_bounds = array<i64: 1, 128>}, {pipeline_mode = #tpu.pipeline_mode<synchronous>, transform_indices = @transform_3, window_bounds = array<i64: 3, 3, 3, 128, 128>}, {pipeline_mode = #tpu.pipeline_mode<synchronous>, transform_indices = @transform_4, window_bounds = array<i64: 3, 128>}, {pipeline_mode = #tpu.pipeline_mode<synchronous>, transform_indices = @transform_5, window_bounds = array<i64: 4, 128, 128>}, {transform_indices = @transform_6, window_bounds = array<i64: 1, 1, 128>}, {transform_indices = @transform_7, window_bounds = array<i64: 1, 8, 16, 128>}]} {
    %c0 = arith.constant 0 : index
    %c0_0 = arith.constant 0 : index
    %c6 = arith.constant 6 : index
    %c6_1 = arith.constant 6 : index
    %c0_2 = arith.constant 0 : index
    %0 = vector.load %arg2[%c0, %c0_0, %c6, %c6_1, %c0_2] : memref<1x1x20x28x128xbf16, #tpu.memory_space<vmem>>, vector<1x1x8x16x128xbf16>
    %1 = vector.shape_cast %0 : vector<1x1x8x16x128xbf16> to vector<8x16x128xbf16>
    %2 = vector.shape_cast %1 : vector<8x16x128xbf16> to vector<128x128xbf16>
    %c0_3 = arith.constant 0 : index
    %c0_4 = arith.constant 0 : index
    %3 = vector.load %arg3[%c0_3, %c0_4] : memref<128x128xbf16, #tpu.memory_space<vmem>>, vector<128x128xbf16>
    %cst = arith.constant dense<0.000000e+00> : vector<128x128xf32>
    %4 = tpu.matmul %2, %3, %cst {dimension_numbers = #tpu.dot_dimension_numbers<[1], [0], [0], [1], [0, 0, 1, 1], [], []>} : vector<128x128xbf16>, vector<128x128xbf16>, vector<128x128xf32> -> vector<128x128xf32>
    %c0_5 = arith.constant 0 : index
    %c0_6 = arith.constant 0 : index
    %5 = vector.load %arg4[%c0_5, %c0_6] : memref<1x128xf32, #tpu.memory_space<vmem>>, vector<1x128xf32>
    %6 = vector.broadcast %5 : vector<1x128xf32> to vector<128x128xf32>
    %7 = arith.addf %4, %6 : vector<128x128xf32>
    %cst_7 = arith.constant 0.000000e+00 : f32
    %8 = vector.broadcast %cst_7 : f32 to vector<128x128xf32>
    %9 = arith.maximumf %7, %8 : vector<128x128xf32>
    %10 = arith.truncf %9 : vector<128x128xf32> to vector<128x128xbf16>
    %c0_8 = arith.constant 0 : index
    %c0_9 = arith.constant 0 : index
    %c0_10 = arith.constant 0 : index
    %11 = vector.load %arg7[%c0_8, %c0_9, %c0_10] : memref<4x128x128xbf16, #tpu.memory_space<vmem>>, vector<1x128x128xbf16>
    %12 = vector.shape_cast %11 : vector<1x128x128xbf16> to vector<128x128xbf16>
    %cst_11 = arith.constant dense<0.000000e+00> : vector<128x128xf32>
    %13 = tpu.matmul %10, %12, %cst_11 {dimension_numbers = #tpu.dot_dimension_numbers<[1], [0], [0], [1], [0, 0, 1, 1], [], []>} : vector<128x128xbf16>, vector<128x128xbf16>, vector<128x128xf32> -> vector<128x128xf32>
    %c0_12 = arith.constant 0 : index
    %c0_13 = arith.constant 0 : index
    %c0_14 = arith.constant 0 : index
    %14 = vector.load %arg8[%c0_12, %c0_13, %c0_14] : memref<1x1x128xf32, #tpu.memory_space<vmem>>, vector<1x1x128xf32>
    %15 = vector.shape_cast %14 : vector<1x1x128xf32> to vector<1x128xf32>
    %16 = vector.broadcast %15 : vector<1x128xf32> to vector<128x128xf32>
    %17 = arith.addf %13, %16 : vector<128x128xf32>
    %c0_15 = arith.constant 0 : index
    %c0_16 = arith.constant 0 : index
    %c4 = arith.constant 4 : index
    %c4_17 = arith.constant 4 : index
    %c0_18 = arith.constant 0 : index
    %18 = vector.load %arg2[%c0_15, %c0_16, %c4, %c4_17, %c0_18] : memref<1x1x20x28x128xbf16, #tpu.memory_space<vmem>>, vector<1x1x8x16x128xbf16>
    %19 = vector.shape_cast %18 : vector<1x1x8x16x128xbf16> to vector<8x16x128xbf16>
    %20 = vector.shape_cast %19 : vector<8x16x128xbf16> to vector<128x128xbf16>
    %c0_19 = arith.constant 0 : index
    %c0_20 = arith.constant 0 : index
    %c0_21 = arith.constant 0 : index
    %c0_22 = arith.constant 0 : index
    %c0_23 = arith.constant 0 : index
    %21 = vector.load %arg5[%c0_19, %c0_20, %c0_21, %c0_22, %c0_23] : memref<3x3x3x128x128xbf16, #tpu.memory_space<vmem>>, vector<1x1x1x128x128xbf16>
    %22 = vector.shape_cast %21 : vector<1x1x1x128x128xbf16> to vector<128x128xbf16>
    %cst_24 = arith.constant dense<0.000000e+00> : vector<128x128xf32>
    %23 = tpu.matmul %20, %22, %cst_24 {dimension_numbers = #tpu.dot_dimension_numbers<[1], [0], [0], [1], [0, 0, 1, 1], [], []>} : vector<128x128xbf16>, vector<128x128xbf16>, vector<128x128xf32> -> vector<128x128xf32>
    %c0_25 = arith.constant 0 : index
    %c0_26 = arith.constant 0 : index
    %24 = vector.load %arg6[%c0_25, %c0_26] : memref<3x128xf32, #tpu.memory_space<vmem>>, vector<1x128xf32>
    %25 = vector.broadcast %24 : vector<1x128xf32> to vector<128x128xf32>
    %26 = arith.addf %23, %25 : vector<128x128xf32>
    %c0_27 = arith.constant 0 : index
    %c0_28 = arith.constant 0 : index
    %c4_29 = arith.constant 4 : index
    %c6_30 = arith.constant 6 : index
    %c0_31 = arith.constant 0 : index
    %27 = vector.load %arg2[%c0_27, %c0_28, %c4_29, %c6_30, %c0_31] : memref<1x1x20x28x128xbf16, #tpu.memory_space<vmem>>, vector<1x1x8x16x128xbf16>
    %28 = vector.shape_cast %27 : vector<1x1x8x16x128xbf16> to vector<8x16x128xbf16>
    %29 = vector.shape_cast %28 : vector<8x16x128xbf16> to vector<128x128xbf16>
    %c0_32 = arith.constant 0 : index
    %c0_33 = arith.constant 0 : index
    %c1 = arith.constant 1 : index
    %c0_34 = arith.constant 0 : index
    %c0_35 = arith.constant 0 : index
    %30 = vector.load %arg5[%c0_32, %c0_33, %c1, %c0_34, %c0_35] : memref<3x3x3x128x128xbf16, #tpu.memory_space<vmem>>, vector<1x1x1x128x128xbf16>
    %31 = vector.shape_cast %30 : vector<1x1x1x128x128xbf16> to vector<128x128xbf16>
    %cst_36 = arith.constant dense<0.000000e+00> : vector<128x128xf32>
    %32 = tpu.matmul %29, %31, %cst_36 {dimension_numbers = #tpu.dot_dimension_numbers<[1], [0], [0], [1], [0, 0, 1, 1], [], []>} : vector<128x128xbf16>, vector<128x128xbf16>, vector<128x128xf32> -> vector<128x128xf32>
    %33 = arith.addf %26, %32 : vector<128x128xf32>
    %c0_37 = arith.constant 0 : index
    %c0_38 = arith.constant 0 : index
    %c4_39 = arith.constant 4 : index
    %c8 = arith.constant 8 : index
    %c0_40 = arith.constant 0 : index
    %34 = vector.load %arg2[%c0_37, %c0_38, %c4_39, %c8, %c0_40] : memref<1x1x20x28x128xbf16, #tpu.memory_space<vmem>>, vector<1x1x8x16x128xbf16>
    %35 = vector.shape_cast %34 : vector<1x1x8x16x128xbf16> to vector<8x16x128xbf16>
    %36 = vector.shape_cast %35 : vector<8x16x128xbf16> to vector<128x128xbf16>
    %c0_41 = arith.constant 0 : index
    %c0_42 = arith.constant 0 : index
    %c2 = arith.constant 2 : index
    %c0_43 = arith.constant 0 : index
    %c0_44 = arith.constant 0 : index
    %37 = vector.load %arg5[%c0_41, %c0_42, %c2, %c0_43, %c0_44] : memref<3x3x3x128x128xbf16, #tpu.memory_space<vmem>>, vector<1x1x1x128x128xbf16>
    %38 = vector.shape_cast %37 : vector<1x1x1x128x128xbf16> to vector<128x128xbf16>
    %cst_45 = arith.constant dense<0.000000e+00> : vector<128x128xf32>
    %39 = tpu.matmul %36, %38, %cst_45 {dimension_numbers = #tpu.dot_dimension_numbers<[1], [0], [0], [1], [0, 0, 1, 1], [], []>} : vector<128x128xbf16>, vector<128x128xbf16>, vector<128x128xf32> -> vector<128x128xf32>
    %40 = arith.addf %33, %39 : vector<128x128xf32>
    %c0_46 = arith.constant 0 : index
    %c0_47 = arith.constant 0 : index
    %c6_48 = arith.constant 6 : index
    %c4_49 = arith.constant 4 : index
    %c0_50 = arith.constant 0 : index
    %41 = vector.load %arg2[%c0_46, %c0_47, %c6_48, %c4_49, %c0_50] : memref<1x1x20x28x128xbf16, #tpu.memory_space<vmem>>, vector<1x1x8x16x128xbf16>
    %42 = vector.shape_cast %41 : vector<1x1x8x16x128xbf16> to vector<8x16x128xbf16>
    %43 = vector.shape_cast %42 : vector<8x16x128xbf16> to vector<128x128xbf16>
    %c0_51 = arith.constant 0 : index
    %c1_52 = arith.constant 1 : index
    %c0_53 = arith.constant 0 : index
    %c0_54 = arith.constant 0 : index
    %c0_55 = arith.constant 0 : index
    %44 = vector.load %arg5[%c0_51, %c1_52, %c0_53, %c0_54, %c0_55] : memref<3x3x3x128x128xbf16, #tpu.memory_space<vmem>>, vector<1x1x1x128x128xbf16>
    %45 = vector.shape_cast %44 : vector<1x1x1x128x128xbf16> to vector<128x128xbf16>
    %cst_56 = arith.constant dense<0.000000e+00> : vector<128x128xf32>
    %46 = tpu.matmul %43, %45, %cst_56 {dimension_numbers = #tpu.dot_dimension_numbers<[1], [0], [0], [1], [0, 0, 1, 1], [], []>} : vector<128x128xbf16>, vector<128x128xbf16>, vector<128x128xf32> -> vector<128x128xf32>
    %47 = arith.addf %40, %46 : vector<128x128xf32>
    %c0_57 = arith.constant 0 : index
    %c0_58 = arith.constant 0 : index
    %c6_59 = arith.constant 6 : index
    %c6_60 = arith.constant 6 : index
    %c0_61 = arith.constant 0 : index
    %48 = vector.load %arg2[%c0_57, %c0_58, %c6_59, %c6_60, %c0_61] : memref<1x1x20x28x128xbf16, #tpu.memory_space<vmem>>, vector<1x1x8x16x128xbf16>
    %49 = vector.shape_cast %48 : vector<1x1x8x16x128xbf16> to vector<8x16x128xbf16>
    %50 = vector.shape_cast %49 : vector<8x16x128xbf16> to vector<128x128xbf16>
    %c0_62 = arith.constant 0 : index
    %c1_63 = arith.constant 1 : index
    %c1_64 = arith.constant 1 : index
    %c0_65 = arith.constant 0 : index
    %c0_66 = arith.constant 0 : index
    %51 = vector.load %arg5[%c0_62, %c1_63, %c1_64, %c0_65, %c0_66] : memref<3x3x3x128x128xbf16, #tpu.memory_space<vmem>>, vector<1x1x1x128x128xbf16>
    %52 = vector.shape_cast %51 : vector<1x1x1x128x128xbf16> to vector<128x128xbf16>
    %cst_67 = arith.constant dense<0.000000e+00> : vector<128x128xf32>
    %53 = tpu.matmul %50, %52, %cst_67 {dimension_numbers = #tpu.dot_dimension_numbers<[1], [0], [0], [1], [0, 0, 1, 1], [], []>} : vector<128x128xbf16>, vector<128x128xbf16>, vector<128x128xf32> -> vector<128x128xf32>
    %54 = arith.addf %47, %53 : vector<128x128xf32>
    %c0_68 = arith.constant 0 : index
    %c0_69 = arith.constant 0 : index
    %c6_70 = arith.constant 6 : index
    %c8_71 = arith.constant 8 : index
    %c0_72 = arith.constant 0 : index
    %55 = vector.load %arg2[%c0_68, %c0_69, %c6_70, %c8_71, %c0_72] : memref<1x1x20x28x128xbf16, #tpu.memory_space<vmem>>, vector<1x1x8x16x128xbf16>
    %56 = vector.shape_cast %55 : vector<1x1x8x16x128xbf16> to vector<8x16x128xbf16>
    %57 = vector.shape_cast %56 : vector<8x16x128xbf16> to vector<128x128xbf16>
    %c0_73 = arith.constant 0 : index
    %c1_74 = arith.constant 1 : index
    %c2_75 = arith.constant 2 : index
    %c0_76 = arith.constant 0 : index
    %c0_77 = arith.constant 0 : index
    %58 = vector.load %arg5[%c0_73, %c1_74, %c2_75, %c0_76, %c0_77] : memref<3x3x3x128x128xbf16, #tpu.memory_space<vmem>>, vector<1x1x1x128x128xbf16>
    %59 = vector.shape_cast %58 : vector<1x1x1x128x128xbf16> to vector<128x128xbf16>
    %cst_78 = arith.constant dense<0.000000e+00> : vector<128x128xf32>
    %60 = tpu.matmul %57, %59, %cst_78 {dimension_numbers = #tpu.dot_dimension_numbers<[1], [0], [0], [1], [0, 0, 1, 1], [], []>} : vector<128x128xbf16>, vector<128x128xbf16>, vector<128x128xf32> -> vector<128x128xf32>
    %61 = arith.addf %54, %60 : vector<128x128xf32>
    %c0_79 = arith.constant 0 : index
    %c0_80 = arith.constant 0 : index
    %c8_81 = arith.constant 8 : index
    %c4_82 = arith.constant 4 : index
    %c0_83 = arith.constant 0 : index
    %62 = vector.load %arg2[%c0_79, %c0_80, %c8_81, %c4_82, %c0_83] : memref<1x1x20x28x128xbf16, #tpu.memory_space<vmem>>, vector<1x1x8x16x128xbf16>
    %63 = vector.shape_cast %62 : vector<1x1x8x16x128xbf16> to vector<8x16x128xbf16>
    %64 = vector.shape_cast %63 : vector<8x16x128xbf16> to vector<128x128xbf16>
    %c0_84 = arith.constant 0 : index
    %c2_85 = arith.constant 2 : index
    %c0_86 = arith.constant 0 : index
    %c0_87 = arith.constant 0 : index
    %c0_88 = arith.constant 0 : index
    %65 = vector.load %arg5[%c0_84, %c2_85, %c0_86, %c0_87, %c0_88] : memref<3x3x3x128x128xbf16, #tpu.memory_space<vmem>>, vector<1x1x1x128x128xbf16>
    %66 = vector.shape_cast %65 : vector<1x1x1x128x128xbf16> to vector<128x128xbf16>
    %cst_89 = arith.constant dense<0.000000e+00> : vector<128x128xf32>
    %67 = tpu.matmul %64, %66, %cst_89 {dimension_numbers = #tpu.dot_dimension_numbers<[1], [0], [0], [1], [0, 0, 1, 1], [], []>} : vector<128x128xbf16>, vector<128x128xbf16>, vector<128x128xf32> -> vector<128x128xf32>
    %68 = arith.addf %61, %67 : vector<128x128xf32>
    %c0_90 = arith.constant 0 : index
    %c0_91 = arith.constant 0 : index
    %c8_92 = arith.constant 8 : index
    %c6_93 = arith.constant 6 : index
    %c0_94 = arith.constant 0 : index
    %69 = vector.load %arg2[%c0_90, %c0_91, %c8_92, %c6_93, %c0_94] : memref<1x1x20x28x128xbf16, #tpu.memory_space<vmem>>, vector<1x1x8x16x128xbf16>
    %70 = vector.shape_cast %69 : vector<1x1x8x16x128xbf16> to vector<8x16x128xbf16>
    %71 = vector.shape_cast %70 : vector<8x16x128xbf16> to vector<128x128xbf16>
    %c0_95 = arith.constant 0 : index
    %c2_96 = arith.constant 2 : index
    %c1_97 = arith.constant 1 : index
    %c0_98 = arith.constant 0 : index
    %c0_99 = arith.constant 0 : index
    %72 = vector.load %arg5[%c0_95, %c2_96, %c1_97, %c0_98, %c0_99] : memref<3x3x3x128x128xbf16, #tpu.memory_space<vmem>>, vector<1x1x1x128x128xbf16>
    %73 = vector.shape_cast %72 : vector<1x1x1x128x128xbf16> to vector<128x128xbf16>
    %cst_100 = arith.constant dense<0.000000e+00> : vector<128x128xf32>
    %74 = tpu.matmul %71, %73, %cst_100 {dimension_numbers = #tpu.dot_dimension_numbers<[1], [0], [0], [1], [0, 0, 1, 1], [], []>} : vector<128x128xbf16>, vector<128x128xbf16>, vector<128x128xf32> -> vector<128x128xf32>
    %75 = arith.addf %68, %74 : vector<128x128xf32>
    %c0_101 = arith.constant 0 : index
    %c0_102 = arith.constant 0 : index
    %c8_103 = arith.constant 8 : index
    %c8_104 = arith.constant 8 : index
    %c0_105 = arith.constant 0 : index
    %76 = vector.load %arg2[%c0_101, %c0_102, %c8_103, %c8_104, %c0_105] : memref<1x1x20x28x128xbf16, #tpu.memory_space<vmem>>, vector<1x1x8x16x128xbf16>
    %77 = vector.shape_cast %76 : vector<1x1x8x16x128xbf16> to vector<8x16x128xbf16>
    %78 = vector.shape_cast %77 : vector<8x16x128xbf16> to vector<128x128xbf16>
    %c0_106 = arith.constant 0 : index
    %c2_107 = arith.constant 2 : index
    %c2_108 = arith.constant 2 : index
    %c0_109 = arith.constant 0 : index
    %c0_110 = arith.constant 0 : index
    %79 = vector.load %arg5[%c0_106, %c2_107, %c2_108, %c0_109, %c0_110] : memref<3x3x3x128x128xbf16, #tpu.memory_space<vmem>>, vector<1x1x1x128x128xbf16>
    %80 = vector.shape_cast %79 : vector<1x1x1x128x128xbf16> to vector<128x128xbf16>
    %cst_111 = arith.constant dense<0.000000e+00> : vector<128x128xf32>
    %81 = tpu.matmul %78, %80, %cst_111 {dimension_numbers = #tpu.dot_dimension_numbers<[1], [0], [0], [1], [0, 0, 1, 1], [], []>} : vector<128x128xbf16>, vector<128x128xbf16>, vector<128x128xf32> -> vector<128x128xf32>
    %82 = arith.addf %75, %81 : vector<128x128xf32>
    %cst_112 = arith.constant 0.000000e+00 : f32
    %83 = vector.broadcast %cst_112 : f32 to vector<128x128xf32>
    %84 = arith.maximumf %82, %83 : vector<128x128xf32>
    %85 = arith.truncf %84 : vector<128x128xf32> to vector<128x128xbf16>
    %c1_113 = arith.constant 1 : index
    %c0_114 = arith.constant 0 : index
    %c0_115 = arith.constant 0 : index
    %86 = vector.load %arg7[%c1_113, %c0_114, %c0_115] : memref<4x128x128xbf16, #tpu.memory_space<vmem>>, vector<1x128x128xbf16>
    %87 = vector.shape_cast %86 : vector<1x128x128xbf16> to vector<128x128xbf16>
    %cst_116 = arith.constant dense<0.000000e+00> : vector<128x128xf32>
    %88 = tpu.matmul %85, %87, %cst_116 {dimension_numbers = #tpu.dot_dimension_numbers<[1], [0], [0], [1], [0, 0, 1, 1], [], []>} : vector<128x128xbf16>, vector<128x128xbf16>, vector<128x128xf32> -> vector<128x128xf32>
    %89 = arith.addf %17, %88 : vector<128x128xf32>
    %c0_117 = arith.constant 0 : index
    %c0_118 = arith.constant 0 : index
    %c2_119 = arith.constant 2 : index
    %c2_120 = arith.constant 2 : index
    %c0_121 = arith.constant 0 : index
    %90 = vector.load %arg2[%c0_117, %c0_118, %c2_119, %c2_120, %c0_121] : memref<1x1x20x28x128xbf16, #tpu.memory_space<vmem>>, vector<1x1x8x16x128xbf16>
    %91 = vector.shape_cast %90 : vector<1x1x8x16x128xbf16> to vector<8x16x128xbf16>
    %92 = vector.shape_cast %91 : vector<8x16x128xbf16> to vector<128x128xbf16>
    %c1_122 = arith.constant 1 : index
    %c0_123 = arith.constant 0 : index
    %c0_124 = arith.constant 0 : index
    %c0_125 = arith.constant 0 : index
    %c0_126 = arith.constant 0 : index
    %93 = vector.load %arg5[%c1_122, %c0_123, %c0_124, %c0_125, %c0_126] : memref<3x3x3x128x128xbf16, #tpu.memory_space<vmem>>, vector<1x1x1x128x128xbf16>
    %94 = vector.shape_cast %93 : vector<1x1x1x128x128xbf16> to vector<128x128xbf16>
    %cst_127 = arith.constant dense<0.000000e+00> : vector<128x128xf32>
    %95 = tpu.matmul %92, %94, %cst_127 {dimension_numbers = #tpu.dot_dimension_numbers<[1], [0], [0], [1], [0, 0, 1, 1], [], []>} : vector<128x128xbf16>, vector<128x128xbf16>, vector<128x128xf32> -> vector<128x128xf32>
    %c1_128 = arith.constant 1 : index
    %c0_129 = arith.constant 0 : index
    %96 = vector.load %arg6[%c1_128, %c0_129] : memref<3x128xf32, #tpu.memory_space<vmem>>, vector<1x128xf32>
    %97 = vector.broadcast %96 : vector<1x128xf32> to vector<128x128xf32>
    %98 = arith.addf %95, %97 : vector<128x128xf32>
    %c0_130 = arith.constant 0 : index
    %c0_131 = arith.constant 0 : index
    %c2_132 = arith.constant 2 : index
    %c6_133 = arith.constant 6 : index
    %c0_134 = arith.constant 0 : index
    %99 = vector.load %arg2[%c0_130, %c0_131, %c2_132, %c6_133, %c0_134] : memref<1x1x20x28x128xbf16, #tpu.memory_space<vmem>>, vector<1x1x8x16x128xbf16>
    %100 = vector.shape_cast %99 : vector<1x1x8x16x128xbf16> to vector<8x16x128xbf16>
    %101 = vector.shape_cast %100 : vector<8x16x128xbf16> to vector<128x128xbf16>
    %c1_135 = arith.constant 1 : index
    %c0_136 = arith.constant 0 : index
    %c1_137 = arith.constant 1 : index
    %c0_138 = arith.constant 0 : index
    %c0_139 = arith.constant 0 : index
    %102 = vector.load %arg5[%c1_135, %c0_136, %c1_137, %c0_138, %c0_139] : memref<3x3x3x128x128xbf16, #tpu.memory_space<vmem>>, vector<1x1x1x128x128xbf16>
    %103 = vector.shape_cast %102 : vector<1x1x1x128x128xbf16> to vector<128x128xbf16>
    %cst_140 = arith.constant dense<0.000000e+00> : vector<128x128xf32>
    %104 = tpu.matmul %101, %103, %cst_140 {dimension_numbers = #tpu.dot_dimension_numbers<[1], [0], [0], [1], [0, 0, 1, 1], [], []>} : vector<128x128xbf16>, vector<128x128xbf16>, vector<128x128xf32> -> vector<128x128xf32>
    %105 = arith.addf %98, %104 : vector<128x128xf32>
    %c0_141 = arith.constant 0 : index
    %c0_142 = arith.constant 0 : index
    %c2_143 = arith.constant 2 : index
    %c10 = arith.constant 10 : index
    %c0_144 = arith.constant 0 : index
    %106 = vector.load %arg2[%c0_141, %c0_142, %c2_143, %c10, %c0_144] : memref<1x1x20x28x128xbf16, #tpu.memory_space<vmem>>, vector<1x1x8x16x128xbf16>
    %107 = vector.shape_cast %106 : vector<1x1x8x16x128xbf16> to vector<8x16x128xbf16>
    %108 = vector.shape_cast %107 : vector<8x16x128xbf16> to vector<128x128xbf16>
    %c1_145 = arith.constant 1 : index
    %c0_146 = arith.constant 0 : index
    %c2_147 = arith.constant 2 : index
    %c0_148 = arith.constant 0 : index
    %c0_149 = arith.constant 0 : index
    %109 = vector.load %arg5[%c1_145, %c0_146, %c2_147, %c0_148, %c0_149] : memref<3x3x3x128x128xbf16, #tpu.memory_space<vmem>>, vector<1x1x1x128x128xbf16>
    %110 = vector.shape_cast %109 : vector<1x1x1x128x128xbf16> to vector<128x128xbf16>
    %cst_150 = arith.constant dense<0.000000e+00> : vector<128x128xf32>
    %111 = tpu.matmul %108, %110, %cst_150 {dimension_numbers = #tpu.dot_dimension_numbers<[1], [0], [0], [1], [0, 0, 1, 1], [], []>} : vector<128x128xbf16>, vector<128x128xbf16>, vector<128x128xf32> -> vector<128x128xf32>
    %112 = arith.addf %105, %111 : vector<128x128xf32>
    %c0_151 = arith.constant 0 : index
    %c0_152 = arith.constant 0 : index
    %c6_153 = arith.constant 6 : index
    %c2_154 = arith.constant 2 : index
    %c0_155 = arith.constant 0 : index
    %113 = vector.load %arg2[%c0_151, %c0_152, %c6_153, %c2_154, %c0_155] : memref<1x1x20x28x128xbf16, #tpu.memory_space<vmem>>, vector<1x1x8x16x128xbf16>
    %114 = vector.shape_cast %113 : vector<1x1x8x16x128xbf16> to vector<8x16x128xbf16>
    %115 = vector.shape_cast %114 : vector<8x16x128xbf16> to vector<128x128xbf16>
    %c1_156 = arith.constant 1 : index
    %c1_157 = arith.constant 1 : index
    %c0_158 = arith.constant 0 : index
    %c0_159 = arith.constant 0 : index
    %c0_160 = arith.constant 0 : index
    %116 = vector.load %arg5[%c1_156, %c1_157, %c0_158, %c0_159, %c0_160] : memref<3x3x3x128x128xbf16, #tpu.memory_space<vmem>>, vector<1x1x1x128x128xbf16>
    %117 = vector.shape_cast %116 : vector<1x1x1x128x128xbf16> to vector<128x128xbf16>
    %cst_161 = arith.constant dense<0.000000e+00> : vector<128x128xf32>
    %118 = tpu.matmul %115, %117, %cst_161 {dimension_numbers = #tpu.dot_dimension_numbers<[1], [0], [0], [1], [0, 0, 1, 1], [], []>} : vector<128x128xbf16>, vector<128x128xbf16>, vector<128x128xf32> -> vector<128x128xf32>
    %119 = arith.addf %112, %118 : vector<128x128xf32>
    %c0_162 = arith.constant 0 : index
    %c0_163 = arith.constant 0 : index
    %c6_164 = arith.constant 6 : index
    %c6_165 = arith.constant 6 : index
    %c0_166 = arith.constant 0 : index
    %120 = vector.load %arg2[%c0_162, %c0_163, %c6_164, %c6_165, %c0_166] : memref<1x1x20x28x128xbf16, #tpu.memory_space<vmem>>, vector<1x1x8x16x128xbf16>
    %121 = vector.shape_cast %120 : vector<1x1x8x16x128xbf16> to vector<8x16x128xbf16>
    %122 = vector.shape_cast %121 : vector<8x16x128xbf16> to vector<128x128xbf16>
    %c1_167 = arith.constant 1 : index
    %c1_168 = arith.constant 1 : index
    %c1_169 = arith.constant 1 : index
    %c0_170 = arith.constant 0 : index
    %c0_171 = arith.constant 0 : index
    %123 = vector.load %arg5[%c1_167, %c1_168, %c1_169, %c0_170, %c0_171] : memref<3x3x3x128x128xbf16, #tpu.memory_space<vmem>>, vector<1x1x1x128x128xbf16>
    %124 = vector.shape_cast %123 : vector<1x1x1x128x128xbf16> to vector<128x128xbf16>
    %cst_172 = arith.constant dense<0.000000e+00> : vector<128x128xf32>
    %125 = tpu.matmul %122, %124, %cst_172 {dimension_numbers = #tpu.dot_dimension_numbers<[1], [0], [0], [1], [0, 0, 1, 1], [], []>} : vector<128x128xbf16>, vector<128x128xbf16>, vector<128x128xf32> -> vector<128x128xf32>
    %126 = arith.addf %119, %125 : vector<128x128xf32>
    %c0_173 = arith.constant 0 : index
    %c0_174 = arith.constant 0 : index
    %c6_175 = arith.constant 6 : index
    %c10_176 = arith.constant 10 : index
    %c0_177 = arith.constant 0 : index
    %127 = vector.load %arg2[%c0_173, %c0_174, %c6_175, %c10_176, %c0_177] : memref<1x1x20x28x128xbf16, #tpu.memory_space<vmem>>, vector<1x1x8x16x128xbf16>
    %128 = vector.shape_cast %127 : vector<1x1x8x16x128xbf16> to vector<8x16x128xbf16>
    %129 = vector.shape_cast %128 : vector<8x16x128xbf16> to vector<128x128xbf16>
    %c1_178 = arith.constant 1 : index
    %c1_179 = arith.constant 1 : index
    %c2_180 = arith.constant 2 : index
    %c0_181 = arith.constant 0 : index
    %c0_182 = arith.constant 0 : index
    %130 = vector.load %arg5[%c1_178, %c1_179, %c2_180, %c0_181, %c0_182] : memref<3x3x3x128x128xbf16, #tpu.memory_space<vmem>>, vector<1x1x1x128x128xbf16>
    %131 = vector.shape_cast %130 : vector<1x1x1x128x128xbf16> to vector<128x128xbf16>
    %cst_183 = arith.constant dense<0.000000e+00> : vector<128x128xf32>
    %132 = tpu.matmul %129, %131, %cst_183 {dimension_numbers = #tpu.dot_dimension_numbers<[1], [0], [0], [1], [0, 0, 1, 1], [], []>} : vector<128x128xbf16>, vector<128x128xbf16>, vector<128x128xf32> -> vector<128x128xf32>
    %133 = arith.addf %126, %132 : vector<128x128xf32>
    %c0_184 = arith.constant 0 : index
    %c0_185 = arith.constant 0 : index
    %c10_186 = arith.constant 10 : index
    %c2_187 = arith.constant 2 : index
    %c0_188 = arith.constant 0 : index
    %134 = vector.load %arg2[%c0_184, %c0_185, %c10_186, %c2_187, %c0_188] : memref<1x1x20x28x128xbf16, #tpu.memory_space<vmem>>, vector<1x1x8x16x128xbf16>
    %135 = vector.shape_cast %134 : vector<1x1x8x16x128xbf16> to vector<8x16x128xbf16>
    %136 = vector.shape_cast %135 : vector<8x16x128xbf16> to vector<128x128xbf16>
    %c1_189 = arith.constant 1 : index
    %c2_190 = arith.constant 2 : index
    %c0_191 = arith.constant 0 : index
    %c0_192 = arith.constant 0 : index
    %c0_193 = arith.constant 0 : index
    %137 = vector.load %arg5[%c1_189, %c2_190, %c0_191, %c0_192, %c0_193] : memref<3x3x3x128x128xbf16, #tpu.memory_space<vmem>>, vector<1x1x1x128x128xbf16>
    %138 = vector.shape_cast %137 : vector<1x1x1x128x128xbf16> to vector<128x128xbf16>
    %cst_194 = arith.constant dense<0.000000e+00> : vector<128x128xf32>
    %139 = tpu.matmul %136, %138, %cst_194 {dimension_numbers = #tpu.dot_dimension_numbers<[1], [0], [0], [1], [0, 0, 1, 1], [], []>} : vector<128x128xbf16>, vector<128x128xbf16>, vector<128x128xf32> -> vector<128x128xf32>
    %140 = arith.addf %133, %139 : vector<128x128xf32>
    %c0_195 = arith.constant 0 : index
    %c0_196 = arith.constant 0 : index
    %c10_197 = arith.constant 10 : index
    %c6_198 = arith.constant 6 : index
    %c0_199 = arith.constant 0 : index
    %141 = vector.load %arg2[%c0_195, %c0_196, %c10_197, %c6_198, %c0_199] : memref<1x1x20x28x128xbf16, #tpu.memory_space<vmem>>, vector<1x1x8x16x128xbf16>
    %142 = vector.shape_cast %141 : vector<1x1x8x16x128xbf16> to vector<8x16x128xbf16>
    %143 = vector.shape_cast %142 : vector<8x16x128xbf16> to vector<128x128xbf16>
    %c1_200 = arith.constant 1 : index
    %c2_201 = arith.constant 2 : index
    %c1_202 = arith.constant 1 : index
    %c0_203 = arith.constant 0 : index
    %c0_204 = arith.constant 0 : index
    %144 = vector.load %arg5[%c1_200, %c2_201, %c1_202, %c0_203, %c0_204] : memref<3x3x3x128x128xbf16, #tpu.memory_space<vmem>>, vector<1x1x1x128x128xbf16>
    %145 = vector.shape_cast %144 : vector<1x1x1x128x128xbf16> to vector<128x128xbf16>
    %cst_205 = arith.constant dense<0.000000e+00> : vector<128x128xf32>
    %146 = tpu.matmul %143, %145, %cst_205 {dimension_numbers = #tpu.dot_dimension_numbers<[1], [0], [0], [1], [0, 0, 1, 1], [], []>} : vector<128x128xbf16>, vector<128x128xbf16>, vector<128x128xf32> -> vector<128x128xf32>
    %147 = arith.addf %140, %146 : vector<128x128xf32>
    %c0_206 = arith.constant 0 : index
    %c0_207 = arith.constant 0 : index
    %c10_208 = arith.constant 10 : index
    %c10_209 = arith.constant 10 : index
    %c0_210 = arith.constant 0 : index
    %148 = vector.load %arg2[%c0_206, %c0_207, %c10_208, %c10_209, %c0_210] : memref<1x1x20x28x128xbf16, #tpu.memory_space<vmem>>, vector<1x1x8x16x128xbf16>
    %149 = vector.shape_cast %148 : vector<1x1x8x16x128xbf16> to vector<8x16x128xbf16>
    %150 = vector.shape_cast %149 : vector<8x16x128xbf16> to vector<128x128xbf16>
    %c1_211 = arith.constant 1 : index
    %c2_212 = arith.constant 2 : index
    %c2_213 = arith.constant 2 : index
    %c0_214 = arith.constant 0 : index
    %c0_215 = arith.constant 0 : index
    %151 = vector.load %arg5[%c1_211, %c2_212, %c2_213, %c0_214, %c0_215] : memref<3x3x3x128x128xbf16, #tpu.memory_space<vmem>>, vector<1x1x1x128x128xbf16>
    %152 = vector.shape_cast %151 : vector<1x1x1x128x128xbf16> to vector<128x128xbf16>
    %cst_216 = arith.constant dense<0.000000e+00> : vector<128x128xf32>
    %153 = tpu.matmul %150, %152, %cst_216 {dimension_numbers = #tpu.dot_dimension_numbers<[1], [0], [0], [1], [0, 0, 1, 1], [], []>} : vector<128x128xbf16>, vector<128x128xbf16>, vector<128x128xf32> -> vector<128x128xf32>
    %154 = arith.addf %147, %153 : vector<128x128xf32>
    %cst_217 = arith.constant 0.000000e+00 : f32
    %155 = vector.broadcast %cst_217 : f32 to vector<128x128xf32>
    %156 = arith.maximumf %154, %155 : vector<128x128xf32>
    %157 = arith.truncf %156 : vector<128x128xf32> to vector<128x128xbf16>
    %c2_218 = arith.constant 2 : index
    %c0_219 = arith.constant 0 : index
    %c0_220 = arith.constant 0 : index
    %158 = vector.load %arg7[%c2_218, %c0_219, %c0_220] : memref<4x128x128xbf16, #tpu.memory_space<vmem>>, vector<1x128x128xbf16>
    %159 = vector.shape_cast %158 : vector<1x128x128xbf16> to vector<128x128xbf16>
    %cst_221 = arith.constant dense<0.000000e+00> : vector<128x128xf32>
    %160 = tpu.matmul %157, %159, %cst_221 {dimension_numbers = #tpu.dot_dimension_numbers<[1], [0], [0], [1], [0, 0, 1, 1], [], []>} : vector<128x128xbf16>, vector<128x128xbf16>, vector<128x128xf32> -> vector<128x128xf32>
    %161 = arith.addf %89, %160 : vector<128x128xf32>
    %c0_222 = arith.constant 0 : index
    %c0_223 = arith.constant 0 : index
    %c0_224 = arith.constant 0 : index
    %c0_225 = arith.constant 0 : index
    %c0_226 = arith.constant 0 : index
    %162 = vector.load %arg2[%c0_222, %c0_223, %c0_224, %c0_225, %c0_226] : memref<1x1x20x28x128xbf16, #tpu.memory_space<vmem>>, vector<1x1x8x16x128xbf16>
    %163 = vector.shape_cast %162 : vector<1x1x8x16x128xbf16> to vector<8x16x128xbf16>
    %164 = vector.shape_cast %163 : vector<8x16x128xbf16> to vector<128x128xbf16>
    %c2_227 = arith.constant 2 : index
    %c0_228 = arith.constant 0 : index
    %c0_229 = arith.constant 0 : index
    %c0_230 = arith.constant 0 : index
    %c0_231 = arith.constant 0 : index
    %165 = vector.load %arg5[%c2_227, %c0_228, %c0_229, %c0_230, %c0_231] : memref<3x3x3x128x128xbf16, #tpu.memory_space<vmem>>, vector<1x1x1x128x128xbf16>
    %166 = vector.shape_cast %165 : vector<1x1x1x128x128xbf16> to vector<128x128xbf16>
    %cst_232 = arith.constant dense<0.000000e+00> : vector<128x128xf32>
    %167 = tpu.matmul %164, %166, %cst_232 {dimension_numbers = #tpu.dot_dimension_numbers<[1], [0], [0], [1], [0, 0, 1, 1], [], []>} : vector<128x128xbf16>, vector<128x128xbf16>, vector<128x128xf32> -> vector<128x128xf32>
    %c2_233 = arith.constant 2 : index
    %c0_234 = arith.constant 0 : index
    %168 = vector.load %arg6[%c2_233, %c0_234] : memref<3x128xf32, #tpu.memory_space<vmem>>, vector<1x128xf32>
    %169 = vector.broadcast %168 : vector<1x128xf32> to vector<128x128xf32>
    %170 = arith.addf %167, %169 : vector<128x128xf32>
    %c0_235 = arith.constant 0 : index
    %c0_236 = arith.constant 0 : index
    %c0_237 = arith.constant 0 : index
    %c6_238 = arith.constant 6 : index
    %c0_239 = arith.constant 0 : index
    %171 = vector.load %arg2[%c0_235, %c0_236, %c0_237, %c6_238, %c0_239] : memref<1x1x20x28x128xbf16, #tpu.memory_space<vmem>>, vector<1x1x8x16x128xbf16>
    %172 = vector.shape_cast %171 : vector<1x1x8x16x128xbf16> to vector<8x16x128xbf16>
    %173 = vector.shape_cast %172 : vector<8x16x128xbf16> to vector<128x128xbf16>
    %c2_240 = arith.constant 2 : index
    %c0_241 = arith.constant 0 : index
    %c1_242 = arith.constant 1 : index
    %c0_243 = arith.constant 0 : index
    %c0_244 = arith.constant 0 : index
    %174 = vector.load %arg5[%c2_240, %c0_241, %c1_242, %c0_243, %c0_244] : memref<3x3x3x128x128xbf16, #tpu.memory_space<vmem>>, vector<1x1x1x128x128xbf16>
    %175 = vector.shape_cast %174 : vector<1x1x1x128x128xbf16> to vector<128x128xbf16>
    %cst_245 = arith.constant dense<0.000000e+00> : vector<128x128xf32>
    %176 = tpu.matmul %173, %175, %cst_245 {dimension_numbers = #tpu.dot_dimension_numbers<[1], [0], [0], [1], [0, 0, 1, 1], [], []>} : vector<128x128xbf16>, vector<128x128xbf16>, vector<128x128xf32> -> vector<128x128xf32>
    %177 = arith.addf %170, %176 : vector<128x128xf32>
    %c0_246 = arith.constant 0 : index
    %c0_247 = arith.constant 0 : index
    %c0_248 = arith.constant 0 : index
    %c12 = arith.constant 12 : index
    %c0_249 = arith.constant 0 : index
    %178 = vector.load %arg2[%c0_246, %c0_247, %c0_248, %c12, %c0_249] : memref<1x1x20x28x128xbf16, #tpu.memory_space<vmem>>, vector<1x1x8x16x128xbf16>
    %179 = vector.shape_cast %178 : vector<1x1x8x16x128xbf16> to vector<8x16x128xbf16>
    %180 = vector.shape_cast %179 : vector<8x16x128xbf16> to vector<128x128xbf16>
    %c2_250 = arith.constant 2 : index
    %c0_251 = arith.constant 0 : index
    %c2_252 = arith.constant 2 : index
    %c0_253 = arith.constant 0 : index
    %c0_254 = arith.constant 0 : index
    %181 = vector.load %arg5[%c2_250, %c0_251, %c2_252, %c0_253, %c0_254] : memref<3x3x3x128x128xbf16, #tpu.memory_space<vmem>>, vector<1x1x1x128x128xbf16>
    %182 = vector.shape_cast %181 : vector<1x1x1x128x128xbf16> to vector<128x128xbf16>
    %cst_255 = arith.constant dense<0.000000e+00> : vector<128x128xf32>
    %183 = tpu.matmul %180, %182, %cst_255 {dimension_numbers = #tpu.dot_dimension_numbers<[1], [0], [0], [1], [0, 0, 1, 1], [], []>} : vector<128x128xbf16>, vector<128x128xbf16>, vector<128x128xf32> -> vector<128x128xf32>
    %184 = arith.addf %177, %183 : vector<128x128xf32>
    %c0_256 = arith.constant 0 : index
    %c0_257 = arith.constant 0 : index
    %c6_258 = arith.constant 6 : index
    %c0_259 = arith.constant 0 : index
    %c0_260 = arith.constant 0 : index
    %185 = vector.load %arg2[%c0_256, %c0_257, %c6_258, %c0_259, %c0_260] : memref<1x1x20x28x128xbf16, #tpu.memory_space<vmem>>, vector<1x1x8x16x128xbf16>
    %186 = vector.shape_cast %185 : vector<1x1x8x16x128xbf16> to vector<8x16x128xbf16>
    %187 = vector.shape_cast %186 : vector<8x16x128xbf16> to vector<128x128xbf16>
    %c2_261 = arith.constant 2 : index
    %c1_262 = arith.constant 1 : index
    %c0_263 = arith.constant 0 : index
    %c0_264 = arith.constant 0 : index
    %c0_265 = arith.constant 0 : index
    %188 = vector.load %arg5[%c2_261, %c1_262, %c0_263, %c0_264, %c0_265] : memref<3x3x3x128x128xbf16, #tpu.memory_space<vmem>>, vector<1x1x1x128x128xbf16>
    %189 = vector.shape_cast %188 : vector<1x1x1x128x128xbf16> to vector<128x128xbf16>
    %cst_266 = arith.constant dense<0.000000e+00> : vector<128x128xf32>
    %190 = tpu.matmul %187, %189, %cst_266 {dimension_numbers = #tpu.dot_dimension_numbers<[1], [0], [0], [1], [0, 0, 1, 1], [], []>} : vector<128x128xbf16>, vector<128x128xbf16>, vector<128x128xf32> -> vector<128x128xf32>
    %191 = arith.addf %184, %190 : vector<128x128xf32>
    %c0_267 = arith.constant 0 : index
    %c0_268 = arith.constant 0 : index
    %c6_269 = arith.constant 6 : index
    %c6_270 = arith.constant 6 : index
    %c0_271 = arith.constant 0 : index
    %192 = vector.load %arg2[%c0_267, %c0_268, %c6_269, %c6_270, %c0_271] : memref<1x1x20x28x128xbf16, #tpu.memory_space<vmem>>, vector<1x1x8x16x128xbf16>
    %193 = vector.shape_cast %192 : vector<1x1x8x16x128xbf16> to vector<8x16x128xbf16>
    %194 = vector.shape_cast %193 : vector<8x16x128xbf16> to vector<128x128xbf16>
    %c2_272 = arith.constant 2 : index
    %c1_273 = arith.constant 1 : index
    %c1_274 = arith.constant 1 : index
    %c0_275 = arith.constant 0 : index
    %c0_276 = arith.constant 0 : index
    %195 = vector.load %arg5[%c2_272, %c1_273, %c1_274, %c0_275, %c0_276] : memref<3x3x3x128x128xbf16, #tpu.memory_space<vmem>>, vector<1x1x1x128x128xbf16>
    %196 = vector.shape_cast %195 : vector<1x1x1x128x128xbf16> to vector<128x128xbf16>
    %cst_277 = arith.constant dense<0.000000e+00> : vector<128x128xf32>
    %197 = tpu.matmul %194, %196, %cst_277 {dimension_numbers = #tpu.dot_dimension_numbers<[1], [0], [0], [1], [0, 0, 1, 1], [], []>} : vector<128x128xbf16>, vector<128x128xbf16>, vector<128x128xf32> -> vector<128x128xf32>
    %198 = arith.addf %191, %197 : vector<128x128xf32>
    %c0_278 = arith.constant 0 : index
    %c0_279 = arith.constant 0 : index
    %c6_280 = arith.constant 6 : index
    %c12_281 = arith.constant 12 : index
    %c0_282 = arith.constant 0 : index
    %199 = vector.load %arg2[%c0_278, %c0_279, %c6_280, %c12_281, %c0_282] : memref<1x1x20x28x128xbf16, #tpu.memory_space<vmem>>, vector<1x1x8x16x128xbf16>
    %200 = vector.shape_cast %199 : vector<1x1x8x16x128xbf16> to vector<8x16x128xbf16>
    %201 = vector.shape_cast %200 : vector<8x16x128xbf16> to vector<128x128xbf16>
    %c2_283 = arith.constant 2 : index
    %c1_284 = arith.constant 1 : index
    %c2_285 = arith.constant 2 : index
    %c0_286 = arith.constant 0 : index
    %c0_287 = arith.constant 0 : index
    %202 = vector.load %arg5[%c2_283, %c1_284, %c2_285, %c0_286, %c0_287] : memref<3x3x3x128x128xbf16, #tpu.memory_space<vmem>>, vector<1x1x1x128x128xbf16>
    %203 = vector.shape_cast %202 : vector<1x1x1x128x128xbf16> to vector<128x128xbf16>
    %cst_288 = arith.constant dense<0.000000e+00> : vector<128x128xf32>
    %204 = tpu.matmul %201, %203, %cst_288 {dimension_numbers = #tpu.dot_dimension_numbers<[1], [0], [0], [1], [0, 0, 1, 1], [], []>} : vector<128x128xbf16>, vector<128x128xbf16>, vector<128x128xf32> -> vector<128x128xf32>
    %205 = arith.addf %198, %204 : vector<128x128xf32>
    %c0_289 = arith.constant 0 : index
    %c0_290 = arith.constant 0 : index
    %c12_291 = arith.constant 12 : index
    %c0_292 = arith.constant 0 : index
    %c0_293 = arith.constant 0 : index
    %206 = vector.load %arg2[%c0_289, %c0_290, %c12_291, %c0_292, %c0_293] : memref<1x1x20x28x128xbf16, #tpu.memory_space<vmem>>, vector<1x1x8x16x128xbf16>
    %207 = vector.shape_cast %206 : vector<1x1x8x16x128xbf16> to vector<8x16x128xbf16>
    %208 = vector.shape_cast %207 : vector<8x16x128xbf16> to vector<128x128xbf16>
    %c2_294 = arith.constant 2 : index
    %c2_295 = arith.constant 2 : index
    %c0_296 = arith.constant 0 : index
    %c0_297 = arith.constant 0 : index
    %c0_298 = arith.constant 0 : index
    %209 = vector.load %arg5[%c2_294, %c2_295, %c0_296, %c0_297, %c0_298] : memref<3x3x3x128x128xbf16, #tpu.memory_space<vmem>>, vector<1x1x1x128x128xbf16>
    %210 = vector.shape_cast %209 : vector<1x1x1x128x128xbf16> to vector<128x128xbf16>
    %cst_299 = arith.constant dense<0.000000e+00> : vector<128x128xf32>
    %211 = tpu.matmul %208, %210, %cst_299 {dimension_numbers = #tpu.dot_dimension_numbers<[1], [0], [0], [1], [0, 0, 1, 1], [], []>} : vector<128x128xbf16>, vector<128x128xbf16>, vector<128x128xf32> -> vector<128x128xf32>
    %212 = arith.addf %205, %211 : vector<128x128xf32>
    %c0_300 = arith.constant 0 : index
    %c0_301 = arith.constant 0 : index
    %c12_302 = arith.constant 12 : index
    %c6_303 = arith.constant 6 : index
    %c0_304 = arith.constant 0 : index
    %213 = vector.load %arg2[%c0_300, %c0_301, %c12_302, %c6_303, %c0_304] : memref<1x1x20x28x128xbf16, #tpu.memory_space<vmem>>, vector<1x1x8x16x128xbf16>
    %214 = vector.shape_cast %213 : vector<1x1x8x16x128xbf16> to vector<8x16x128xbf16>
    %215 = vector.shape_cast %214 : vector<8x16x128xbf16> to vector<128x128xbf16>
    %c2_305 = arith.constant 2 : index
    %c2_306 = arith.constant 2 : index
    %c1_307 = arith.constant 1 : index
    %c0_308 = arith.constant 0 : index
    %c0_309 = arith.constant 0 : index
    %216 = vector.load %arg5[%c2_305, %c2_306, %c1_307, %c0_308, %c0_309] : memref<3x3x3x128x128xbf16, #tpu.memory_space<vmem>>, vector<1x1x1x128x128xbf16>
    %217 = vector.shape_cast %216 : vector<1x1x1x128x128xbf16> to vector<128x128xbf16>
    %cst_310 = arith.constant dense<0.000000e+00> : vector<128x128xf32>
    %218 = tpu.matmul %215, %217, %cst_310 {dimension_numbers = #tpu.dot_dimension_numbers<[1], [0], [0], [1], [0, 0, 1, 1], [], []>} : vector<128x128xbf16>, vector<128x128xbf16>, vector<128x128xf32> -> vector<128x128xf32>
    %219 = arith.addf %212, %218 : vector<128x128xf32>
    %c0_311 = arith.constant 0 : index
    %c0_312 = arith.constant 0 : index
    %c12_313 = arith.constant 12 : index
    %c12_314 = arith.constant 12 : index
    %c0_315 = arith.constant 0 : index
    %220 = vector.load %arg2[%c0_311, %c0_312, %c12_313, %c12_314, %c0_315] : memref<1x1x20x28x128xbf16, #tpu.memory_space<vmem>>, vector<1x1x8x16x128xbf16>
    %221 = vector.shape_cast %220 : vector<1x1x8x16x128xbf16> to vector<8x16x128xbf16>
    %222 = vector.shape_cast %221 : vector<8x16x128xbf16> to vector<128x128xbf16>
    %c2_316 = arith.constant 2 : index
    %c2_317 = arith.constant 2 : index
    %c2_318 = arith.constant 2 : index
    %c0_319 = arith.constant 0 : index
    %c0_320 = arith.constant 0 : index
    %223 = vector.load %arg5[%c2_316, %c2_317, %c2_318, %c0_319, %c0_320] : memref<3x3x3x128x128xbf16, #tpu.memory_space<vmem>>, vector<1x1x1x128x128xbf16>
    %224 = vector.shape_cast %223 : vector<1x1x1x128x128xbf16> to vector<128x128xbf16>
    %cst_321 = arith.constant dense<0.000000e+00> : vector<128x128xf32>
    %225 = tpu.matmul %222, %224, %cst_321 {dimension_numbers = #tpu.dot_dimension_numbers<[1], [0], [0], [1], [0, 0, 1, 1], [], []>} : vector<128x128xbf16>, vector<128x128xbf16>, vector<128x128xf32> -> vector<128x128xf32>
    %226 = arith.addf %219, %225 : vector<128x128xf32>
    %cst_322 = arith.constant 0.000000e+00 : f32
    %227 = vector.broadcast %cst_322 : f32 to vector<128x128xf32>
    %228 = arith.maximumf %226, %227 : vector<128x128xf32>
    %229 = arith.truncf %228 : vector<128x128xf32> to vector<128x128xbf16>
    %c3 = arith.constant 3 : index
    %c0_323 = arith.constant 0 : index
    %c0_324 = arith.constant 0 : index
    %230 = vector.load %arg7[%c3, %c0_323, %c0_324] : memref<4x128x128xbf16, #tpu.memory_space<vmem>>, vector<1x128x128xbf16>
    %231 = vector.shape_cast %230 : vector<1x128x128xbf16> to vector<128x128xbf16>
    %cst_325 = arith.constant dense<0.000000e+00> : vector<128x128xf32>
    %232 = tpu.matmul %229, %231, %cst_325 {dimension_numbers = #tpu.dot_dimension_numbers<[1], [0], [0], [1], [0, 0, 1, 1], [], []>} : vector<128x128xbf16>, vector<128x128xbf16>, vector<128x128xf32> -> vector<128x128xf32>
    %233 = arith.addf %161, %232 : vector<128x128xf32>
    %cst_326 = arith.constant 0.000000e+00 : f32
    %234 = vector.broadcast %cst_326 : f32 to vector<128x128xf32>
    %235 = arith.maximumf %233, %234 : vector<128x128xf32>
    %236 = vector.shape_cast %235 : vector<128x128xf32> to vector<1x8x16x128xf32>
    %c0_327 = arith.constant 0 : index
    %c0_328 = arith.constant 0 : index
    %c0_329 = arith.constant 0 : index
    %c0_330 = arith.constant 0 : index
    %237 = vector.load %arg9[%c0_327, %c0_328, %c0_329, %c0_330] : memref<1x8x16x128xf32, #tpu.memory_space<vmem>>, vector<1x8x16x128xf32>
    tpu.vector_store %arg9[%c0_327, %c0_328, %c0_329, %c0_330], %236 {strides = array<i32>} : memref<1x8x16x128xf32, #tpu.memory_space<vmem>>, vector<1x8x16x128xf32>,
    return
  }
  func.func @transform_0(%arg0: i32, %arg1: i32) -> (i32, i32, i32, i32, i32) {
    %c0_i32 = arith.constant 0 : i32
    %c0_i32_0 = arith.constant 0 : i32
    %c0_i32_1 = arith.constant 0 : i32
    %c0_i32_2 = arith.constant 0 : i32
    return %arg0, %arg1, %c0_i32, %c0_i32_0, %c0_i32_1 : i32, i32, i32, i32, i32
  }
  func.func @transform_1(%arg0: i32, %arg1: i32) -> (i32, i32) {
    %c0_i32 = arith.constant 0 : i32
    %c0_i32_0 = arith.constant 0 : i32
    %c0_i32_1 = arith.constant 0 : i32
    return %c0_i32, %c0_i32_0 : i32, i32
  }
  func.func @transform_2(%arg0: i32, %arg1: i32) -> (i32, i32) {
    %c0_i32 = arith.constant 0 : i32
    %c0_i32_0 = arith.constant 0 : i32
    %c0_i32_1 = arith.constant 0 : i32
    return %c0_i32, %c0_i32_0 : i32, i32
  }
  func.func @transform_3(%arg0: i32, %arg1: i32) -> (i32, i32, i32, i32, i32) {
    %c0_i32 = arith.constant 0 : i32
    %c0_i32_0 = arith.constant 0 : i32
    %c0_i32_1 = arith.constant 0 : i32
    %c0_i32_2 = arith.constant 0 : i32
    %c0_i32_3 = arith.constant 0 : i32
    %c0_i32_4 = arith.constant 0 : i32
    return %c0_i32, %c0_i32_0, %c0_i32_1, %c0_i32_2, %c0_i32_3 : i32, i32, i32, i32, i32
  }
  func.func @transform_4(%arg0: i32, %arg1: i32) -> (i32, i32) {
    %c0_i32 = arith.constant 0 : i32
    %c0_i32_0 = arith.constant 0 : i32
    %c0_i32_1 = arith.constant 0 : i32
    return %c0_i32, %c0_i32_0 : i32, i32
  }
  func.func @transform_5(%arg0: i32, %arg1: i32) -> (i32, i32, i32) {
    %c0_i32 = arith.constant 0 : i32
    %c0_i32_0 = arith.constant 0 : i32
    %c0_i32_1 = arith.constant 0 : i32
    %c0_i32_2 = arith.constant 0 : i32
    return %c0_i32, %c0_i32_0, %c0_i32_1 : i32, i32, i32
  }
  func.func @transform_6(%arg0: i32, %arg1: i32) -> (i32, i32, i32) {
    %c0_i32 = arith.constant 0 : i32
    %c0_i32_0 = arith.constant 0 : i32
    %c0_i32_1 = arith.constant 0 : i32
    return %arg0, %c0_i32, %c0_i32_0 : i32, i32, i32
  }
  func.func @transform_7(%arg0: i32, %arg1: i32) -> (i32, i32, i32, i32) {
    %c0_i32 = arith.constant 0 : i32
    %c0_i32_0 = arith.constant 0 : i32
    %c0_i32_1 = arith.constant 0 : i32
    return %arg0, %arg1, %c0_i32, %c0_i32_0 : i32, i32, i32, i32
  }
}

</mosaic_0001>

<llo_original>
// kernel: forward.1
$region0: #{forward.1}
  #allocation0 [shape = 'u32[]', space=smem, size = 0x4, offset = 0x4, fixed_abs, tag = 'smem constant byte address 0x4 - core index']
  #allocation1 [shape = 'u32[144,128]{1,0:T(1,128)}', space=vmem, size = 0x12000, scoped, tag = 'internal scratch']
  %s0 = inlined_call_operand.vmem [shape: bf16[2,2,20,28,128], index: 0, kind: input, shape index: {}]
  %s1 = inlined_call_operand.vmem [shape: bf16[128,128], index: 1, kind: input, shape index: {}]
  %s2 = inlined_call_operand.vmem [shape: f32[1,128], index: 2, kind: input, shape index: {}]
  %s3 = inlined_call_operand.vmem [shape: bf16[3,3,3,128,128], index: 3, kind: input, shape index: {}]
  %s4 = inlined_call_operand.vmem [shape: f32[3,128], index: 4, kind: input, shape index: {}]
  %s5 = inlined_call_operand.vmem [shape: bf16[4,128,128], index: 5, kind: input, shape index: {}]
  %s6 = inlined_call_operand.vmem [shape: f32[2,1,128], index: 6, kind: input, shape index: {}]
  %s7 = inlined_call_operand.vmem [shape: f32[2,16,16,128], index: 7, kind: output, shape index: {}]
  %s8 = sld [smem:[#allocation0]]
  $region61: #{forward.1} parent=0
    _
  %s10 = ssub.s32 1, %s8
  %s11 = scalar_select 0, %s10, %s8
  loop: start=0, step=1, limit=6
  $region2: #{forward.1} parent=0 // loop_pre_header
    _
  $region3: #{forward.1} parent=0 // loop_header
    %s13 = sphi 0, %s17
    %p14 = scmp.ge.s32.totalorder %s13, 6
    %s20 = sphi 0, %s32
    %s21 = sphi 0, %s28
    %s22 = sphi 0, %s20
    %s23 = sphi 0, %s21
    %s24 = sphi 0, %s22
    %s25 = sphi 0, %s23
    %s37 = sphi 0, %s39
    %s40 = sphi 0, %s37
    %s41 = sphi 0, %s40
    %s57 = sphi 0, %s41
    %s61 = sphi 0, %s61
    %s63 = sphi 0, %s61
    %s64 = sphi 0, %s63
    %s78 = sphi 0, %s64
    %s82 = sphi 0, %s82
    %s84 = sphi 0, %s82
    %s85 = sphi 0, %s84
    %s99 = sphi 0, %s85
    %s103 = sphi 0, %s103
    %s105 = sphi 0, %s103
    %s106 = sphi 0, %s105
    %s120 = sphi 0, %s106
    %s124 = sphi 0, %s124
    %s126 = sphi 0, %s124
    %s127 = sphi 0, %s126
    %s141 = sphi 0, %s127
    %s145 = sphi 0, %s145
    %s147 = sphi 0, %s145
    %s148 = sphi 0, %s147
    %s162 = sphi 0, %s148
    %s168 = sphi 0, %s170
    %s171 = sphi 0, %s168
    %s172 = sphi 0, %s171
    %s188 = sphi 0, %s172
    %s196 = sphi 0, %s198
    %s199 = sphi 0, %s196
    %s200 = sphi 0, %s199
    %s216 = sphi 0, %s200
  $region4: #{forward.1} parent=0 // loop_header_branch
    %16 = sbr.rel (%p14) target = $region8
  $region5: #{forward.1} parent=0 // loop_body
    %s18 = ssub.s32 %s13, 1
    %s19 = ssub.s32 %s13, 2
    %s26 = sadd.s32 1, %s21
    %p27 = scmp.ge.s32.totalorder %s26, 2
    %s28 = scalar_select %p27, 0, %s26
    %s29 = sadd.s32 1, %s20
    %s30 = scalar_select %p27, %s29, %s20
    %p31 = scmp.ge.s32.totalorder %s30, 2
    %s32 = scalar_select %p31, 0, %s30
    %s33 = ssub.s32 %s20, %s32
    %s34 = ssub.s32 %s21, %s28
    %s35 = sor.u32 %s33, %s34
    %p36 = scmp.eq.s32.totalorder %s35, 0
    %s38 = sadd.s32 %s37, 1
    %s39 = scalar_select %p36, %s37, %s38
    %p42 = pneg %p36
    %p43 = scmp.eq.s32.totalorder %s13, 3
    %p44 = por %p42, %p43
    %p45 = scmp.ne.s32.totalorder %s37, %s40
    %p46 = scmp.eq.s32.totalorder %s13, 0
    %p47 = por %p45, %p46
    %p48 = scmp.ne.s32.totalorder %s37, %s40
    %p49 = scmp.eq.s32.totalorder %s18, 3
    %p50 = por %p48, %p49
    %p51 = scmp.ne.s32.totalorder %s40, %s41
    %p52 = scmp.eq.s32.totalorder %s18, 0
    %p53 = por %p51, %p52
    %p54 = scmp.ne.s32.totalorder %s40, %s41
    %p55 = scmp.eq.s32.totalorder %s19, 3
    %p56 = por %p54, %p55
    %p58 = scmp.ne.s32.totalorder %s41, %s57
    %p59 = scmp.eq.s32.totalorder %s19, 0
    %p60 = por %p58, %p59
    %s62 = sadd.s32 %s61, 1
    %p65 = scmp.eq.s32.totalorder %s13, 3
    %p66 = scmp.ne.s32.totalorder %s61, %s63
    %p67 = scmp.eq.s32.totalorder %s13, 0
    %p68 = por %p66, %p67
    %p69 = scmp.ne.s32.totalorder %s61, %s63
    %p70 = scmp.eq.s32.totalorder %s18, 3
    %p71 = por %p69, %p70
    %p72 = scmp.ne.s32.totalorder %s63, %s64
    %p73 = scmp.eq.s32.totalorder %s18, 0
    %p74 = por %p72, %p73
    %p75 = scmp.ne.s32.totalorder %s63, %s64
    %p76 = scmp.eq.s32.totalorder %s19, 3
    %p77 = por %p75, %p76
    %p79 = scmp.ne.s32.totalorder %s64, %s78
    %p80 = scmp.eq.s32.totalorder %s19, 0
    %p81 = por %p79, %p80
    %s83 = sadd.s32 %s82, 1
    %p86 = scmp.eq.s32.totalorder %s13, 3
    %p87 = scmp.ne.s32.totalorder %s82, %s84
    %p88 = scmp.eq.s32.totalorder %s13, 0
    %p89 = por %p87, %p88
    %p90 = scmp.ne.s32.totalorder %s82, %s84
    %p91 = scmp.eq.s32.totalorder %s18, 3
    %p92 = por %p90, %p91
    %p93 = scmp.ne.s32.totalorder %s84, %s85
    %p94 = scmp.eq.s32.totalorder %s18, 0
    %p95 = por %p93, %p94
    %p96 = scmp.ne.s32.totalorder %s84, %s85
    %p97 = scmp.eq.s32.totalorder %s19, 3
    %p98 = por %p96, %p97
    %p100 = scmp.ne.s32.totalorder %s85, %s99
    %p101 = scmp.eq.s32.totalorder %s19, 0
    %p102 = por %p100, %p101
    %s104 = sadd.s32 %s103, 1
    %p107 = scmp.eq.s32.totalorder %s13, 3
    %p108 = scmp.ne.s32.totalorder %s103, %s105
    %p109 = scmp.eq.s32.totalorder %s13, 0
    %p110 = por %p108, %p109
    %p111 = scmp.ne.s32.totalorder %s103, %s105
    %p112 = scmp.eq.s32.totalorder %s18, 3
    %p113 = por %p111, %p112
    %p114 = scmp.ne.s32.totalorder %s105, %s106
    %p115 = scmp.eq.s32.totalorder %s18, 0
    %p116 = por %p114, %p115
    %p117 = scmp.ne.s32.totalorder %s105, %s106
    %p118 = scmp.eq.s32.totalorder %s19, 3
    %p119 = por %p117, %p118
    %p121 = scmp.ne.s32.totalorder %s106, %s120
    %p122 = scmp.eq.s32.totalorder %s19, 0
    %p123 = por %p121, %p122
    %s125 = sadd.s32 %s124, 1
    %p128 = scmp.eq.s32.totalorder %s13, 3
    %p129 = scmp.ne.s32.totalorder %s124, %s126
    %p130 = scmp.eq.s32.totalorder %s13, 0
    %p131 = por %p129, %p130
    %p132 = scmp.ne.s32.totalorder %s124, %s126
    %p133 = scmp.eq.s32.totalorder %s18, 3
    %p134 = por %p132, %p133
    %p135 = scmp.ne.s32.totalorder %s126, %s127
    %p136 = scmp.eq.s32.totalorder %s18, 0
    %p137 = por %p135, %p136
    %p138 = scmp.ne.s32.totalorder %s126, %s127
    %p139 = scmp.eq.s32.totalorder %s19, 3
    %p140 = por %p138, %p139
    %p142 = scmp.ne.s32.totalorder %s127, %s141
    %p143 = scmp.eq.s32.totalorder %s19, 0
    %p144 = por %p142, %p143
    %s146 = sadd.s32 %s145, 1
    %p149 = scmp.eq.s32.totalorder %s13, 3
    %p150 = scmp.ne.s32.totalorder %s145, %s147
    %p151 = scmp.eq.s32.totalorder %s13, 0
    %p152 = por %p150, %p151
    %p153 = scmp.ne.s32.totalorder %s145, %s147
    %p154 = scmp.eq.s32.totalorder %s18, 3
    %p155 = por %p153, %p154
    %p156 = scmp.ne.s32.totalorder %s147, %s148
    %p157 = scmp.eq.s32.totalorder %s18, 0
    %p158 = por %p156, %p157
    %p159 = scmp.ne.s32.totalorder %s147, %s148
    %p160 = scmp.eq.s32.totalorder %s19, 3
    %p161 = por %p159, %p160
    %p163 = scmp.ne.s32.totalorder %s148, %s162
    %p164 = scmp.eq.s32.totalorder %s19, 0
    %p165 = por %p163, %p164
    %s166 = ssub.s32 %s20, %s32
    %p167 = scmp.eq.s32.totalorder %s166, 0
    %s169 = sadd.s32 %s168, 1
    %s170 = scalar_select %p167, %s168, %s169
    %p173 = pneg %p167
    %p174 = scmp.eq.s32.totalorder %s13, 3
    %p175 = por %p173, %p174
    %p176 = scmp.ne.s32.totalorder %s168, %s171
    %p177 = scmp.eq.s32.totalorder %s13, 0
    %p178 = por %p176, %p177
    %p179 = scmp.ne.s32.totalorder %s168, %s171
    %p180 = scmp.eq.s32.totalorder %s18, 3
    %p181 = por %p179, %p180
    %p182 = scmp.ne.s32.totalorder %s171, %s172
    %p183 = scmp.eq.s32.totalorder %s18, 0
    %p184 = por %p182, %p183
    %p185 = scmp.ne.s32.totalorder %s171, %s172
    %p186 = scmp.eq.s32.totalorder %s19, 3
    %p187 = por %p185, %p186
    %p189 = scmp.ne.s32.totalorder %s172, %s188
    %p190 = scmp.eq.s32.totalorder %s19, 0
    %p191 = por %p189, %p190
    %s192 = ssub.s32 %s20, %s32
    %s193 = ssub.s32 %s21, %s28
    %s194 = sor.u32 %s192, %s193
    %p195 = scmp.eq.s32.totalorder %s194, 0
    %s197 = sadd.s32 %s196, 1
    %s198 = scalar_select %p195, %s196, %s197
    %p201 = pneg %p195
    %p202 = scmp.eq.s32.totalorder %s13, 3
    %p203 = por %p201, %p202
    %p204 = scmp.ne.s32.totalorder %s196, %s199
    %p205 = scmp.eq.s32.totalorder %s13, 0
    %p206 = por %p204, %p205
    %p207 = scmp.ne.s32.totalorder %s196, %s199
    %p208 = scmp.eq.s32.totalorder %s18, 3
    %p209 = por %p207, %p208
    %p210 = scmp.ne.s32.totalorder %s199, %s200
    %p211 = scmp.eq.s32.totalorder %s18, 0
    %p212 = por %p210, %p211
    %p213 = scmp.ne.s32.totalorder %s199, %s200
    %p214 = scmp.eq.s32.totalorder %s19, 3
    %p215 = por %p213, %p214
    %p217 = scmp.ne.s32.totalorder %s200, %s216
    %p218 = scmp.eq.s32.totalorder %s19, 0
    %p219 = por %p217, %p218
    %p220 = scmp.le.s32.totalorder 1, %s13
    %p221 = scmp.lt.s32.totalorder %s13, 5
    %p222 = pnand %p220, %p221
    %p223 = pneg %p222
    // Predicated region
    $region9: #{forward.1} parent=5 // pred_check
      _
    $region10: #{forward.1} parent=5 // pred_check_branch
      %225 = sbr.rel (%p222) target = $region12
    $region11: #{forward.1} parent=5 // pred_region
      %s226 = ssub.s32 %s13, 1
      // Predicated region
      $region13: #{forward.1} parent=11 // pred_check
        %p227 = pneg %p74
      $region14: #{forward.1} parent=11 // pred_check_branch
        %229 = sbr.rel (%p227) target = $region16
      $region15: #{forward.1} parent=11 // pred_region
        _
      $region16: #{forward.1} parent=11 // pred_fallthru
        _
      // Predicated region
      $region17: #{forward.1} parent=11 // pred_check
        %p230 = pneg %p95
      $region18: #{forward.1} parent=11 // pred_check_branch
        %232 = sbr.rel (%p230) target = $region20
      $region19: #{forward.1} parent=11 // pred_region
        _
      $region20: #{forward.1} parent=11 // pred_fallthru
        _
      // Predicated region
      $region21: #{forward.1} parent=11 // pred_check
        %p233 = pneg %p116
      $region22: #{forward.1} parent=11 // pred_check_branch
        %235 = sbr.rel (%p233) target = $region24
      $region23: #{forward.1} parent=11 // pred_region
        _
      $region24: #{forward.1} parent=11 // pred_fallthru
        _
      // Predicated region
      $region25: #{forward.1} parent=11 // pred_check
        %p236 = pneg %p137
      $region26: #{forward.1} parent=11 // pred_check_branch
        %238 = sbr.rel (%p236) target = $region28
      $region27: #{forward.1} parent=11 // pred_region
        _
      $region28: #{forward.1} parent=11 // pred_fallthru
        _
      // Predicated region
      $region29: #{forward.1} parent=11 // pred_check
        %p239 = pneg %p158
      $region30: #{forward.1} parent=11 // pred_check_branch
        %241 = sbr.rel (%p239) target = $region32
      $region31: #{forward.1} parent=11 // pred_region
        _
      $region32: #{forward.1} parent=11 // pred_fallthru
        _
    $region12: #{forward.1} parent=5 // pred_fallthru
      _
    %p242 = scmp.lt.s32.totalorder %s13, 4
    // Predicated region
    $region33: #{forward.1} parent=5 // pred_check
      %p243 = pneg %p242
    $region34: #{forward.1} parent=5 // pred_check_branch
      %245 = sbr.rel (%p243) target = $region36
    $region35: #{forward.1} parent=5 // pred_region
      // Predicated region
      $region37: #{forward.1} parent=35 // pred_check
        %p246 = pneg %p47
      $region38: #{forward.1} parent=35 // pred_check_branch
        %248 = sbr.rel (%p246) target = $region40
      $region39: #{forward.1} parent=35 // pred_region
        %p249 = scmp.lt.s32.totalorder %s20, 1
        %s250 = scalar_select %p249, %s20, 1
        %p251 = scmp.lt.s32.totalorder %s21, 1
        %s252 = scalar_select %p251, %s21, 1
        %s253 = smul.addr %s252, 80
        %s254 = smul.addr %s250, 160
        %s255 = sadd.s32 %s253, %s254
        %s256 = smul.addr %s255, 4
        %s257 = scalar_lea.vmem %s0, %s256
      $region40: #{forward.1} parent=35 // pred_fallthru
        _
      // Predicated region
      $region41: #{forward.1} parent=35 // pred_check
        %p258 = pneg %p178
      $region42: #{forward.1} parent=35 // pred_check_branch
        %260 = sbr.rel (%p258) target = $region44
      $region43: #{forward.1} parent=35 // pred_region
        %p261 = scmp.lt.s32.totalorder %s20, 1
        %s262 = scalar_select %p261, %s20, 1
        %s263 = scalar_lea.vmem %s6, %s262
      $region44: #{forward.1} parent=35 // pred_fallthru
        _
    $region36: #{forward.1} parent=5 // pred_fallthru
      _
    %p264 = scmp.le.s32.totalorder 1, %s13
    %p265 = scmp.lt.s32.totalorder %s13, 5
    %p266 = pnand %p264, %p265
    %p267 = pneg %p266
    // Predicated region
    $region45: #{forward.1} parent=5 // pred_check
      _
    $region46: #{forward.1} parent=5 // pred_check_branch
      %269 = sbr.rel (%p266) target = $region48
    $region47: #{forward.1} parent=5 // pred_region
      %s270 = ssub.s32 %s13, 1
      %p271 = scmp.lt.s32.totalorder %s22, 1
      %s272 = scalar_select %p271, %s22, 1
      %p273 = scmp.lt.s32.totalorder %s23, 1
      %s274 = scalar_select %p273, %s23, 1
      %s275 = smul.addr %s274, 80
      %s276 = smul.addr %s272, 160
      %s277 = sadd.s32 %s275, %s276
      %s278 = smul.addr %s277, 4
      %s279 = scalar_lea.vmem %s0, %s278
      %p280 = pneg %p53
      %p281 = pneg %p50
      %p282 = pneg %p74
      %p283 = pneg %p71
      %p284 = pneg %p95
      %p285 = pneg %p92
      %p286 = pneg %p116
      %p287 = pneg %p113
      %p288 = pneg %p137
      %p289 = pneg %p134
      %p290 = pneg %p158
      %p291 = pneg %p155
      %p292 = scmp.lt.s32.totalorder %s22, 1
      %s293 = scalar_select %p292, %s22, 1
      %s294 = scalar_lea.vmem %s6, %s293
      %p295 = pneg %p184
      %p296 = pneg %p181
      %p297 = pneg %p212
      %p298 = pneg %p209
      %s299 = smul.u32 8, %s23
      %p300 = scmp.lt.s32.totalorder %s22, 1
      %s301 = scalar_select %p300, %s22, 1
      %p302 = scmp.lt.s32.totalorder %s299, 15
      %s303 = scalar_select %p302, %s299, 15
      %s304 = smul.addr %s303, 2
      %s305 = smul.addr %s301, 32
      %s306 = sadd.s32 %s304, %s305
      %s307 = smul.addr %s306, 8
      %s308 = scalar_lea.vmem %s7, %s307
      %p309 = scmp.lt.s32.totalorder %s22, 1
      %s310 = scalar_select %p309, %s22, 1
      %p311 = scmp.lt.s32.totalorder %s23, 1
      %s312 = scalar_select %p311, %s23, 1
      %s313 = smul.addr %s312, 80
      %s314 = smul.addr %s310, 160
      %s315 = sadd.s32 %s313, %s314
      %s316 = smul.addr %s315, 4
      %s317 = scalar_lea.vmem %s0, %s316
      %p318 = scmp.lt.s32.totalorder %s22, 1
      %s319 = scalar_select %p318, %s22, 1
      %s320 = scalar_lea.vmem %s6, %s319
      %s321 = smul.u32 8, %s23
      %p322 = scmp.lt.s32.totalorder %s22, 1
      %s323 = scalar_select %p322, %s22, 1
      %p324 = scmp.lt.s32.totalorder %s321, 15
      %s325 = scalar_select %p324, %s321, 15
      %s326 = smul.addr %s325, 2
      %s327 = smul.addr %s323, 32
      %s328 = sadd.s32 %s326, %s327
      %s329 = smul.addr %s328, 8
      %s330 = scalar_lea.vmem %s7, %s329
      %s331 = smul.u32 8, %s23
      %s333 = scalar_lea.vmem %s317, 96
      %v334 = vld [vmem:[%s333] sm:$0x8]
      %v335 = vld [vmem:[%s333 + $0x4] sm:$0xf]
      %v336 = vld [vmem:[%s333 + $0x8] sm:$0x7]
      %v337 = vld [vmem:[%s333 + $0x10] sm:$0x8]
      %v338 = vld [vmem:[%s333 + $0x14] sm:$0xf]
      %v339 = vld [vmem:[%s333 + $0x18] sm:$0x7]
      %v340 = vld [vmem:[%s333 + $0x20] sm:$0x8]
      %v341 = vld [vmem:[%s333 + $0x24] sm:$0xf]
      %v342 = vld [vmem:[%s333 + $0x28] sm:$0x7]
      %v343 = vld [vmem:[%s333 + $0x30] sm:$0x8]
      %v344 = vld [vmem:[%s333 + $0x34] sm:$0xf]
      %v345 = vld [vmem:[%s333 + $0x38] sm:$0x7]
      %v346 = vld [vmem:[%s333 + $0x40] sm:$0x8]
      %v347 = vld [vmem:[%s333 + $0x44] sm:$0xf]
      %v348 = vld [vmem:[%s333 + $0x48] sm:$0x7]
      %v349 = vld [vmem:[%s333 + $0x50] sm:$0x8]
      %v350 = vld [vmem:[%s333 + $0x54] sm:$0xf]
      %v351 = vld [vmem:[%s333 + $0x58] sm:$0x7]
      %v352 = vld [vmem:[%s333 + $0x60] sm:$0x8]
      %v353 = vld [vmem:[%s333 + $0x64] sm:$0xf]
      %v354 = vld [vmem:[%s333 + $0x68] sm:$0x7]
      %v355 = vld [vmem:[%s333 + $0x70] sm:$0x8]
      %v356 = vld [vmem:[%s333 + $0x74] sm:$0xf]
      %v357 = vld [vmem:[%s333 + $0x78] sm:$0x7]
      %vm382 = vcmask 1040384
      %vm383 = vcmask 1044484
      %vm384 = vmor %vm382, %vm383
      %v385 = vrot.slane %v334, 7
      %v386 = vrot.slane %v385, 4
      %v387 = vrot.slane %v335, 7
      %v388 = vsel %vm384, %v386, %v387
      %v389 = vrot.slane %v387, 4
      %v390 = vrot.slane %v336, 7
      %v391 = vsel %vm384, %v389, %v390
      %v392 = vrot.slane %v337, 7
      %v393 = vrot.slane %v392, 4
      %v394 = vrot.slane %v338, 7
      %v395 = vsel %vm384, %v393, %v394
      %v396 = vrot.slane %v394, 4
      %v397 = vrot.slane %v339, 7
      %v398 = vsel %vm384, %v396, %v397
      %v399 = vrot.slane %v340, 7
      %v400 = vrot.slane %v399, 4
      %v401 = vrot.slane %v341, 7
      %v402 = vsel %vm384, %v400, %v401
      %v403 = vrot.slane %v401, 4
      %v404 = vrot.slane %v342, 7
      %v405 = vsel %vm384, %v403, %v404
      %v406 = vrot.slane %v343, 7
      %v407 = vrot.slane %v406, 4
      %v408 = vrot.slane %v344, 7
      %v409 = vsel %vm384, %v407, %v408
      %v410 = vrot.slane %v408, 4
      %v411 = vrot.slane %v345, 7
      %v412 = vsel %vm384, %v410, %v411
      %v413 = vrot.slane %v346, 7
      %v414 = vrot.slane %v413, 4
      %v415 = vrot.slane %v347, 7
      %v416 = vsel %vm384, %v414, %v415
      %v417 = vrot.slane %v415, 4
      %v418 = vrot.slane %v348, 7
      %v419 = vsel %vm384, %v417, %v418
      %v420 = vrot.slane %v349, 7
      %v421 = vrot.slane %v420, 4
      %v422 = vrot.slane %v350, 7
      %v423 = vsel %vm384, %v421, %v422
      %v424 = vrot.slane %v422, 4
      %v425 = vrot.slane %v351, 7
      %v426 = vsel %vm384, %v424, %v425
      %v427 = vrot.slane %v352, 7
      %v428 = vrot.slane %v427, 4
      %v429 = vrot.slane %v353, 7
      %v430 = vsel %vm384, %v428, %v429
      %v431 = vrot.slane %v429, 4
      %v432 = vrot.slane %v354, 7
      %v433 = vsel %vm384, %v431, %v432
      %v434 = vrot.slane %v355, 7
      %v435 = vrot.slane %v434, 4
      %v436 = vrot.slane %v356, 7
      %v437 = vsel %vm384, %v435, %v436
      %v438 = vrot.slane %v436, 4
      %v439 = vrot.slane %v357, 7
      %v440 = vsel %vm384, %v438, %v439
      %v441 = vld [vmem:[%s1] sm:$0xf]
      %v442 = vld [vmem:[%s1 + $0x4] sm:$0xf]
      %v443 = vld [vmem:[%s1 + $0x8] sm:$0xf]
      %v444 = vld [vmem:[%s1 + $0xc] sm:$0xf]
      %v445 = vld [vmem:[%s1 + $0x10] sm:$0xf]
      %v446 = vld [vmem:[%s1 + $0x14] sm:$0xf]
      %v447 = vld [vmem:[%s1 + $0x18] sm:$0xf]
      %v448 = vld [vmem:[%s1 + $0x1c] sm:$0xf]
      %v449 = vld [vmem:[%s1 + $0x20] sm:$0xf]
      %v450 = vld [vmem:[%s1 + $0x24] sm:$0xf]
      %v451 = vld [vmem:[%s1 + $0x28] sm:$0xf]
      %v452 = vld [vmem:[%s1 + $0x2c] sm:$0xf]
      %v453 = vld [vmem:[%s1 + $0x30] sm:$0xf]
      %v454 = vld [vmem:[%s1 + $0x34] sm:$0xf]
      %v455 = vld [vmem:[%s1 + $0x38] sm:$0xf]
      %v456 = vld [vmem:[%s1 + $0x3c] sm:$0xf]
      %v457 = vld [vmem:[%s2] sm:$0x1]
      %v459 = vlaneseq
      %v460 = vshrl.u32 %v459, 7
      %v461 = vsub.s32 0, %v460
      %v462 = vrot.slane %v457, %v461
      %v464 = vunpack.c.l.b16 %v388
      %v465 = vunpack.c.l.b16 %v391
      %v466 = vunpack.c.l.b16 %v395
      %v467 = vunpack.c.l.b16 %v398
      %v468 = vunpack.c.l.b16 %v402
      %v469 = vunpack.c.l.b16 %v405
      %v470 = vunpack.c.l.b16 %v409
      %v471 = vunpack.c.l.b16 %v412
      %v472 = vunpack.c.l.b16 %v416
      %v473 = vunpack.c.l.b16 %v419
      %v474 = vunpack.c.l.b16 %v423
      %v475 = vunpack.c.l.b16 %v426
      %v476 = vunpack.c.l.b16 %v430
      %v477 = vunpack.c.l.b16 %v433
      %v478 = vunpack.c.l.b16 %v437
      %v479 = vunpack.c.l.b16 %v440
      %v480 = vpack.c.b16 %v465, %v464
      %v481 = vpack.c.b16 %v467, %v466
      %v482 = vpack.c.b16 %v469, %v468
      %v483 = vpack.c.b16 %v471, %v470
      %v484 = vpack.c.b16 %v473, %v472
      %v485 = vpack.c.b16 %v475, %v474
      %v486 = vpack.c.b16 %v477, %v476
      %v487 = vpack.c.b16 %v479, %v478
      %v512 = vunpack.c.l.b16 %v441
      %v513 = vunpack.c.l.b16 %v442
      %v514 = vunpack.c.l.b16 %v443
      %v515 = vunpack.c.l.b16 %v444
      %v516 = vunpack.c.l.b16 %v445
      %v517 = vunpack.c.l.b16 %v446
      %v518 = vunpack.c.l.b16 %v447
      %v519 = vunpack.c.l.b16 %v448
      %v520 = vunpack.c.l.b16 %v449
      %v521 = vunpack.c.l.b16 %v450
      %v522 = vunpack.c.l.b16 %v451
      %v523 = vunpack.c.l.b16 %v452
      %v524 = vunpack.c.l.b16 %v453
      %v525 = vunpack.c.l.b16 %v454
      %v526 = vunpack.c.l.b16 %v455
      %v527 = vunpack.c.l.b16 %v456
      %v528 = vpack.c.b16 %v513, %v512
      %v529 = vpack.c.b16 %v515, %v514
      %v530 = vpack.c.b16 %v517, %v516
      %v531 = vpack.c.b16 %v519, %v518
      %v532 = vpack.c.b16 %v521, %v520
      %v533 = vpack.c.b16 %v523, %v522
      %v534 = vpack.c.b16 %v525, %v524
      %v535 = vpack.c.b16 %v527, %v526
      %544 = vmatprep.subr.bf16.mxu0 0
      %545 = vmatpush1.bf16.msra.mxu0 %v535
      %546 = vmatprep.subr.bf16.mxu0 0
      %547 = vmatpush1.bf16.msra.mxu0 %v534
      %548 = vmatprep.subr.bf16.mxu0 0
      %549 = vmatpush1.bf16.msra.mxu0 %v533
      %550 = vmatprep.subr.bf16.mxu0 0
      %551 = vmatpush1.bf16.msra.mxu0 %v532
      %552 = vmatprep.subr.bf16.mxu0 0
      %553 = vmatpush1.bf16.msra.mxu0 %v531
      %554 = vmatprep.subr.bf16.mxu0 0
      %555 = vmatpush1.bf16.msra.mxu0 %v530
      %556 = vmatprep.subr.bf16.mxu0 0
      %557 = vmatpush1.bf16.msra.mxu0 %v529
      %558 = vmatprep.subr.bf16.mxu0 0
      %559 = vmatpush1.bf16.msra.mxu0 %v528
      %560 = vmatprep.subr.bf16.mxu0 0
      %561 = vmatpush2.bf16.msra.mxu0 0
      %562 = vmatprep.subr.bf16.mxu0 0
      %563 = vmatpush2.bf16.msra.mxu0 0
      %564 = vmatprep.subr.bf16.mxu0 0
      %565 = vmatpush2.bf16.msra.mxu0 0
      %566 = vmatprep.subr.bf16.mxu0 0
      %567 = vmatpush2.bf16.msra.mxu0 0
      %568 = vmatprep.subr.bf16.mxu0 0
      %569 = vmatpush2.bf16.msra.mxu0 0
      %570 = vmatprep.subr.bf16.mxu0 0
      %571 = vmatpush2.bf16.msra.mxu0 0
      %572 = vmatprep.subr.bf16.mxu0 0
      %573 = vmatpush2.bf16.msra.mxu0 0
      %574 = vmatprep.subr.bf16.mxu0 0
      %575 = vmatpush2.bf16.msra.mxu0 0
      %576 = vmatprep.mubr.bf16.mxu0 0
      %577 = vmatmul.mubr.bf16.gmra.mxu0 %v480
      %v578 = vpop.f32.mrf.mxu0
      %v579 = vadd.f32 %v462, %v578
      %v580 = vpop.f32.mrf.mxu0
      %v581 = vpop.f32.mrf.mxu0
      %v582 = vadd.f32 %v462, %v581
      %v583 = vpop.f32.mrf.mxu0
      %584 = vmatprep.mubr.bf16.mxu0 0
      %585 = vmatmul.mubr.bf16.gmra.mxu0 %v481
      %v586 = vpop.f32.mrf.mxu0
      %v587 = vadd.f32 %v462, %v586
      %v588 = vpop.f32.mrf.mxu0
      %v589 = vpop.f32.mrf.mxu0
      %v590 = vadd.f32 %v462, %v589
      %v591 = vpop.f32.mrf.mxu0
      %592 = vmatprep.mubr.bf16.mxu0 0
      %593 = vmatmul.mubr.bf16.gmra.mxu0 %v482
      %v594 = vpop.f32.mrf.mxu0
      %v595 = vadd.f32 %v462, %v594
      %v596 = vpop.f32.mrf.mxu0
      %v597 = vpop.f32.mrf.mxu0
      %v598 = vadd.f32 %v462, %v597
      %v599 = vpop.f32.mrf.mxu0
      %600 = vmatprep.mubr.bf16.mxu0 0
      %601 = vmatmul.mubr.bf16.gmra.mxu0 %v483
      %v602 = vpop.f32.mrf.mxu0
      %v603 = vadd.f32 %v462, %v602
      %v604 = vpop.f32.mrf.mxu0
      %v605 = vpop.f32.mrf.mxu0
      %v606 = vadd.f32 %v462, %v605
      %v607 = vpop.f32.mrf.mxu0
      %608 = vmatprep.mubr.bf16.mxu0 0
      %609 = vmatmul.mubr.bf16.gmra.mxu0 %v484
      %v610 = vpop.f32.mrf.mxu0
      %v611 = vadd.f32 %v462, %v610
      %v612 = vpop.f32.mrf.mxu0
      %v613 = vpop.f32.mrf.mxu0
      %v614 = vadd.f32 %v462, %v613
      %v615 = vpop.f32.mrf.mxu0
      %616 = vmatprep.mubr.bf16.mxu0 0
      %617 = vmatmul.mubr.bf16.gmra.mxu0 %v485
      %v618 = vpop.f32.mrf.mxu0
      %v619 = vadd.f32 %v462, %v618
      %v620 = vpop.f32.mrf.mxu0
      %v621 = vpop.f32.mrf.mxu0
      %v622 = vadd.f32 %v462, %v621
      %v623 = vpop.f32.mrf.mxu0
      %624 = vmatprep.mubr.bf16.mxu0 0
      %625 = vmatmul.mubr.bf16.gmra.mxu0 %v486
      %v626 = vpop.f32.mrf.mxu0
      %v627 = vadd.f32 %v462, %v626
      %v628 = vpop.f32.mrf.mxu0
      %v629 = vpop.f32.mrf.mxu0
      %v630 = vadd.f32 %v462, %v629
      %v631 = vpop.f32.mrf.mxu0
      %632 = vmatprep.mubr.bf16.mxu0 0
      %633 = vmatmul.mubr.bf16.gmra.mxu0 %v487
      %v634 = vpop.f32.mrf.mxu0
      %v635 = vadd.f32 %v462, %v634
      %v636 = vpop.f32.mrf.mxu0
      %v637 = vpop.f32.mrf.mxu0
      %v638 = vadd.f32 %v462, %v637
      %v639 = vpop.f32.mrf.mxu0
      %640 = vdwg.mxu0
      %v641 = vmax.f32 %v579, 0.0
      %v642 = vmax.f32 %v582, 0.0
      %v643 = vmax.f32 %v587, 0.0
      %v644 = vmax.f32 %v590, 0.0
      %v645 = vmax.f32 %v595, 0.0
      %v646 = vmax.f32 %v598, 0.0
      %v647 = vmax.f32 %v603, 0.0
      %v648 = vmax.f32 %v606, 0.0
      %v649 = vmax.f32 %v611, 0.0
      %v650 = vmax.f32 %v614, 0.0
      %v651 = vmax.f32 %v619, 0.0
      %v652 = vmax.f32 %v622, 0.0
      %v653 = vmax.f32 %v627, 0.0
      %v654 = vmax.f32 %v630, 0.0
      %v655 = vmax.f32 %v635, 0.0
      %v656 = vmax.f32 %v638, 0.0
      %v657 = vpack.c.bf16 %v642, %v641
      %v658 = vpack.c.bf16 %v644, %v643
      %v659 = vpack.c.bf16 %v646, %v645
      %v660 = vpack.c.bf16 %v648, %v647
      %v661 = vpack.c.bf16 %v650, %v649
      %v662 = vpack.c.bf16 %v652, %v651
      %v663 = vpack.c.bf16 %v654, %v653
      %v664 = vpack.c.bf16 %v656, %v655
      %v665 = vld [vmem:[%s5] sm:$0xf]
      %v666 = vld [vmem:[%s5 + $0x4] sm:$0xf]
      %v667 = vld [vmem:[%s5 + $0x8] sm:$0xf]
      %v668 = vld [vmem:[%s5 + $0xc] sm:$0xf]
      %v669 = vld [vmem:[%s5 + $0x10] sm:$0xf]
      %v670 = vld [vmem:[%s5 + $0x14] sm:$0xf]
      %v671 = vld [vmem:[%s5 + $0x18] sm:$0xf]
      %v672 = vld [vmem:[%s5 + $0x1c] sm:$0xf]
      %v673 = vld [vmem:[%s5 + $0x20] sm:$0xf]
      %v674 = vld [vmem:[%s5 + $0x24] sm:$0xf]
      %v675 = vld [vmem:[%s5 + $0x28] sm:$0xf]
      %v676 = vld [vmem:[%s5 + $0x2c] sm:$0xf]
      %v677 = vld [vmem:[%s5 + $0x30] sm:$0xf]
      %v678 = vld [vmem:[%s5 + $0x34] sm:$0xf]
      %v679 = vld [vmem:[%s5 + $0x38] sm:$0xf]
      %v680 = vld [vmem:[%s5 + $0x3c] sm:$0xf]
      %v681 = vld [vmem:[%s320] sm:$0x1]
      %v683 = vlaneseq
      %v684 = vshrl.u32 %v683, 7
      %v685 = vsub.s32 0, %v684
      %v686 = vrot.slane %v681, %v685
      %v704 = vunpack.c.l.b16 %v665
      %v705 = vunpack.c.l.b16 %v666
      %v706 = vunpack.c.l.b16 %v667
      %v707 = vunpack.c.l.b16 %v668
      %v708 = vunpack.c.l.b16 %v669
      %v709 = vunpack.c.l.b16 %v670
      %v710 = vunpack.c.l.b16 %v671
      %v711 = vunpack.c.l.b16 %v672
      %v712 = vunpack.c.l.b16 %v673
      %v713 = vunpack.c.l.b16 %v674
      %v714 = vunpack.c.l.b16 %v675
      %v715 = vunpack.c.l.b16 %v676
      %v716 = vunpack.c.l.b16 %v677
      %v717 = vunpack.c.l.b16 %v678
      %v718 = vunpack.c.l.b16 %v679
      %v719 = vunpack.c.l.b16 %v680
      %v720 = vpack.c.b16 %v705, %v704
      %v721 = vpack.c.b16 %v707, %v706
      %v722 = vpack.c.b16 %v709, %v708
      %v723 = vpack.c.b16 %v711, %v710
      %v724 = vpack.c.b16 %v713, %v712
      %v725 = vpack.c.b16 %v715, %v714
      %v726 = vpack.c.b16 %v717, %v716
      %v727 = vpack.c.b16 %v719, %v718
      %736 = vmatprep.subr.bf16.mxu0 0
      %737 = vmatpush1.bf16.msra.mxu0 %v727
      %738 = vmatprep.subr.bf16.mxu0 0
      %739 = vmatpush1.bf16.msra.mxu0 %v726
      %740 = vmatprep.subr.bf16.mxu0 0
      %741 = vmatpush1.bf16.msra.mxu0 %v725
      %742 = vmatprep.subr.bf16.mxu0 0
      %743 = vmatpush1.bf16.msra.mxu0 %v724
      %744 = vmatprep.subr.bf16.mxu0 0
      %745 = vmatpush1.bf16.msra.mxu0 %v723
      %746 = vmatprep.subr.bf16.mxu0 0
      %747 = vmatpush1.bf16.msra.mxu0 %v722
      %748 = vmatprep.subr.bf16.mxu0 0
      %749 = vmatpush1.bf16.msra.mxu0 %v721
      %750 = vmatprep.subr.bf16.mxu0 0
      %751 = vmatpush1.bf16.msra.mxu0 %v720
      %752 = vmatprep.subr.bf16.mxu0 0
      %753 = vmatpush2.bf16.msra.mxu0 0
      %754 = vmatprep.subr.bf16.mxu0 0
      %755 = vmatpush2.bf16.msra.mxu0 0
      %756 = vmatprep.subr.bf16.mxu0 0
      %757 = vmatpush2.bf16.msra.mxu0 0
      %758 = vmatprep.subr.bf16.mxu0 0
      %759 = vmatpush2.bf16.msra.mxu0 0
      %760 = vmatprep.subr.bf16.mxu0 0
      %761 = vmatpush2.bf16.msra.mxu0 0
      %762 = vmatprep.subr.bf16.mxu0 0
      %763 = vmatpush2.bf16.msra.mxu0 0
      %764 = vmatprep.subr.bf16.mxu0 0
      %765 = vmatpush2.bf16.msra.mxu0 0
      %766 = vmatprep.subr.bf16.mxu0 0
      %767 = vmatpush2.bf16.msra.mxu0 0
      %768 = vmatprep.mubr.bf16.mxu0 0
      %769 = vmatmul.mubr.bf16.gmra.mxu0 %v657
      %v770 = vpop.f32.mrf.mxu0
      %v771 = vadd.f32 %v686, %v770
      %v772 = vpop.f32.mrf.mxu0
      %v773 = vpop.f32.mrf.mxu0
      %v774 = vadd.f32 %v686, %v773
      %v775 = vpop.f32.mrf.mxu0
      %776 = vmatprep.mubr.bf16.mxu0 0
      %777 = vmatmul.mubr.bf16.gmra.mxu0 %v658
      %v778 = vpop.f32.mrf.mxu0
      %v779 = vadd.f32 %v686, %v778
      %v780 = vpop.f32.mrf.mxu0
      %v781 = vpop.f32.mrf.mxu0
      %v782 = vadd.f32 %v686, %v781
      %v783 = vpop.f32.mrf.mxu0
      %784 = vmatprep.mubr.bf16.mxu0 0
      %785 = vmatmul.mubr.bf16.gmra.mxu0 %v659
      %v786 = vpop.f32.mrf.mxu0
      %v787 = vadd.f32 %v686, %v786
      %v788 = vpop.f32.mrf.mxu0
      %v789 = vpop.f32.mrf.mxu0
      %v790 = vadd.f32 %v686, %v789
      %v791 = vpop.f32.mrf.mxu0
      %792 = vmatprep.mubr.bf16.mxu0 0
      %793 = vmatmul.mubr.bf16.gmra.mxu0 %v660
      %v794 = vpop.f32.mrf.mxu0
      %v795 = vadd.f32 %v686, %v794
      %v796 = vpop.f32.mrf.mxu0
      %v797 = vpop.f32.mrf.mxu0
      %v798 = vadd.f32 %v686, %v797
      %v799 = vpop.f32.mrf.mxu0
      %800 = vmatprep.mubr.bf16.mxu0 0
      %801 = vmatmul.mubr.bf16.gmra.mxu0 %v661
      %v802 = vpop.f32.mrf.mxu0
      %v803 = vadd.f32 %v686, %v802
      %v804 = vpop.f32.mrf.mxu0
      %v805 = vpop.f32.mrf.mxu0
      %v806 = vadd.f32 %v686, %v805
      %v807 = vpop.f32.mrf.mxu0
      %808 = vmatprep.mubr.bf16.mxu0 0
      %809 = vmatmul.mubr.bf16.gmra.mxu0 %v662
      %v810 = vpop.f32.mrf.mxu0
      %v811 = vadd.f32 %v686, %v810
      %v812 = vpop.f32.mrf.mxu0
      %v813 = vpop.f32.mrf.mxu0
      %v814 = vadd.f32 %v686, %v813
      %v815 = vpop.f32.mrf.mxu0
      %816 = vmatprep.mubr.bf16.mxu0 0
      %817 = vmatmul.mubr.bf16.gmra.mxu0 %v663
      %v818 = vpop.f32.mrf.mxu0
      %v819 = vadd.f32 %v686, %v818
      %v820 = vpop.f32.mrf.mxu0
      %v821 = vpop.f32.mrf.mxu0
      %v822 = vadd.f32 %v686, %v821
      %v823 = vpop.f32.mrf.mxu0
      %824 = vmatprep.mubr.bf16.mxu0 0
      %825 = vmatmul.mubr.bf16.gmra.mxu0 %v664
      %v826 = vpop.f32.mrf.mxu0
      %v827 = vadd.f32 %v686, %v826
      %v828 = vpop.f32.mrf.mxu0
      %v829 = vpop.f32.mrf.mxu0
      %v830 = vadd.f32 %v686, %v829
      %v831 = vpop.f32.mrf.mxu0
      %832 = vdwg.mxu0
      %s833 = scalar_lea.vmem %s317, 64
      %v834 = vld [vmem:[%s833] sm:$0xc]
      %v835 = vld [vmem:[%s833 + $0x4] sm:$0xf]
      %v836 = vld [vmem:[%s833 + $0x8] sm:$0x3]
      %v837 = vld [vmem:[%s833 + $0x10] sm:$0xc]
      %v838 = vld [vmem:[%s833 + $0x14] sm:$0xf]
      %v839 = vld [vmem:[%s833 + $0x18] sm:$0x3]
      %v840 = vld [vmem:[%s833 + $0x20] sm:$0xc]
      %v841 = vld [vmem:[%s833 + $0x24] sm:$0xf]
      %v842 = vld [vmem:[%s833 + $0x28] sm:$0x3]
      %v843 = vld [vmem:[%s833 + $0x30] sm:$0xc]
      %v844 = vld [vmem:[%s833 + $0x34] sm:$0xf]
      %v845 = vld [vmem:[%s833 + $0x38] sm:$0x3]
      %v846 = vld [vmem:[%s833 + $0x40] sm:$0xc]
      %v847 = vld [vmem:[%s833 + $0x44] sm:$0xf]
      %v848 = vld [vmem:[%s833 + $0x48] sm:$0x3]
      %v849 = vld [vmem:[%s833 + $0x50] sm:$0xc]
      %v850 = vld [vmem:[%s833 + $0x54] sm:$0xf]
      %v851 = vld [vmem:[%s833 + $0x58] sm:$0x3]
      %v852 = vld [vmem:[%s833 + $0x60] sm:$0xc]
      %v853 = vld [vmem:[%s833 + $0x64] sm:$0xf]
      %v854 = vld [vmem:[%s833 + $0x68] sm:$0x3]
      %v855 = vld [vmem:[%s833 + $0x70] sm:$0xc]
      %v856 = vld [vmem:[%s833 + $0x74] sm:$0xf]
      %v857 = vld [vmem:[%s833 + $0x78] sm:$0x3]
      %vm882 = vcmask 1041408
      %vm883 = vcmask 1045508
      %vm884 = vmor %vm882, %vm883
      %v885 = vrot.slane %v834, 6
      %v886 = vrot.slane %v885, 4
      %v887 = vrot.slane %v835, 6
      %v888 = vsel %vm884, %v886, %v887
      %v889 = vrot.slane %v887, 4
      %v890 = vrot.slane %v836, 6
      %v891 = vsel %vm884, %v889, %v890
      %v892 = vrot.slane %v837, 6
      %v893 = vrot.slane %v892, 4
      %v894 = vrot.slane %v838, 6
      %v895 = vsel %vm884, %v893, %v894
      %v896 = vrot.slane %v894, 4
      %v897 = vrot.slane %v839, 6
      %v898 = vsel %vm884, %v896, %v897
      %v899 = vrot.slane %v840, 6
      %v900 = vrot.slane %v899, 4
      %v901 = vrot.slane %v841, 6
      %v902 = vsel %vm884, %v900, %v901
      %v903 = vrot.slane %v901, 4
      %v904 = vrot.slane %v842, 6
      %v905 = vsel %vm884, %v903, %v904
      %v906 = vrot.slane %v843, 6
      %v907 = vrot.slane %v906, 4
      %v908 = vrot.slane %v844, 6
      %v909 = vsel %vm884, %v907, %v908
      %v910 = vrot.slane %v908, 4
      %v911 = vrot.slane %v845, 6
      %v912 = vsel %vm884, %v910, %v911
      %v913 = vrot.slane %v846, 6
      %v914 = vrot.slane %v913, 4
      %v915 = vrot.slane %v847, 6
      %v916 = vsel %vm884, %v914, %v915
      %v917 = vrot.slane %v915, 4
      %v918 = vrot.slane %v848, 6
      %v919 = vsel %vm884, %v917, %v918
      %v920 = vrot.slane %v849, 6
      %v921 = vrot.slane %v920, 4
      %v922 = vrot.slane %v850, 6
      %v923 = vsel %vm884, %v921, %v922
      %v924 = vrot.slane %v922, 4
      %v925 = vrot.slane %v851, 6
      %v926 = vsel %vm884, %v924, %v925
      %v927 = vrot.slane %v852, 6
      %v928 = vrot.slane %v927, 4
      %v929 = vrot.slane %v853, 6
      %v930 = vsel %vm884, %v928, %v929
      %v931 = vrot.slane %v929, 4
      %v932 = vrot.slane %v854, 6
      %v933 = vsel %vm884, %v931, %v932
      %v934 = vrot.slane %v855, 6
      %v935 = vrot.slane %v934, 4
      %v936 = vrot.slane %v856, 6
      %v937 = vsel %vm884, %v935, %v936
      %v938 = vrot.slane %v936, 4
      %v939 = vrot.slane %v857, 6
      %v940 = vsel %vm884, %v938, %v939
      %v941 = vld [vmem:[%s3] sm:$0xf]
      %v942 = vld [vmem:[%s3 + $0x4] sm:$0xf]
      %v943 = vld [vmem:[%s3 + $0x8] sm:$0xf]
      %v944 = vld [vmem:[%s3 + $0xc] sm:$0xf]
      %v945 = vld [vmem:[%s3 + $0x10] sm:$0xf]
      %v946 = vld [vmem:[%s3 + $0x14] sm:$0xf]
      %v947 = vld [vmem:[%s3 + $0x18] sm:$0xf]
      %v948 = vld [vmem:[%s3 + $0x1c] sm:$0xf]
      %v949 = vld [vmem:[%s3 + $0x20] sm:$0xf]
      %v950 = vld [vmem:[%s3 + $0x24] sm:$0xf]
      %v951 = vld [vmem:[%s3 + $0x28] sm:$0xf]
      %v952 = vld [vmem:[%s3 + $0x2c] sm:$0xf]
      %v953 = vld [vmem:[%s3 + $0x30] sm:$0xf]
      %v954 = vld [vmem:[%s3 + $0x34] sm:$0xf]
      %v955 = vld [vmem:[%s3 + $0x38] sm:$0xf]
      %v956 = vld [vmem:[%s3 + $0x3c] sm:$0xf]
      %v957 = vld [vmem:[%s4] sm:$0x1]
      %v958 = vlaneseq
      %v959 = vshrl.u32 %v958, 7
      %v960 = vsub.s32 0, %v959
      %v961 = vrot.slane %v957, %v960
      %v962 = vunpack.c.l.b16 %v888
      %v963 = vunpack.c.l.b16 %v891
      %v964 = vunpack.c.l.b16 %v895
      %v965 = vunpack.c.l.b16 %v898
      %v966 = vunpack.c.l.b16 %v902
      %v967 = vunpack.c.l.b16 %v905
      %v968 = vunpack.c.l.b16 %v909
      %v969 = vunpack.c.l.b16 %v912
      %v970 = vunpack.c.l.b16 %v916
      %v971 = vunpack.c.l.b16 %v919
      %v972 = vunpack.c.l.b16 %v923
      %v973 = vunpack.c.l.b16 %v926
      %v974 = vunpack.c.l.b16 %v930
      %v975 = vunpack.c.l.b16 %v933
      %v976 = vunpack.c.l.b16 %v937
      %v977 = vunpack.c.l.b16 %v940
      %v978 = vpack.c.b16 %v963, %v962
      %v979 = vpack.c.b16 %v965, %v964
      %v980 = vpack.c.b16 %v967, %v966
      %v981 = vpack.c.b16 %v969, %v968
      %v982 = vpack.c.b16 %v971, %v970
      %v983 = vpack.c.b16 %v973, %v972
      %v984 = vpack.c.b16 %v975, %v974
      %v985 = vpack.c.b16 %v977, %v976
      %v1010 = vunpack.c.l.b16 %v941
      %v1011 = vunpack.c.l.b16 %v942
      %v1012 = vunpack.c.l.b16 %v943
      %v1013 = vunpack.c.l.b16 %v944
      %v1014 = vunpack.c.l.b16 %v945
      %v1015 = vunpack.c.l.b16 %v946
      %v1016 = vunpack.c.l.b16 %v947
      %v1017 = vunpack.c.l.b16 %v948
      %v1018 = vunpack.c.l.b16 %v949
      %v1019 = vunpack.c.l.b16 %v950
      %v1020 = vunpack.c.l.b16 %v951
      %v1021 = vunpack.c.l.b16 %v952
      %v1022 = vunpack.c.l.b16 %v953
      %v1023 = vunpack.c.l.b16 %v954
      %v1024 = vunpack.c.l.b16 %v955
      %v1025 = vunpack.c.l.b16 %v956
      %v1026 = vpack.c.b16 %v1011, %v1010
      %v1027 = vpack.c.b16 %v1013, %v1012
      %v1028 = vpack.c.b16 %v1015, %v1014
      %v1029 = vpack.c.b16 %v1017, %v1016
      %v1030 = vpack.c.b16 %v1019, %v1018
      %v1031 = vpack.c.b16 %v1021, %v1020
      %v1032 = vpack.c.b16 %v1023, %v1022
      %v1033 = vpack.c.b16 %v1025, %v1024
      %1042 = vmatprep.subr.bf16.mxu0 0
      %1043 = vmatpush1.bf16.msra.mxu0 %v1033
      %1044 = vmatprep.subr.bf16.mxu0 0
      %1045 = vmatpush1.bf16.msra.mxu0 %v1032
      %1046 = vmatprep.subr.bf16.mxu0 0
      %1047 = vmatpush1.bf16.msra.mxu0 %v1031
      %1048 = vmatprep.subr.bf16.mxu0 0
      %1049 = vmatpush1.bf16.msra.mxu0 %v1030
      %1050 = vmatprep.subr.bf16.mxu0 0
      %1051 = vmatpush1.bf16.msra.mxu0 %v1029
      %1052 = vmatprep.subr.bf16.mxu0 0
      %1053 = vmatpush1.bf16.msra.mxu0 %v1028
      %1054 = vmatprep.subr.bf16.mxu0 0
      %1055 = vmatpush1.bf16.msra.mxu0 %v1027
      %1056 = vmatprep.subr.bf16.mxu0 0
      %1057 = vmatpush1.bf16.msra.mxu0 %v1026
      %1058 = vmatprep.subr.bf16.mxu0 0
      %1059 = vmatpush2.bf16.msra.mxu0 0
      %1060 = vmatprep.subr.bf16.mxu0 0
      %1061 = vmatpush2.bf16.msra.mxu0 0
      %1062 = vmatprep.subr.bf16.mxu0 0
      %1063 = vmatpush2.bf16.msra.mxu0 0
      %1064 = vmatprep.subr.bf16.mxu0 0
      %1065 = vmatpush2.bf16.msra.mxu0 0
      %1066 = vmatprep.subr.bf16.mxu0 0
      %1067 = vmatpush2.bf16.msra.mxu0 0
      %1068 = vmatprep.subr.bf16.mxu0 0
      %1069 = vmatpush2.bf16.msra.mxu0 0
      %1070 = vmatprep.subr.bf16.mxu0 0
      %1071 = vmatpush2.bf16.msra.mxu0 0
      %1072 = vmatprep.subr.bf16.mxu0 0
      %1073 = vmatpush2.bf16.msra.mxu0 0
      %1074 = vmatprep.mubr.bf16.mxu0 0
      %1075 = vmatmul.mubr.bf16.gmra.mxu0 %v978
      %v1076 = vpop.f32.mrf.mxu0
      %v1077 = vadd.f32 %v961, %v1076
      %v1078 = vpop.f32.mrf.mxu0
      %v1079 = vpop.f32.mrf.mxu0
      %v1080 = vadd.f32 %v961, %v1079
      %v1081 = vpop.f32.mrf.mxu0
      %1082 = vmatprep.mubr.bf16.mxu0 0
      %1083 = vmatmul.mubr.bf16.gmra.mxu0 %v979
      %v1084 = vpop.f32.mrf.mxu0
      %v1085 = vadd.f32 %v961, %v1084
      %v1086 = vpop.f32.mrf.mxu0
      %v1087 = vpop.f32.mrf.mxu0
      %v1088 = vadd.f32 %v961, %v1087
      %v1089 = vpop.f32.mrf.mxu0
      %1090 = vmatprep.mubr.bf16.mxu0 0
      %1091 = vmatmul.mubr.bf16.gmra.mxu0 %v980
      %v1092 = vpop.f32.mrf.mxu0
      %v1093 = vadd.f32 %v961, %v1092
      %v1094 = vpop.f32.mrf.mxu0
      %v1095 = vpop.f32.mrf.mxu0
      %v1096 = vadd.f32 %v961, %v1095
      %v1097 = vpop.f32.mrf.mxu0
      %1098 = vmatprep.mubr.bf16.mxu0 0
      %1099 = vmatmul.mubr.bf16.gmra.mxu0 %v981
      %v1100 = vpop.f32.mrf.mxu0
      %v1101 = vadd.f32 %v961, %v1100
      %v1102 = vpop.f32.mrf.mxu0
      %v1103 = vpop.f32.mrf.mxu0
      %v1104 = vadd.f32 %v961, %v1103
      %v1105 = vpop.f32.mrf.mxu0
      %1106 = vmatprep.mubr.bf16.mxu0 0
      %1107 = vmatmul.mubr.bf16.gmra.mxu0 %v982
      %v1108 = vpop.f32.mrf.mxu0
      %v1109 = vadd.f32 %v961, %v1108
      %v1110 = vpop.f32.mrf.mxu0
      %v1111 = vpop.f32.mrf.mxu0
      %v1112 = vadd.f32 %v961, %v1111
      %v1113 = vpop.f32.mrf.mxu0
      %1114 = vmatprep.mubr.bf16.mxu0 0
      %1115 = vmatmul.mubr.bf16.gmra.mxu0 %v983
      %v1116 = vpop.f32.mrf.mxu0
      %v1117 = vadd.f32 %v961, %v1116
      %v1118 = vpop.f32.mrf.mxu0
      %v1119 = vpop.f32.mrf.mxu0
      %v1120 = vadd.f32 %v961, %v1119
      %v1121 = vpop.f32.mrf.mxu0
      %1122 = vmatprep.mubr.bf16.mxu0 0
      %1123 = vmatmul.mubr.bf16.gmra.mxu0 %v984
      %v1124 = vpop.f32.mrf.mxu0
      %v1125 = vadd.f32 %v961, %v1124
      %v1126 = vpop.f32.mrf.mxu0
      %v1127 = vpop.f32.mrf.mxu0
      %v1128 = vadd.f32 %v961, %v1127
      %v1129 = vpop.f32.mrf.mxu0
      %1130 = vmatprep.mubr.bf16.mxu0 0
      %1131 = vmatmul.mubr.bf16.gmra.mxu0 %v985
      %v1132 = vpop.f32.mrf.mxu0
      %v1133 = vadd.f32 %v961, %v1132
      %v1134 = vpop.f32.mrf.mxu0
      %v1135 = vpop.f32.mrf.mxu0
      %v1136 = vadd.f32 %v961, %v1135
      %v1137 = vpop.f32.mrf.mxu0
      %1138 = vdwg.mxu0
      %v1139 = vld [vmem:[%s833] sm:$0x8]
      %v1140 = vld [vmem:[%s833 + $0x8] sm:$0x7]
      %v1141 = vld [vmem:[%s833 + $0x10] sm:$0x8]
      %v1142 = vld [vmem:[%s833 + $0x18] sm:$0x7]
      %v1143 = vld [vmem:[%s833 + $0x20] sm:$0x8]
      %v1144 = vld [vmem:[%s833 + $0x28] sm:$0x7]
      %v1145 = vld [vmem:[%s833 + $0x30] sm:$0x8]
      %v1146 = vld [vmem:[%s833 + $0x38] sm:$0x7]
      %v1147 = vld [vmem:[%s833 + $0x40] sm:$0x8]
      %v1148 = vld [vmem:[%s833 + $0x48] sm:$0x7]
      %v1149 = vld [vmem:[%s833 + $0x50] sm:$0x8]
      %v1150 = vld [vmem:[%s833 + $0x58] sm:$0x7]
      %v1151 = vld [vmem:[%s833 + $0x60] sm:$0x8]
      %v1152 = vld [vmem:[%s833 + $0x68] sm:$0x7]
      %v1153 = vld [vmem:[%s833 + $0x70] sm:$0x8]
      %v1154 = vld [vmem:[%s833 + $0x78] sm:$0x7]
      %v1171 = vrot.slane %v1139, 7
      %v1172 = vrot.slane %v1171, 4
      %v1173 = vrot.slane %v835, 7
      %v1174 = vsel %vm384, %v1172, %v1173
      %v1175 = vrot.slane %v1173, 4
      %v1176 = vrot.slane %v1140, 7
      %v1177 = vsel %vm384, %v1175, %v1176
      %v1178 = vrot.slane %v1141, 7
      %v1179 = vrot.slane %v1178, 4
      %v1180 = vrot.slane %v838, 7
      %v1181 = vsel %vm384, %v1179, %v1180
      %v1182 = vrot.slane %v1180, 4
      %v1183 = vrot.slane %v1142, 7
      %v1184 = vsel %vm384, %v1182, %v1183
      %v1185 = vrot.slane %v1143, 7
      %v1186 = vrot.slane %v1185, 4
      %v1187 = vrot.slane %v841, 7
      %v1188 = vsel %vm384, %v1186, %v1187
      %v1189 = vrot.slane %v1187, 4
      %v1190 = vrot.slane %v1144, 7
      %v1191 = vsel %vm384, %v1189, %v1190
      %v1192 = vrot.slane %v1145, 7
      %v1193 = vrot.slane %v1192, 4
      %v1194 = vrot.slane %v844, 7
      %v1195 = vsel %vm384, %v1193, %v1194
      %v1196 = vrot.slane %v1194, 4
      %v1197 = vrot.slane %v1146, 7
      %v1198 = vsel %vm384, %v1196, %v1197
      %v1199 = vrot.slane %v1147, 7
      %v1200 = vrot.slane %v1199, 4
      %v1201 = vrot.slane %v847, 7
      %v1202 = vsel %vm384, %v1200, %v1201
      %v1203 = vrot.slane %v1201, 4
      %v1204 = vrot.slane %v1148, 7
      %v1205 = vsel %vm384, %v1203, %v1204
      %v1206 = vrot.slane %v1149, 7
      %v1207 = vrot.slane %v1206, 4
      %v1208 = vrot.slane %v850, 7
      %v1209 = vsel %vm384, %v1207, %v1208
      %v1210 = vrot.slane %v1208, 4
      %v1211 = vrot.slane %v1150, 7
      %v1212 = vsel %vm384, %v1210, %v1211
      %v1213 = vrot.slane %v1151, 7
      %v1214 = vrot.slane %v1213, 4
      %v1215 = vrot.slane %v853, 7
      %v1216 = vsel %vm384, %v1214, %v1215
      %v1217 = vrot.slane %v1215, 4
      %v1218 = vrot.slane %v1152, 7
      %v1219 = vsel %vm384, %v1217, %v1218
      %v1220 = vrot.slane %v1153, 7
      %v1221 = vrot.slane %v1220, 4
      %v1222 = vrot.slane %v856, 7
      %v1223 = vsel %vm384, %v1221, %v1222
      %v1224 = vrot.slane %v1222, 4
      %v1225 = vrot.slane %v1154, 7
      %v1226 = vsel %vm384, %v1224, %v1225
      %s1227 = scalar_lea.vmem %s3, 64
      %v1228 = vld [vmem:[%s1227] sm:$0xf]
      %v1229 = vld [vmem:[%s1227 + $0x4] sm:$0xf]
      %v1230 = vld [vmem:[%s1227 + $0x8] sm:$0xf]
      %v1231 = vld [vmem:[%s1227 + $0xc] sm:$0xf]
      %v1232 = vld [vmem:[%s1227 + $0x10] sm:$0xf]
      %v1233 = vld [vmem:[%s1227 + $0x14] sm:$0xf]
      %v1234 = vld [vmem:[%s1227 + $0x18] sm:$0xf]
      %v1235 = vld [vmem:[%s1227 + $0x1c] sm:$0xf]
      %v1236 = vld [vmem:[%s1227 + $0x20] sm:$0xf]
      %v1237 = vld [vmem:[%s1227 + $0x24] sm:$0xf]
      %v1238 = vld [vmem:[%s1227 + $0x28] sm:$0xf]
      %v1239 = vld [vmem:[%s1227 + $0x2c] sm:$0xf]
      %v1240 = vld [vmem:[%s1227 + $0x30] sm:$0xf]
      %v1241 = vld [vmem:[%s1227 + $0x34] sm:$0xf]
      %v1242 = vld [vmem:[%s1227 + $0x38] sm:$0xf]
      %v1243 = vld [vmem:[%s1227 + $0x3c] sm:$0xf]
      %v1244 = vunpack.c.l.b16 %v1174
      %v1245 = vunpack.c.l.b16 %v1177
      %v1246 = vunpack.c.l.b16 %v1181
      %v1247 = vunpack.c.l.b16 %v1184
      %v1248 = vunpack.c.l.b16 %v1188
      %v1249 = vunpack.c.l.b16 %v1191
      %v1250 = vunpack.c.l.b16 %v1195
      %v1251 = vunpack.c.l.b16 %v1198
      %v1252 = vunpack.c.l.b16 %v1202
      %v1253 = vunpack.c.l.b16 %v1205
      %v1254 = vunpack.c.l.b16 %v1209
      %v1255 = vunpack.c.l.b16 %v1212
      %v1256 = vunpack.c.l.b16 %v1216
      %v1257 = vunpack.c.l.b16 %v1219
      %v1258 = vunpack.c.l.b16 %v1223
      %v1259 = vunpack.c.l.b16 %v1226
      %v1260 = vpack.c.b16 %v1245, %v1244
      %v1261 = vpack.c.b16 %v1247, %v1246
      %v1262 = vpack.c.b16 %v1249, %v1248
      %v1263 = vpack.c.b16 %v1251, %v1250
      %v1264 = vpack.c.b16 %v1253, %v1252
      %v1265 = vpack.c.b16 %v1255, %v1254
      %v1266 = vpack.c.b16 %v1257, %v1256
      %v1267 = vpack.c.b16 %v1259, %v1258
      %v1292 = vunpack.c.l.b16 %v1228
      %v1293 = vunpack.c.l.b16 %v1229
      %v1294 = vunpack.c.l.b16 %v1230
      %v1295 = vunpack.c.l.b16 %v1231
      %v1296 = vunpack.c.l.b16 %v1232
      %v1297 = vunpack.c.l.b16 %v1233
      %v1298 = vunpack.c.l.b16 %v1234
      %v1299 = vunpack.c.l.b16 %v1235
      %v1300 = vunpack.c.l.b16 %v1236
      %v1301 = vunpack.c.l.b16 %v1237
      %v1302 = vunpack.c.l.b16 %v1238
      %v1303 = vunpack.c.l.b16 %v1239
      %v1304 = vunpack.c.l.b16 %v1240
      %v1305 = vunpack.c.l.b16 %v1241
      %v1306 = vunpack.c.l.b16 %v1242
      %v1307 = vunpack.c.l.b16 %v1243
      %v1308 = vpack.c.b16 %v1293, %v1292
      %v1309 = vpack.c.b16 %v1295, %v1294
      %v1310 = vpack.c.b16 %v1297, %v1296
      %v1311 = vpack.c.b16 %v1299, %v1298
      %v1312 = vpack.c.b16 %v1301, %v1300
      %v1313 = vpack.c.b16 %v1303, %v1302
      %v1314 = vpack.c.b16 %v1305, %v1304
      %v1315 = vpack.c.b16 %v1307, %v1306
      %1324 = vmatprep.subr.bf16.mxu0 0
      %1325 = vmatpush1.bf16.msra.mxu0 %v1315
      %1326 = vmatprep.subr.bf16.mxu0 0
      %1327 = vmatpush1.bf16.msra.mxu0 %v1314
      %1328 = vmatprep.subr.bf16.mxu0 0
      %1329 = vmatpush1.bf16.msra.mxu0 %v1313
      %1330 = vmatprep.subr.bf16.mxu0 0
      %1331 = vmatpush1.bf16.msra.mxu0 %v1312
      %1332 = vmatprep.subr.bf16.mxu0 0
      %1333 = vmatpush1.bf16.msra.mxu0 %v1311
      %1334 = vmatprep.subr.bf16.mxu0 0
      %1335 = vmatpush1.bf16.msra.mxu0 %v1310
      %1336 = vmatprep.subr.bf16.mxu0 0
      %1337 = vmatpush1.bf16.msra.mxu0 %v1309
      %1338 = vmatprep.subr.bf16.mxu0 0
      %1339 = vmatpush1.bf16.msra.mxu0 %v1308
      %1340 = vmatprep.subr.bf16.mxu0 0
      %1341 = vmatpush2.bf16.msra.mxu0 0
      %1342 = vmatprep.subr.bf16.mxu0 0
      %1343 = vmatpush2.bf16.msra.mxu0 0
      %1344 = vmatprep.subr.bf16.mxu0 0
      %1345 = vmatpush2.bf16.msra.mxu0 0
      %1346 = vmatprep.subr.bf16.mxu0 0
      %1347 = vmatpush2.bf16.msra.mxu0 0
      %1348 = vmatprep.subr.bf16.mxu0 0
      %1349 = vmatpush2.bf16.msra.mxu0 0
      %1350 = vmatprep.subr.bf16.mxu0 0
      %1351 = vmatpush2.bf16.msra.mxu0 0
      %1352 = vmatprep.subr.bf16.mxu0 0
      %1353 = vmatpush2.bf16.msra.mxu0 0
      %1354 = vmatprep.subr.bf16.mxu0 0
      %1355 = vmatpush2.bf16.msra.mxu0 0
      %1356 = vmatprep.mubr.bf16.mxu0 0
      %1357 = vmatmul.mubr.bf16.gmra.mxu0 %v1260
      %v1358 = vpop.f32.mrf.mxu0
      %v1359 = vadd.f32 0.0, %v1358
      %v1360 = vpop.f32.mrf.mxu0
      %v1361 = vpop.f32.mrf.mxu0
      %v1362 = vadd.f32 0.0, %v1361
      %v1363 = vpop.f32.mrf.mxu0
      %1364 = vmatprep.mubr.bf16.mxu0 0
      %1365 = vmatmul.mubr.bf16.gmra.mxu0 %v1261
      %v1366 = vpop.f32.mrf.mxu0
      %v1367 = vadd.f32 0.0, %v1366
      %v1368 = vpop.f32.mrf.mxu0
      %v1369 = vpop.f32.mrf.mxu0
      %v1370 = vadd.f32 0.0, %v1369
      %v1371 = vpop.f32.mrf.mxu0
      %1372 = vmatprep.mubr.bf16.mxu0 0
      %1373 = vmatmul.mubr.bf16.gmra.mxu0 %v1262
      %v1374 = vpop.f32.mrf.mxu0
      %v1375 = vadd.f32 0.0, %v1374
      %v1376 = vpop.f32.mrf.mxu0
      %v1377 = vpop.f32.mrf.mxu0
      %v1378 = vadd.f32 0.0, %v1377
      %v1379 = vpop.f32.mrf.mxu0
      %1380 = vmatprep.mubr.bf16.mxu0 0
      %1381 = vmatmul.mubr.bf16.gmra.mxu0 %v1263
      %v1382 = vpop.f32.mrf.mxu0
      %v1383 = vadd.f32 0.0, %v1382
      %v1384 = vpop.f32.mrf.mxu0
      %v1385 = vpop.f32.mrf.mxu0
      %v1386 = vadd.f32 0.0, %v1385
      %v1387 = vpop.f32.mrf.mxu0
      %1388 = vmatprep.mubr.bf16.mxu0 0
      %1389 = vmatmul.mubr.bf16.gmra.mxu0 %v1264
      %v1390 = vpop.f32.mrf.mxu0
      %v1391 = vadd.f32 0.0, %v1390
      %v1392 = vpop.f32.mrf.mxu0
      %v1393 = vpop.f32.mrf.mxu0
      %v1394 = vadd.f32 0.0, %v1393
      %v1395 = vpop.f32.mrf.mxu0
      %1396 = vmatprep.mubr.bf16.mxu0 0
      %1397 = vmatmul.mubr.bf16.gmra.mxu0 %v1265
      %v1398 = vpop.f32.mrf.mxu0
      %v1399 = vadd.f32 0.0, %v1398
      %v1400 = vpop.f32.mrf.mxu0
      %v1401 = vpop.f32.mrf.mxu0
      %v1402 = vadd.f32 0.0, %v1401
      %v1403 = vpop.f32.mrf.mxu0
      %1404 = vmatprep.mubr.bf16.mxu0 0
      %1405 = vmatmul.mubr.bf16.gmra.mxu0 %v1266
      %v1406 = vpop.f32.mrf.mxu0
      %v1407 = vadd.f32 0.0, %v1406
      %v1408 = vpop.f32.mrf.mxu0
      %v1409 = vpop.f32.mrf.mxu0
      %v1410 = vadd.f32 0.0, %v1409
      %v1411 = vpop.f32.mrf.mxu0
      %1412 = vmatprep.mubr.bf16.mxu0 0
      %1413 = vmatmul.mubr.bf16.gmra.mxu0 %v1267
      %v1414 = vpop.f32.mrf.mxu0
      %v1415 = vadd.f32 0.0, %v1414
      %v1416 = vpop.f32.mrf.mxu0
      %v1417 = vpop.f32.mrf.mxu0
      %v1418 = vadd.f32 0.0, %v1417
      %v1419 = vpop.f32.mrf.mxu0
      %1420 = vdwg.mxu0
      %v1421 = vadd.f32 %v1077, %v1359
      %v1422 = vadd.f32 %v1080, %v1362
      %v1423 = vadd.f32 %v1085, %v1367
      %v1424 = vadd.f32 %v1088, %v1370
      %v1425 = vadd.f32 %v1093, %v1375
      %v1426 = vadd.f32 %v1096, %v1378
      %v1427 = vadd.f32 %v1101, %v1383
      %v1428 = vadd.f32 %v1104, %v1386
      %v1429 = vadd.f32 %v1109, %v1391
      %v1430 = vadd.f32 %v1112, %v1394
      %v1431 = vadd.f32 %v1117, %v1399
      %v1432 = vadd.f32 %v1120, %v1402
      %v1433 = vadd.f32 %v1125, %v1407
      %v1434 = vadd.f32 %v1128, %v1410
      %v1435 = vadd.f32 %v1133, %v1415
      %v1436 = vadd.f32 %v1136, %v1418
      %v1437 = vld [vmem:[%s833 + $0x8] sm:$0xf]
      %v1438 = vld [vmem:[%s833 + $0x18] sm:$0xf]
      %v1439 = vld [vmem:[%s833 + $0x28] sm:$0xf]
      %v1440 = vld [vmem:[%s833 + $0x38] sm:$0xf]
      %v1441 = vld [vmem:[%s833 + $0x48] sm:$0xf]
      %v1442 = vld [vmem:[%s833 + $0x58] sm:$0xf]
      %v1443 = vld [vmem:[%s833 + $0x68] sm:$0xf]
      %v1444 = vld [vmem:[%s833 + $0x78] sm:$0xf]
      %s1445 = scalar_lea.vmem %s3, 128
      %v1446 = vld [vmem:[%s1445] sm:$0xf]
      %v1447 = vld [vmem:[%s1445 + $0x4] sm:$0xf]
      %v1448 = vld [vmem:[%s1445 + $0x8] sm:$0xf]
      %v1449 = vld [vmem:[%s1445 + $0xc] sm:$0xf]
      %v1450 = vld [vmem:[%s1445 + $0x10] sm:$0xf]
      %v1451 = vld [vmem:[%s1445 + $0x14] sm:$0xf]
      %v1452 = vld [vmem:[%s1445 + $0x18] sm:$0xf]
      %v1453 = vld [vmem:[%s1445 + $0x1c] sm:$0xf]
      %v1454 = vld [vmem:[%s1445 + $0x20] sm:$0xf]
      %v1455 = vld [vmem:[%s1445 + $0x24] sm:$0xf]
      %v1456 = vld [vmem:[%s1445 + $0x28] sm:$0xf]
      %v1457 = vld [vmem:[%s1445 + $0x2c] sm:$0xf]
      %v1458 = vld [vmem:[%s1445 + $0x30] sm:$0xf]
      %v1459 = vld [vmem:[%s1445 + $0x34] sm:$0xf]
      %v1460 = vld [vmem:[%s1445 + $0x38] sm:$0xf]
      %v1461 = vld [vmem:[%s1445 + $0x3c] sm:$0xf]
      %v1470 = vunpack.c.l.b16 %v835
      %v1471 = vunpack.c.l.b16 %v1437
      %v1472 = vunpack.c.l.b16 %v838
      %v1473 = vunpack.c.l.b16 %v1438
      %v1474 = vunpack.c.l.b16 %v841
      %v1475 = vunpack.c.l.b16 %v1439
      %v1476 = vunpack.c.l.b16 %v844
      %v1477 = vunpack.c.l.b16 %v1440
      %v1478 = vunpack.c.l.b16 %v847
      %v1479 = vunpack.c.l.b16 %v1441
      %v1480 = vunpack.c.l.b16 %v850
      %v1481 = vunpack.c.l.b16 %v1442
      %v1482 = vunpack.c.l.b16 %v853
      %v1483 = vunpack.c.l.b16 %v1443
      %v1484 = vunpack.c.l.b16 %v856
      %v1485 = vunpack.c.l.b16 %v1444
      %v1486 = vpack.c.b16 %v1471, %v1470
      %v1487 = vpack.c.b16 %v1473, %v1472
      %v1488 = vpack.c.b16 %v1475, %v1474
      %v1489 = vpack.c.b16 %v1477, %v1476
      %v1490 = vpack.c.b16 %v1479, %v1478
      %v1491 = vpack.c.b16 %v1481, %v1480
      %v1492 = vpack.c.b16 %v1483, %v1482
      %v1493 = vpack.c.b16 %v1485, %v1484
      %v1518 = vunpack.c.l.b16 %v1446
      %v1519 = vunpack.c.l.b16 %v1447
      %v1520 = vunpack.c.l.b16 %v1448
      %v1521 = vunpack.c.l.b16 %v1449
      %v1522 = vunpack.c.l.b16 %v1450
      %v1523 = vunpack.c.l.b16 %v1451
      %v1524 = vunpack.c.l.b16 %v1452
      %v1525 = vunpack.c.l.b16 %v1453
      %v1526 = vunpack.c.l.b16 %v1454
      %v1527 = vunpack.c.l.b16 %v1455
      %v1528 = vunpack.c.l.b16 %v1456
      %v1529 = vunpack.c.l.b16 %v1457
      %v1530 = vunpack.c.l.b16 %v1458
      %v1531 = vunpack.c.l.b16 %v1459
      %v1532 = vunpack.c.l.b16 %v1460
      %v1533 = vunpack.c.l.b16 %v1461
      %v1534 = vpack.c.b16 %v1519, %v1518
      %v1535 = vpack.c.b16 %v1521, %v1520
      %v1536 = vpack.c.b16 %v1523, %v1522
      %v1537 = vpack.c.b16 %v1525, %v1524
      %v1538 = vpack.c.b16 %v1527, %v1526
      %v1539 = vpack.c.b16 %v1529, %v1528
      %v1540 = vpack.c.b16 %v1531, %v1530
      %v1541 = vpack.c.b16 %v1533, %v1532
      %1550 = vmatprep.subr.bf16.mxu0 0
      %1551 = vmatpush1.bf16.msra.mxu0 %v1541
      %1552 = vmatprep.subr.bf16.mxu0 0
      %1553 = vmatpush1.bf16.msra.mxu0 %v1540
      %1554 = vmatprep.subr.bf16.mxu0 0
      %1555 = vmatpush1.bf16.msra.mxu0 %v1539
      %1556 = vmatprep.subr.bf16.mxu0 0
      %1557 = vmatpush1.bf16.msra.mxu0 %v1538
      %1558 = vmatprep.subr.bf16.mxu0 0
      %1559 = vmatpush1.bf16.msra.mxu0 %v1537
      %1560 = vmatprep.subr.bf16.mxu0 0
      %1561 = vmatpush1.bf16.msra.mxu0 %v1536
      %1562 = vmatprep.subr.bf16.mxu0 0
      %1563 = vmatpush1.bf16.msra.mxu0 %v1535
      %1564 = vmatprep.subr.bf16.mxu0 0
      %1565 = vmatpush1.bf16.msra.mxu0 %v1534
      %1566 = vmatprep.subr.bf16.mxu0 0
      %1567 = vmatpush2.bf16.msra.mxu0 0
      %1568 = vmatprep.subr.bf16.mxu0 0
      %1569 = vmatpush2.bf16.msra.mxu0 0
      %1570 = vmatprep.subr.bf16.mxu0 0
      %1571 = vmatpush2.bf16.msra.mxu0 0
      %1572 = vmatprep.subr.bf16.mxu0 0
      %1573 = vmatpush2.bf16.msra.mxu0 0
      %1574 = vmatprep.subr.bf16.mxu0 0
      %1575 = vmatpush2.bf16.msra.mxu0 0
      %1576 = vmatprep.subr.bf16.mxu0 0
      %1577 = vmatpush2.bf16.msra.mxu0 0
      %1578 = vmatprep.subr.bf16.mxu0 0
      %1579 = vmatpush2.bf16.msra.mxu0 0
      %1580 = vmatprep.subr.bf16.mxu0 0
      %1581 = vmatpush2.bf16.msra.mxu0 0
      %1582 = vmatprep.mubr.bf16.mxu0 0
      %1583 = vmatmul.mubr.bf16.gmra.mxu0 %v1486
      %v1584 = vpop.f32.mrf.mxu0
      %v1585 = vadd.f32 0.0, %v1584
      %v1586 = vpop.f32.mrf.mxu0
      %v1587 = vpop.f32.mrf.mxu0
      %v1588 = vadd.f32 0.0, %v1587
      %v1589 = vpop.f32.mrf.mxu0
      %1590 = vmatprep.mubr.bf16.mxu0 0
      %1591 = vmatmul.mubr.bf16.gmra.mxu0 %v1487
      %v1592 = vpop.f32.mrf.mxu0
      %v1593 = vadd.f32 0.0, %v1592
      %v1594 = vpop.f32.mrf.mxu0
      %v1595 = vpop.f32.mrf.mxu0
      %v1596 = vadd.f32 0.0, %v1595
      %v1597 = vpop.f32.mrf.mxu0
      %1598 = vmatprep.mubr.bf16.mxu0 0
      %1599 = vmatmul.mubr.bf16.gmra.mxu0 %v1488
      %v1600 = vpop.f32.mrf.mxu0
      %v1601 = vadd.f32 0.0, %v1600
      %v1602 = vpop.f32.mrf.mxu0
      %v1603 = vpop.f32.mrf.mxu0
      %v1604 = vadd.f32 0.0, %v1603
      %v1605 = vpop.f32.mrf.mxu0
      %1606 = vmatprep.mubr.bf16.mxu0 0
      %1607 = vmatmul.mubr.bf16.gmra.mxu0 %v1489
      %v1608 = vpop.f32.mrf.mxu0
      %v1609 = vadd.f32 0.0, %v1608
      %v1610 = vpop.f32.mrf.mxu0
      %v1611 = vpop.f32.mrf.mxu0
      %v1612 = vadd.f32 0.0, %v1611
      %v1613 = vpop.f32.mrf.mxu0
      %1614 = vmatprep.mubr.bf16.mxu0 0
      %1615 = vmatmul.mubr.bf16.gmra.mxu0 %v1490
      %v1616 = vpop.f32.mrf.mxu0
      %v1617 = vadd.f32 0.0, %v1616
      %v1618 = vpop.f32.mrf.mxu0
      %v1619 = vpop.f32.mrf.mxu0
      %v1620 = vadd.f32 0.0, %v1619
      %v1621 = vpop.f32.mrf.mxu0
      %1622 = vmatprep.mubr.bf16.mxu0 0
      %1623 = vmatmul.mubr.bf16.gmra.mxu0 %v1491
      %v1624 = vpop.f32.mrf.mxu0
      %v1625 = vadd.f32 0.0, %v1624
      %v1626 = vpop.f32.mrf.mxu0
      %v1627 = vpop.f32.mrf.mxu0
      %v1628 = vadd.f32 0.0, %v1627
      %v1629 = vpop.f32.mrf.mxu0
      %1630 = vmatprep.mubr.bf16.mxu0 0
      %1631 = vmatmul.mubr.bf16.gmra.mxu0 %v1492
      %v1632 = vpop.f32.mrf.mxu0
      %v1633 = vadd.f32 0.0, %v1632
      %v1634 = vpop.f32.mrf.mxu0
      %v1635 = vpop.f32.mrf.mxu0
      %v1636 = vadd.f32 0.0, %v1635
      %v1637 = vpop.f32.mrf.mxu0
      %1638 = vmatprep.mubr.bf16.mxu0 0
      %1639 = vmatmul.mubr.bf16.gmra.mxu0 %v1493
      %v1640 = vpop.f32.mrf.mxu0
      %v1641 = vadd.f32 0.0, %v1640
      %v1642 = vpop.f32.mrf.mxu0
      %v1643 = vpop.f32.mrf.mxu0
      %v1644 = vadd.f32 0.0, %v1643
      %v1645 = vpop.f32.mrf.mxu0
      %1646 = vdwg.mxu0
      %v1647 = vadd.f32 %v1421, %v1585
      %v1648 = vadd.f32 %v1422, %v1588
      %v1649 = vadd.f32 %v1423, %v1593
      %v1650 = vadd.f32 %v1424, %v1596
      %v1651 = vadd.f32 %v1425, %v1601
      %v1652 = vadd.f32 %v1426, %v1604
      %v1653 = vadd.f32 %v1427, %v1609
      %v1654 = vadd.f32 %v1428, %v1612
      %v1655 = vadd.f32 %v1429, %v1617
      %v1656 = vadd.f32 %v1430, %v1620
      %v1657 = vadd.f32 %v1431, %v1625
      %v1658 = vadd.f32 %v1432, %v1628
      %v1659 = vadd.f32 %v1433, %v1633
      %v1660 = vadd.f32 %v1434, %v1636
      %v1661 = vadd.f32 %v1435, %v1641
      %v1662 = vadd.f32 %v1436, %v1644
      %v1663 = vld [vmem:[%s333] sm:$0xc]
      %v1664 = vld [vmem:[%s333 + $0x8] sm:$0x3]
      %v1665 = vld [vmem:[%s333 + $0x10] sm:$0xc]
      %v1666 = vld [vmem:[%s333 + $0x18] sm:$0x3]
      %v1667 = vld [vmem:[%s333 + $0x20] sm:$0xc]
      %v1668 = vld [vmem:[%s333 + $0x28] sm:$0x3]
      %v1669 = vld [vmem:[%s333 + $0x30] sm:$0xc]
      %v1670 = vld [vmem:[%s333 + $0x38] sm:$0x3]
      %v1671 = vld [vmem:[%s333 + $0x40] sm:$0xc]
      %v1672 = vld [vmem:[%s333 + $0x48] sm:$0x3]
      %v1673 = vld [vmem:[%s333 + $0x50] sm:$0xc]
      %v1674 = vld [vmem:[%s333 + $0x58] sm:$0x3]
      %v1675 = vld [vmem:[%s333 + $0x60] sm:$0xc]
      %v1676 = vld [vmem:[%s333 + $0x68] sm:$0x3]
      %v1677 = vld [vmem:[%s333 + $0x70] sm:$0xc]
      %v1678 = vld [vmem:[%s333 + $0x78] sm:$0x3]
      %v1695 = vrot.slane %v1663, 6
      %v1696 = vrot.slane %v1695, 4
      %v1697 = vrot.slane %v335, 6
      %v1698 = vsel %vm884, %v1696, %v1697
      %v1699 = vrot.slane %v1697, 4
      %v1700 = vrot.slane %v1664, 6
      %v1701 = vsel %vm884, %v1699, %v1700
      %v1702 = vrot.slane %v1665, 6
      %v1703 = vrot.slane %v1702, 4
      %v1704 = vrot.slane %v338, 6
      %v1705 = vsel %vm884, %v1703, %v1704
      %v1706 = vrot.slane %v1704, 4
      %v1707 = vrot.slane %v1666, 6
      %v1708 = vsel %vm884, %v1706, %v1707
      %v1709 = vrot.slane %v1667, 6
      %v1710 = vrot.slane %v1709, 4
      %v1711 = vrot.slane %v341, 6
      %v1712 = vsel %vm884, %v1710, %v1711
      %v1713 = vrot.slane %v1711, 4
      %v1714 = vrot.slane %v1668, 6
      %v1715 = vsel %vm884, %v1713, %v1714
      %v1716 = vrot.slane %v1669, 6
      %v1717 = vrot.slane %v1716, 4
      %v1718 = vrot.slane %v344, 6
      %v1719 = vsel %vm884, %v1717, %v1718
      %v1720 = vrot.slane %v1718, 4
      %v1721 = vrot.slane %v1670, 6
      %v1722 = vsel %vm884, %v1720, %v1721
      %v1723 = vrot.slane %v1671, 6
      %v1724 = vrot.slane %v1723, 4
      %v1725 = vrot.slane %v347, 6
      %v1726 = vsel %vm884, %v1724, %v1725
      %v1727 = vrot.slane %v1725, 4
      %v1728 = vrot.slane %v1672, 6
      %v1729 = vsel %vm884, %v1727, %v1728
      %v1730 = vrot.slane %v1673, 6
      %v1731 = vrot.slane %v1730, 4
      %v1732 = vrot.slane %v350, 6
      %v1733 = vsel %vm884, %v1731, %v1732
      %v1734 = vrot.slane %v1732, 4
      %v1735 = vrot.slane %v1674, 6
      %v1736 = vsel %vm884, %v1734, %v1735
      %v1737 = vrot.slane %v1675, 6
      %v1738 = vrot.slane %v1737, 4
      %v1739 = vrot.slane %v353, 6
      %v1740 = vsel %vm884, %v1738, %v1739
      %v1741 = vrot.slane %v1739, 4
      %v1742 = vrot.slane %v1676, 6
      %v1743 = vsel %vm884, %v1741, %v1742
      %v1744 = vrot.slane %v1677, 6
      %v1745 = vrot.slane %v1744, 4
      %v1746 = vrot.slane %v356, 6
      %v1747 = vsel %vm884, %v1745, %v1746
      %v1748 = vrot.slane %v1746, 4
      %v1749 = vrot.slane %v1678, 6
      %v1750 = vsel %vm884, %v1748, %v1749
      %s1751 = scalar_lea.vmem %s3, 192
      %v1752 = vld [vmem:[%s1751] sm:$0xf]
      %v1753 = vld [vmem:[%s1751 + $0x4] sm:$0xf]
      %v1754 = vld [vmem:[%s1751 + $0x8] sm:$0xf]
      %v1755 = vld [vmem:[%s1751 + $0xc] sm:$0xf]
      %v1756 = vld [vmem:[%s1751 + $0x10] sm:$0xf]
      %v1757 = vld [vmem:[%s1751 + $0x14] sm:$0xf]
      %v1758 = vld [vmem:[%s1751 + $0x18] sm:$0xf]
      %v1759 = vld [vmem:[%s1751 + $0x1c] sm:$0xf]
      %v1760 = vld [vmem:[%s1751 + $0x20] sm:$0xf]
      %v1761 = vld [vmem:[%s1751 + $0x24] sm:$0xf]
      %v1762 = vld [vmem:[%s1751 + $0x28] sm:$0xf]
      %v1763 = vld [vmem:[%s1751 + $0x2c] sm:$0xf]
      %v1764 = vld [vmem:[%s1751 + $0x30] sm:$0xf]
      %v1765 = vld [vmem:[%s1751 + $0x34] sm:$0xf]
      %v1766 = vld [vmem:[%s1751 + $0x38] sm:$0xf]
      %v1767 = vld [vmem:[%s1751 + $0x3c] sm:$0xf]
      %v1768 = vunpack.c.l.b16 %v1698
      %v1769 = vunpack.c.l.b16 %v1701
      %v1770 = vunpack.c.l.b16 %v1705
      %v1771 = vunpack.c.l.b16 %v1708
      %v1772 = vunpack.c.l.b16 %v1712
      %v1773 = vunpack.c.l.b16 %v1715
      %v1774 = vunpack.c.l.b16 %v1719
      %v1775 = vunpack.c.l.b16 %v1722
      %v1776 = vunpack.c.l.b16 %v1726
      %v1777 = vunpack.c.l.b16 %v1729
      %v1778 = vunpack.c.l.b16 %v1733
      %v1779 = vunpack.c.l.b16 %v1736
      %v1780 = vunpack.c.l.b16 %v1740
      %v1781 = vunpack.c.l.b16 %v1743
      %v1782 = vunpack.c.l.b16 %v1747
      %v1783 = vunpack.c.l.b16 %v1750
      %v1784 = vpack.c.b16 %v1769, %v1768
      %v1785 = vpack.c.b16 %v1771, %v1770
      %v1786 = vpack.c.b16 %v1773, %v1772
      %v1787 = vpack.c.b16 %v1775, %v1774
      %v1788 = vpack.c.b16 %v1777, %v1776
      %v1789 = vpack.c.b16 %v1779, %v1778
      %v1790 = vpack.c.b16 %v1781, %v1780
      %v1791 = vpack.c.b16 %v1783, %v1782
      %v1816 = vunpack.c.l.b16 %v1752
      %v1817 = vunpack.c.l.b16 %v1753
      %v1818 = vunpack.c.l.b16 %v1754
      %v1819 = vunpack.c.l.b16 %v1755
      %v1820 = vunpack.c.l.b16 %v1756
      %v1821 = vunpack.c.l.b16 %v1757
      %v1822 = vunpack.c.l.b16 %v1758
      %v1823 = vunpack.c.l.b16 %v1759
      %v1824 = vunpack.c.l.b16 %v1760
      %v1825 = vunpack.c.l.b16 %v1761
      %v1826 = vunpack.c.l.b16 %v1762
      %v1827 = vunpack.c.l.b16 %v1763
      %v1828 = vunpack.c.l.b16 %v1764
      %v1829 = vunpack.c.l.b16 %v1765
      %v1830 = vunpack.c.l.b16 %v1766
      %v1831 = vunpack.c.l.b16 %v1767
      %v1832 = vpack.c.b16 %v1817, %v1816
      %v1833 = vpack.c.b16 %v1819, %v1818
      %v1834 = vpack.c.b16 %v1821, %v1820
      %v1835 = vpack.c.b16 %v1823, %v1822
      %v1836 = vpack.c.b16 %v1825, %v1824
      %v1837 = vpack.c.b16 %v1827, %v1826
      %v1838 = vpack.c.b16 %v1829, %v1828
      %v1839 = vpack.c.b16 %v1831, %v1830
      %1848 = vmatprep.subr.bf16.mxu0 0
      %1849 = vmatpush1.bf16.msra.mxu0 %v1839
      %1850 = vmatprep.subr.bf16.mxu0 0
      %1851 = vmatpush1.bf16.msra.mxu0 %v1838
      %1852 = vmatprep.subr.bf16.mxu0 0
      %1853 = vmatpush1.bf16.msra.mxu0 %v1837
      %1854 = vmatprep.subr.bf16.mxu0 0
      %1855 = vmatpush1.bf16.msra.mxu0 %v1836
      %1856 = vmatprep.subr.bf16.mxu0 0
      %1857 = vmatpush1.bf16.msra.mxu0 %v1835
      %1858 = vmatprep.subr.bf16.mxu0 0
      %1859 = vmatpush1.bf16.msra.mxu0 %v1834
      %1860 = vmatprep.subr.bf16.mxu0 0
      %1861 = vmatpush1.bf16.msra.mxu0 %v1833
      %1862 = vmatprep.subr.bf16.mxu0 0
      %1863 = vmatpush1.bf16.msra.mxu0 %v1832
      %1864 = vmatprep.subr.bf16.mxu0 0
      %1865 = vmatpush2.bf16.msra.mxu0 0
      %1866 = vmatprep.subr.bf16.mxu0 0
      %1867 = vmatpush2.bf16.msra.mxu0 0
      %1868 = vmatprep.subr.bf16.mxu0 0
      %1869 = vmatpush2.bf16.msra.mxu0 0
      %1870 = vmatprep.subr.bf16.mxu0 0
      %1871 = vmatpush2.bf16.msra.mxu0 0
      %1872 = vmatprep.subr.bf16.mxu0 0
      %1873 = vmatpush2.bf16.msra.mxu0 0
      %1874 = vmatprep.subr.bf16.mxu0 0
      %1875 = vmatpush2.bf16.msra.mxu0 0
      %1876 = vmatprep.subr.bf16.mxu0 0
      %1877 = vmatpush2.bf16.msra.mxu0 0
      %1878 = vmatprep.subr.bf16.mxu0 0
      %1879 = vmatpush2.bf16.msra.mxu0 0
      %1880 = vmatprep.mubr.bf16.mxu0 0
      %1881 = vmatmul.mubr.bf16.gmra.mxu0 %v1784
      %v1882 = vpop.f32.mrf.mxu0
      %v1883 = vadd.f32 0.0, %v1882
      %v1884 = vpop.f32.mrf.mxu0
      %v1885 = vpop.f32.mrf.mxu0
      %v1886 = vadd.f32 0.0, %v1885
      %v1887 = vpop.f32.mrf.mxu0
      %1888 = vmatprep.mubr.bf16.mxu0 0
      %1889 = vmatmul.mubr.bf16.gmra.mxu0 %v1785
      %v1890 = vpop.f32.mrf.mxu0
      %v1891 = vadd.f32 0.0, %v1890
      %v1892 = vpop.f32.mrf.mxu0
      %v1893 = vpop.f32.mrf.mxu0
      %v1894 = vadd.f32 0.0, %v1893
      %v1895 = vpop.f32.mrf.mxu0
      %1896 = vmatprep.mubr.bf16.mxu0 0
      %1897 = vmatmul.mubr.bf16.gmra.mxu0 %v1786
      %v1898 = vpop.f32.mrf.mxu0
      %v1899 = vadd.f32 0.0, %v1898
      %v1900 = vpop.f32.mrf.mxu0
      %v1901 = vpop.f32.mrf.mxu0
      %v1902 = vadd.f32 0.0, %v1901
      %v1903 = vpop.f32.mrf.mxu0
      %1904 = vmatprep.mubr.bf16.mxu0 0
      %1905 = vmatmul.mubr.bf16.gmra.mxu0 %v1787
      %v1906 = vpop.f32.mrf.mxu0
      %v1907 = vadd.f32 0.0, %v1906
      %v1908 = vpop.f32.mrf.mxu0
      %v1909 = vpop.f32.mrf.mxu0
      %v1910 = vadd.f32 0.0, %v1909
      %v1911 = vpop.f32.mrf.mxu0
      %1912 = vmatprep.mubr.bf16.mxu0 0
      %1913 = vmatmul.mubr.bf16.gmra.mxu0 %v1788
      %v1914 = vpop.f32.mrf.mxu0
      %v1915 = vadd.f32 0.0, %v1914
      %v1916 = vpop.f32.mrf.mxu0
      %v1917 = vpop.f32.mrf.mxu0
      %v1918 = vadd.f32 0.0, %v1917
      %v1919 = vpop.f32.mrf.mxu0
      %1920 = vmatprep.mubr.bf16.mxu0 0
      %1921 = vmatmul.mubr.bf16.gmra.mxu0 %v1789
      %v1922 = vpop.f32.mrf.mxu0
      %v1923 = vadd.f32 0.0, %v1922
      %v1924 = vpop.f32.mrf.mxu0
      %v1925 = vpop.f32.mrf.mxu0
      %v1926 = vadd.f32 0.0, %v1925
      %v1927 = vpop.f32.mrf.mxu0
      %1928 = vmatprep.mubr.bf16.mxu0 0
      %1929 = vmatmul.mubr.bf16.gmra.mxu0 %v1790
      %v1930 = vpop.f32.mrf.mxu0
      %v1931 = vadd.f32 0.0, %v1930
      %v1932 = vpop.f32.mrf.mxu0
      %v1933 = vpop.f32.mrf.mxu0
      %v1934 = vadd.f32 0.0, %v1933
      %v1935 = vpop.f32.mrf.mxu0
      %1936 = vmatprep.mubr.bf16.mxu0 0
      %1937 = vmatmul.mubr.bf16.gmra.mxu0 %v1791
      %v1938 = vpop.f32.mrf.mxu0
      %v1939 = vadd.f32 0.0, %v1938
      %v1940 = vpop.f32.mrf.mxu0
      %v1941 = vpop.f32.mrf.mxu0
      %v1942 = vadd.f32 0.0, %v1941
      %v1943 = vpop.f32.mrf.mxu0
      %1944 = vdwg.mxu0
      %v1945 = vadd.f32 %v1647, %v1883
      %v1946 = vadd.f32 %v1648, %v1886
      %v1947 = vadd.f32 %v1649, %v1891
      %v1948 = vadd.f32 %v1650, %v1894
      %v1949 = vadd.f32 %v1651, %v1899
      %v1950 = vadd.f32 %v1652, %v1902
      %v1951 = vadd.f32 %v1653, %v1907
      %v1952 = vadd.f32 %v1654, %v1910
      %v1953 = vadd.f32 %v1655, %v1915
      %v1954 = vadd.f32 %v1656, %v1918
      %v1955 = vadd.f32 %v1657, %v1923
      %v1956 = vadd.f32 %v1658, %v1926
      %v1957 = vadd.f32 %v1659, %v1931
      %v1958 = vadd.f32 %v1660, %v1934
      %v1959 = vadd.f32 %v1661, %v1939
      %v1960 = vadd.f32 %v1662, %v1942
      %s1961 = scalar_lea.vmem %s3, 256
      %v1962 = vld [vmem:[%s1961] sm:$0xf]
      %v1963 = vld [vmem:[%s1961 + $0x4] sm:$0xf]
      %v1964 = vld [vmem:[%s1961 + $0x8] sm:$0xf]
      %v1965 = vld [vmem:[%s1961 + $0xc] sm:$0xf]
      %v1966 = vld [vmem:[%s1961 + $0x10] sm:$0xf]
      %v1967 = vld [vmem:[%s1961 + $0x14] sm:$0xf]
      %v1968 = vld [vmem:[%s1961 + $0x18] sm:$0xf]
      %v1969 = vld [vmem:[%s1961 + $0x1c] sm:$0xf]
      %v1970 = vld [vmem:[%s1961 + $0x20] sm:$0xf]
      %v1971 = vld [vmem:[%s1961 + $0x24] sm:$0xf]
      %v1972 = vld [vmem:[%s1961 + $0x28] sm:$0xf]
      %v1973 = vld [vmem:[%s1961 + $0x2c] sm:$0xf]
      %v1974 = vld [vmem:[%s1961 + $0x30] sm:$0xf]
      %v1975 = vld [vmem:[%s1961 + $0x34] sm:$0xf]
      %v1976 = vld [vmem:[%s1961 + $0x38] sm:$0xf]
      %v1977 = vld [vmem:[%s1961 + $0x3c] sm:$0xf]
      %v1994 = vunpack.c.l.b16 %v1962
      %v1995 = vunpack.c.l.b16 %v1963
      %v1996 = vunpack.c.l.b16 %v1964
      %v1997 = vunpack.c.l.b16 %v1965
      %v1998 = vunpack.c.l.b16 %v1966
      %v1999 = vunpack.c.l.b16 %v1967
      %v2000 = vunpack.c.l.b16 %v1968
      %v2001 = vunpack.c.l.b16 %v1969
      %v2002 = vunpack.c.l.b16 %v1970
      %v2003 = vunpack.c.l.b16 %v1971
      %v2004 = vunpack.c.l.b16 %v1972
      %v2005 = vunpack.c.l.b16 %v1973
      %v2006 = vunpack.c.l.b16 %v1974
      %v2007 = vunpack.c.l.b16 %v1975
      %v2008 = vunpack.c.l.b16 %v1976
      %v2009 = vunpack.c.l.b16 %v1977
      %v2010 = vpack.c.b16 %v1995, %v1994
      %v2011 = vpack.c.b16 %v1997, %v1996
      %v2012 = vpack.c.b16 %v1999, %v1998
      %v2013 = vpack.c.b16 %v2001, %v2000
      %v2014 = vpack.c.b16 %v2003, %v2002
      %v2015 = vpack.c.b16 %v2005, %v2004
      %v2016 = vpack.c.b16 %v2007, %v2006
      %v2017 = vpack.c.b16 %v2009, %v2008
      %2026 = vmatprep.subr.bf16.mxu0 0
      %2027 = vmatpush1.bf16.msra.mxu0 %v2017
      %2028 = vmatprep.subr.bf16.mxu0 0
      %2029 = vmatpush1.bf16.msra.mxu0 %v2016
      %2030 = vmatprep.subr.bf16.mxu0 0
      %2031 = vmatpush1.bf16.msra.mxu0 %v2015
      %2032 = vmatprep.subr.bf16.mxu0 0
      %2033 = vmatpush1.bf16.msra.mxu0 %v2014
      %2034 = vmatprep.subr.bf16.mxu0 0
      %2035 = vmatpush1.bf16.msra.mxu0 %v2013
      %2036 = vmatprep.subr.bf16.mxu0 0
      %2037 = vmatpush1.bf16.msra.mxu0 %v2012
      %2038 = vmatprep.subr.bf16.mxu0 0
      %2039 = vmatpush1.bf16.msra.mxu0 %v2011
      %2040 = vmatprep.subr.bf16.mxu0 0
      %2041 = vmatpush1.bf16.msra.mxu0 %v2010
      %2042 = vmatprep.subr.bf16.mxu0 0
      %2043 = vmatpush2.bf16.msra.mxu0 0
      %2044 = vmatprep.subr.bf16.mxu0 0
      %2045 = vmatpush2.bf16.msra.mxu0 0
      %2046 = vmatprep.subr.bf16.mxu0 0
      %2047 = vmatpush2.bf16.msra.mxu0 0
      %2048 = vmatprep.subr.bf16.mxu0 0
      %2049 = vmatpush2.bf16.msra.mxu0 0
      %2050 = vmatprep.subr.bf16.mxu0 0
      %2051 = vmatpush2.bf16.msra.mxu0 0
      %2052 = vmatprep.subr.bf16.mxu0 0
      %2053 = vmatpush2.bf16.msra.mxu0 0
      %2054 = vmatprep.subr.bf16.mxu0 0
      %2055 = vmatpush2.bf16.msra.mxu0 0
      %2056 = vmatprep.subr.bf16.mxu0 0
      %2057 = vmatpush2.bf16.msra.mxu0 0
      %2058 = vmatprep.mubr.bf16.mxu0 0
      %2059 = vmatmul.mubr.bf16.gmra.mxu0 %v480
      %v2060 = vpop.f32.mrf.mxu0
      %v2061 = vadd.f32 0.0, %v2060
      %v2062 = vpop.f32.mrf.mxu0
      %v2063 = vpop.f32.mrf.mxu0
      %v2064 = vadd.f32 0.0, %v2063
      %v2065 = vpop.f32.mrf.mxu0
      %2066 = vmatprep.mubr.bf16.mxu0 0
      %2067 = vmatmul.mubr.bf16.gmra.mxu0 %v481
      %v2068 = vpop.f32.mrf.mxu0
      %v2069 = vadd.f32 0.0, %v2068
      %v2070 = vpop.f32.mrf.mxu0
      %v2071 = vpop.f32.mrf.mxu0
      %v2072 = vadd.f32 0.0, %v2071
      %v2073 = vpop.f32.mrf.mxu0
      %2074 = vmatprep.mubr.bf16.mxu0 0
      %2075 = vmatmul.mubr.bf16.gmra.mxu0 %v482
      %v2076 = vpop.f32.mrf.mxu0
      %v2077 = vadd.f32 0.0, %v2076
      %v2078 = vpop.f32.mrf.mxu0
      %v2079 = vpop.f32.mrf.mxu0
      %v2080 = vadd.f32 0.0, %v2079
      %v2081 = vpop.f32.mrf.mxu0
      %2082 = vmatprep.mubr.bf16.mxu0 0
      %2083 = vmatmul.mubr.bf16.gmra.mxu0 %v483
      %v2084 = vpop.f32.mrf.mxu0
      %v2085 = vadd.f32 0.0, %v2084
      %v2086 = vpop.f32.mrf.mxu0
      %v2087 = vpop.f32.mrf.mxu0
      %v2088 = vadd.f32 0.0, %v2087
      %v2089 = vpop.f32.mrf.mxu0
      %2090 = vmatprep.mubr.bf16.mxu0 0
      %2091 = vmatmul.mubr.bf16.gmra.mxu0 %v484
      %v2092 = vpop.f32.mrf.mxu0
      %v2093 = vadd.f32 0.0, %v2092
      %v2094 = vpop.f32.mrf.mxu0
      %v2095 = vpop.f32.mrf.mxu0
      %v2096 = vadd.f32 0.0, %v2095
      %v2097 = vpop.f32.mrf.mxu0
      %2098 = vmatprep.mubr.bf16.mxu0 0
      %2099 = vmatmul.mubr.bf16.gmra.mxu0 %v485
      %v2100 = vpop.f32.mrf.mxu0
      %v2101 = vadd.f32 0.0, %v2100
      %v2102 = vpop.f32.mrf.mxu0
      %v2103 = vpop.f32.mrf.mxu0
      %v2104 = vadd.f32 0.0, %v2103
      %v2105 = vpop.f32.mrf.mxu0
      %2106 = vmatprep.mubr.bf16.mxu0 0
      %2107 = vmatmul.mubr.bf16.gmra.mxu0 %v486
      %v2108 = vpop.f32.mrf.mxu0
      %v2109 = vadd.f32 0.0, %v2108
      %v2110 = vpop.f32.mrf.mxu0
      %v2111 = vpop.f32.mrf.mxu0
      %v2112 = vadd.f32 0.0, %v2111
      %v2113 = vpop.f32.mrf.mxu0
      %2114 = vmatprep.mubr.bf16.mxu0 0
      %2115 = vmatmul.mubr.bf16.gmra.mxu0 %v487
      %v2116 = vpop.f32.mrf.mxu0
      %v2117 = vadd.f32 0.0, %v2116
      %v2118 = vpop.f32.mrf.mxu0
      %v2119 = vpop.f32.mrf.mxu0
      %v2120 = vadd.f32 0.0, %v2119
      %v2121 = vpop.f32.mrf.mxu0
      %2122 = vdwg.mxu0
      %v2123 = vadd.f32 %v1945, %v2061
      %v2124 = vadd.f32 %v1946, %v2064
      %v2125 = vadd.f32 %v1947, %v2069
      %v2126 = vadd.f32 %v1948, %v2072
      %v2127 = vadd.f32 %v1949, %v2077
      %v2128 = vadd.f32 %v1950, %v2080
      %v2129 = vadd.f32 %v1951, %v2085
      %v2130 = vadd.f32 %v1952, %v2088
      %v2131 = vadd.f32 %v1953, %v2093
      %v2132 = vadd.f32 %v1954, %v2096
      %v2133 = vadd.f32 %v1955, %v2101
      %v2134 = vadd.f32 %v1956, %v2104
      %v2135 = vadd.f32 %v1957, %v2109
      %v2136 = vadd.f32 %v1958, %v2112
      %v2137 = vadd.f32 %v1959, %v2117
      %v2138 = vadd.f32 %v1960, %v2120
      %v2139 = vld [vmem:[%s333 + $0x8] sm:$0xf]
      %v2140 = vld [vmem:[%s333 + $0x18] sm:$0xf]
      %v2141 = vld [vmem:[%s333 + $0x28] sm:$0xf]
      %v2142 = vld [vmem:[%s333 + $0x38] sm:$0xf]
      %v2143 = vld [vmem:[%s333 + $0x48] sm:$0xf]
      %v2144 = vld [vmem:[%s333 + $0x58] sm:$0xf]
      %v2145 = vld [vmem:[%s333 + $0x68] sm:$0xf]
      %v2146 = vld [vmem:[%s333 + $0x78] sm:$0xf]
      %s2147 = scalar_lea.vmem %s3, 320
      %v2148 = vld [vmem:[%s2147] sm:$0xf]
      %v2149 = vld [vmem:[%s2147 + $0x4] sm:$0xf]
      %v2150 = vld [vmem:[%s2147 + $0x8] sm:$0xf]
      %v2151 = vld [vmem:[%s2147 + $0xc] sm:$0xf]
      %v2152 = vld [vmem:[%s2147 + $0x10] sm:$0xf]
      %v2153 = vld [vmem:[%s2147 + $0x14] sm:$0xf]
      %v2154 = vld [vmem:[%s2147 + $0x18] sm:$0xf]
      %v2155 = vld [vmem:[%s2147 + $0x1c] sm:$0xf]
      %v2156 = vld [vmem:[%s2147 + $0x20] sm:$0xf]
      %v2157 = vld [vmem:[%s2147 + $0x24] sm:$0xf]
      %v2158 = vld [vmem:[%s2147 + $0x28] sm:$0xf]
      %v2159 = vld [vmem:[%s2147 + $0x2c] sm:$0xf]
      %v2160 = vld [vmem:[%s2147 + $0x30] sm:$0xf]
      %v2161 = vld [vmem:[%s2147 + $0x34] sm:$0xf]
      %v2162 = vld [vmem:[%s2147 + $0x38] sm:$0xf]
      %v2163 = vld [vmem:[%s2147 + $0x3c] sm:$0xf]
      %v2172 = vunpack.c.l.b16 %v335
      %v2173 = vunpack.c.l.b16 %v2139
      %v2174 = vunpack.c.l.b16 %v338
      %v2175 = vunpack.c.l.b16 %v2140
      %v2176 = vunpack.c.l.b16 %v341
      %v2177 = vunpack.c.l.b16 %v2141
      %v2178 = vunpack.c.l.b16 %v344
      %v2179 = vunpack.c.l.b16 %v2142
      %v2180 = vunpack.c.l.b16 %v347
      %v2181 = vunpack.c.l.b16 %v2143
      %v2182 = vunpack.c.l.b16 %v350
      %v2183 = vunpack.c.l.b16 %v2144
      %v2184 = vunpack.c.l.b16 %v353
      %v2185 = vunpack.c.l.b16 %v2145
      %v2186 = vunpack.c.l.b16 %v356
      %v2187 = vunpack.c.l.b16 %v2146
      %v2188 = vpack.c.b16 %v2173, %v2172
      %v2189 = vpack.c.b16 %v2175, %v2174
      %v2190 = vpack.c.b16 %v2177, %v2176
      %v2191 = vpack.c.b16 %v2179, %v2178
      %v2192 = vpack.c.b16 %v2181, %v2180
      %v2193 = vpack.c.b16 %v2183, %v2182
      %v2194 = vpack.c.b16 %v2185, %v2184
      %v2195 = vpack.c.b16 %v2187, %v2186
      %v2220 = vunpack.c.l.b16 %v2148
      %v2221 = vunpack.c.l.b16 %v2149
      %v2222 = vunpack.c.l.b16 %v2150
      %v2223 = vunpack.c.l.b16 %v2151
      %v2224 = vunpack.c.l.b16 %v2152
      %v2225 = vunpack.c.l.b16 %v2153
      %v2226 = vunpack.c.l.b16 %v2154
      %v2227 = vunpack.c.l.b16 %v2155
      %v2228 = vunpack.c.l.b16 %v2156
      %v2229 = vunpack.c.l.b16 %v2157
      %v2230 = vunpack.c.l.b16 %v2158
      %v2231 = vunpack.c.l.b16 %v2159
      %v2232 = vunpack.c.l.b16 %v2160
      %v2233 = vunpack.c.l.b16 %v2161
      %v2234 = vunpack.c.l.b16 %v2162
      %v2235 = vunpack.c.l.b16 %v2163
      %v2236 = vpack.c.b16 %v2221, %v2220
      %v2237 = vpack.c.b16 %v2223, %v2222
      %v2238 = vpack.c.b16 %v2225, %v2224
      %v2239 = vpack.c.b16 %v2227, %v2226
      %v2240 = vpack.c.b16 %v2229, %v2228
      %v2241 = vpack.c.b16 %v2231, %v2230
      %v2242 = vpack.c.b16 %v2233, %v2232
      %v2243 = vpack.c.b16 %v2235, %v2234
      %2252 = vmatprep.subr.bf16.mxu0 0
      %2253 = vmatpush1.bf16.msra.mxu0 %v2243
      %2254 = vmatprep.subr.bf16.mxu0 0
      %2255 = vmatpush1.bf16.msra.mxu0 %v2242
      %2256 = vmatprep.subr.bf16.mxu0 0
      %2257 = vmatpush1.bf16.msra.mxu0 %v2241
      %2258 = vmatprep.subr.bf16.mxu0 0
      %2259 = vmatpush1.bf16.msra.mxu0 %v2240
      %2260 = vmatprep.subr.bf16.mxu0 0
      %2261 = vmatpush1.bf16.msra.mxu0 %v2239
      %2262 = vmatprep.subr.bf16.mxu0 0
      %2263 = vmatpush1.bf16.msra.mxu0 %v2238
      %2264 = vmatprep.subr.bf16.mxu0 0
      %2265 = vmatpush1.bf16.msra.mxu0 %v2237
      %2266 = vmatprep.subr.bf16.mxu0 0
      %2267 = vmatpush1.bf16.msra.mxu0 %v2236
      %2268 = vmatprep.subr.bf16.mxu0 0
      %2269 = vmatpush2.bf16.msra.mxu0 0
      %2270 = vmatprep.subr.bf16.mxu0 0
      %2271 = vmatpush2.bf16.msra.mxu0 0
      %2272 = vmatprep.subr.bf16.mxu0 0
      %2273 = vmatpush2.bf16.msra.mxu0 0
      %2274 = vmatprep.subr.bf16.mxu0 0
      %2275 = vmatpush2.bf16.msra.mxu0 0
      %2276 = vmatprep.subr.bf16.mxu0 0
      %2277 = vmatpush2.bf16.msra.mxu0 0
      %2278 = vmatprep.subr.bf16.mxu0 0
      %2279 = vmatpush2.bf16.msra.mxu0 0
      %2280 = vmatprep.subr.bf16.mxu0 0
      %2281 = vmatpush2.bf16.msra.mxu0 0
      %2282 = vmatprep.subr.bf16.mxu0 0
      %2283 = vmatpush2.bf16.msra.mxu0 0
      %2284 = vmatprep.mubr.bf16.mxu0 0
      %2285 = vmatmul.mubr.bf16.gmra.mxu0 %v2188
      %v2286 = vpop.f32.mrf.mxu0
      %v2287 = vadd.f32 0.0, %v2286
      %v2288 = vpop.f32.mrf.mxu0
      %v2289 = vpop.f32.mrf.mxu0
      %v2290 = vadd.f32 0.0, %v2289
      %v2291 = vpop.f32.mrf.mxu0
      %2292 = vmatprep.mubr.bf16.mxu0 0
      %2293 = vmatmul.mubr.bf16.gmra.mxu0 %v2189
      %v2294 = vpop.f32.mrf.mxu0
      %v2295 = vadd.f32 0.0, %v2294
      %v2296 = vpop.f32.mrf.mxu0
      %v2297 = vpop.f32.mrf.mxu0
      %v2298 = vadd.f32 0.0, %v2297
      %v2299 = vpop.f32.mrf.mxu0
      %2300 = vmatprep.mubr.bf16.mxu0 0
      %2301 = vmatmul.mubr.bf16.gmra.mxu0 %v2190
      %v2302 = vpop.f32.mrf.mxu0
      %v2303 = vadd.f32 0.0, %v2302
      %v2304 = vpop.f32.mrf.mxu0
      %v2305 = vpop.f32.mrf.mxu0
      %v2306 = vadd.f32 0.0, %v2305
      %v2307 = vpop.f32.mrf.mxu0
      %2308 = vmatprep.mubr.bf16.mxu0 0
      %2309 = vmatmul.mubr.bf16.gmra.mxu0 %v2191
      %v2310 = vpop.f32.mrf.mxu0
      %v2311 = vadd.f32 0.0, %v2310
      %v2312 = vpop.f32.mrf.mxu0
      %v2313 = vpop.f32.mrf.mxu0
      %v2314 = vadd.f32 0.0, %v2313
      %v2315 = vpop.f32.mrf.mxu0
      %2316 = vmatprep.mubr.bf16.mxu0 0
      %2317 = vmatmul.mubr.bf16.gmra.mxu0 %v2192
      %v2318 = vpop.f32.mrf.mxu0
      %v2319 = vadd.f32 0.0, %v2318
      %v2320 = vpop.f32.mrf.mxu0
      %v2321 = vpop.f32.mrf.mxu0
      %v2322 = vadd.f32 0.0, %v2321
      %v2323 = vpop.f32.mrf.mxu0
      %2324 = vmatprep.mubr.bf16.mxu0 0
      %2325 = vmatmul.mubr.bf16.gmra.mxu0 %v2193
      %v2326 = vpop.f32.mrf.mxu0
      %v2327 = vadd.f32 0.0, %v2326
      %v2328 = vpop.f32.mrf.mxu0
      %v2329 = vpop.f32.mrf.mxu0
      %v2330 = vadd.f32 0.0, %v2329
      %v2331 = vpop.f32.mrf.mxu0
      %2332 = vmatprep.mubr.bf16.mxu0 0
      %2333 = vmatmul.mubr.bf16.gmra.mxu0 %v2194
      %v2334 = vpop.f32.mrf.mxu0
      %v2335 = vadd.f32 0.0, %v2334
      %v2336 = vpop.f32.mrf.mxu0
      %v2337 = vpop.f32.mrf.mxu0
      %v2338 = vadd.f32 0.0, %v2337
      %v2339 = vpop.f32.mrf.mxu0
      %2340 = vmatprep.mubr.bf16.mxu0 0
      %2341 = vmatmul.mubr.bf16.gmra.mxu0 %v2195
      %v2342 = vpop.f32.mrf.mxu0
      %v2343 = vadd.f32 0.0, %v2342
      %v2344 = vpop.f32.mrf.mxu0
      %v2345 = vpop.f32.mrf.mxu0
      %v2346 = vadd.f32 0.0, %v2345
      %v2347 = vpop.f32.mrf.mxu0
      %2348 = vdwg.mxu0
      %v2349 = vadd.f32 %v2123, %v2287
      %v2350 = vadd.f32 %v2124, %v2290
      %v2351 = vadd.f32 %v2125, %v2295
      %v2352 = vadd.f32 %v2126, %v2298
      %v2353 = vadd.f32 %v2127, %v2303
      %v2354 = vadd.f32 %v2128, %v2306
      %v2355 = vadd.f32 %v2129, %v2311
      %v2356 = vadd.f32 %v2130, %v2314
      %v2357 = vadd.f32 %v2131, %v2319
      %v2358 = vadd.f32 %v2132, %v2322
      %v2359 = vadd.f32 %v2133, %v2327
      %v2360 = vadd.f32 %v2134, %v2330
      %v2361 = vadd.f32 %v2135, %v2335
      %v2362 = vadd.f32 %v2136, %v2338
      %v2363 = vadd.f32 %v2137, %v2343
      %v2364 = vadd.f32 %v2138, %v2346
      %s2365 = scalar_lea.vmem %s317, 128
      %v2366 = vld [vmem:[%s2365] sm:$0xc]
      %v2367 = vld [vmem:[%s2365 + $0x4] sm:$0xf]
      %v2368 = vld [vmem:[%s2365 + $0x8] sm:$0x3]
      %v2369 = vld [vmem:[%s2365 + $0x10] sm:$0xc]
      %v2370 = vld [vmem:[%s2365 + $0x14] sm:$0xf]
      %v2371 = vld [vmem:[%s2365 + $0x18] sm:$0x3]
      %v2372 = vld [vmem:[%s2365 + $0x20] sm:$0xc]
      %v2373 = vld [vmem:[%s2365 + $0x24] sm:$0xf]
      %v2374 = vld [vmem:[%s2365 + $0x28] sm:$0x3]
      %v2375 = vld [vmem:[%s2365 + $0x30] sm:$0xc]
      %v2376 = vld [vmem:[%s2365 + $0x34] sm:$0xf]
      %v2377 = vld [vmem:[%s2365 + $0x38] sm:$0x3]
      %v2378 = vld [vmem:[%s2365 + $0x40] sm:$0xc]
      %v2379 = vld [vmem:[%s2365 + $0x44] sm:$0xf]
      %v2380 = vld [vmem:[%s2365 + $0x48] sm:$0x3]
      %v2381 = vld [vmem:[%s2365 + $0x50] sm:$0xc]
      %v2382 = vld [vmem:[%s2365 + $0x54] sm:$0xf]
      %v2383 = vld [vmem:[%s2365 + $0x58] sm:$0x3]
      %v2384 = vld [vmem:[%s2365 + $0x60] sm:$0xc]
      %v2385 = vld [vmem:[%s2365 + $0x64] sm:$0xf]
      %v2386 = vld [vmem:[%s2365 + $0x68] sm:$0x3]
      %v2387 = vld [vmem:[%s2365 + $0x70] sm:$0xc]
      %v2388 = vld [vmem:[%s2365 + $0x74] sm:$0xf]
      %v2389 = vld [vmem:[%s2365 + $0x78] sm:$0x3]
      %v2414 = vrot.slane %v2366, 6
      %v2415 = vrot.slane %v2414, 4
      %v2416 = vrot.slane %v2367, 6
      %v2417 = vsel %vm884, %v2415, %v2416
      %v2418 = vrot.slane %v2416, 4
      %v2419 = vrot.slane %v2368, 6
      %v2420 = vsel %vm884, %v2418, %v2419
      %v2421 = vrot.slane %v2369, 6
      %v2422 = vrot.slane %v2421, 4
      %v2423 = vrot.slane %v2370, 6
      %v2424 = vsel %vm884, %v2422, %v2423
      %v2425 = vrot.slane %v2423, 4
      %v2426 = vrot.slane %v2371, 6
      %v2427 = vsel %vm884, %v2425, %v2426
      %v2428 = vrot.slane %v2372, 6
      %v2429 = vrot.slane %v2428, 4
      %v2430 = vrot.slane %v2373, 6
      %v2431 = vsel %vm884, %v2429, %v2430
      %v2432 = vrot.slane %v2430, 4
      %v2433 = vrot.slane %v2374, 6
      %v2434 = vsel %vm884, %v2432, %v2433
      %v2435 = vrot.slane %v2375, 6
      %v2436 = vrot.slane %v2435, 4
      %v2437 = vrot.slane %v2376, 6
      %v2438 = vsel %vm884, %v2436, %v2437
      %v2439 = vrot.slane %v2437, 4
      %v2440 = vrot.slane %v2377, 6
      %v2441 = vsel %vm884, %v2439, %v2440
      %v2442 = vrot.slane %v2378, 6
      %v2443 = vrot.slane %v2442, 4
      %v2444 = vrot.slane %v2379, 6
      %v2445 = vsel %vm884, %v2443, %v2444
      %v2446 = vrot.slane %v2444, 4
      %v2447 = vrot.slane %v2380, 6
      %v2448 = vsel %vm884, %v2446, %v2447
      %v2449 = vrot.slane %v2381, 6
      %v2450 = vrot.slane %v2449, 4
      %v2451 = vrot.slane %v2382, 6
      %v2452 = vsel %vm884, %v2450, %v2451
      %v2453 = vrot.slane %v2451, 4
      %v2454 = vrot.slane %v2383, 6
      %v2455 = vsel %vm884, %v2453, %v2454
      %v2456 = vrot.slane %v2384, 6
      %v2457 = vrot.slane %v2456, 4
      %v2458 = vrot.slane %v2385, 6
      %v2459 = vsel %vm884, %v2457, %v2458
      %v2460 = vrot.slane %v2458, 4
      %v2461 = vrot.slane %v2386, 6
      %v2462 = vsel %vm884, %v2460, %v2461
      %v2463 = vrot.slane %v2387, 6
      %v2464 = vrot.slane %v2463, 4
      %v2465 = vrot.slane %v2388, 6
      %v2466 = vsel %vm884, %v2464, %v2465
      %v2467 = vrot.slane %v2465, 4
      %v2468 = vrot.slane %v2389, 6
      %v2469 = vsel %vm884, %v2467, %v2468
      %s2470 = scalar_lea.vmem %s3, 384
      %v2471 = vld [vmem:[%s2470] sm:$0xf]
      %v2472 = vld [vmem:[%s2470 + $0x4] sm:$0xf]
      %v2473 = vld [vmem:[%s2470 + $0x8] sm:$0xf]
      %v2474 = vld [vmem:[%s2470 + $0xc] sm:$0xf]
      %v2475 = vld [vmem:[%s2470 + $0x10] sm:$0xf]
      %v2476 = vld [vmem:[%s2470 + $0x14] sm:$0xf]
      %v2477 = vld [vmem:[%s2470 + $0x18] sm:$0xf]
      %v2478 = vld [vmem:[%s2470 + $0x1c] sm:$0xf]
      %v2479 = vld [vmem:[%s2470 + $0x20] sm:$0xf]
      %v2480 = vld [vmem:[%s2470 + $0x24] sm:$0xf]
      %v2481 = vld [vmem:[%s2470 + $0x28] sm:$0xf]
      %v2482 = vld [vmem:[%s2470 + $0x2c] sm:$0xf]
      %v2483 = vld [vmem:[%s2470 + $0x30] sm:$0xf]
      %v2484 = vld [vmem:[%s2470 + $0x34] sm:$0xf]
      %v2485 = vld [vmem:[%s2470 + $0x38] sm:$0xf]
      %v2486 = vld [vmem:[%s2470 + $0x3c] sm:$0xf]
      %v2487 = vunpack.c.l.b16 %v2417
      %v2488 = vunpack.c.l.b16 %v2420
      %v2489 = vunpack.c.l.b16 %v2424
      %v2490 = vunpack.c.l.b16 %v2427
      %v2491 = vunpack.c.l.b16 %v2431
      %v2492 = vunpack.c.l.b16 %v2434
      %v2493 = vunpack.c.l.b16 %v2438
      %v2494 = vunpack.c.l.b16 %v2441
      %v2495 = vunpack.c.l.b16 %v2445
      %v2496 = vunpack.c.l.b16 %v2448
      %v2497 = vunpack.c.l.b16 %v2452
      %v2498 = vunpack.c.l.b16 %v2455
      %v2499 = vunpack.c.l.b16 %v2459
      %v2500 = vunpack.c.l.b16 %v2462
      %v2501 = vunpack.c.l.b16 %v2466
      %v2502 = vunpack.c.l.b16 %v2469
      %v2503 = vpack.c.b16 %v2488, %v2487
      %v2504 = vpack.c.b16 %v2490, %v2489
      %v2505 = vpack.c.b16 %v2492, %v2491
      %v2506 = vpack.c.b16 %v2494, %v2493
      %v2507 = vpack.c.b16 %v2496, %v2495
      %v2508 = vpack.c.b16 %v2498, %v2497
      %v2509 = vpack.c.b16 %v2500, %v2499
      %v2510 = vpack.c.b16 %v2502, %v2501
      %v2535 = vunpack.c.l.b16 %v2471
      %v2536 = vunpack.c.l.b16 %v2472
      %v2537 = vunpack.c.l.b16 %v2473
      %v2538 = vunpack.c.l.b16 %v2474
      %v2539 = vunpack.c.l.b16 %v2475
      %v2540 = vunpack.c.l.b16 %v2476
      %v2541 = vunpack.c.l.b16 %v2477
      %v2542 = vunpack.c.l.b16 %v2478
      %v2543 = vunpack.c.l.b16 %v2479
      %v2544 = vunpack.c.l.b16 %v2480
      %v2545 = vunpack.c.l.b16 %v2481
      %v2546 = vunpack.c.l.b16 %v2482
      %v2547 = vunpack.c.l.b16 %v2483
      %v2548 = vunpack.c.l.b16 %v2484
      %v2549 = vunpack.c.l.b16 %v2485
      %v2550 = vunpack.c.l.b16 %v2486
      %v2551 = vpack.c.b16 %v2536, %v2535
      %v2552 = vpack.c.b16 %v2538, %v2537
      %v2553 = vpack.c.b16 %v2540, %v2539
      %v2554 = vpack.c.b16 %v2542, %v2541
      %v2555 = vpack.c.b16 %v2544, %v2543
      %v2556 = vpack.c.b16 %v2546, %v2545
      %v2557 = vpack.c.b16 %v2548, %v2547
      %v2558 = vpack.c.b16 %v2550, %v2549
      %2567 = vmatprep.subr.bf16.mxu0 0
      %2568 = vmatpush1.bf16.msra.mxu0 %v2558
      %2569 = vmatprep.subr.bf16.mxu0 0
      %2570 = vmatpush1.bf16.msra.mxu0 %v2557
      %2571 = vmatprep.subr.bf16.mxu0 0
      %2572 = vmatpush1.bf16.msra.mxu0 %v2556
      %2573 = vmatprep.subr.bf16.mxu0 0
      %2574 = vmatpush1.bf16.msra.mxu0 %v2555
      %2575 = vmatprep.subr.bf16.mxu0 0
      %2576 = vmatpush1.bf16.msra.mxu0 %v2554
      %2577 = vmatprep.subr.bf16.mxu0 0
      %2578 = vmatpush1.bf16.msra.mxu0 %v2553
      %2579 = vmatprep.subr.bf16.mxu0 0
      %2580 = vmatpush1.bf16.msra.mxu0 %v2552
      %2581 = vmatprep.subr.bf16.mxu0 0
      %2582 = vmatpush1.bf16.msra.mxu0 %v2551
      %2583 = vmatprep.subr.bf16.mxu0 0
      %2584 = vmatpush2.bf16.msra.mxu0 0
      %2585 = vmatprep.subr.bf16.mxu0 0
      %2586 = vmatpush2.bf16.msra.mxu0 0
      %2587 = vmatprep.subr.bf16.mxu0 0
      %2588 = vmatpush2.bf16.msra.mxu0 0
      %2589 = vmatprep.subr.bf16.mxu0 0
      %2590 = vmatpush2.bf16.msra.mxu0 0
      %2591 = vmatprep.subr.bf16.mxu0 0
      %2592 = vmatpush2.bf16.msra.mxu0 0
      %2593 = vmatprep.subr.bf16.mxu0 0
      %2594 = vmatpush2.bf16.msra.mxu0 0
      %2595 = vmatprep.subr.bf16.mxu0 0
      %2596 = vmatpush2.bf16.msra.mxu0 0
      %2597 = vmatprep.subr.bf16.mxu0 0
      %2598 = vmatpush2.bf16.msra.mxu0 0
      %2599 = vmatprep.mubr.bf16.mxu0 0
      %2600 = vmatmul.mubr.bf16.gmra.mxu0 %v2503
      %v2601 = vpop.f32.mrf.mxu0
      %v2602 = vadd.f32 0.0, %v2601
      %v2603 = vpop.f32.mrf.mxu0
      %v2604 = vpop.f32.mrf.mxu0
      %v2605 = vadd.f32 0.0, %v2604
      %v2606 = vpop.f32.mrf.mxu0
      %2607 = vmatprep.mubr.bf16.mxu0 0
      %2608 = vmatmul.mubr.bf16.gmra.mxu0 %v2504
      %v2609 = vpop.f32.mrf.mxu0
      %v2610 = vadd.f32 0.0, %v2609
      %v2611 = vpop.f32.mrf.mxu0
      %v2612 = vpop.f32.mrf.mxu0
      %v2613 = vadd.f32 0.0, %v2612
      %v2614 = vpop.f32.mrf.mxu0
      %2615 = vmatprep.mubr.bf16.mxu0 0
      %2616 = vmatmul.mubr.bf16.gmra.mxu0 %v2505
      %v2617 = vpop.f32.mrf.mxu0
      %v2618 = vadd.f32 0.0, %v2617
      %v2619 = vpop.f32.mrf.mxu0
      %v2620 = vpop.f32.mrf.mxu0
      %v2621 = vadd.f32 0.0, %v2620
      %v2622 = vpop.f32.mrf.mxu0
      %2623 = vmatprep.mubr.bf16.mxu0 0
      %2624 = vmatmul.mubr.bf16.gmra.mxu0 %v2506
      %v2625 = vpop.f32.mrf.mxu0
      %v2626 = vadd.f32 0.0, %v2625
      %v2627 = vpop.f32.mrf.mxu0
      %v2628 = vpop.f32.mrf.mxu0
      %v2629 = vadd.f32 0.0, %v2628
      %v2630 = vpop.f32.mrf.mxu0
      %2631 = vmatprep.mubr.bf16.mxu0 0
      %2632 = vmatmul.mubr.bf16.gmra.mxu0 %v2507
      %v2633 = vpop.f32.mrf.mxu0
      %v2634 = vadd.f32 0.0, %v2633
      %v2635 = vpop.f32.mrf.mxu0
      %v2636 = vpop.f32.mrf.mxu0
      %v2637 = vadd.f32 0.0, %v2636
      %v2638 = vpop.f32.mrf.mxu0
      %2639 = vmatprep.mubr.bf16.mxu0 0
      %2640 = vmatmul.mubr.bf16.gmra.mxu0 %v2508
      %v2641 = vpop.f32.mrf.mxu0
      %v2642 = vadd.f32 0.0, %v2641
      %v2643 = vpop.f32.mrf.mxu0
      %v2644 = vpop.f32.mrf.mxu0
      %v2645 = vadd.f32 0.0, %v2644
      %v2646 = vpop.f32.mrf.mxu0
      %2647 = vmatprep.mubr.bf16.mxu0 0
      %2648 = vmatmul.mubr.bf16.gmra.mxu0 %v2509
      %v2649 = vpop.f32.mrf.mxu0
      %v2650 = vadd.f32 0.0, %v2649
      %v2651 = vpop.f32.mrf.mxu0
      %v2652 = vpop.f32.mrf.mxu0
      %v2653 = vadd.f32 0.0, %v2652
      %v2654 = vpop.f32.mrf.mxu0
      %2655 = vmatprep.mubr.bf16.mxu0 0
      %2656 = vmatmul.mubr.bf16.gmra.mxu0 %v2510
      %v2657 = vpop.f32.mrf.mxu0
      %v2658 = vadd.f32 0.0, %v2657
      %v2659 = vpop.f32.mrf.mxu0
      %v2660 = vpop.f32.mrf.mxu0
      %v2661 = vadd.f32 0.0, %v2660
      %v2662 = vpop.f32.mrf.mxu0
      %2663 = vdwg.mxu0
      %v2664 = vadd.f32 %v2349, %v2602
      %v2665 = vadd.f32 %v2350, %v2605
      %v2666 = vadd.f32 %v2351, %v2610
      %v2667 = vadd.f32 %v2352, %v2613
      %v2668 = vadd.f32 %v2353, %v2618
      %v2669 = vadd.f32 %v2354, %v2621
      %v2670 = vadd.f32 %v2355, %v2626
      %v2671 = vadd.f32 %v2356, %v2629
      %v2672 = vadd.f32 %v2357, %v2634
      %v2673 = vadd.f32 %v2358, %v2637
      %v2674 = vadd.f32 %v2359, %v2642
      %v2675 = vadd.f32 %v2360, %v2645
      %v2676 = vadd.f32 %v2361, %v2650
      %v2677 = vadd.f32 %v2362, %v2653
      %v2678 = vadd.f32 %v2363, %v2658
      %v2679 = vadd.f32 %v2364, %v2661
      %v2680 = vld [vmem:[%s2365] sm:$0x8]
      %v2681 = vld [vmem:[%s2365 + $0x8] sm:$0x7]
      %v2682 = vld [vmem:[%s2365 + $0x10] sm:$0x8]
      %v2683 = vld [vmem:[%s2365 + $0x18] sm:$0x7]
      %v2684 = vld [vmem:[%s2365 + $0x20] sm:$0x8]
      %v2685 = vld [vmem:[%s2365 + $0x28] sm:$0x7]
      %v2686 = vld [vmem:[%s2365 + $0x30] sm:$0x8]
      %v2687 = vld [vmem:[%s2365 + $0x38] sm:$0x7]
      %v2688 = vld [vmem:[%s2365 + $0x40] sm:$0x8]
      %v2689 = vld [vmem:[%s2365 + $0x48] sm:$0x7]
      %v2690 = vld [vmem:[%s2365 + $0x50] sm:$0x8]
      %v2691 = vld [vmem:[%s2365 + $0x58] sm:$0x7]
      %v2692 = vld [vmem:[%s2365 + $0x60] sm:$0x8]
      %v2693 = vld [vmem:[%s2365 + $0x68] sm:$0x7]
      %v2694 = vld [vmem:[%s2365 + $0x70] sm:$0x8]
      %v2695 = vld [vmem:[%s2365 + $0x78] sm:$0x7]
      %v2712 = vrot.slane %v2680, 7
      %v2713 = vrot.slane %v2712, 4
      %v2714 = vrot.slane %v2367, 7
      %v2715 = vsel %vm384, %v2713, %v2714
      %v2716 = vrot.slane %v2714, 4
      %v2717 = vrot.slane %v2681, 7
      %v2718 = vsel %vm384, %v2716, %v2717
      %v2719 = vrot.slane %v2682, 7
      %v2720 = vrot.slane %v2719, 4
      %v2721 = vrot.slane %v2370, 7
      %v2722 = vsel %vm384, %v2720, %v2721
      %v2723 = vrot.slane %v2721, 4
      %v2724 = vrot.slane %v2683, 7
      %v2725 = vsel %vm384, %v2723, %v2724
      %v2726 = vrot.slane %v2684, 7
      %v2727 = vrot.slane %v2726, 4
      %v2728 = vrot.slane %v2373, 7
      %v2729 = vsel %vm384, %v2727, %v2728
      %v2730 = vrot.slane %v2728, 4
      %v2731 = vrot.slane %v2685, 7
      %v2732 = vsel %vm384, %v2730, %v2731
      %v2733 = vrot.slane %v2686, 7
      %v2734 = vrot.slane %v2733, 4
      %v2735 = vrot.slane %v2376, 7
      %v2736 = vsel %vm384, %v2734, %v2735
      %v2737 = vrot.slane %v2735, 4
      %v2738 = vrot.slane %v2687, 7
      %v2739 = vsel %vm384, %v2737, %v2738
      %v2740 = vrot.slane %v2688, 7
      %v2741 = vrot.slane %v2740, 4
      %v2742 = vrot.slane %v2379, 7
      %v2743 = vsel %vm384, %v2741, %v2742
      %v2744 = vrot.slane %v2742, 4
      %v2745 = vrot.slane %v2689, 7
      %v2746 = vsel %vm384, %v2744, %v2745
      %v2747 = vrot.slane %v2690, 7
      %v2748 = vrot.slane %v2747, 4
      %v2749 = vrot.slane %v2382, 7
      %v2750 = vsel %vm384, %v2748, %v2749
      %v2751 = vrot.slane %v2749, 4
      %v2752 = vrot.slane %v2691, 7
      %v2753 = vsel %vm384, %v2751, %v2752
      %v2754 = vrot.slane %v2692, 7
      %v2755 = vrot.slane %v2754, 4
      %v2756 = vrot.slane %v2385, 7
      %v2757 = vsel %vm384, %v2755, %v2756
      %v2758 = vrot.slane %v2756, 4
      %v2759 = vrot.slane %v2693, 7
      %v2760 = vsel %vm384, %v2758, %v2759
      %v2761 = vrot.slane %v2694, 7
      %v2762 = vrot.slane %v2761, 4
      %v2763 = vrot.slane %v2388, 7
      %v2764 = vsel %vm384, %v2762, %v2763
      %v2765 = vrot.slane %v2763, 4
      %v2766 = vrot.slane %v2695, 7
      %v2767 = vsel %vm384, %v2765, %v2766
      %s2768 = scalar_lea.vmem %s3, 448
      %v2769 = vld [vmem:[%s2768] sm:$0xf]
      %v2770 = vld [vmem:[%s2768 + $0x4] sm:$0xf]
      %v2771 = vld [vmem:[%s2768 + $0x8] sm:$0xf]
      %v2772 = vld [vmem:[%s2768 + $0xc] sm:$0xf]
      %v2773 = vld [vmem:[%s2768 + $0x10] sm:$0xf]
      %v2774 = vld [vmem:[%s2768 + $0x14] sm:$0xf]
      %v2775 = vld [vmem:[%s2768 + $0x18] sm:$0xf]
      %v2776 = vld [vmem:[%s2768 + $0x1c] sm:$0xf]
      %v2777 = vld [vmem:[%s2768 + $0x20] sm:$0xf]
      %v2778 = vld [vmem:[%s2768 + $0x24] sm:$0xf]
      %v2779 = vld [vmem:[%s2768 + $0x28] sm:$0xf]
      %v2780 = vld [vmem:[%s2768 + $0x2c] sm:$0xf]
      %v2781 = vld [vmem:[%s2768 + $0x30] sm:$0xf]
      %v2782 = vld [vmem:[%s2768 + $0x34] sm:$0xf]
      %v2783 = vld [vmem:[%s2768 + $0x38] sm:$0xf]
      %v2784 = vld [vmem:[%s2768 + $0x3c] sm:$0xf]
      %v2785 = vunpack.c.l.b16 %v2715
      %v2786 = vunpack.c.l.b16 %v2718
      %v2787 = vunpack.c.l.b16 %v2722
      %v2788 = vunpack.c.l.b16 %v2725
      %v2789 = vunpack.c.l.b16 %v2729
      %v2790 = vunpack.c.l.b16 %v2732
      %v2791 = vunpack.c.l.b16 %v2736
      %v2792 = vunpack.c.l.b16 %v2739
      %v2793 = vunpack.c.l.b16 %v2743
      %v2794 = vunpack.c.l.b16 %v2746
      %v2795 = vunpack.c.l.b16 %v2750
      %v2796 = vunpack.c.l.b16 %v2753
      %v2797 = vunpack.c.l.b16 %v2757
      %v2798 = vunpack.c.l.b16 %v2760
      %v2799 = vunpack.c.l.b16 %v2764
      %v2800 = vunpack.c.l.b16 %v2767
      %v2801 = vpack.c.b16 %v2786, %v2785
      %v2802 = vpack.c.b16 %v2788, %v2787
      %v2803 = vpack.c.b16 %v2790, %v2789
      %v2804 = vpack.c.b16 %v2792, %v2791
      %v2805 = vpack.c.b16 %v2794, %v2793
      %v2806 = vpack.c.b16 %v2796, %v2795
      %v2807 = vpack.c.b16 %v2798, %v2797
      %v2808 = vpack.c.b16 %v2800, %v2799
      %v2833 = vunpack.c.l.b16 %v2769
      %v2834 = vunpack.c.l.b16 %v2770
      %v2835 = vunpack.c.l.b16 %v2771
      %v2836 = vunpack.c.l.b16 %v2772
      %v2837 = vunpack.c.l.b16 %v2773
      %v2838 = vunpack.c.l.b16 %v2774
      %v2839 = vunpack.c.l.b16 %v2775
      %v2840 = vunpack.c.l.b16 %v2776
      %v2841 = vunpack.c.l.b16 %v2777
      %v2842 = vunpack.c.l.b16 %v2778
      %v2843 = vunpack.c.l.b16 %v2779
      %v2844 = vunpack.c.l.b16 %v2780
      %v2845 = vunpack.c.l.b16 %v2781
      %v2846 = vunpack.c.l.b16 %v2782
      %v2847 = vunpack.c.l.b16 %v2783
      %v2848 = vunpack.c.l.b16 %v2784
      %v2849 = vpack.c.b16 %v2834, %v2833
      %v2850 = vpack.c.b16 %v2836, %v2835
      %v2851 = vpack.c.b16 %v2838, %v2837
      %v2852 = vpack.c.b16 %v2840, %v2839
      %v2853 = vpack.c.b16 %v2842, %v2841
      %v2854 = vpack.c.b16 %v2844, %v2843
      %v2855 = vpack.c.b16 %v2846, %v2845
      %v2856 = vpack.c.b16 %v2848, %v2847
      %2865 = vmatprep.subr.bf16.mxu0 0
      %2866 = vmatpush1.bf16.msra.mxu0 %v2856
      %2867 = vmatprep.subr.bf16.mxu0 0
      %2868 = vmatpush1.bf16.msra.mxu0 %v2855
      %2869 = vmatprep.subr.bf16.mxu0 0
      %2870 = vmatpush1.bf16.msra.mxu0 %v2854
      %2871 = vmatprep.subr.bf16.mxu0 0
      %2872 = vmatpush1.bf16.msra.mxu0 %v2853
      %2873 = vmatprep.subr.bf16.mxu0 0
      %2874 = vmatpush1.bf16.msra.mxu0 %v2852
      %2875 = vmatprep.subr.bf16.mxu0 0
      %2876 = vmatpush1.bf16.msra.mxu0 %v2851
      %2877 = vmatprep.subr.bf16.mxu0 0
      %2878 = vmatpush1.bf16.msra.mxu0 %v2850
      %2879 = vmatprep.subr.bf16.mxu0 0
      %2880 = vmatpush1.bf16.msra.mxu0 %v2849
      %2881 = vmatprep.subr.bf16.mxu0 0
      %2882 = vmatpush2.bf16.msra.mxu0 0
      %2883 = vmatprep.subr.bf16.mxu0 0
      %2884 = vmatpush2.bf16.msra.mxu0 0
      %2885 = vmatprep.subr.bf16.mxu0 0
      %2886 = vmatpush2.bf16.msra.mxu0 0
      %2887 = vmatprep.subr.bf16.mxu0 0
      %2888 = vmatpush2.bf16.msra.mxu0 0
      %2889 = vmatprep.subr.bf16.mxu0 0
      %2890 = vmatpush2.bf16.msra.mxu0 0
      %2891 = vmatprep.subr.bf16.mxu0 0
      %2892 = vmatpush2.bf16.msra.mxu0 0
      %2893 = vmatprep.subr.bf16.mxu0 0
      %2894 = vmatpush2.bf16.msra.mxu0 0
      %2895 = vmatprep.subr.bf16.mxu0 0
      %2896 = vmatpush2.bf16.msra.mxu0 0
      %2897 = vmatprep.mubr.bf16.mxu0 0
      %2898 = vmatmul.mubr.bf16.gmra.mxu0 %v2801
      %v2899 = vpop.f32.mrf.mxu0
      %v2900 = vadd.f32 0.0, %v2899
      %v2901 = vpop.f32.mrf.mxu0
      %v2902 = vpop.f32.mrf.mxu0
      %v2903 = vadd.f32 0.0, %v2902
      %v2904 = vpop.f32.mrf.mxu0
      %2905 = vmatprep.mubr.bf16.mxu0 0
      %2906 = vmatmul.mubr.bf16.gmra.mxu0 %v2802
      %v2907 = vpop.f32.mrf.mxu0
      %v2908 = vadd.f32 0.0, %v2907
      %v2909 = vpop.f32.mrf.mxu0
      %v2910 = vpop.f32.mrf.mxu0
      %v2911 = vadd.f32 0.0, %v2910
      %v2912 = vpop.f32.mrf.mxu0
      %2913 = vmatprep.mubr.bf16.mxu0 0
      %2914 = vmatmul.mubr.bf16.gmra.mxu0 %v2803
      %v2915 = vpop.f32.mrf.mxu0
      %v2916 = vadd.f32 0.0, %v2915
      %v2917 = vpop.f32.mrf.mxu0
      %v2918 = vpop.f32.mrf.mxu0
      %v2919 = vadd.f32 0.0, %v2918
      %v2920 = vpop.f32.mrf.mxu0
      %2921 = vmatprep.mubr.bf16.mxu0 0
      %2922 = vmatmul.mubr.bf16.gmra.mxu0 %v2804
      %v2923 = vpop.f32.mrf.mxu0
      %v2924 = vadd.f32 0.0, %v2923
      %v2925 = vpop.f32.mrf.mxu0
      %v2926 = vpop.f32.mrf.mxu0
      %v2927 = vadd.f32 0.0, %v2926
      %v2928 = vpop.f32.mrf.mxu0
      %2929 = vmatprep.mubr.bf16.mxu0 0
      %2930 = vmatmul.mubr.bf16.gmra.mxu0 %v2805
      %v2931 = vpop.f32.mrf.mxu0
      %v2932 = vadd.f32 0.0, %v2931
      %v2933 = vpop.f32.mrf.mxu0
      %v2934 = vpop.f32.mrf.mxu0
      %v2935 = vadd.f32 0.0, %v2934
      %v2936 = vpop.f32.mrf.mxu0
      %2937 = vmatprep.mubr.bf16.mxu0 0
      %2938 = vmatmul.mubr.bf16.gmra.mxu0 %v2806
      %v2939 = vpop.f32.mrf.mxu0
      %v2940 = vadd.f32 0.0, %v2939
      %v2941 = vpop.f32.mrf.mxu0
      %v2942 = vpop.f32.mrf.mxu0
      %v2943 = vadd.f32 0.0, %v2942
      %v2944 = vpop.f32.mrf.mxu0
      %2945 = vmatprep.mubr.bf16.mxu0 0
      %2946 = vmatmul.mubr.bf16.gmra.mxu0 %v2807
      %v2947 = vpop.f32.mrf.mxu0
      %v2948 = vadd.f32 0.0, %v2947
      %v2949 = vpop.f32.mrf.mxu0
      %v2950 = vpop.f32.mrf.mxu0
      %v2951 = vadd.f32 0.0, %v2950
      %v2952 = vpop.f32.mrf.mxu0
      %2953 = vmatprep.mubr.bf16.mxu0 0
      %2954 = vmatmul.mubr.bf16.gmra.mxu0 %v2808
      %v2955 = vpop.f32.mrf.mxu0
      %v2956 = vadd.f32 0.0, %v2955
      %v2957 = vpop.f32.mrf.mxu0
      %v2958 = vpop.f32.mrf.mxu0
      %v2959 = vadd.f32 0.0, %v2958
      %v2960 = vpop.f32.mrf.mxu0
      %2961 = vdwg.mxu0
      %v2962 = vadd.f32 %v2664, %v2900
      %v2963 = vadd.f32 %v2665, %v2903
      %v2964 = vadd.f32 %v2666, %v2908
      %v2965 = vadd.f32 %v2667, %v2911
      %v2966 = vadd.f32 %v2668, %v2916
      %v2967 = vadd.f32 %v2669, %v2919
      %v2968 = vadd.f32 %v2670, %v2924
      %v2969 = vadd.f32 %v2671, %v2927
      %v2970 = vadd.f32 %v2672, %v2932
      %v2971 = vadd.f32 %v2673, %v2935
      %v2972 = vadd.f32 %v2674, %v2940
      %v2973 = vadd.f32 %v2675, %v2943
      %v2974 = vadd.f32 %v2676, %v2948
      %v2975 = vadd.f32 %v2677, %v2951
      %v2976 = vadd.f32 %v2678, %v2956
      %v2977 = vadd.f32 %v2679, %v2959
      %v2978 = vld [vmem:[%s2365 + $0x8] sm:$0xf]
      %v2979 = vld [vmem:[%s2365 + $0x18] sm:$0xf]
      %v2980 = vld [vmem:[%s2365 + $0x28] sm:$0xf]
      %v2981 = vld [vmem:[%s2365 + $0x38] sm:$0xf]
      %v2982 = vld [vmem:[%s2365 + $0x48] sm:$0xf]
      %v2983 = vld [vmem:[%s2365 + $0x58] sm:$0xf]
      %v2984 = vld [vmem:[%s2365 + $0x68] sm:$0xf]
      %v2985 = vld [vmem:[%s2365 + $0x78] sm:$0xf]
      %s2986 = scalar_lea.vmem %s3, 512
      %v2987 = vld [vmem:[%s2986] sm:$0xf]
      %v2988 = vld [vmem:[%s2986 + $0x4] sm:$0xf]
      %v2989 = vld [vmem:[%s2986 + $0x8] sm:$0xf]
      %v2990 = vld [vmem:[%s2986 + $0xc] sm:$0xf]
      %v2991 = vld [vmem:[%s2986 + $0x10] sm:$0xf]
      %v2992 = vld [vmem:[%s2986 + $0x14] sm:$0xf]
      %v2993 = vld [vmem:[%s2986 + $0x18] sm:$0xf]
      %v2994 = vld [vmem:[%s2986 + $0x1c] sm:$0xf]
      %v2995 = vld [vmem:[%s2986 + $0x20] sm:$0xf]
      %v2996 = vld [vmem:[%s2986 + $0x24] sm:$0xf]
      %v2997 = vld [vmem:[%s2986 + $0x28] sm:$0xf]
      %v2998 = vld [vmem:[%s2986 + $0x2c] sm:$0xf]
      %v2999 = vld [vmem:[%s2986 + $0x30] sm:$0xf]
      %v3000 = vld [vmem:[%s2986 + $0x34] sm:$0xf]
      %v3001 = vld [vmem:[%s2986 + $0x38] sm:$0xf]
      %v3002 = vld [vmem:[%s2986 + $0x3c] sm:$0xf]
      %v3011 = vunpack.c.l.b16 %v2367
      %v3012 = vunpack.c.l.b16 %v2978
      %v3013 = vunpack.c.l.b16 %v2370
      %v3014 = vunpack.c.l.b16 %v2979
      %v3015 = vunpack.c.l.b16 %v2373
      %v3016 = vunpack.c.l.b16 %v2980
      %v3017 = vunpack.c.l.b16 %v2376
      %v3018 = vunpack.c.l.b16 %v2981
      %v3019 = vunpack.c.l.b16 %v2379
      %v3020 = vunpack.c.l.b16 %v2982
      %v3021 = vunpack.c.l.b16 %v2382
      %v3022 = vunpack.c.l.b16 %v2983
      %v3023 = vunpack.c.l.b16 %v2385
      %v3024 = vunpack.c.l.b16 %v2984
      %v3025 = vunpack.c.l.b16 %v2388
      %v3026 = vunpack.c.l.b16 %v2985
      %v3027 = vpack.c.b16 %v3012, %v3011
      %v3028 = vpack.c.b16 %v3014, %v3013
      %v3029 = vpack.c.b16 %v3016, %v3015
      %v3030 = vpack.c.b16 %v3018, %v3017
      %v3031 = vpack.c.b16 %v3020, %v3019
      %v3032 = vpack.c.b16 %v3022, %v3021
      %v3033 = vpack.c.b16 %v3024, %v3023
      %v3034 = vpack.c.b16 %v3026, %v3025
      %v3059 = vunpack.c.l.b16 %v2987
      %v3060 = vunpack.c.l.b16 %v2988
      %v3061 = vunpack.c.l.b16 %v2989
      %v3062 = vunpack.c.l.b16 %v2990
      %v3063 = vunpack.c.l.b16 %v2991
      %v3064 = vunpack.c.l.b16 %v2992
      %v3065 = vunpack.c.l.b16 %v2993
      %v3066 = vunpack.c.l.b16 %v2994
      %v3067 = vunpack.c.l.b16 %v2995
      %v3068 = vunpack.c.l.b16 %v2996
      %v3069 = vunpack.c.l.b16 %v2997
      %v3070 = vunpack.c.l.b16 %v2998
      %v3071 = vunpack.c.l.b16 %v2999
      %v3072 = vunpack.c.l.b16 %v3000
      %v3073 = vunpack.c.l.b16 %v3001
      %v3074 = vunpack.c.l.b16 %v3002
      %v3075 = vpack.c.b16 %v3060, %v3059
      %v3076 = vpack.c.b16 %v3062, %v3061
      %v3077 = vpack.c.b16 %v3064, %v3063
      %v3078 = vpack.c.b16 %v3066, %v3065
      %v3079 = vpack.c.b16 %v3068, %v3067
      %v3080 = vpack.c.b16 %v3070, %v3069
      %v3081 = vpack.c.b16 %v3072, %v3071
      %v3082 = vpack.c.b16 %v3074, %v3073
      %3091 = vmatprep.subr.bf16.mxu0 0
      %3092 = vmatpush1.bf16.msra.mxu0 %v3082
      %3093 = vmatprep.subr.bf16.mxu0 0
      %3094 = vmatpush1.bf16.msra.mxu0 %v3081
      %3095 = vmatprep.subr.bf16.mxu0 0
      %3096 = vmatpush1.bf16.msra.mxu0 %v3080
      %3097 = vmatprep.subr.bf16.mxu0 0
      %3098 = vmatpush1.bf16.msra.mxu0 %v3079
      %3099 = vmatprep.subr.bf16.mxu0 0
      %3100 = vmatpush1.bf16.msra.mxu0 %v3078
      %3101 = vmatprep.subr.bf16.mxu0 0
      %3102 = vmatpush1.bf16.msra.mxu0 %v3077
      %3103 = vmatprep.subr.bf16.mxu0 0
      %3104 = vmatpush1.bf16.msra.mxu0 %v3076
      %3105 = vmatprep.subr.bf16.mxu0 0
      %3106 = vmatpush1.bf16.msra.mxu0 %v3075
      %3107 = vmatprep.subr.bf16.mxu0 0
      %3108 = vmatpush2.bf16.msra.mxu0 0
      %3109 = vmatprep.subr.bf16.mxu0 0
      %3110 = vmatpush2.bf16.msra.mxu0 0
      %3111 = vmatprep.subr.bf16.mxu0 0
      %3112 = vmatpush2.bf16.msra.mxu0 0
      %3113 = vmatprep.subr.bf16.mxu0 0
      %3114 = vmatpush2.bf16.msra.mxu0 0
      %3115 = vmatprep.subr.bf16.mxu0 0
      %3116 = vmatpush2.bf16.msra.mxu0 0
      %3117 = vmatprep.subr.bf16.mxu0 0
      %3118 = vmatpush2.bf16.msra.mxu0 0
      %3119 = vmatprep.subr.bf16.mxu0 0
      %3120 = vmatpush2.bf16.msra.mxu0 0
      %3121 = vmatprep.subr.bf16.mxu0 0
      %3122 = vmatpush2.bf16.msra.mxu0 0
      %3123 = vmatprep.mubr.bf16.mxu0 0
      %3124 = vmatmul.mubr.bf16.gmra.mxu0 %v3027
      %v3125 = vpop.f32.mrf.mxu0
      %v3126 = vadd.f32 0.0, %v3125
      %v3127 = vpop.f32.mrf.mxu0
      %v3128 = vpop.f32.mrf.mxu0
      %v3129 = vadd.f32 0.0, %v3128
      %v3130 = vpop.f32.mrf.mxu0
      %3131 = vmatprep.mubr.bf16.mxu0 0
      %3132 = vmatmul.mubr.bf16.gmra.mxu0 %v3028
      %v3133 = vpop.f32.mrf.mxu0
      %v3134 = vadd.f32 0.0, %v3133
      %v3135 = vpop.f32.mrf.mxu0
      %v3136 = vpop.f32.mrf.mxu0
      %v3137 = vadd.f32 0.0, %v3136
      %v3138 = vpop.f32.mrf.mxu0
      %3139 = vmatprep.mubr.bf16.mxu0 0
      %3140 = vmatmul.mubr.bf16.gmra.mxu0 %v3029
      %v3141 = vpop.f32.mrf.mxu0
      %v3142 = vadd.f32 0.0, %v3141
      %v3143 = vpop.f32.mrf.mxu0
      %v3144 = vpop.f32.mrf.mxu0
      %v3145 = vadd.f32 0.0, %v3144
      %v3146 = vpop.f32.mrf.mxu0
      %3147 = vmatprep.mubr.bf16.mxu0 0
      %3148 = vmatmul.mubr.bf16.gmra.mxu0 %v3030
      %v3149 = vpop.f32.mrf.mxu0
      %v3150 = vadd.f32 0.0, %v3149
      %v3151 = vpop.f32.mrf.mxu0
      %v3152 = vpop.f32.mrf.mxu0
      %v3153 = vadd.f32 0.0, %v3152
      %v3154 = vpop.f32.mrf.mxu0
      %3155 = vmatprep.mubr.bf16.mxu0 0
      %3156 = vmatmul.mubr.bf16.gmra.mxu0 %v3031
      %v3157 = vpop.f32.mrf.mxu0
      %v3158 = vadd.f32 0.0, %v3157
      %v3159 = vpop.f32.mrf.mxu0
      %v3160 = vpop.f32.mrf.mxu0
      %v3161 = vadd.f32 0.0, %v3160
      %v3162 = vpop.f32.mrf.mxu0
      %3163 = vmatprep.mubr.bf16.mxu0 0
      %3164 = vmatmul.mubr.bf16.gmra.mxu0 %v3032
      %v3165 = vpop.f32.mrf.mxu0
      %v3166 = vadd.f32 0.0, %v3165
      %v3167 = vpop.f32.mrf.mxu0
      %v3168 = vpop.f32.mrf.mxu0
      %v3169 = vadd.f32 0.0, %v3168
      %v3170 = vpop.f32.mrf.mxu0
      %3171 = vmatprep.mubr.bf16.mxu0 0
      %3172 = vmatmul.mubr.bf16.gmra.mxu0 %v3033
      %v3173 = vpop.f32.mrf.mxu0
      %v3174 = vadd.f32 0.0, %v3173
      %v3175 = vpop.f32.mrf.mxu0
      %v3176 = vpop.f32.mrf.mxu0
      %v3177 = vadd.f32 0.0, %v3176
      %v3178 = vpop.f32.mrf.mxu0
      %3179 = vmatprep.mubr.bf16.mxu0 0
      %3180 = vmatmul.mubr.bf16.gmra.mxu0 %v3034
      %v3181 = vpop.f32.mrf.mxu0
      %v3182 = vadd.f32 0.0, %v3181
      %v3183 = vpop.f32.mrf.mxu0
      %v3184 = vpop.f32.mrf.mxu0
      %v3185 = vadd.f32 0.0, %v3184
      %v3186 = vpop.f32.mrf.mxu0
      %3187 = vdwg.mxu0
      %v3188 = vadd.f32 %v2962, %v3126
      %v3189 = vadd.f32 %v2963, %v3129
      %v3190 = vadd.f32 %v2964, %v3134
      %v3191 = vadd.f32 %v2965, %v3137
      %v3192 = vadd.f32 %v2966, %v3142
      %v3193 = vadd.f32 %v2967, %v3145
      %v3194 = vadd.f32 %v2968, %v3150
      %v3195 = vadd.f32 %v2969, %v3153
      %v3196 = vadd.f32 %v2970, %v3158
      %v3197 = vadd.f32 %v2971, %v3161
      %v3198 = vadd.f32 %v2972, %v3166
      %v3199 = vadd.f32 %v2973, %v3169
      %v3200 = vadd.f32 %v2974, %v3174
      %v3201 = vadd.f32 %v2975, %v3177
      %v3202 = vadd.f32 %v2976, %v3182
      %v3203 = vadd.f32 %v2977, %v3185
      %v3204 = vmax.f32 %v3188, 0.0
      %v3205 = vmax.f32 %v3189, 0.0
      %v3206 = vmax.f32 %v3190, 0.0
      %v3207 = vmax.f32 %v3191, 0.0
      %v3208 = vmax.f32 %v3192, 0.0
      %v3209 = vmax.f32 %v3193, 0.0
      %v3210 = vmax.f32 %v3194, 0.0
      %v3211 = vmax.f32 %v3195, 0.0
      %v3212 = vmax.f32 %v3196, 0.0
      %v3213 = vmax.f32 %v3197, 0.0
      %v3214 = vmax.f32 %v3198, 0.0
      %v3215 = vmax.f32 %v3199, 0.0
      %v3216 = vmax.f32 %v3200, 0.0
      %v3217 = vmax.f32 %v3201, 0.0
      %v3218 = vmax.f32 %v3202, 0.0
      %v3219 = vmax.f32 %v3203, 0.0
      %v3220 = vpack.c.bf16 %v3205, %v3204
      %v3221 = vpack.c.bf16 %v3207, %v3206
      %v3222 = vpack.c.bf16 %v3209, %v3208
      %v3223 = vpack.c.bf16 %v3211, %v3210
      %v3224 = vpack.c.bf16 %v3213, %v3212
      %v3225 = vpack.c.bf16 %v3215, %v3214
      %v3226 = vpack.c.bf16 %v3217, %v3216
      %v3227 = vpack.c.bf16 %v3219, %v3218
      %s3228 = scalar_lea.vmem %s5, 64
      %v3229 = vld [vmem:[%s3228] sm:$0xf]
      %v3230 = vld [vmem:[%s3228 + $0x4] sm:$0xf]
      %v3231 = vld [vmem:[%s3228 + $0x8] sm:$0xf]
      %v3232 = vld [vmem:[%s3228 + $0xc] sm:$0xf]
      %v3233 = vld [vmem:[%s3228 + $0x10] sm:$0xf]
      %v3234 = vld [vmem:[%s3228 + $0x14] sm:$0xf]
      %v3235 = vld [vmem:[%s3228 + $0x18] sm:$0xf]
      %v3236 = vld [vmem:[%s3228 + $0x1c] sm:$0xf]
      %v3237 = vld [vmem:[%s3228 + $0x20] sm:$0xf]
      %v3238 = vld [vmem:[%s3228 + $0x24] sm:$0xf]
      %v3239 = vld [vmem:[%s3228 + $0x28] sm:$0xf]
      %v3240 = vld [vmem:[%s3228 + $0x2c] sm:$0xf]
      %v3241 = vld [vmem:[%s3228 + $0x30] sm:$0xf]
      %v3242 = vld [vmem:[%s3228 + $0x34] sm:$0xf]
      %v3243 = vld [vmem:[%s3228 + $0x38] sm:$0xf]
      %v3244 = vld [vmem:[%s3228 + $0x3c] sm:$0xf]
      %v3261 = vunpack.c.l.b16 %v3229
      %v3262 = vunpack.c.l.b16 %v3230
      %v3263 = vunpack.c.l.b16 %v3231
      %v3264 = vunpack.c.l.b16 %v3232
      %v3265 = vunpack.c.l.b16 %v3233
      %v3266 = vunpack.c.l.b16 %v3234
      %v3267 = vunpack.c.l.b16 %v3235
      %v3268 = vunpack.c.l.b16 %v3236
      %v3269 = vunpack.c.l.b16 %v3237
      %v3270 = vunpack.c.l.b16 %v3238
      %v3271 = vunpack.c.l.b16 %v3239
      %v3272 = vunpack.c.l.b16 %v3240
      %v3273 = vunpack.c.l.b16 %v3241
      %v3274 = vunpack.c.l.b16 %v3242
      %v3275 = vunpack.c.l.b16 %v3243
      %v3276 = vunpack.c.l.b16 %v3244
      %v3277 = vpack.c.b16 %v3262, %v3261
      %v3278 = vpack.c.b16 %v3264, %v3263
      %v3279 = vpack.c.b16 %v3266, %v3265
      %v3280 = vpack.c.b16 %v3268, %v3267
      %v3281 = vpack.c.b16 %v3270, %v3269
      %v3282 = vpack.c.b16 %v3272, %v3271
      %v3283 = vpack.c.b16 %v3274, %v3273
      %v3284 = vpack.c.b16 %v3276, %v3275
      %3293 = vmatprep.subr.bf16.mxu0 0
      %3294 = vmatpush1.bf16.msra.mxu0 %v3284
      %3295 = vmatprep.subr.bf16.mxu0 0
      %3296 = vmatpush1.bf16.msra.mxu0 %v3283
      %3297 = vmatprep.subr.bf16.mxu0 0
      %3298 = vmatpush1.bf16.msra.mxu0 %v3282
      %3299 = vmatprep.subr.bf16.mxu0 0
      %3300 = vmatpush1.bf16.msra.mxu0 %v3281
      %3301 = vmatprep.subr.bf16.mxu0 0
      %3302 = vmatpush1.bf16.msra.mxu0 %v3280
      %3303 = vmatprep.subr.bf16.mxu0 0
      %3304 = vmatpush1.bf16.msra.mxu0 %v3279
      %3305 = vmatprep.subr.bf16.mxu0 0
      %3306 = vmatpush1.bf16.msra.mxu0 %v3278
      %3307 = vmatprep.subr.bf16.mxu0 0
      %3308 = vmatpush1.bf16.msra.mxu0 %v3277
      %3309 = vmatprep.subr.bf16.mxu0 0
      %3310 = vmatpush2.bf16.msra.mxu0 0
      %3311 = vmatprep.subr.bf16.mxu0 0
      %3312 = vmatpush2.bf16.msra.mxu0 0
      %3313 = vmatprep.subr.bf16.mxu0 0
      %3314 = vmatpush2.bf16.msra.mxu0 0
      %3315 = vmatprep.subr.bf16.mxu0 0
      %3316 = vmatpush2.bf16.msra.mxu0 0
      %3317 = vmatprep.subr.bf16.mxu0 0
      %3318 = vmatpush2.bf16.msra.mxu0 0
      %3319 = vmatprep.subr.bf16.mxu0 0
      %3320 = vmatpush2.bf16.msra.mxu0 0
      %3321 = vmatprep.subr.bf16.mxu0 0
      %3322 = vmatpush2.bf16.msra.mxu0 0
      %3323 = vmatprep.subr.bf16.mxu0 0
      %3324 = vmatpush2.bf16.msra.mxu0 0
      %3325 = vmatprep.mubr.bf16.mxu0 0
      %3326 = vmatmul.mubr.bf16.gmra.mxu0 %v3220
      %v3327 = vpop.f32.mrf.mxu0
      %v3328 = vadd.f32 0.0, %v3327
      %v3329 = vpop.f32.mrf.mxu0
      %v3330 = vpop.f32.mrf.mxu0
      %v3331 = vadd.f32 0.0, %v3330
      %v3332 = vpop.f32.mrf.mxu0
      %3333 = vmatprep.mubr.bf16.mxu0 0
      %3334 = vmatmul.mubr.bf16.gmra.mxu0 %v3221
      %v3335 = vpop.f32.mrf.mxu0
      %v3336 = vadd.f32 0.0, %v3335
      %v3337 = vpop.f32.mrf.mxu0
      %v3338 = vpop.f32.mrf.mxu0
      %v3339 = vadd.f32 0.0, %v3338
      %v3340 = vpop.f32.mrf.mxu0
      %3341 = vmatprep.mubr.bf16.mxu0 0
      %3342 = vmatmul.mubr.bf16.gmra.mxu0 %v3222
      %v3343 = vpop.f32.mrf.mxu0
      %v3344 = vadd.f32 0.0, %v3343
      %v3345 = vpop.f32.mrf.mxu0
      %v3346 = vpop.f32.mrf.mxu0
      %v3347 = vadd.f32 0.0, %v3346
      %v3348 = vpop.f32.mrf.mxu0
      %3349 = vmatprep.mubr.bf16.mxu0 0
      %3350 = vmatmul.mubr.bf16.gmra.mxu0 %v3223
      %v3351 = vpop.f32.mrf.mxu0
      %v3352 = vadd.f32 0.0, %v3351
      %v3353 = vpop.f32.mrf.mxu0
      %v3354 = vpop.f32.mrf.mxu0
      %v3355 = vadd.f32 0.0, %v3354
      %v3356 = vpop.f32.mrf.mxu0
      %3357 = vmatprep.mubr.bf16.mxu0 0
      %3358 = vmatmul.mubr.bf16.gmra.mxu0 %v3224
      %v3359 = vpop.f32.mrf.mxu0
      %v3360 = vadd.f32 0.0, %v3359
      %v3361 = vpop.f32.mrf.mxu0
      %v3362 = vpop.f32.mrf.mxu0
      %v3363 = vadd.f32 0.0, %v3362
      %v3364 = vpop.f32.mrf.mxu0
      %3365 = vmatprep.mubr.bf16.mxu0 0
      %3366 = vmatmul.mubr.bf16.gmra.mxu0 %v3225
      %v3367 = vpop.f32.mrf.mxu0
      %v3368 = vadd.f32 0.0, %v3367
      %v3369 = vpop.f32.mrf.mxu0
      %v3370 = vpop.f32.mrf.mxu0
      %v3371 = vadd.f32 0.0, %v3370
      %v3372 = vpop.f32.mrf.mxu0
      %3373 = vmatprep.mubr.bf16.mxu0 0
      %3374 = vmatmul.mubr.bf16.gmra.mxu0 %v3226
      %v3375 = vpop.f32.mrf.mxu0
      %v3376 = vadd.f32 0.0, %v3375
      %v3377 = vpop.f32.mrf.mxu0
      %v3378 = vpop.f32.mrf.mxu0
      %v3379 = vadd.f32 0.0, %v3378
      %v3380 = vpop.f32.mrf.mxu0
      %3381 = vmatprep.mubr.bf16.mxu0 0
      %3382 = vmatmul.mubr.bf16.gmra.mxu0 %v3227
      %v3383 = vpop.f32.mrf.mxu0
      %v3384 = vadd.f32 0.0, %v3383
      %v3385 = vpop.f32.mrf.mxu0
      %v3386 = vpop.f32.mrf.mxu0
      %v3387 = vadd.f32 0.0, %v3386
      %v3388 = vpop.f32.mrf.mxu0
      %3389 = vdwg.mxu0
      %v3390 = vadd.f32 %v771, %v3328
      %v3391 = vadd.f32 %v774, %v3331
      %v3392 = vadd.f32 %v779, %v3336
      %v3393 = vadd.f32 %v782, %v3339
      %v3394 = vadd.f32 %v787, %v3344
      %v3395 = vadd.f32 %v790, %v3347
      %v3396 = vadd.f32 %v795, %v3352
      %v3397 = vadd.f32 %v798, %v3355
      %v3398 = vadd.f32 %v803, %v3360
      %v3399 = vadd.f32 %v806, %v3363
      %v3400 = vadd.f32 %v811, %v3368
      %v3401 = vadd.f32 %v814, %v3371
      %v3402 = vadd.f32 %v819, %v3376
      %v3403 = vadd.f32 %v822, %v3379
      %v3404 = vadd.f32 %v827, %v3384
      %v3405 = vadd.f32 %v830, %v3387
      %s3406 = scalar_lea.vmem %s317, 32
      %v3407 = vld [vmem:[%s3406] sm:$0xe]
      %v3408 = vld [vmem:[%s3406 + $0x4] sm:$0xf]
      %v3409 = vld [vmem:[%s3406 + $0x8] sm:$0x1]
      %v3410 = vld [vmem:[%s3406 + $0x10] sm:$0xe]
      %v3411 = vld [vmem:[%s3406 + $0x14] sm:$0xf]
      %v3412 = vld [vmem:[%s3406 + $0x18] sm:$0x1]
      %v3413 = vld [vmem:[%s3406 + $0x20] sm:$0xe]
      %v3414 = vld [vmem:[%s3406 + $0x24] sm:$0xf]
      %v3415 = vld [vmem:[%s3406 + $0x28] sm:$0x1]
      %v3416 = vld [vmem:[%s3406 + $0x30] sm:$0xe]
      %v3417 = vld [vmem:[%s3406 + $0x34] sm:$0xf]
      %v3418 = vld [vmem:[%s3406 + $0x38] sm:$0x1]
      %v3419 = vld [vmem:[%s3406 + $0x40] sm:$0xe]
      %v3420 = vld [vmem:[%s3406 + $0x44] sm:$0xf]
      %v3421 = vld [vmem:[%s3406 + $0x48] sm:$0x1]
      %v3422 = vld [vmem:[%s3406 + $0x50] sm:$0xe]
      %v3423 = vld [vmem:[%s3406 + $0x54] sm:$0xf]
      %v3424 = vld [vmem:[%s3406 + $0x58] sm:$0x1]
      %v3425 = vld [vmem:[%s3406 + $0x60] sm:$0xe]
      %v3426 = vld [vmem:[%s3406 + $0x64] sm:$0xf]
      %v3427 = vld [vmem:[%s3406 + $0x68] sm:$0x1]
      %v3428 = vld [vmem:[%s3406 + $0x70] sm:$0xe]
      %v3429 = vld [vmem:[%s3406 + $0x74] sm:$0xf]
      %v3430 = vld [vmem:[%s3406 + $0x78] sm:$0x1]
      %vm3455 = vcmask 1042432
      %vm3456 = vcmask 1046532
      %vm3457 = vmor %vm3455, %vm3456
      %v3458 = vrot.slane %v3407, 5
      %v3459 = vrot.slane %v3458, 4
      %v3460 = vrot.slane %v3408, 5
      %v3461 = vsel %vm3457, %v3459, %v3460
      %v3462 = vrot.slane %v3460, 4
      %v3463 = vrot.slane %v3409, 5
      %v3464 = vsel %vm3457, %v3462, %v3463
      %v3465 = vrot.slane %v3410, 5
      %v3466 = vrot.slane %v3465, 4
      %v3467 = vrot.slane %v3411, 5
      %v3468 = vsel %vm3457, %v3466, %v3467
      %v3469 = vrot.slane %v3467, 4
      %v3470 = vrot.slane %v3412, 5
      %v3471 = vsel %vm3457, %v3469, %v3470
      %v3472 = vrot.slane %v3413, 5
      %v3473 = vrot.slane %v3472, 4
      %v3474 = vrot.slane %v3414, 5
      %v3475 = vsel %vm3457, %v3473, %v3474
      %v3476 = vrot.slane %v3474, 4
      %v3477 = vrot.slane %v3415, 5
      %v3478 = vsel %vm3457, %v3476, %v3477
      %v3479 = vrot.slane %v3416, 5
      %v3480 = vrot.slane %v3479, 4
      %v3481 = vrot.slane %v3417, 5
      %v3482 = vsel %vm3457, %v3480, %v3481
      %v3483 = vrot.slane %v3481, 4
      %v3484 = vrot.slane %v3418, 5
      %v3485 = vsel %vm3457, %v3483, %v3484
      %v3486 = vrot.slane %v3419, 5
      %v3487 = vrot.slane %v3486, 4
      %v3488 = vrot.slane %v3420, 5
      %v3489 = vsel %vm3457, %v3487, %v3488
      %v3490 = vrot.slane %v3488, 4
      %v3491 = vrot.slane %v3421, 5
      %v3492 = vsel %vm3457, %v3490, %v3491
      %v3493 = vrot.slane %v3422, 5
      %v3494 = vrot.slane %v3493, 4
      %v3495 = vrot.slane %v3423, 5
      %v3496 = vsel %vm3457, %v3494, %v3495
      %v3497 = vrot.slane %v3495, 4
      %v3498 = vrot.slane %v3424, 5
      %v3499 = vsel %vm3457, %v3497, %v3498
      %v3500 = vrot.slane %v3425, 5
      %v3501 = vrot.slane %v3500, 4
      %v3502 = vrot.slane %v3426, 5
      %v3503 = vsel %vm3457, %v3501, %v3502
      %v3504 = vrot.slane %v3502, 4
      %v3505 = vrot.slane %v3427, 5
      %v3506 = vsel %vm3457, %v3504, %v3505
      %v3507 = vrot.slane %v3428, 5
      %v3508 = vrot.slane %v3507, 4
      %v3509 = vrot.slane %v3429, 5
      %v3510 = vsel %vm3457, %v3508, %v3509
      %v3511 = vrot.slane %v3509, 4
      %v3512 = vrot.slane %v3430, 5
      %v3513 = vsel %vm3457, %v3511, %v3512
      %s3514 = scalar_lea.vmem %s3, 576
      %v3515 = vld [vmem:[%s3514] sm:$0xf]
      %v3516 = vld [vmem:[%s3514 + $0x4] sm:$0xf]
      %v3517 = vld [vmem:[%s3514 + $0x8] sm:$0xf]
      %v3518 = vld [vmem:[%s3514 + $0xc] sm:$0xf]
      %v3519 = vld [vmem:[%s3514 + $0x10] sm:$0xf]
      %v3520 = vld [vmem:[%s3514 + $0x14] sm:$0xf]
      %v3521 = vld [vmem:[%s3514 + $0x18] sm:$0xf]
      %v3522 = vld [vmem:[%s3514 + $0x1c] sm:$0xf]
      %v3523 = vld [vmem:[%s3514 + $0x20] sm:$0xf]
      %v3524 = vld [vmem:[%s3514 + $0x24] sm:$0xf]
      %v3525 = vld [vmem:[%s3514 + $0x28] sm:$0xf]
      %v3526 = vld [vmem:[%s3514 + $0x2c] sm:$0xf]
      %v3527 = vld [vmem:[%s3514 + $0x30] sm:$0xf]
      %v3528 = vld [vmem:[%s3514 + $0x34] sm:$0xf]
      %v3529 = vld [vmem:[%s3514 + $0x38] sm:$0xf]
      %v3530 = vld [vmem:[%s3514 + $0x3c] sm:$0xf]
      %v3531 = vld [vmem:[%s4 + $0x1] sm:$0x1]
      %v3532 = vlaneseq
      %v3533 = vshrl.u32 %v3532, 7
      %v3534 = vsub.s32 0, %v3533
      %v3535 = vrot.slane %v3531, %v3534
      %v3536 = vunpack.c.l.b16 %v3461
      %v3537 = vunpack.c.l.b16 %v3464
      %v3538 = vunpack.c.l.b16 %v3468
      %v3539 = vunpack.c.l.b16 %v3471
      %v3540 = vunpack.c.l.b16 %v3475
      %v3541 = vunpack.c.l.b16 %v3478
      %v3542 = vunpack.c.l.b16 %v3482
      %v3543 = vunpack.c.l.b16 %v3485
      %v3544 = vunpack.c.l.b16 %v3489
      %v3545 = vunpack.c.l.b16 %v3492
      %v3546 = vunpack.c.l.b16 %v3496
      %v3547 = vunpack.c.l.b16 %v3499
      %v3548 = vunpack.c.l.b16 %v3503
      %v3549 = vunpack.c.l.b16 %v3506
      %v3550 = vunpack.c.l.b16 %v3510
      %v3551 = vunpack.c.l.b16 %v3513
      %v3552 = vpack.c.b16 %v3537, %v3536
      %v3553 = vpack.c.b16 %v3539, %v3538
      %v3554 = vpack.c.b16 %v3541, %v3540
      %v3555 = vpack.c.b16 %v3543, %v3542
      %v3556 = vpack.c.b16 %v3545, %v3544
      %v3557 = vpack.c.b16 %v3547, %v3546
      %v3558 = vpack.c.b16 %v3549, %v3548
      %v3559 = vpack.c.b16 %v3551, %v3550
      %v3584 = vunpack.c.l.b16 %v3515
      %v3585 = vunpack.c.l.b16 %v3516
      %v3586 = vunpack.c.l.b16 %v3517
      %v3587 = vunpack.c.l.b16 %v3518
      %v3588 = vunpack.c.l.b16 %v3519
      %v3589 = vunpack.c.l.b16 %v3520
      %v3590 = vunpack.c.l.b16 %v3521
      %v3591 = vunpack.c.l.b16 %v3522
      %v3592 = vunpack.c.l.b16 %v3523
      %v3593 = vunpack.c.l.b16 %v3524
      %v3594 = vunpack.c.l.b16 %v3525
      %v3595 = vunpack.c.l.b16 %v3526
      %v3596 = vunpack.c.l.b16 %v3527
      %v3597 = vunpack.c.l.b16 %v3528
      %v3598 = vunpack.c.l.b16 %v3529
      %v3599 = vunpack.c.l.b16 %v3530
      %v3600 = vpack.c.b16 %v3585, %v3584
      %v3601 = vpack.c.b16 %v3587, %v3586
      %v3602 = vpack.c.b16 %v3589, %v3588
      %v3603 = vpack.c.b16 %v3591, %v3590
      %v3604 = vpack.c.b16 %v3593, %v3592
      %v3605 = vpack.c.b16 %v3595, %v3594
      %v3606 = vpack.c.b16 %v3597, %v3596
      %v3607 = vpack.c.b16 %v3599, %v3598
      %3616 = vmatprep.subr.bf16.mxu0 0
      %3617 = vmatpush1.bf16.msra.mxu0 %v3607
      %3618 = vmatprep.subr.bf16.mxu0 0
      %3619 = vmatpush1.bf16.msra.mxu0 %v3606
      %3620 = vmatprep.subr.bf16.mxu0 0
      %3621 = vmatpush1.bf16.msra.mxu0 %v3605
      %3622 = vmatprep.subr.bf16.mxu0 0
      %3623 = vmatpush1.bf16.msra.mxu0 %v3604
      %3624 = vmatprep.subr.bf16.mxu0 0
      %3625 = vmatpush1.bf16.msra.mxu0 %v3603
      %3626 = vmatprep.subr.bf16.mxu0 0
      %3627 = vmatpush1.bf16.msra.mxu0 %v3602
      %3628 = vmatprep.subr.bf16.mxu0 0
      %3629 = vmatpush1.bf16.msra.mxu0 %v3601
      %3630 = vmatprep.subr.bf16.mxu0 0
      %3631 = vmatpush1.bf16.msra.mxu0 %v3600
      %3632 = vmatprep.subr.bf16.mxu0 0
      %3633 = vmatpush2.bf16.msra.mxu0 0
      %3634 = vmatprep.subr.bf16.mxu0 0
      %3635 = vmatpush2.bf16.msra.mxu0 0
      %3636 = vmatprep.subr.bf16.mxu0 0
      %3637 = vmatpush2.bf16.msra.mxu0 0
      %3638 = vmatprep.subr.bf16.mxu0 0
      %3639 = vmatpush2.bf16.msra.mxu0 0
      %3640 = vmatprep.subr.bf16.mxu0 0
      %3641 = vmatpush2.bf16.msra.mxu0 0
      %3642 = vmatprep.subr.bf16.mxu0 0
      %3643 = vmatpush2.bf16.msra.mxu0 0
      %3644 = vmatprep.subr.bf16.mxu0 0
      %3645 = vmatpush2.bf16.msra.mxu0 0
      %3646 = vmatprep.subr.bf16.mxu0 0
      %3647 = vmatpush2.bf16.msra.mxu0 0
      %3648 = vmatprep.mubr.bf16.mxu0 0
      %3649 = vmatmul.mubr.bf16.gmra.mxu0 %v3552
      %v3650 = vpop.f32.mrf.mxu0
      %v3651 = vadd.f32 %v3535, %v3650
      %v3652 = vpop.f32.mrf.mxu0
      %v3653 = vpop.f32.mrf.mxu0
      %v3654 = vadd.f32 %v3535, %v3653
      %v3655 = vpop.f32.mrf.mxu0
      %3656 = vmatprep.mubr.bf16.mxu0 0
      %3657 = vmatmul.mubr.bf16.gmra.mxu0 %v3553
      %v3658 = vpop.f32.mrf.mxu0
      %v3659 = vadd.f32 %v3535, %v3658
      %v3660 = vpop.f32.mrf.mxu0
      %v3661 = vpop.f32.mrf.mxu0
      %v3662 = vadd.f32 %v3535, %v3661
      %v3663 = vpop.f32.mrf.mxu0
      %3664 = vmatprep.mubr.bf16.mxu0 0
      %3665 = vmatmul.mubr.bf16.gmra.mxu0 %v3554
      %v3666 = vpop.f32.mrf.mxu0
      %v3667 = vadd.f32 %v3535, %v3666
      %v3668 = vpop.f32.mrf.mxu0
      %v3669 = vpop.f32.mrf.mxu0
      %v3670 = vadd.f32 %v3535, %v3669
      %v3671 = vpop.f32.mrf.mxu0
      %3672 = vmatprep.mubr.bf16.mxu0 0
      %3673 = vmatmul.mubr.bf16.gmra.mxu0 %v3555
      %v3674 = vpop.f32.mrf.mxu0
      %v3675 = vadd.f32 %v3535, %v3674
      %v3676 = vpop.f32.mrf.mxu0
      %v3677 = vpop.f32.mrf.mxu0
      %v3678 = vadd.f32 %v3535, %v3677
      %v3679 = vpop.f32.mrf.mxu0
      %3680 = vmatprep.mubr.bf16.mxu0 0
      %3681 = vmatmul.mubr.bf16.gmra.mxu0 %v3556
      %v3682 = vpop.f32.mrf.mxu0
      %v3683 = vadd.f32 %v3535, %v3682
      %v3684 = vpop.f32.mrf.mxu0
      %v3685 = vpop.f32.mrf.mxu0
      %v3686 = vadd.f32 %v3535, %v3685
      %v3687 = vpop.f32.mrf.mxu0
      %3688 = vmatprep.mubr.bf16.mxu0 0
      %3689 = vmatmul.mubr.bf16.gmra.mxu0 %v3557
      %v3690 = vpop.f32.mrf.mxu0
      %v3691 = vadd.f32 %v3535, %v3690
      %v3692 = vpop.f32.mrf.mxu0
      %v3693 = vpop.f32.mrf.mxu0
      %v3694 = vadd.f32 %v3535, %v3693
      %v3695 = vpop.f32.mrf.mxu0
      %3696 = vmatprep.mubr.bf16.mxu0 0
      %3697 = vmatmul.mubr.bf16.gmra.mxu0 %v3558
      %v3698 = vpop.f32.mrf.mxu0
      %v3699 = vadd.f32 %v3535, %v3698
      %v3700 = vpop.f32.mrf.mxu0
      %v3701 = vpop.f32.mrf.mxu0
      %v3702 = vadd.f32 %v3535, %v3701
      %v3703 = vpop.f32.mrf.mxu0
      %3704 = vmatprep.mubr.bf16.mxu0 0
      %3705 = vmatmul.mubr.bf16.gmra.mxu0 %v3559
      %v3706 = vpop.f32.mrf.mxu0
      %v3707 = vadd.f32 %v3535, %v3706
      %v3708 = vpop.f32.mrf.mxu0
      %v3709 = vpop.f32.mrf.mxu0
      %v3710 = vadd.f32 %v3535, %v3709
      %v3711 = vpop.f32.mrf.mxu0
      %3712 = vdwg.mxu0
      %v3713 = vld [vmem:[%s3406] sm:$0x8]
      %v3714 = vld [vmem:[%s3406 + $0x8] sm:$0x7]
      %v3715 = vld [vmem:[%s3406 + $0x10] sm:$0x8]
      %v3716 = vld [vmem:[%s3406 + $0x18] sm:$0x7]
      %v3717 = vld [vmem:[%s3406 + $0x20] sm:$0x8]
      %v3718 = vld [vmem:[%s3406 + $0x28] sm:$0x7]
      %v3719 = vld [vmem:[%s3406 + $0x30] sm:$0x8]
      %v3720 = vld [vmem:[%s3406 + $0x38] sm:$0x7]
      %v3721 = vld [vmem:[%s3406 + $0x40] sm:$0x8]
      %v3722 = vld [vmem:[%s3406 + $0x48] sm:$0x7]
      %v3723 = vld [vmem:[%s3406 + $0x50] sm:$0x8]
      %v3724 = vld [vmem:[%s3406 + $0x58] sm:$0x7]
      %v3725 = vld [vmem:[%s3406 + $0x60] sm:$0x8]
      %v3726 = vld [vmem:[%s3406 + $0x68] sm:$0x7]
      %v3727 = vld [vmem:[%s3406 + $0x70] sm:$0x8]
      %v3728 = vld [vmem:[%s3406 + $0x78] sm:$0x7]
      %v3745 = vrot.slane %v3713, 7
      %v3746 = vrot.slane %v3745, 4
      %v3747 = vrot.slane %v3408, 7
      %v3748 = vsel %vm384, %v3746, %v3747
      %v3749 = vrot.slane %v3747, 4
      %v3750 = vrot.slane %v3714, 7
      %v3751 = vsel %vm384, %v3749, %v3750
      %v3752 = vrot.slane %v3715, 7
      %v3753 = vrot.slane %v3752, 4
      %v3754 = vrot.slane %v3411, 7
      %v3755 = vsel %vm384, %v3753, %v3754
      %v3756 = vrot.slane %v3754, 4
      %v3757 = vrot.slane %v3716, 7
      %v3758 = vsel %vm384, %v3756, %v3757
      %v3759 = vrot.slane %v3717, 7
      %v3760 = vrot.slane %v3759, 4
      %v3761 = vrot.slane %v3414, 7
      %v3762 = vsel %vm384, %v3760, %v3761
      %v3763 = vrot.slane %v3761, 4
      %v3764 = vrot.slane %v3718, 7
      %v3765 = vsel %vm384, %v3763, %v3764
      %v3766 = vrot.slane %v3719, 7
      %v3767 = vrot.slane %v3766, 4
      %v3768 = vrot.slane %v3417, 7
      %v3769 = vsel %vm384, %v3767, %v3768
      %v3770 = vrot.slane %v3768, 4
      %v3771 = vrot.slane %v3720, 7
      %v3772 = vsel %vm384, %v3770, %v3771
      %v3773 = vrot.slane %v3721, 7
      %v3774 = vrot.slane %v3773, 4
      %v3775 = vrot.slane %v3420, 7
      %v3776 = vsel %vm384, %v3774, %v3775
      %v3777 = vrot.slane %v3775, 4
      %v3778 = vrot.slane %v3722, 7
      %v3779 = vsel %vm384, %v3777, %v3778
      %v3780 = vrot.slane %v3723, 7
      %v3781 = vrot.slane %v3780, 4
      %v3782 = vrot.slane %v3423, 7
      %v3783 = vsel %vm384, %v3781, %v3782
      %v3784 = vrot.slane %v3782, 4
      %v3785 = vrot.slane %v3724, 7
      %v3786 = vsel %vm384, %v3784, %v3785
      %v3787 = vrot.slane %v3725, 7
      %v3788 = vrot.slane %v3787, 4
      %v3789 = vrot.slane %v3426, 7
      %v3790 = vsel %vm384, %v3788, %v3789
      %v3791 = vrot.slane %v3789, 4
      %v3792 = vrot.slane %v3726, 7
      %v3793 = vsel %vm384, %v3791, %v3792
      %v3794 = vrot.slane %v3727, 7
      %v3795 = vrot.slane %v3794, 4
      %v3796 = vrot.slane %v3429, 7
      %v3797 = vsel %vm384, %v3795, %v3796
      %v3798 = vrot.slane %v3796, 4
      %v3799 = vrot.slane %v3728, 7
      %v3800 = vsel %vm384, %v3798, %v3799
      %s3801 = scalar_lea.vmem %s3, 640
      %v3802 = vld [vmem:[%s3801] sm:$0xf]
      %v3803 = vld [vmem:[%s3801 + $0x4] sm:$0xf]
      %v3804 = vld [vmem:[%s3801 + $0x8] sm:$0xf]
      %v3805 = vld [vmem:[%s3801 + $0xc] sm:$0xf]
      %v3806 = vld [vmem:[%s3801 + $0x10] sm:$0xf]
      %v3807 = vld [vmem:[%s3801 + $0x14] sm:$0xf]
      %v3808 = vld [vmem:[%s3801 + $0x18] sm:$0xf]
      %v3809 = vld [vmem:[%s3801 + $0x1c] sm:$0xf]
      %v3810 = vld [vmem:[%s3801 + $0x20] sm:$0xf]
      %v3811 = vld [vmem:[%s3801 + $0x24] sm:$0xf]
      %v3812 = vld [vmem:[%s3801 + $0x28] sm:$0xf]
      %v3813 = vld [vmem:[%s3801 + $0x2c] sm:$0xf]
      %v3814 = vld [vmem:[%s3801 + $0x30] sm:$0xf]
      %v3815 = vld [vmem:[%s3801 + $0x34] sm:$0xf]
      %v3816 = vld [vmem:[%s3801 + $0x38] sm:$0xf]
      %v3817 = vld [vmem:[%s3801 + $0x3c] sm:$0xf]
      %v3818 = vunpack.c.l.b16 %v3748
      %v3819 = vunpack.c.l.b16 %v3751
      %v3820 = vunpack.c.l.b16 %v3755
      %v3821 = vunpack.c.l.b16 %v3758
      %v3822 = vunpack.c.l.b16 %v3762
      %v3823 = vunpack.c.l.b16 %v3765
      %v3824 = vunpack.c.l.b16 %v3769
      %v3825 = vunpack.c.l.b16 %v3772
      %v3826 = vunpack.c.l.b16 %v3776
      %v3827 = vunpack.c.l.b16 %v3779
      %v3828 = vunpack.c.l.b16 %v3783
      %v3829 = vunpack.c.l.b16 %v3786
      %v3830 = vunpack.c.l.b16 %v3790
      %v3831 = vunpack.c.l.b16 %v3793
      %v3832 = vunpack.c.l.b16 %v3797
      %v3833 = vunpack.c.l.b16 %v3800
      %v3834 = vpack.c.b16 %v3819, %v3818
      %v3835 = vpack.c.b16 %v3821, %v3820
      %v3836 = vpack.c.b16 %v3823, %v3822
      %v3837 = vpack.c.b16 %v3825, %v3824
      %v3838 = vpack.c.b16 %v3827, %v3826
      %v3839 = vpack.c.b16 %v3829, %v3828
      %v3840 = vpack.c.b16 %v3831, %v3830
      %v3841 = vpack.c.b16 %v3833, %v3832
      %v3866 = vunpack.c.l.b16 %v3802
      %v3867 = vunpack.c.l.b16 %v3803
      %v3868 = vunpack.c.l.b16 %v3804
      %v3869 = vunpack.c.l.b16 %v3805
      %v3870 = vunpack.c.l.b16 %v3806
      %v3871 = vunpack.c.l.b16 %v3807
      %v3872 = vunpack.c.l.b16 %v3808
      %v3873 = vunpack.c.l.b16 %v3809
      %v3874 = vunpack.c.l.b16 %v3810
      %v3875 = vunpack.c.l.b16 %v3811
      %v3876 = vunpack.c.l.b16 %v3812
      %v3877 = vunpack.c.l.b16 %v3813
      %v3878 = vunpack.c.l.b16 %v3814
      %v3879 = vunpack.c.l.b16 %v3815
      %v3880 = vunpack.c.l.b16 %v3816
      %v3881 = vunpack.c.l.b16 %v3817
      %v3882 = vpack.c.b16 %v3867, %v3866
      %v3883 = vpack.c.b16 %v3869, %v3868
      %v3884 = vpack.c.b16 %v3871, %v3870
      %v3885 = vpack.c.b16 %v3873, %v3872
      %v3886 = vpack.c.b16 %v3875, %v3874
      %v3887 = vpack.c.b16 %v3877, %v3876
      %v3888 = vpack.c.b16 %v3879, %v3878
      %v3889 = vpack.c.b16 %v3881, %v3880
      %3898 = vmatprep.subr.bf16.mxu0 0
      %3899 = vmatpush1.bf16.msra.mxu0 %v3889
      %3900 = vmatprep.subr.bf16.mxu0 0
      %3901 = vmatpush1.bf16.msra.mxu0 %v3888
      %3902 = vmatprep.subr.bf16.mxu0 0
      %3903 = vmatpush1.bf16.msra.mxu0 %v3887
      %3904 = vmatprep.subr.bf16.mxu0 0
      %3905 = vmatpush1.bf16.msra.mxu0 %v3886
      %3906 = vmatprep.subr.bf16.mxu0 0
      %3907 = vmatpush1.bf16.msra.mxu0 %v3885
      %3908 = vmatprep.subr.bf16.mxu0 0
      %3909 = vmatpush1.bf16.msra.mxu0 %v3884
      %3910 = vmatprep.subr.bf16.mxu0 0
      %3911 = vmatpush1.bf16.msra.mxu0 %v3883
      %3912 = vmatprep.subr.bf16.mxu0 0
      %3913 = vmatpush1.bf16.msra.mxu0 %v3882
      %3914 = vmatprep.subr.bf16.mxu0 0
      %3915 = vmatpush2.bf16.msra.mxu0 0
      %3916 = vmatprep.subr.bf16.mxu0 0
      %3917 = vmatpush2.bf16.msra.mxu0 0
      %3918 = vmatprep.subr.bf16.mxu0 0
      %3919 = vmatpush2.bf16.msra.mxu0 0
      %3920 = vmatprep.subr.bf16.mxu0 0
      %3921 = vmatpush2.bf16.msra.mxu0 0
      %3922 = vmatprep.subr.bf16.mxu0 0
      %3923 = vmatpush2.bf16.msra.mxu0 0
      %3924 = vmatprep.subr.bf16.mxu0 0
      %3925 = vmatpush2.bf16.msra.mxu0 0
      %3926 = vmatprep.subr.bf16.mxu0 0
      %3927 = vmatpush2.bf16.msra.mxu0 0
      %3928 = vmatprep.subr.bf16.mxu0 0
      %3929 = vmatpush2.bf16.msra.mxu0 0
      %3930 = vmatprep.mubr.bf16.mxu0 0
      %3931 = vmatmul.mubr.bf16.gmra.mxu0 %v3834
      %v3932 = vpop.f32.mrf.mxu0
      %v3933 = vadd.f32 0.0, %v3932
      %v3934 = vpop.f32.mrf.mxu0
      %v3935 = vpop.f32.mrf.mxu0
      %v3936 = vadd.f32 0.0, %v3935
      %v3937 = vpop.f32.mrf.mxu0
      %3938 = vmatprep.mubr.bf16.mxu0 0
      %3939 = vmatmul.mubr.bf16.gmra.mxu0 %v3835
      %v3940 = vpop.f32.mrf.mxu0
      %v3941 = vadd.f32 0.0, %v3940
      %v3942 = vpop.f32.mrf.mxu0
      %v3943 = vpop.f32.mrf.mxu0
      %v3944 = vadd.f32 0.0, %v3943
      %v3945 = vpop.f32.mrf.mxu0
      %3946 = vmatprep.mubr.bf16.mxu0 0
      %3947 = vmatmul.mubr.bf16.gmra.mxu0 %v3836
      %v3948 = vpop.f32.mrf.mxu0
      %v3949 = vadd.f32 0.0, %v3948
      %v3950 = vpop.f32.mrf.mxu0
      %v3951 = vpop.f32.mrf.mxu0
      %v3952 = vadd.f32 0.0, %v3951
      %v3953 = vpop.f32.mrf.mxu0
      %3954 = vmatprep.mubr.bf16.mxu0 0
      %3955 = vmatmul.mubr.bf16.gmra.mxu0 %v3837
      %v3956 = vpop.f32.mrf.mxu0
      %v3957 = vadd.f32 0.0, %v3956
      %v3958 = vpop.f32.mrf.mxu0
      %v3959 = vpop.f32.mrf.mxu0
      %v3960 = vadd.f32 0.0, %v3959
      %v3961 = vpop.f32.mrf.mxu0
      %3962 = vmatprep.mubr.bf16.mxu0 0
      %3963 = vmatmul.mubr.bf16.gmra.mxu0 %v3838
      %v3964 = vpop.f32.mrf.mxu0
      %v3965 = vadd.f32 0.0, %v3964
      %v3966 = vpop.f32.mrf.mxu0
      %v3967 = vpop.f32.mrf.mxu0
      %v3968 = vadd.f32 0.0, %v3967
      %v3969 = vpop.f32.mrf.mxu0
      %3970 = vmatprep.mubr.bf16.mxu0 0
      %3971 = vmatmul.mubr.bf16.gmra.mxu0 %v3839
      %v3972 = vpop.f32.mrf.mxu0
      %v3973 = vadd.f32 0.0, %v3972
      %v3974 = vpop.f32.mrf.mxu0
      %v3975 = vpop.f32.mrf.mxu0
      %v3976 = vadd.f32 0.0, %v3975
      %v3977 = vpop.f32.mrf.mxu0
      %3978 = vmatprep.mubr.bf16.mxu0 0
      %3979 = vmatmul.mubr.bf16.gmra.mxu0 %v3840
      %v3980 = vpop.f32.mrf.mxu0
      %v3981 = vadd.f32 0.0, %v3980
      %v3982 = vpop.f32.mrf.mxu0
      %v3983 = vpop.f32.mrf.mxu0
      %v3984 = vadd.f32 0.0, %v3983
      %v3985 = vpop.f32.mrf.mxu0
      %3986 = vmatprep.mubr.bf16.mxu0 0
      %3987 = vmatmul.mubr.bf16.gmra.mxu0 %v3841
      %v3988 = vpop.f32.mrf.mxu0
      %v3989 = vadd.f32 0.0, %v3988
      %v3990 = vpop.f32.mrf.mxu0
      %v3991 = vpop.f32.mrf.mxu0
      %v3992 = vadd.f32 0.0, %v3991
      %v3993 = vpop.f32.mrf.mxu0
      %3994 = vdwg.mxu0
      %v3995 = vadd.f32 %v3651, %v3933
      %v3996 = vadd.f32 %v3654, %v3936
      %v3997 = vadd.f32 %v3659, %v3941
      %v3998 = vadd.f32 %v3662, %v3944
      %v3999 = vadd.f32 %v3667, %v3949
      %v4000 = vadd.f32 %v3670, %v3952
      %v4001 = vadd.f32 %v3675, %v3957
      %v4002 = vadd.f32 %v3678, %v3960
      %v4003 = vadd.f32 %v3683, %v3965
      %v4004 = vadd.f32 %v3686, %v3968
      %v4005 = vadd.f32 %v3691, %v3973
      %v4006 = vadd.f32 %v3694, %v3976
      %v4007 = vadd.f32 %v3699, %v3981
      %v4008 = vadd.f32 %v3702, %v3984
      %v4009 = vadd.f32 %v3707, %v3989
      %v4010 = vadd.f32 %v3710, %v3992
      %v4011 = vld [vmem:[%s3406 + $0x4] sm:$0xe]
      %v4012 = vld [vmem:[%s3406 + $0x8] sm:$0xf]
      %v4013 = vld [vmem:[%s3406 + $0xc] sm:$0x1]
      %v4014 = vld [vmem:[%s3406 + $0x14] sm:$0xe]
      %v4015 = vld [vmem:[%s3406 + $0x18] sm:$0xf]
      %v4016 = vld [vmem:[%s3406 + $0x1c] sm:$0x1]
      %v4017 = vld [vmem:[%s3406 + $0x24] sm:$0xe]
      %v4018 = vld [vmem:[%s3406 + $0x28] sm:$0xf]
      %v4019 = vld [vmem:[%s3406 + $0x2c] sm:$0x1]
      %v4020 = vld [vmem:[%s3406 + $0x34] sm:$0xe]
      %v4021 = vld [vmem:[%s3406 + $0x38] sm:$0xf]
      %v4022 = vld [vmem:[%s3406 + $0x3c] sm:$0x1]
      %v4023 = vld [vmem:[%s3406 + $0x44] sm:$0xe]
      %v4024 = vld [vmem:[%s3406 + $0x48] sm:$0xf]
      %v4025 = vld [vmem:[%s3406 + $0x4c] sm:$0x1]
      %v4026 = vld [vmem:[%s3406 + $0x54] sm:$0xe]
      %v4027 = vld [vmem:[%s3406 + $0x58] sm:$0xf]
      %v4028 = vld [vmem:[%s3406 + $0x5c] sm:$0x1]
      %v4029 = vld [vmem:[%s3406 + $0x64] sm:$0xe]
      %v4030 = vld [vmem:[%s3406 + $0x68] sm:$0xf]
      %v4031 = vld [vmem:[%s3406 + $0x6c] sm:$0x1]
      %v4032 = vld [vmem:[%s3406 + $0x74] sm:$0xe]
      %v4033 = vld [vmem:[%s3406 + $0x78] sm:$0xf]
      %v4034 = vld [vmem:[%s3406 + $0x7c] sm:$0x1]
      %v4059 = vrot.slane %v4011, 5
      %v4060 = vrot.slane %v4059, 4
      %v4061 = vrot.slane %v4012, 5
      %v4062 = vsel %vm3457, %v4060, %v4061
      %v4063 = vrot.slane %v4061, 4
      %v4064 = vrot.slane %v4013, 5
      %v4065 = vsel %vm3457, %v4063, %v4064
      %v4066 = vrot.slane %v4014, 5
      %v4067 = vrot.slane %v4066, 4
      %v4068 = vrot.slane %v4015, 5
      %v4069 = vsel %vm3457, %v4067, %v4068
      %v4070 = vrot.slane %v4068, 4
      %v4071 = vrot.slane %v4016, 5
      %v4072 = vsel %vm3457, %v4070, %v4071
      %v4073 = vrot.slane %v4017, 5
      %v4074 = vrot.slane %v4073, 4
      %v4075 = vrot.slane %v4018, 5
      %v4076 = vsel %vm3457, %v4074, %v4075
      %v4077 = vrot.slane %v4075, 4
      %v4078 = vrot.slane %v4019, 5
      %v4079 = vsel %vm3457, %v4077, %v4078
      %v4080 = vrot.slane %v4020, 5
      %v4081 = vrot.slane %v4080, 4
      %v4082 = vrot.slane %v4021, 5
      %v4083 = vsel %vm3457, %v4081, %v4082
      %v4084 = vrot.slane %v4082, 4
      %v4085 = vrot.slane %v4022, 5
      %v4086 = vsel %vm3457, %v4084, %v4085
      %v4087 = vrot.slane %v4023, 5
      %v4088 = vrot.slane %v4087, 4
      %v4089 = vrot.slane %v4024, 5
      %v4090 = vsel %vm3457, %v4088, %v4089
      %v4091 = vrot.slane %v4089, 4
      %v4092 = vrot.slane %v4025, 5
      %v4093 = vsel %vm3457, %v4091, %v4092
      %v4094 = vrot.slane %v4026, 5
      %v4095 = vrot.slane %v4094, 4
      %v4096 = vrot.slane %v4027, 5
      %v4097 = vsel %vm3457, %v4095, %v4096
      %v4098 = vrot.slane %v4096, 4
      %v4099 = vrot.slane %v4028, 5
      %v4100 = vsel %vm3457, %v4098, %v4099
      %v4101 = vrot.slane %v4029, 5
      %v4102 = vrot.slane %v4101, 4
      %v4103 = vrot.slane %v4030, 5
      %v4104 = vsel %vm3457, %v4102, %v4103
      %v4105 = vrot.slane %v4103, 4
      %v4106 = vrot.slane %v4031, 5
      %v4107 = vsel %vm3457, %v4105, %v4106
      %v4108 = vrot.slane %v4032, 5
      %v4109 = vrot.slane %v4108, 4
      %v4110 = vrot.slane %v4033, 5
      %v4111 = vsel %vm3457, %v4109, %v4110
      %v4112 = vrot.slane %v4110, 4
      %v4113 = vrot.slane %v4034, 5
      %v4114 = vsel %vm3457, %v4112, %v4113
      %s4115 = scalar_lea.vmem %s3, 704
      %v4116 = vld [vmem:[%s4115] sm:$0xf]
      %v4117 = vld [vmem:[%s4115 + $0x4] sm:$0xf]
      %v4118 = vld [vmem:[%s4115 + $0x8] sm:$0xf]
      %v4119 = vld [vmem:[%s4115 + $0xc] sm:$0xf]
      %v4120 = vld [vmem:[%s4115 + $0x10] sm:$0xf]
      %v4121 = vld [vmem:[%s4115 + $0x14] sm:$0xf]
      %v4122 = vld [vmem:[%s4115 + $0x18] sm:$0xf]
      %v4123 = vld [vmem:[%s4115 + $0x1c] sm:$0xf]
      %v4124 = vld [vmem:[%s4115 + $0x20] sm:$0xf]
      %v4125 = vld [vmem:[%s4115 + $0x24] sm:$0xf]
      %v4126 = vld [vmem:[%s4115 + $0x28] sm:$0xf]
      %v4127 = vld [vmem:[%s4115 + $0x2c] sm:$0xf]
      %v4128 = vld [vmem:[%s4115 + $0x30] sm:$0xf]
      %v4129 = vld [vmem:[%s4115 + $0x34] sm:$0xf]
      %v4130 = vld [vmem:[%s4115 + $0x38] sm:$0xf]
      %v4131 = vld [vmem:[%s4115 + $0x3c] sm:$0xf]
      %v4132 = vunpack.c.l.b16 %v4062
      %v4133 = vunpack.c.l.b16 %v4065
      %v4134 = vunpack.c.l.b16 %v4069
      %v4135 = vunpack.c.l.b16 %v4072
      %v4136 = vunpack.c.l.b16 %v4076
      %v4137 = vunpack.c.l.b16 %v4079
      %v4138 = vunpack.c.l.b16 %v4083
      %v4139 = vunpack.c.l.b16 %v4086
      %v4140 = vunpack.c.l.b16 %v4090
      %v4141 = vunpack.c.l.b16 %v4093
      %v4142 = vunpack.c.l.b16 %v4097
      %v4143 = vunpack.c.l.b16 %v4100
      %v4144 = vunpack.c.l.b16 %v4104
      %v4145 = vunpack.c.l.b16 %v4107
      %v4146 = vunpack.c.l.b16 %v4111
      %v4147 = vunpack.c.l.b16 %v4114
      %v4148 = vpack.c.b16 %v4133, %v4132
      %v4149 = vpack.c.b16 %v4135, %v4134
      %v4150 = vpack.c.b16 %v4137, %v4136
      %v4151 = vpack.c.b16 %v4139, %v4138
      %v4152 = vpack.c.b16 %v4141, %v4140
      %v4153 = vpack.c.b16 %v4143, %v4142
      %v4154 = vpack.c.b16 %v4145, %v4144
      %v4155 = vpack.c.b16 %v4147, %v4146
      %v4180 = vunpack.c.l.b16 %v4116
      %v4181 = vunpack.c.l.b16 %v4117
      %v4182 = vunpack.c.l.b16 %v4118
      %v4183 = vunpack.c.l.b16 %v4119
      %v4184 = vunpack.c.l.b16 %v4120
      %v4185 = vunpack.c.l.b16 %v4121
      %v4186 = vunpack.c.l.b16 %v4122
      %v4187 = vunpack.c.l.b16 %v4123
      %v4188 = vunpack.c.l.b16 %v4124
      %v4189 = vunpack.c.l.b16 %v4125
      %v4190 = vunpack.c.l.b16 %v4126
      %v4191 = vunpack.c.l.b16 %v4127
      %v4192 = vunpack.c.l.b16 %v4128
      %v4193 = vunpack.c.l.b16 %v4129
      %v4194 = vunpack.c.l.b16 %v4130
      %v4195 = vunpack.c.l.b16 %v4131
      %v4196 = vpack.c.b16 %v4181, %v4180
      %v4197 = vpack.c.b16 %v4183, %v4182
      %v4198 = vpack.c.b16 %v4185, %v4184
      %v4199 = vpack.c.b16 %v4187, %v4186
      %v4200 = vpack.c.b16 %v4189, %v4188
      %v4201 = vpack.c.b16 %v4191, %v4190
      %v4202 = vpack.c.b16 %v4193, %v4192
      %v4203 = vpack.c.b16 %v4195, %v4194
      %4212 = vmatprep.subr.bf16.mxu0 0
      %4213 = vmatpush1.bf16.msra.mxu0 %v4203
      %4214 = vmatprep.subr.bf16.mxu0 0
      %4215 = vmatpush1.bf16.msra.mxu0 %v4202
      %4216 = vmatprep.subr.bf16.mxu0 0
      %4217 = vmatpush1.bf16.msra.mxu0 %v4201
      %4218 = vmatprep.subr.bf16.mxu0 0
      %4219 = vmatpush1.bf16.msra.mxu0 %v4200
      %4220 = vmatprep.subr.bf16.mxu0 0
      %4221 = vmatpush1.bf16.msra.mxu0 %v4199
      %4222 = vmatprep.subr.bf16.mxu0 0
      %4223 = vmatpush1.bf16.msra.mxu0 %v4198
      %4224 = vmatprep.subr.bf16.mxu0 0
      %4225 = vmatpush1.bf16.msra.mxu0 %v4197
      %4226 = vmatprep.subr.bf16.mxu0 0
      %4227 = vmatpush1.bf16.msra.mxu0 %v4196
      %4228 = vmatprep.subr.bf16.mxu0 0
      %4229 = vmatpush2.bf16.msra.mxu0 0
      %4230 = vmatprep.subr.bf16.mxu0 0
      %4231 = vmatpush2.bf16.msra.mxu0 0
      %4232 = vmatprep.subr.bf16.mxu0 0
      %4233 = vmatpush2.bf16.msra.mxu0 0
      %4234 = vmatprep.subr.bf16.mxu0 0
      %4235 = vmatpush2.bf16.msra.mxu0 0
      %4236 = vmatprep.subr.bf16.mxu0 0
      %4237 = vmatpush2.bf16.msra.mxu0 0
      %4238 = vmatprep.subr.bf16.mxu0 0
      %4239 = vmatpush2.bf16.msra.mxu0 0
      %4240 = vmatprep.subr.bf16.mxu0 0
      %4241 = vmatpush2.bf16.msra.mxu0 0
      %4242 = vmatprep.subr.bf16.mxu0 0
      %4243 = vmatpush2.bf16.msra.mxu0 0
      %4244 = vmatprep.mubr.bf16.mxu0 0
      %4245 = vmatmul.mubr.bf16.gmra.mxu0 %v4148
      %v4246 = vpop.f32.mrf.mxu0
      %v4247 = vadd.f32 0.0, %v4246
      %v4248 = vpop.f32.mrf.mxu0
      %v4249 = vpop.f32.mrf.mxu0
      %v4250 = vadd.f32 0.0, %v4249
      %v4251 = vpop.f32.mrf.mxu0
      %4252 = vmatprep.mubr.bf16.mxu0 0
      %4253 = vmatmul.mubr.bf16.gmra.mxu0 %v4149
      %v4254 = vpop.f32.mrf.mxu0
      %v4255 = vadd.f32 0.0, %v4254
      %v4256 = vpop.f32.mrf.mxu0
      %v4257 = vpop.f32.mrf.mxu0
      %v4258 = vadd.f32 0.0, %v4257
      %v4259 = vpop.f32.mrf.mxu0
      %4260 = vmatprep.mubr.bf16.mxu0 0
      %4261 = vmatmul.mubr.bf16.gmra.mxu0 %v4150
      %v4262 = vpop.f32.mrf.mxu0
      %v4263 = vadd.f32 0.0, %v4262
      %v4264 = vpop.f32.mrf.mxu0
      %v4265 = vpop.f32.mrf.mxu0
      %v4266 = vadd.f32 0.0, %v4265
      %v4267 = vpop.f32.mrf.mxu0
      %4268 = vmatprep.mubr.bf16.mxu0 0
      %4269 = vmatmul.mubr.bf16.gmra.mxu0 %v4151
      %v4270 = vpop.f32.mrf.mxu0
      %v4271 = vadd.f32 0.0, %v4270
      %v4272 = vpop.f32.mrf.mxu0
      %v4273 = vpop.f32.mrf.mxu0
      %v4274 = vadd.f32 0.0, %v4273
      %v4275 = vpop.f32.mrf.mxu0
      %4276 = vmatprep.mubr.bf16.mxu0 0
      %4277 = vmatmul.mubr.bf16.gmra.mxu0 %v4152
      %v4278 = vpop.f32.mrf.mxu0
      %v4279 = vadd.f32 0.0, %v4278
      %v4280 = vpop.f32.mrf.mxu0
      %v4281 = vpop.f32.mrf.mxu0
      %v4282 = vadd.f32 0.0, %v4281
      %v4283 = vpop.f32.mrf.mxu0
      %4284 = vmatprep.mubr.bf16.mxu0 0
      %4285 = vmatmul.mubr.bf16.gmra.mxu0 %v4153
      %v4286 = vpop.f32.mrf.mxu0
      %v4287 = vadd.f32 0.0, %v4286
      %v4288 = vpop.f32.mrf.mxu0
      %v4289 = vpop.f32.mrf.mxu0
      %v4290 = vadd.f32 0.0, %v4289
      %v4291 = vpop.f32.mrf.mxu0
      %4292 = vmatprep.mubr.bf16.mxu0 0
      %4293 = vmatmul.mubr.bf16.gmra.mxu0 %v4154
      %v4294 = vpop.f32.mrf.mxu0
      %v4295 = vadd.f32 0.0, %v4294
      %v4296 = vpop.f32.mrf.mxu0
      %v4297 = vpop.f32.mrf.mxu0
      %v4298 = vadd.f32 0.0, %v4297
      %v4299 = vpop.f32.mrf.mxu0
      %4300 = vmatprep.mubr.bf16.mxu0 0
      %4301 = vmatmul.mubr.bf16.gmra.mxu0 %v4155
      %v4302 = vpop.f32.mrf.mxu0
      %v4303 = vadd.f32 0.0, %v4302
      %v4304 = vpop.f32.mrf.mxu0
      %v4305 = vpop.f32.mrf.mxu0
      %v4306 = vadd.f32 0.0, %v4305
      %v4307 = vpop.f32.mrf.mxu0
      %4308 = vdwg.mxu0
      %v4309 = vadd.f32 %v3995, %v4247
      %v4310 = vadd.f32 %v3996, %v4250
      %v4311 = vadd.f32 %v3997, %v4255
      %v4312 = vadd.f32 %v3998, %v4258
      %v4313 = vadd.f32 %v3999, %v4263
      %v4314 = vadd.f32 %v4000, %v4266
      %v4315 = vadd.f32 %v4001, %v4271
      %v4316 = vadd.f32 %v4002, %v4274
      %v4317 = vadd.f32 %v4003, %v4279
      %v4318 = vadd.f32 %v4004, %v4282
      %v4319 = vadd.f32 %v4005, %v4287
      %v4320 = vadd.f32 %v4006, %v4290
      %v4321 = vadd.f32 %v4007, %v4295
      %v4322 = vadd.f32 %v4008, %v4298
      %v4323 = vadd.f32 %v4009, %v4303
      %v4324 = vadd.f32 %v4010, %v4306
      %v4325 = vld [vmem:[%s333] sm:$0xe]
      %v4326 = vld [vmem:[%s333 + $0x8] sm:$0x1]
      %v4327 = vld [vmem:[%s333 + $0x10] sm:$0xe]
      %v4328 = vld [vmem:[%s333 + $0x18] sm:$0x1]
      %v4329 = vld [vmem:[%s333 + $0x20] sm:$0xe]
      %v4330 = vld [vmem:[%s333 + $0x28] sm:$0x1]
      %v4331 = vld [vmem:[%s333 + $0x30] sm:$0xe]
      %v4332 = vld [vmem:[%s333 + $0x38] sm:$0x1]
      %v4333 = vld [vmem:[%s333 + $0x40] sm:$0xe]
      %v4334 = vld [vmem:[%s333 + $0x48] sm:$0x1]
      %v4335 = vld [vmem:[%s333 + $0x50] sm:$0xe]
      %v4336 = vld [vmem:[%s333 + $0x58] sm:$0x1]
      %v4337 = vld [vmem:[%s333 + $0x60] sm:$0xe]
      %v4338 = vld [vmem:[%s333 + $0x68] sm:$0x1]
      %v4339 = vld [vmem:[%s333 + $0x70] sm:$0xe]
      %v4340 = vld [vmem:[%s333 + $0x78] sm:$0x1]
      %v4357 = vrot.slane %v4325, 5
      %v4358 = vrot.slane %v4357, 4
      %v4359 = vrot.slane %v335, 5
      %v4360 = vsel %vm3457, %v4358, %v4359
      %v4361 = vrot.slane %v4359, 4
      %v4362 = vrot.slane %v4326, 5
      %v4363 = vsel %vm3457, %v4361, %v4362
      %v4364 = vrot.slane %v4327, 5
      %v4365 = vrot.slane %v4364, 4
      %v4366 = vrot.slane %v338, 5
      %v4367 = vsel %vm3457, %v4365, %v4366
      %v4368 = vrot.slane %v4366, 4
      %v4369 = vrot.slane %v4328, 5
      %v4370 = vsel %vm3457, %v4368, %v4369
      %v4371 = vrot.slane %v4329, 5
      %v4372 = vrot.slane %v4371, 4
      %v4373 = vrot.slane %v341, 5
      %v4374 = vsel %vm3457, %v4372, %v4373
      %v4375 = vrot.slane %v4373, 4
      %v4376 = vrot.slane %v4330, 5
      %v4377 = vsel %vm3457, %v4375, %v4376
      %v4378 = vrot.slane %v4331, 5
      %v4379 = vrot.slane %v4378, 4
      %v4380 = vrot.slane %v344, 5
      %v4381 = vsel %vm3457, %v4379, %v4380
      %v4382 = vrot.slane %v4380, 4
      %v4383 = vrot.slane %v4332, 5
      %v4384 = vsel %vm3457, %v4382, %v4383
      %v4385 = vrot.slane %v4333, 5
      %v4386 = vrot.slane %v4385, 4
      %v4387 = vrot.slane %v347, 5
      %v4388 = vsel %vm3457, %v4386, %v4387
      %v4389 = vrot.slane %v4387, 4
      %v4390 = vrot.slane %v4334, 5
      %v4391 = vsel %vm3457, %v4389, %v4390
      %v4392 = vrot.slane %v4335, 5
      %v4393 = vrot.slane %v4392, 4
      %v4394 = vrot.slane %v350, 5
      %v4395 = vsel %vm3457, %v4393, %v4394
      %v4396 = vrot.slane %v4394, 4
      %v4397 = vrot.slane %v4336, 5
      %v4398 = vsel %vm3457, %v4396, %v4397
      %v4399 = vrot.slane %v4337, 5
      %v4400 = vrot.slane %v4399, 4
      %v4401 = vrot.slane %v353, 5
      %v4402 = vsel %vm3457, %v4400, %v4401
      %v4403 = vrot.slane %v4401, 4
      %v4404 = vrot.slane %v4338, 5
      %v4405 = vsel %vm3457, %v4403, %v4404
      %v4406 = vrot.slane %v4339, 5
      %v4407 = vrot.slane %v4406, 4
      %v4408 = vrot.slane %v356, 5
      %v4409 = vsel %vm3457, %v4407, %v4408
      %v4410 = vrot.slane %v4408, 4
      %v4411 = vrot.slane %v4340, 5
      %v4412 = vsel %vm3457, %v4410, %v4411
      %s4413 = scalar_lea.vmem %s3, 768
      %v4414 = vld [vmem:[%s4413] sm:$0xf]
      %v4415 = vld [vmem:[%s4413 + $0x4] sm:$0xf]
      %v4416 = vld [vmem:[%s4413 + $0x8] sm:$0xf]
      %v4417 = vld [vmem:[%s4413 + $0xc] sm:$0xf]
      %v4418 = vld [vmem:[%s4413 + $0x10] sm:$0xf]
      %v4419 = vld [vmem:[%s4413 + $0x14] sm:$0xf]
      %v4420 = vld [vmem:[%s4413 + $0x18] sm:$0xf]
      %v4421 = vld [vmem:[%s4413 + $0x1c] sm:$0xf]
      %v4422 = vld [vmem:[%s4413 + $0x20] sm:$0xf]
      %v4423 = vld [vmem:[%s4413 + $0x24] sm:$0xf]
      %v4424 = vld [vmem:[%s4413 + $0x28] sm:$0xf]
      %v4425 = vld [vmem:[%s4413 + $0x2c] sm:$0xf]
      %v4426 = vld [vmem:[%s4413 + $0x30] sm:$0xf]
      %v4427 = vld [vmem:[%s4413 + $0x34] sm:$0xf]
      %v4428 = vld [vmem:[%s4413 + $0x38] sm:$0xf]
      %v4429 = vld [vmem:[%s4413 + $0x3c] sm:$0xf]
      %v4430 = vunpack.c.l.b16 %v4360
      %v4431 = vunpack.c.l.b16 %v4363
      %v4432 = vunpack.c.l.b16 %v4367
      %v4433 = vunpack.c.l.b16 %v4370
      %v4434 = vunpack.c.l.b16 %v4374
      %v4435 = vunpack.c.l.b16 %v4377
      %v4436 = vunpack.c.l.b16 %v4381
      %v4437 = vunpack.c.l.b16 %v4384
      %v4438 = vunpack.c.l.b16 %v4388
      %v4439 = vunpack.c.l.b16 %v4391
      %v4440 = vunpack.c.l.b16 %v4395
      %v4441 = vunpack.c.l.b16 %v4398
      %v4442 = vunpack.c.l.b16 %v4402
      %v4443 = vunpack.c.l.b16 %v4405
      %v4444 = vunpack.c.l.b16 %v4409
      %v4445 = vunpack.c.l.b16 %v4412
      %v4446 = vpack.c.b16 %v4431, %v4430
      %v4447 = vpack.c.b16 %v4433, %v4432
      %v4448 = vpack.c.b16 %v4435, %v4434
      %v4449 = vpack.c.b16 %v4437, %v4436
      %v4450 = vpack.c.b16 %v4439, %v4438
      %v4451 = vpack.c.b16 %v4441, %v4440
      %v4452 = vpack.c.b16 %v4443, %v4442
      %v4453 = vpack.c.b16 %v4445, %v4444
      %v4478 = vunpack.c.l.b16 %v4414
      %v4479 = vunpack.c.l.b16 %v4415
      %v4480 = vunpack.c.l.b16 %v4416
      %v4481 = vunpack.c.l.b16 %v4417
      %v4482 = vunpack.c.l.b16 %v4418
      %v4483 = vunpack.c.l.b16 %v4419
      %v4484 = vunpack.c.l.b16 %v4420
      %v4485 = vunpack.c.l.b16 %v4421
      %v4486 = vunpack.c.l.b16 %v4422
      %v4487 = vunpack.c.l.b16 %v4423
      %v4488 = vunpack.c.l.b16 %v4424
      %v4489 = vunpack.c.l.b16 %v4425
      %v4490 = vunpack.c.l.b16 %v4426
      %v4491 = vunpack.c.l.b16 %v4427
      %v4492 = vunpack.c.l.b16 %v4428
      %v4493 = vunpack.c.l.b16 %v4429
      %v4494 = vpack.c.b16 %v4479, %v4478
      %v4495 = vpack.c.b16 %v4481, %v4480
      %v4496 = vpack.c.b16 %v4483, %v4482
      %v4497 = vpack.c.b16 %v4485, %v4484
      %v4498 = vpack.c.b16 %v4487, %v4486
      %v4499 = vpack.c.b16 %v4489, %v4488
      %v4500 = vpack.c.b16 %v4491, %v4490
      %v4501 = vpack.c.b16 %v4493, %v4492
      %4510 = vmatprep.subr.bf16.mxu0 0
      %4511 = vmatpush1.bf16.msra.mxu0 %v4501
      %4512 = vmatprep.subr.bf16.mxu0 0
      %4513 = vmatpush1.bf16.msra.mxu0 %v4500
      %4514 = vmatprep.subr.bf16.mxu0 0
      %4515 = vmatpush1.bf16.msra.mxu0 %v4499
      %4516 = vmatprep.subr.bf16.mxu0 0
      %4517 = vmatpush1.bf16.msra.mxu0 %v4498
      %4518 = vmatprep.subr.bf16.mxu0 0
      %4519 = vmatpush1.bf16.msra.mxu0 %v4497
      %4520 = vmatprep.subr.bf16.mxu0 0
      %4521 = vmatpush1.bf16.msra.mxu0 %v4496
      %4522 = vmatprep.subr.bf16.mxu0 0
      %4523 = vmatpush1.bf16.msra.mxu0 %v4495
      %4524 = vmatprep.subr.bf16.mxu0 0
      %4525 = vmatpush1.bf16.msra.mxu0 %v4494
      %4526 = vmatprep.subr.bf16.mxu0 0
      %4527 = vmatpush2.bf16.msra.mxu0 0
      %4528 = vmatprep.subr.bf16.mxu0 0
      %4529 = vmatpush2.bf16.msra.mxu0 0
      %4530 = vmatprep.subr.bf16.mxu0 0
      %4531 = vmatpush2.bf16.msra.mxu0 0
      %4532 = vmatprep.subr.bf16.mxu0 0
      %4533 = vmatpush2.bf16.msra.mxu0 0
      %4534 = vmatprep.subr.bf16.mxu0 0
      %4535 = vmatpush2.bf16.msra.mxu0 0
      %4536 = vmatprep.subr.bf16.mxu0 0
      %4537 = vmatpush2.bf16.msra.mxu0 0
      %4538 = vmatprep.subr.bf16.mxu0 0
      %4539 = vmatpush2.bf16.msra.mxu0 0
      %4540 = vmatprep.subr.bf16.mxu0 0
      %4541 = vmatpush2.bf16.msra.mxu0 0
      %4542 = vmatprep.mubr.bf16.mxu0 0
      %4543 = vmatmul.mubr.bf16.gmra.mxu0 %v4446
      %v4544 = vpop.f32.mrf.mxu0
      %v4545 = vadd.f32 0.0, %v4544
      %v4546 = vpop.f32.mrf.mxu0
      %v4547 = vpop.f32.mrf.mxu0
      %v4548 = vadd.f32 0.0, %v4547
      %v4549 = vpop.f32.mrf.mxu0
      %4550 = vmatprep.mubr.bf16.mxu0 0
      %4551 = vmatmul.mubr.bf16.gmra.mxu0 %v4447
      %v4552 = vpop.f32.mrf.mxu0
      %v4553 = vadd.f32 0.0, %v4552
      %v4554 = vpop.f32.mrf.mxu0
      %v4555 = vpop.f32.mrf.mxu0
      %v4556 = vadd.f32 0.0, %v4555
      %v4557 = vpop.f32.mrf.mxu0
      %4558 = vmatprep.mubr.bf16.mxu0 0
      %4559 = vmatmul.mubr.bf16.gmra.mxu0 %v4448
      %v4560 = vpop.f32.mrf.mxu0
      %v4561 = vadd.f32 0.0, %v4560
      %v4562 = vpop.f32.mrf.mxu0
      %v4563 = vpop.f32.mrf.mxu0
      %v4564 = vadd.f32 0.0, %v4563
      %v4565 = vpop.f32.mrf.mxu0
      %4566 = vmatprep.mubr.bf16.mxu0 0
      %4567 = vmatmul.mubr.bf16.gmra.mxu0 %v4449
      %v4568 = vpop.f32.mrf.mxu0
      %v4569 = vadd.f32 0.0, %v4568
      %v4570 = vpop.f32.mrf.mxu0
      %v4571 = vpop.f32.mrf.mxu0
      %v4572 = vadd.f32 0.0, %v4571
      %v4573 = vpop.f32.mrf.mxu0
      %4574 = vmatprep.mubr.bf16.mxu0 0
      %4575 = vmatmul.mubr.bf16.gmra.mxu0 %v4450
      %v4576 = vpop.f32.mrf.mxu0
      %v4577 = vadd.f32 0.0, %v4576
      %v4578 = vpop.f32.mrf.mxu0
      %v4579 = vpop.f32.mrf.mxu0
      %v4580 = vadd.f32 0.0, %v4579
      %v4581 = vpop.f32.mrf.mxu0
      %4582 = vmatprep.mubr.bf16.mxu0 0
      %4583 = vmatmul.mubr.bf16.gmra.mxu0 %v4451
      %v4584 = vpop.f32.mrf.mxu0
      %v4585 = vadd.f32 0.0, %v4584
      %v4586 = vpop.f32.mrf.mxu0
      %v4587 = vpop.f32.mrf.mxu0
      %v4588 = vadd.f32 0.0, %v4587
      %v4589 = vpop.f32.mrf.mxu0
      %4590 = vmatprep.mubr.bf16.mxu0 0
      %4591 = vmatmul.mubr.bf16.gmra.mxu0 %v4452
      %v4592 = vpop.f32.mrf.mxu0
      %v4593 = vadd.f32 0.0, %v4592
      %v4594 = vpop.f32.mrf.mxu0
      %v4595 = vpop.f32.mrf.mxu0
      %v4596 = vadd.f32 0.0, %v4595
      %v4597 = vpop.f32.mrf.mxu0
      %4598 = vmatprep.mubr.bf16.mxu0 0
      %4599 = vmatmul.mubr.bf16.gmra.mxu0 %v4453
      %v4600 = vpop.f32.mrf.mxu0
      %v4601 = vadd.f32 0.0, %v4600
      %v4602 = vpop.f32.mrf.mxu0
      %v4603 = vpop.f32.mrf.mxu0
      %v4604 = vadd.f32 0.0, %v4603
      %v4605 = vpop.f32.mrf.mxu0
      %4606 = vdwg.mxu0
      %v4607 = vadd.f32 %v4309, %v4545
      %v4608 = vadd.f32 %v4310, %v4548
      %v4609 = vadd.f32 %v4311, %v4553
      %v4610 = vadd.f32 %v4312, %v4556
      %v4611 = vadd.f32 %v4313, %v4561
      %v4612 = vadd.f32 %v4314, %v4564
      %v4613 = vadd.f32 %v4315, %v4569
      %v4614 = vadd.f32 %v4316, %v4572
      %v4615 = vadd.f32 %v4317, %v4577
      %v4616 = vadd.f32 %v4318, %v4580
      %v4617 = vadd.f32 %v4319, %v4585
      %v4618 = vadd.f32 %v4320, %v4588
      %v4619 = vadd.f32 %v4321, %v4593
      %v4620 = vadd.f32 %v4322, %v4596
      %v4621 = vadd.f32 %v4323, %v4601
      %v4622 = vadd.f32 %v4324, %v4604
      %s4623 = scalar_lea.vmem %s3, 832
      %v4624 = vld [vmem:[%s4623] sm:$0xf]
      %v4625 = vld [vmem:[%s4623 + $0x4] sm:$0xf]
      %v4626 = vld [vmem:[%s4623 + $0x8] sm:$0xf]
      %v4627 = vld [vmem:[%s4623 + $0xc] sm:$0xf]
      %v4628 = vld [vmem:[%s4623 + $0x10] sm:$0xf]
      %v4629 = vld [vmem:[%s4623 + $0x14] sm:$0xf]
      %v4630 = vld [vmem:[%s4623 + $0x18] sm:$0xf]
      %v4631 = vld [vmem:[%s4623 + $0x1c] sm:$0xf]
      %v4632 = vld [vmem:[%s4623 + $0x20] sm:$0xf]
      %v4633 = vld [vmem:[%s4623 + $0x24] sm:$0xf]
      %v4634 = vld [vmem:[%s4623 + $0x28] sm:$0xf]
      %v4635 = vld [vmem:[%s4623 + $0x2c] sm:$0xf]
      %v4636 = vld [vmem:[%s4623 + $0x30] sm:$0xf]
      %v4637 = vld [vmem:[%s4623 + $0x34] sm:$0xf]
      %v4638 = vld [vmem:[%s4623 + $0x38] sm:$0xf]
      %v4639 = vld [vmem:[%s4623 + $0x3c] sm:$0xf]
      %v4656 = vunpack.c.l.b16 %v4624
      %v4657 = vunpack.c.l.b16 %v4625
      %v4658 = vunpack.c.l.b16 %v4626
      %v4659 = vunpack.c.l.b16 %v4627
      %v4660 = vunpack.c.l.b16 %v4628
      %v4661 = vunpack.c.l.b16 %v4629
      %v4662 = vunpack.c.l.b16 %v4630
      %v4663 = vunpack.c.l.b16 %v4631
      %v4664 = vunpack.c.l.b16 %v4632
      %v4665 = vunpack.c.l.b16 %v4633
      %v4666 = vunpack.c.l.b16 %v4634
      %v4667 = vunpack.c.l.b16 %v4635
      %v4668 = vunpack.c.l.b16 %v4636
      %v4669 = vunpack.c.l.b16 %v4637
      %v4670 = vunpack.c.l.b16 %v4638
      %v4671 = vunpack.c.l.b16 %v4639
      %v4672 = vpack.c.b16 %v4657, %v4656
      %v4673 = vpack.c.b16 %v4659, %v4658
      %v4674 = vpack.c.b16 %v4661, %v4660
      %v4675 = vpack.c.b16 %v4663, %v4662
      %v4676 = vpack.c.b16 %v4665, %v4664
      %v4677 = vpack.c.b16 %v4667, %v4666
      %v4678 = vpack.c.b16 %v4669, %v4668
      %v4679 = vpack.c.b16 %v4671, %v4670
      %4688 = vmatprep.subr.bf16.mxu0 0
      %4689 = vmatpush1.bf16.msra.mxu0 %v4679
      %4690 = vmatprep.subr.bf16.mxu0 0
      %4691 = vmatpush1.bf16.msra.mxu0 %v4678
      %4692 = vmatprep.subr.bf16.mxu0 0
      %4693 = vmatpush1.bf16.msra.mxu0 %v4677
      %4694 = vmatprep.subr.bf16.mxu0 0
      %4695 = vmatpush1.bf16.msra.mxu0 %v4676
      %4696 = vmatprep.subr.bf16.mxu0 0
      %4697 = vmatpush1.bf16.msra.mxu0 %v4675
      %4698 = vmatprep.subr.bf16.mxu0 0
      %4699 = vmatpush1.bf16.msra.mxu0 %v4674
      %4700 = vmatprep.subr.bf16.mxu0 0
      %4701 = vmatpush1.bf16.msra.mxu0 %v4673
      %4702 = vmatprep.subr.bf16.mxu0 0
      %4703 = vmatpush1.bf16.msra.mxu0 %v4672
      %4704 = vmatprep.subr.bf16.mxu0 0
      %4705 = vmatpush2.bf16.msra.mxu0 0
      %4706 = vmatprep.subr.bf16.mxu0 0
      %4707 = vmatpush2.bf16.msra.mxu0 0
      %4708 = vmatprep.subr.bf16.mxu0 0
      %4709 = vmatpush2.bf16.msra.mxu0 0
      %4710 = vmatprep.subr.bf16.mxu0 0
      %4711 = vmatpush2.bf16.msra.mxu0 0
      %4712 = vmatprep.subr.bf16.mxu0 0
      %4713 = vmatpush2.bf16.msra.mxu0 0
      %4714 = vmatprep.subr.bf16.mxu0 0
      %4715 = vmatpush2.bf16.msra.mxu0 0
      %4716 = vmatprep.subr.bf16.mxu0 0
      %4717 = vmatpush2.bf16.msra.mxu0 0
      %4718 = vmatprep.subr.bf16.mxu0 0
      %4719 = vmatpush2.bf16.msra.mxu0 0
      %4720 = vmatprep.mubr.bf16.mxu0 0
      %4721 = vmatmul.mubr.bf16.gmra.mxu0 %v480
      %v4722 = vpop.f32.mrf.mxu0
      %v4723 = vadd.f32 0.0, %v4722
      %v4724 = vpop.f32.mrf.mxu0
      %v4725 = vpop.f32.mrf.mxu0
      %v4726 = vadd.f32 0.0, %v4725
      %v4727 = vpop.f32.mrf.mxu0
      %4728 = vmatprep.mubr.bf16.mxu0 0
      %4729 = vmatmul.mubr.bf16.gmra.mxu0 %v481
      %v4730 = vpop.f32.mrf.mxu0
      %v4731 = vadd.f32 0.0, %v4730
      %v4732 = vpop.f32.mrf.mxu0
      %v4733 = vpop.f32.mrf.mxu0
      %v4734 = vadd.f32 0.0, %v4733
      %v4735 = vpop.f32.mrf.mxu0
      %4736 = vmatprep.mubr.bf16.mxu0 0
      %4737 = vmatmul.mubr.bf16.gmra.mxu0 %v482
      %v4738 = vpop.f32.mrf.mxu0
      %v4739 = vadd.f32 0.0, %v4738
      %v4740 = vpop.f32.mrf.mxu0
      %v4741 = vpop.f32.mrf.mxu0
      %v4742 = vadd.f32 0.0, %v4741
      %v4743 = vpop.f32.mrf.mxu0
      %4744 = vmatprep.mubr.bf16.mxu0 0
      %4745 = vmatmul.mubr.bf16.gmra.mxu0 %v483
      %v4746 = vpop.f32.mrf.mxu0
      %v4747 = vadd.f32 0.0, %v4746
      %v4748 = vpop.f32.mrf.mxu0
      %v4749 = vpop.f32.mrf.mxu0
      %v4750 = vadd.f32 0.0, %v4749
      %v4751 = vpop.f32.mrf.mxu0
      %4752 = vmatprep.mubr.bf16.mxu0 0
      %4753 = vmatmul.mubr.bf16.gmra.mxu0 %v484
      %v4754 = vpop.f32.mrf.mxu0
      %v4755 = vadd.f32 0.0, %v4754
      %v4756 = vpop.f32.mrf.mxu0
      %v4757 = vpop.f32.mrf.mxu0
      %v4758 = vadd.f32 0.0, %v4757
      %v4759 = vpop.f32.mrf.mxu0
      %4760 = vmatprep.mubr.bf16.mxu0 0
      %4761 = vmatmul.mubr.bf16.gmra.mxu0 %v485
      %v4762 = vpop.f32.mrf.mxu0
      %v4763 = vadd.f32 0.0, %v4762
      %v4764 = vpop.f32.mrf.mxu0
      %v4765 = vpop.f32.mrf.mxu0
      %v4766 = vadd.f32 0.0, %v4765
      %v4767 = vpop.f32.mrf.mxu0
      %4768 = vmatprep.mubr.bf16.mxu0 0
      %4769 = vmatmul.mubr.bf16.gmra.mxu0 %v486
      %v4770 = vpop.f32.mrf.mxu0
      %v4771 = vadd.f32 0.0, %v4770
      %v4772 = vpop.f32.mrf.mxu0
      %v4773 = vpop.f32.mrf.mxu0
      %v4774 = vadd.f32 0.0, %v4773
      %v4775 = vpop.f32.mrf.mxu0
      %4776 = vmatprep.mubr.bf16.mxu0 0
      %4777 = vmatmul.mubr.bf16.gmra.mxu0 %v487
      %v4778 = vpop.f32.mrf.mxu0
      %v4779 = vadd.f32 0.0, %v4778
      %v4780 = vpop.f32.mrf.mxu0
      %v4781 = vpop.f32.mrf.mxu0
      %v4782 = vadd.f32 0.0, %v4781
      %v4783 = vpop.f32.mrf.mxu0
      %4784 = vdwg.mxu0
      %v4785 = vadd.f32 %v4607, %v4723
      %v4786 = vadd.f32 %v4608, %v4726
      %v4787 = vadd.f32 %v4609, %v4731
      %v4788 = vadd.f32 %v4610, %v4734
      %v4789 = vadd.f32 %v4611, %v4739
      %v4790 = vadd.f32 %v4612, %v4742
      %v4791 = vadd.f32 %v4613, %v4747
      %v4792 = vadd.f32 %v4614, %v4750
      %v4793 = vadd.f32 %v4615, %v4755
      %v4794 = vadd.f32 %v4616, %v4758
      %v4795 = vadd.f32 %v4617, %v4763
      %v4796 = vadd.f32 %v4618, %v4766
      %v4797 = vadd.f32 %v4619, %v4771
      %v4798 = vadd.f32 %v4620, %v4774
      %v4799 = vadd.f32 %v4621, %v4779
      %v4800 = vadd.f32 %v4622, %v4782
      %v4801 = vld [vmem:[%s333 + $0x4] sm:$0xe]
      %v4802 = vld [vmem:[%s333 + $0x8] sm:$0xf]
      %v4803 = vld [vmem:[%s333 + $0xc] sm:$0x1]
      %v4804 = vld [vmem:[%s333 + $0x14] sm:$0xe]
      %v4805 = vld [vmem:[%s333 + $0x18] sm:$0xf]
      %v4806 = vld [vmem:[%s333 + $0x1c] sm:$0x1]
      %v4807 = vld [vmem:[%s333 + $0x24] sm:$0xe]
      %v4808 = vld [vmem:[%s333 + $0x28] sm:$0xf]
      %v4809 = vld [vmem:[%s333 + $0x2c] sm:$0x1]
      %v4810 = vld [vmem:[%s333 + $0x34] sm:$0xe]
      %v4811 = vld [vmem:[%s333 + $0x38] sm:$0xf]
      %v4812 = vld [vmem:[%s333 + $0x3c] sm:$0x1]
      %v4813 = vld [vmem:[%s333 + $0x44] sm:$0xe]
      %v4814 = vld [vmem:[%s333 + $0x48] sm:$0xf]
      %v4815 = vld [vmem:[%s333 + $0x4c] sm:$0x1]
      %v4816 = vld [vmem:[%s333 + $0x54] sm:$0xe]
      %v4817 = vld [vmem:[%s333 + $0x58] sm:$0xf]
      %v4818 = vld [vmem:[%s333 + $0x5c] sm:$0x1]
      %v4819 = vld [vmem:[%s333 + $0x64] sm:$0xe]
      %v4820 = vld [vmem:[%s333 + $0x68] sm:$0xf]
      %v4821 = vld [vmem:[%s333 + $0x6c] sm:$0x1]
      %v4822 = vld [vmem:[%s333 + $0x74] sm:$0xe]
      %v4823 = vld [vmem:[%s333 + $0x78] sm:$0xf]
      %v4824 = vld [vmem:[%s333 + $0x7c] sm:$0x1]
      %v4849 = vrot.slane %v4801, 5
      %v4850 = vrot.slane %v4849, 4
      %v4851 = vrot.slane %v4802, 5
      %v4852 = vsel %vm3457, %v4850, %v4851
      %v4853 = vrot.slane %v4851, 4
      %v4854 = vrot.slane %v4803, 5
      %v4855 = vsel %vm3457, %v4853, %v4854
      %v4856 = vrot.slane %v4804, 5
      %v4857 = vrot.slane %v4856, 4
      %v4858 = vrot.slane %v4805, 5
      %v4859 = vsel %vm3457, %v4857, %v4858
      %v4860 = vrot.slane %v4858, 4
      %v4861 = vrot.slane %v4806, 5
      %v4862 = vsel %vm3457, %v4860, %v4861
      %v4863 = vrot.slane %v4807, 5
      %v4864 = vrot.slane %v4863, 4
      %v4865 = vrot.slane %v4808, 5
      %v4866 = vsel %vm3457, %v4864, %v4865
      %v4867 = vrot.slane %v4865, 4
      %v4868 = vrot.slane %v4809, 5
      %v4869 = vsel %vm3457, %v4867, %v4868
      %v4870 = vrot.slane %v4810, 5
      %v4871 = vrot.slane %v4870, 4
      %v4872 = vrot.slane %v4811, 5
      %v4873 = vsel %vm3457, %v4871, %v4872
      %v4874 = vrot.slane %v4872, 4
      %v4875 = vrot.slane %v4812, 5
      %v4876 = vsel %vm3457, %v4874, %v4875
      %v4877 = vrot.slane %v4813, 5
      %v4878 = vrot.slane %v4877, 4
      %v4879 = vrot.slane %v4814, 5
      %v4880 = vsel %vm3457, %v4878, %v4879
      %v4881 = vrot.slane %v4879, 4
      %v4882 = vrot.slane %v4815, 5
      %v4883 = vsel %vm3457, %v4881, %v4882
      %v4884 = vrot.slane %v4816, 5
      %v4885 = vrot.slane %v4884, 4
      %v4886 = vrot.slane %v4817, 5
      %v4887 = vsel %vm3457, %v4885, %v4886
      %v4888 = vrot.slane %v4886, 4
      %v4889 = vrot.slane %v4818, 5
      %v4890 = vsel %vm3457, %v4888, %v4889
      %v4891 = vrot.slane %v4819, 5
      %v4892 = vrot.slane %v4891, 4
      %v4893 = vrot.slane %v4820, 5
      %v4894 = vsel %vm3457, %v4892, %v4893
      %v4895 = vrot.slane %v4893, 4
      %v4896 = vrot.slane %v4821, 5
      %v4897 = vsel %vm3457, %v4895, %v4896
      %v4898 = vrot.slane %v4822, 5
      %v4899 = vrot.slane %v4898, 4
      %v4900 = vrot.slane %v4823, 5
      %v4901 = vsel %vm3457, %v4899, %v4900
      %v4902 = vrot.slane %v4900, 4
      %v4903 = vrot.slane %v4824, 5
      %v4904 = vsel %vm3457, %v4902, %v4903
      %s4905 = scalar_lea.vmem %s3, 896
      %v4906 = vld [vmem:[%s4905] sm:$0xf]
      %v4907 = vld [vmem:[%s4905 + $0x4] sm:$0xf]
      %v4908 = vld [vmem:[%s4905 + $0x8] sm:$0xf]
      %v4909 = vld [vmem:[%s4905 + $0xc] sm:$0xf]
      %v4910 = vld [vmem:[%s4905 + $0x10] sm:$0xf]
      %v4911 = vld [vmem:[%s4905 + $0x14] sm:$0xf]
      %v4912 = vld [vmem:[%s4905 + $0x18] sm:$0xf]
      %v4913 = vld [vmem:[%s4905 + $0x1c] sm:$0xf]
      %v4914 = vld [vmem:[%s4905 + $0x20] sm:$0xf]
      %v4915 = vld [vmem:[%s4905 + $0x24] sm:$0xf]
      %v4916 = vld [vmem:[%s4905 + $0x28] sm:$0xf]
      %v4917 = vld [vmem:[%s4905 + $0x2c] sm:$0xf]
      %v4918 = vld [vmem:[%s4905 + $0x30] sm:$0xf]
      %v4919 = vld [vmem:[%s4905 + $0x34] sm:$0xf]
      %v4920 = vld [vmem:[%s4905 + $0x38] sm:$0xf]
      %v4921 = vld [vmem:[%s4905 + $0x3c] sm:$0xf]
      %v4922 = vunpack.c.l.b16 %v4852
      %v4923 = vunpack.c.l.b16 %v4855
      %v4924 = vunpack.c.l.b16 %v4859
      %v4925 = vunpack.c.l.b16 %v4862
      %v4926 = vunpack.c.l.b16 %v4866
      %v4927 = vunpack.c.l.b16 %v4869
      %v4928 = vunpack.c.l.b16 %v4873
      %v4929 = vunpack.c.l.b16 %v4876
      %v4930 = vunpack.c.l.b16 %v4880
      %v4931 = vunpack.c.l.b16 %v4883
      %v4932 = vunpack.c.l.b16 %v4887
      %v4933 = vunpack.c.l.b16 %v4890
      %v4934 = vunpack.c.l.b16 %v4894
      %v4935 = vunpack.c.l.b16 %v4897
      %v4936 = vunpack.c.l.b16 %v4901
      %v4937 = vunpack.c.l.b16 %v4904
      %v4938 = vpack.c.b16 %v4923, %v4922
      %v4939 = vpack.c.b16 %v4925, %v4924
      %v4940 = vpack.c.b16 %v4927, %v4926
      %v4941 = vpack.c.b16 %v4929, %v4928
      %v4942 = vpack.c.b16 %v4931, %v4930
      %v4943 = vpack.c.b16 %v4933, %v4932
      %v4944 = vpack.c.b16 %v4935, %v4934
      %v4945 = vpack.c.b16 %v4937, %v4936
      %v4970 = vunpack.c.l.b16 %v4906
      %v4971 = vunpack.c.l.b16 %v4907
      %v4972 = vunpack.c.l.b16 %v4908
      %v4973 = vunpack.c.l.b16 %v4909
      %v4974 = vunpack.c.l.b16 %v4910
      %v4975 = vunpack.c.l.b16 %v4911
      %v4976 = vunpack.c.l.b16 %v4912
      %v4977 = vunpack.c.l.b16 %v4913
      %v4978 = vunpack.c.l.b16 %v4914
      %v4979 = vunpack.c.l.b16 %v4915
      %v4980 = vunpack.c.l.b16 %v4916
      %v4981 = vunpack.c.l.b16 %v4917
      %v4982 = vunpack.c.l.b16 %v4918
      %v4983 = vunpack.c.l.b16 %v4919
      %v4984 = vunpack.c.l.b16 %v4920
      %v4985 = vunpack.c.l.b16 %v4921
      %v4986 = vpack.c.b16 %v4971, %v4970
      %v4987 = vpack.c.b16 %v4973, %v4972
      %v4988 = vpack.c.b16 %v4975, %v4974
      %v4989 = vpack.c.b16 %v4977, %v4976
      %v4990 = vpack.c.b16 %v4979, %v4978
      %v4991 = vpack.c.b16 %v4981, %v4980
      %v4992 = vpack.c.b16 %v4983, %v4982
      %v4993 = vpack.c.b16 %v4985, %v4984
      %5002 = vmatprep.subr.bf16.mxu0 0
      %5003 = vmatpush1.bf16.msra.mxu0 %v4993
      %5004 = vmatprep.subr.bf16.mxu0 0
      %5005 = vmatpush1.bf16.msra.mxu0 %v4992
      %5006 = vmatprep.subr.bf16.mxu0 0
      %5007 = vmatpush1.bf16.msra.mxu0 %v4991
      %5008 = vmatprep.subr.bf16.mxu0 0
      %5009 = vmatpush1.bf16.msra.mxu0 %v4990
      %5010 = vmatprep.subr.bf16.mxu0 0
      %5011 = vmatpush1.bf16.msra.mxu0 %v4989
      %5012 = vmatprep.subr.bf16.mxu0 0
      %5013 = vmatpush1.bf16.msra.mxu0 %v4988
      %5014 = vmatprep.subr.bf16.mxu0 0
      %5015 = vmatpush1.bf16.msra.mxu0 %v4987
      %5016 = vmatprep.subr.bf16.mxu0 0
      %5017 = vmatpush1.bf16.msra.mxu0 %v4986
      %5018 = vmatprep.subr.bf16.mxu0 0
      %5019 = vmatpush2.bf16.msra.mxu0 0
      %5020 = vmatprep.subr.bf16.mxu0 0
      %5021 = vmatpush2.bf16.msra.mxu0 0
      %5022 = vmatprep.subr.bf16.mxu0 0
      %5023 = vmatpush2.bf16.msra.mxu0 0
      %5024 = vmatprep.subr.bf16.mxu0 0
      %5025 = vmatpush2.bf16.msra.mxu0 0
      %5026 = vmatprep.subr.bf16.mxu0 0
      %5027 = vmatpush2.bf16.msra.mxu0 0
      %5028 = vmatprep.subr.bf16.mxu0 0
      %5029 = vmatpush2.bf16.msra.mxu0 0
      %5030 = vmatprep.subr.bf16.mxu0 0
      %5031 = vmatpush2.bf16.msra.mxu0 0
      %5032 = vmatprep.subr.bf16.mxu0 0
      %5033 = vmatpush2.bf16.msra.mxu0 0
      %5034 = vmatprep.mubr.bf16.mxu0 0
      %5035 = vmatmul.mubr.bf16.gmra.mxu0 %v4938
      %v5036 = vpop.f32.mrf.mxu0
      %v5037 = vadd.f32 0.0, %v5036
      %v5038 = vpop.f32.mrf.mxu0
      %v5039 = vpop.f32.mrf.mxu0
      %v5040 = vadd.f32 0.0, %v5039
      %v5041 = vpop.f32.mrf.mxu0
      %5042 = vmatprep.mubr.bf16.mxu0 0
      %5043 = vmatmul.mubr.bf16.gmra.mxu0 %v4939
      %v5044 = vpop.f32.mrf.mxu0
      %v5045 = vadd.f32 0.0, %v5044
      %v5046 = vpop.f32.mrf.mxu0
      %v5047 = vpop.f32.mrf.mxu0
      %v5048 = vadd.f32 0.0, %v5047
      %v5049 = vpop.f32.mrf.mxu0
      %5050 = vmatprep.mubr.bf16.mxu0 0
      %5051 = vmatmul.mubr.bf16.gmra.mxu0 %v4940
      %v5052 = vpop.f32.mrf.mxu0
      %v5053 = vadd.f32 0.0, %v5052
      %v5054 = vpop.f32.mrf.mxu0
      %v5055 = vpop.f32.mrf.mxu0
      %v5056 = vadd.f32 0.0, %v5055
      %v5057 = vpop.f32.mrf.mxu0
      %5058 = vmatprep.mubr.bf16.mxu0 0
      %5059 = vmatmul.mubr.bf16.gmra.mxu0 %v4941
      %v5060 = vpop.f32.mrf.mxu0
      %v5061 = vadd.f32 0.0, %v5060
      %v5062 = vpop.f32.mrf.mxu0
      %v5063 = vpop.f32.mrf.mxu0
      %v5064 = vadd.f32 0.0, %v5063
      %v5065 = vpop.f32.mrf.mxu0
      %5066 = vmatprep.mubr.bf16.mxu0 0
      %5067 = vmatmul.mubr.bf16.gmra.mxu0 %v4942
      %v5068 = vpop.f32.mrf.mxu0
      %v5069 = vadd.f32 0.0, %v5068
      %v5070 = vpop.f32.mrf.mxu0
      %v5071 = vpop.f32.mrf.mxu0
      %v5072 = vadd.f32 0.0, %v5071
      %v5073 = vpop.f32.mrf.mxu0
      %5074 = vmatprep.mubr.bf16.mxu0 0
      %5075 = vmatmul.mubr.bf16.gmra.mxu0 %v4943
      %v5076 = vpop.f32.mrf.mxu0
      %v5077 = vadd.f32 0.0, %v5076
      %v5078 = vpop.f32.mrf.mxu0
      %v5079 = vpop.f32.mrf.mxu0
      %v5080 = vadd.f32 0.0, %v5079
      %v5081 = vpop.f32.mrf.mxu0
      %5082 = vmatprep.mubr.bf16.mxu0 0
      %5083 = vmatmul.mubr.bf16.gmra.mxu0 %v4944
      %v5084 = vpop.f32.mrf.mxu0
      %v5085 = vadd.f32 0.0, %v5084
      %v5086 = vpop.f32.mrf.mxu0
      %v5087 = vpop.f32.mrf.mxu0
      %v5088 = vadd.f32 0.0, %v5087
      %v5089 = vpop.f32.mrf.mxu0
      %5090 = vmatprep.mubr.bf16.mxu0 0
      %5091 = vmatmul.mubr.bf16.gmra.mxu0 %v4945
      %v5092 = vpop.f32.mrf.mxu0
      %v5093 = vadd.f32 0.0, %v5092
      %v5094 = vpop.f32.mrf.mxu0
      %v5095 = vpop.f32.mrf.mxu0
      %v5096 = vadd.f32 0.0, %v5095
      %v5097 = vpop.f32.mrf.mxu0
      %5098 = vdwg.mxu0
      %v5099 = vadd.f32 %v4785, %v5037
      %v5100 = vadd.f32 %v4786, %v5040
      %v5101 = vadd.f32 %v4787, %v5045
      %v5102 = vadd.f32 %v4788, %v5048
      %v5103 = vadd.f32 %v4789, %v5053
      %v5104 = vadd.f32 %v4790, %v5056
      %v5105 = vadd.f32 %v4791, %v5061
      %v5106 = vadd.f32 %v4792, %v5064
      %v5107 = vadd.f32 %v4793, %v5069
      %v5108 = vadd.f32 %v4794, %v5072
      %v5109 = vadd.f32 %v4795, %v5077
      %v5110 = vadd.f32 %v4796, %v5080
      %v5111 = vadd.f32 %v4797, %v5085
      %v5112 = vadd.f32 %v4798, %v5088
      %v5113 = vadd.f32 %v4799, %v5093
      %v5114 = vadd.f32 %v4800, %v5096
      %s5115 = scalar_lea.vmem %s317, 160
      %v5116 = vld [vmem:[%s5115] sm:$0xe]
      %v5117 = vld [vmem:[%s5115 + $0x4] sm:$0xf]
      %v5118 = vld [vmem:[%s5115 + $0x8] sm:$0x1]
      %v5119 = vld [vmem:[%s5115 + $0x10] sm:$0xe]
      %v5120 = vld [vmem:[%s5115 + $0x14] sm:$0xf]
      %v5121 = vld [vmem:[%s5115 + $0x18] sm:$0x1]
      %v5122 = vld [vmem:[%s5115 + $0x20] sm:$0xe]
      %v5123 = vld [vmem:[%s5115 + $0x24] sm:$0xf]
      %v5124 = vld [vmem:[%s5115 + $0x28] sm:$0x1]
      %v5125 = vld [vmem:[%s5115 + $0x30] sm:$0xe]
      %v5126 = vld [vmem:[%s5115 + $0x34] sm:$0xf]
      %v5127 = vld [vmem:[%s5115 + $0x38] sm:$0x1]
      %v5128 = vld [vmem:[%s5115 + $0x40] sm:$0xe]
      %v5129 = vld [vmem:[%s5115 + $0x44] sm:$0xf]
      %v5130 = vld [vmem:[%s5115 + $0x48] sm:$0x1]
      %v5131 = vld [vmem:[%s5115 + $0x50] sm:$0xe]
      %v5132 = vld [vmem:[%s5115 + $0x54] sm:$0xf]
      %v5133 = vld [vmem:[%s5115 + $0x58] sm:$0x1]
      %v5134 = vld [vmem:[%s5115 + $0x60] sm:$0xe]
      %v5135 = vld [vmem:[%s5115 + $0x64] sm:$0xf]
      %v5136 = vld [vmem:[%s5115 + $0x68] sm:$0x1]
      %v5137 = vld [vmem:[%s5115 + $0x70] sm:$0xe]
      %v5138 = vld [vmem:[%s5115 + $0x74] sm:$0xf]
      %v5139 = vld [vmem:[%s5115 + $0x78] sm:$0x1]
      %v5164 = vrot.slane %v5116, 5
      %v5165 = vrot.slane %v5164, 4
      %v5166 = vrot.slane %v5117, 5
      %v5167 = vsel %vm3457, %v5165, %v5166
      %v5168 = vrot.slane %v5166, 4
      %v5169 = vrot.slane %v5118, 5
      %v5170 = vsel %vm3457, %v5168, %v5169
      %v5171 = vrot.slane %v5119, 5
      %v5172 = vrot.slane %v5171, 4
      %v5173 = vrot.slane %v5120, 5
      %v5174 = vsel %vm3457, %v5172, %v5173
      %v5175 = vrot.slane %v5173, 4
      %v5176 = vrot.slane %v5121, 5
      %v5177 = vsel %vm3457, %v5175, %v5176
      %v5178 = vrot.slane %v5122, 5
      %v5179 = vrot.slane %v5178, 4
      %v5180 = vrot.slane %v5123, 5
      %v5181 = vsel %vm3457, %v5179, %v5180
      %v5182 = vrot.slane %v5180, 4
      %v5183 = vrot.slane %v5124, 5
      %v5184 = vsel %vm3457, %v5182, %v5183
      %v5185 = vrot.slane %v5125, 5
      %v5186 = vrot.slane %v5185, 4
      %v5187 = vrot.slane %v5126, 5
      %v5188 = vsel %vm3457, %v5186, %v5187
      %v5189 = vrot.slane %v5187, 4
      %v5190 = vrot.slane %v5127, 5
      %v5191 = vsel %vm3457, %v5189, %v5190
      %v5192 = vrot.slane %v5128, 5
      %v5193 = vrot.slane %v5192, 4
      %v5194 = vrot.slane %v5129, 5
      %v5195 = vsel %vm3457, %v5193, %v5194
      %v5196 = vrot.slane %v5194, 4
      %v5197 = vrot.slane %v5130, 5
      %v5198 = vsel %vm3457, %v5196, %v5197
      %v5199 = vrot.slane %v5131, 5
      %v5200 = vrot.slane %v5199, 4
      %v5201 = vrot.slane %v5132, 5
      %v5202 = vsel %vm3457, %v5200, %v5201
      %v5203 = vrot.slane %v5201, 4
      %v5204 = vrot.slane %v5133, 5
      %v5205 = vsel %vm3457, %v5203, %v5204
      %v5206 = vrot.slane %v5134, 5
      %v5207 = vrot.slane %v5206, 4
      %v5208 = vrot.slane %v5135, 5
      %v5209 = vsel %vm3457, %v5207, %v5208
      %v5210 = vrot.slane %v5208, 4
      %v5211 = vrot.slane %v5136, 5
      %v5212 = vsel %vm3457, %v5210, %v5211
      %v5213 = vrot.slane %v5137, 5
      %v5214 = vrot.slane %v5213, 4
      %v5215 = vrot.slane %v5138, 5
      %v5216 = vsel %vm3457, %v5214, %v5215
      %v5217 = vrot.slane %v5215, 4
      %v5218 = vrot.slane %v5139, 5
      %v5219 = vsel %vm3457, %v5217, %v5218
      %s5220 = scalar_lea.vmem %s3, 960
      %v5221 = vld [vmem:[%s5220] sm:$0xf]
      %v5222 = vld [vmem:[%s5220 + $0x4] sm:$0xf]
      %v5223 = vld [vmem:[%s5220 + $0x8] sm:$0xf]
      %v5224 = vld [vmem:[%s5220 + $0xc] sm:$0xf]
      %v5225 = vld [vmem:[%s5220 + $0x10] sm:$0xf]
      %v5226 = vld [vmem:[%s5220 + $0x14] sm:$0xf]
      %v5227 = vld [vmem:[%s5220 + $0x18] sm:$0xf]
      %v5228 = vld [vmem:[%s5220 + $0x1c] sm:$0xf]
      %v5229 = vld [vmem:[%s5220 + $0x20] sm:$0xf]
      %v5230 = vld [vmem:[%s5220 + $0x24] sm:$0xf]
      %v5231 = vld [vmem:[%s5220 + $0x28] sm:$0xf]
      %v5232 = vld [vmem:[%s5220 + $0x2c] sm:$0xf]
      %v5233 = vld [vmem:[%s5220 + $0x30] sm:$0xf]
      %v5234 = vld [vmem:[%s5220 + $0x34] sm:$0xf]
      %v5235 = vld [vmem:[%s5220 + $0x38] sm:$0xf]
      %v5236 = vld [vmem:[%s5220 + $0x3c] sm:$0xf]
      %v5237 = vunpack.c.l.b16 %v5167
      %v5238 = vunpack.c.l.b16 %v5170
      %v5239 = vunpack.c.l.b16 %v5174
      %v5240 = vunpack.c.l.b16 %v5177
      %v5241 = vunpack.c.l.b16 %v5181
      %v5242 = vunpack.c.l.b16 %v5184
      %v5243 = vunpack.c.l.b16 %v5188
      %v5244 = vunpack.c.l.b16 %v5191
      %v5245 = vunpack.c.l.b16 %v5195
      %v5246 = vunpack.c.l.b16 %v5198
      %v5247 = vunpack.c.l.b16 %v5202
      %v5248 = vunpack.c.l.b16 %v5205
      %v5249 = vunpack.c.l.b16 %v5209
      %v5250 = vunpack.c.l.b16 %v5212
      %v5251 = vunpack.c.l.b16 %v5216
      %v5252 = vunpack.c.l.b16 %v5219
      %v5253 = vpack.c.b16 %v5238, %v5237
      %v5254 = vpack.c.b16 %v5240, %v5239
      %v5255 = vpack.c.b16 %v5242, %v5241
      %v5256 = vpack.c.b16 %v5244, %v5243
      %v5257 = vpack.c.b16 %v5246, %v5245
      %v5258 = vpack.c.b16 %v5248, %v5247
      %v5259 = vpack.c.b16 %v5250, %v5249
      %v5260 = vpack.c.b16 %v5252, %v5251
      %v5285 = vunpack.c.l.b16 %v5221
      %v5286 = vunpack.c.l.b16 %v5222
      %v5287 = vunpack.c.l.b16 %v5223
      %v5288 = vunpack.c.l.b16 %v5224
      %v5289 = vunpack.c.l.b16 %v5225
      %v5290 = vunpack.c.l.b16 %v5226
      %v5291 = vunpack.c.l.b16 %v5227
      %v5292 = vunpack.c.l.b16 %v5228
      %v5293 = vunpack.c.l.b16 %v5229
      %v5294 = vunpack.c.l.b16 %v5230
      %v5295 = vunpack.c.l.b16 %v5231
      %v5296 = vunpack.c.l.b16 %v5232
      %v5297 = vunpack.c.l.b16 %v5233
      %v5298 = vunpack.c.l.b16 %v5234
      %v5299 = vunpack.c.l.b16 %v5235
      %v5300 = vunpack.c.l.b16 %v5236
      %v5301 = vpack.c.b16 %v5286, %v5285
      %v5302 = vpack.c.b16 %v5288, %v5287
      %v5303 = vpack.c.b16 %v5290, %v5289
      %v5304 = vpack.c.b16 %v5292, %v5291
      %v5305 = vpack.c.b16 %v5294, %v5293
      %v5306 = vpack.c.b16 %v5296, %v5295
      %v5307 = vpack.c.b16 %v5298, %v5297
      %v5308 = vpack.c.b16 %v5300, %v5299
      %5317 = vmatprep.subr.bf16.mxu0 0
      %5318 = vmatpush1.bf16.msra.mxu0 %v5308
      %5319 = vmatprep.subr.bf16.mxu0 0
      %5320 = vmatpush1.bf16.msra.mxu0 %v5307
      %5321 = vmatprep.subr.bf16.mxu0 0
      %5322 = vmatpush1.bf16.msra.mxu0 %v5306
      %5323 = vmatprep.subr.bf16.mxu0 0
      %5324 = vmatpush1.bf16.msra.mxu0 %v5305
      %5325 = vmatprep.subr.bf16.mxu0 0
      %5326 = vmatpush1.bf16.msra.mxu0 %v5304
      %5327 = vmatprep.subr.bf16.mxu0 0
      %5328 = vmatpush1.bf16.msra.mxu0 %v5303
      %5329 = vmatprep.subr.bf16.mxu0 0
      %5330 = vmatpush1.bf16.msra.mxu0 %v5302
      %5331 = vmatprep.subr.bf16.mxu0 0
      %5332 = vmatpush1.bf16.msra.mxu0 %v5301
      %5333 = vmatprep.subr.bf16.mxu0 0
      %5334 = vmatpush2.bf16.msra.mxu0 0
      %5335 = vmatprep.subr.bf16.mxu0 0
      %5336 = vmatpush2.bf16.msra.mxu0 0
      %5337 = vmatprep.subr.bf16.mxu0 0
      %5338 = vmatpush2.bf16.msra.mxu0 0
      %5339 = vmatprep.subr.bf16.mxu0 0
      %5340 = vmatpush2.bf16.msra.mxu0 0
      %5341 = vmatprep.subr.bf16.mxu0 0
      %5342 = vmatpush2.bf16.msra.mxu0 0
      %5343 = vmatprep.subr.bf16.mxu0 0
      %5344 = vmatpush2.bf16.msra.mxu0 0
      %5345 = vmatprep.subr.bf16.mxu0 0
      %5346 = vmatpush2.bf16.msra.mxu0 0
      %5347 = vmatprep.subr.bf16.mxu0 0
      %5348 = vmatpush2.bf16.msra.mxu0 0
      %5349 = vmatprep.mubr.bf16.mxu0 0
      %5350 = vmatmul.mubr.bf16.gmra.mxu0 %v5253
      %v5351 = vpop.f32.mrf.mxu0
      %v5352 = vadd.f32 0.0, %v5351
      %v5353 = vpop.f32.mrf.mxu0
      %v5354 = vpop.f32.mrf.mxu0
      %v5355 = vadd.f32 0.0, %v5354
      %v5356 = vpop.f32.mrf.mxu0
      %5357 = vmatprep.mubr.bf16.mxu0 0
      %5358 = vmatmul.mubr.bf16.gmra.mxu0 %v5254
      %v5359 = vpop.f32.mrf.mxu0
      %v5360 = vadd.f32 0.0, %v5359
      %v5361 = vpop.f32.mrf.mxu0
      %v5362 = vpop.f32.mrf.mxu0
      %v5363 = vadd.f32 0.0, %v5362
      %v5364 = vpop.f32.mrf.mxu0
      %5365 = vmatprep.mubr.bf16.mxu0 0
      %5366 = vmatmul.mubr.bf16.gmra.mxu0 %v5255
      %v5367 = vpop.f32.mrf.mxu0
      %v5368 = vadd.f32 0.0, %v5367
      %v5369 = vpop.f32.mrf.mxu0
      %v5370 = vpop.f32.mrf.mxu0
      %v5371 = vadd.f32 0.0, %v5370
      %v5372 = vpop.f32.mrf.mxu0
      %5373 = vmatprep.mubr.bf16.mxu0 0
      %5374 = vmatmul.mubr.bf16.gmra.mxu0 %v5256
      %v5375 = vpop.f32.mrf.mxu0
      %v5376 = vadd.f32 0.0, %v5375
      %v5377 = vpop.f32.mrf.mxu0
      %v5378 = vpop.f32.mrf.mxu0
      %v5379 = vadd.f32 0.0, %v5378
      %v5380 = vpop.f32.mrf.mxu0
      %5381 = vmatprep.mubr.bf16.mxu0 0
      %5382 = vmatmul.mubr.bf16.gmra.mxu0 %v5257
      %v5383 = vpop.f32.mrf.mxu0
      %v5384 = vadd.f32 0.0, %v5383
      %v5385 = vpop.f32.mrf.mxu0
      %v5386 = vpop.f32.mrf.mxu0
      %v5387 = vadd.f32 0.0, %v5386
      %v5388 = vpop.f32.mrf.mxu0
      %5389 = vmatprep.mubr.bf16.mxu0 0
      %5390 = vmatmul.mubr.bf16.gmra.mxu0 %v5258
      %v5391 = vpop.f32.mrf.mxu0
      %v5392 = vadd.f32 0.0, %v5391
      %v5393 = vpop.f32.mrf.mxu0
      %v5394 = vpop.f32.mrf.mxu0
      %v5395 = vadd.f32 0.0, %v5394
      %v5396 = vpop.f32.mrf.mxu0
      %5397 = vmatprep.mubr.bf16.mxu0 0
      %5398 = vmatmul.mubr.bf16.gmra.mxu0 %v5259
      %v5399 = vpop.f32.mrf.mxu0
      %v5400 = vadd.f32 0.0, %v5399
      %v5401 = vpop.f32.mrf.mxu0
      %v5402 = vpop.f32.mrf.mxu0
      %v5403 = vadd.f32 0.0, %v5402
      %v5404 = vpop.f32.mrf.mxu0
      %5405 = vmatprep.mubr.bf16.mxu0 0
      %5406 = vmatmul.mubr.bf16.gmra.mxu0 %v5260
      %v5407 = vpop.f32.mrf.mxu0
      %v5408 = vadd.f32 0.0, %v5407
      %v5409 = vpop.f32.mrf.mxu0
      %v5410 = vpop.f32.mrf.mxu0
      %v5411 = vadd.f32 0.0, %v5410
      %v5412 = vpop.f32.mrf.mxu0
      %5413 = vdwg.mxu0
      %v5414 = vadd.f32 %v5099, %v5352
      %v5415 = vadd.f32 %v5100, %v5355
      %v5416 = vadd.f32 %v5101, %v5360
      %v5417 = vadd.f32 %v5102, %v5363
      %v5418 = vadd.f32 %v5103, %v5368
      %v5419 = vadd.f32 %v5104, %v5371
      %v5420 = vadd.f32 %v5105, %v5376
      %v5421 = vadd.f32 %v5106, %v5379
      %v5422 = vadd.f32 %v5107, %v5384
      %v5423 = vadd.f32 %v5108, %v5387
      %v5424 = vadd.f32 %v5109, %v5392
      %v5425 = vadd.f32 %v5110, %v5395
      %v5426 = vadd.f32 %v5111, %v5400
      %v5427 = vadd.f32 %v5112, %v5403
      %v5428 = vadd.f32 %v5113, %v5408
      %v5429 = vadd.f32 %v5114, %v5411
      %v5430 = vld [vmem:[%s5115] sm:$0x8]
      %v5431 = vld [vmem:[%s5115 + $0x8] sm:$0x7]
      %v5432 = vld [vmem:[%s5115 + $0x10] sm:$0x8]
      %v5433 = vld [vmem:[%s5115 + $0x18] sm:$0x7]
      %v5434 = vld [vmem:[%s5115 + $0x20] sm:$0x8]
      %v5435 = vld [vmem:[%s5115 + $0x28] sm:$0x7]
      %v5436 = vld [vmem:[%s5115 + $0x30] sm:$0x8]
      %v5437 = vld [vmem:[%s5115 + $0x38] sm:$0x7]
      %v5438 = vld [vmem:[%s5115 + $0x40] sm:$0x8]
      %v5439 = vld [vmem:[%s5115 + $0x48] sm:$0x7]
      %v5440 = vld [vmem:[%s5115 + $0x50] sm:$0x8]
      %v5441 = vld [vmem:[%s5115 + $0x58] sm:$0x7]
      %v5442 = vld [vmem:[%s5115 + $0x60] sm:$0x8]
      %v5443 = vld [vmem:[%s5115 + $0x68] sm:$0x7]
      %v5444 = vld [vmem:[%s5115 + $0x70] sm:$0x8]
      %v5445 = vld [vmem:[%s5115 + $0x78] sm:$0x7]
      %v5462 = vrot.slane %v5430, 7
      %v5463 = vrot.slane %v5462, 4
      %v5464 = vrot.slane %v5117, 7
      %v5465 = vsel %vm384, %v5463, %v5464
      %v5466 = vrot.slane %v5464, 4
      %v5467 = vrot.slane %v5431, 7
      %v5468 = vsel %vm384, %v5466, %v5467
      %v5469 = vrot.slane %v5432, 7
      %v5470 = vrot.slane %v5469, 4
      %v5471 = vrot.slane %v5120, 7
      %v5472 = vsel %vm384, %v5470, %v5471
      %v5473 = vrot.slane %v5471, 4
      %v5474 = vrot.slane %v5433, 7
      %v5475 = vsel %vm384, %v5473, %v5474
      %v5476 = vrot.slane %v5434, 7
      %v5477 = vrot.slane %v5476, 4
      %v5478 = vrot.slane %v5123, 7
      %v5479 = vsel %vm384, %v5477, %v5478
      %v5480 = vrot.slane %v5478, 4
      %v5481 = vrot.slane %v5435, 7
      %v5482 = vsel %vm384, %v5480, %v5481
      %v5483 = vrot.slane %v5436, 7
      %v5484 = vrot.slane %v5483, 4
      %v5485 = vrot.slane %v5126, 7
      %v5486 = vsel %vm384, %v5484, %v5485
      %v5487 = vrot.slane %v5485, 4
      %v5488 = vrot.slane %v5437, 7
      %v5489 = vsel %vm384, %v5487, %v5488
      %v5490 = vrot.slane %v5438, 7
      %v5491 = vrot.slane %v5490, 4
      %v5492 = vrot.slane %v5129, 7
      %v5493 = vsel %vm384, %v5491, %v5492
      %v5494 = vrot.slane %v5492, 4
      %v5495 = vrot.slane %v5439, 7
      %v5496 = vsel %vm384, %v5494, %v5495
      %v5497 = vrot.slane %v5440, 7
      %v5498 = vrot.slane %v5497, 4
      %v5499 = vrot.slane %v5132, 7
      %v5500 = vsel %vm384, %v5498, %v5499
      %v5501 = vrot.slane %v5499, 4
      %v5502 = vrot.slane %v5441, 7
      %v5503 = vsel %vm384, %v5501, %v5502
      %v5504 = vrot.slane %v5442, 7
      %v5505 = vrot.slane %v5504, 4
      %v5506 = vrot.slane %v5135, 7
      %v5507 = vsel %vm384, %v5505, %v5506
      %v5508 = vrot.slane %v5506, 4
      %v5509 = vrot.slane %v5443, 7
      %v5510 = vsel %vm384, %v5508, %v5509
      %v5511 = vrot.slane %v5444, 7
      %v5512 = vrot.slane %v5511, 4
      %v5513 = vrot.slane %v5138, 7
      %v5514 = vsel %vm384, %v5512, %v5513
      %v5515 = vrot.slane %v5513, 4
      %v5516 = vrot.slane %v5445, 7
      %v5517 = vsel %vm384, %v5515, %v5516
      %s5518 = scalar_lea.vmem %s3, 1024
      %v5519 = vld [vmem:[%s5518] sm:$0xf]
      %v5520 = vld [vmem:[%s5518 + $0x4] sm:$0xf]
      %v5521 = vld [vmem:[%s5518 + $0x8] sm:$0xf]
      %v5522 = vld [vmem:[%s5518 + $0xc] sm:$0xf]
      %v5523 = vld [vmem:[%s5518 + $0x10] sm:$0xf]
      %v5524 = vld [vmem:[%s5518 + $0x14] sm:$0xf]
      %v5525 = vld [vmem:[%s5518 + $0x18] sm:$0xf]
      %v5526 = vld [vmem:[%s5518 + $0x1c] sm:$0xf]
      %v5527 = vld [vmem:[%s5518 + $0x20] sm:$0xf]
      %v5528 = vld [vmem:[%s5518 + $0x24] sm:$0xf]
      %v5529 = vld [vmem:[%s5518 + $0x28] sm:$0xf]
      %v5530 = vld [vmem:[%s5518 + $0x2c] sm:$0xf]
      %v5531 = vld [vmem:[%s5518 + $0x30] sm:$0xf]
      %v5532 = vld [vmem:[%s5518 + $0x34] sm:$0xf]
      %v5533 = vld [vmem:[%s5518 + $0x38] sm:$0xf]
      %v5534 = vld [vmem:[%s5518 + $0x3c] sm:$0xf]
      %v5535 = vunpack.c.l.b16 %v5465
      %v5536 = vunpack.c.l.b16 %v5468
      %v5537 = vunpack.c.l.b16 %v5472
      %v5538 = vunpack.c.l.b16 %v5475
      %v5539 = vunpack.c.l.b16 %v5479
      %v5540 = vunpack.c.l.b16 %v5482
      %v5541 = vunpack.c.l.b16 %v5486
      %v5542 = vunpack.c.l.b16 %v5489
      %v5543 = vunpack.c.l.b16 %v5493
      %v5544 = vunpack.c.l.b16 %v5496
      %v5545 = vunpack.c.l.b16 %v5500
      %v5546 = vunpack.c.l.b16 %v5503
      %v5547 = vunpack.c.l.b16 %v5507
      %v5548 = vunpack.c.l.b16 %v5510
      %v5549 = vunpack.c.l.b16 %v5514
      %v5550 = vunpack.c.l.b16 %v5517
      %v5551 = vpack.c.b16 %v5536, %v5535
      %v5552 = vpack.c.b16 %v5538, %v5537
      %v5553 = vpack.c.b16 %v5540, %v5539
      %v5554 = vpack.c.b16 %v5542, %v5541
      %v5555 = vpack.c.b16 %v5544, %v5543
      %v5556 = vpack.c.b16 %v5546, %v5545
      %v5557 = vpack.c.b16 %v5548, %v5547
      %v5558 = vpack.c.b16 %v5550, %v5549
      %v5583 = vunpack.c.l.b16 %v5519
      %v5584 = vunpack.c.l.b16 %v5520
      %v5585 = vunpack.c.l.b16 %v5521
      %v5586 = vunpack.c.l.b16 %v5522
      %v5587 = vunpack.c.l.b16 %v5523
      %v5588 = vunpack.c.l.b16 %v5524
      %v5589 = vunpack.c.l.b16 %v5525
      %v5590 = vunpack.c.l.b16 %v5526
      %v5591 = vunpack.c.l.b16 %v5527
      %v5592 = vunpack.c.l.b16 %v5528
      %v5593 = vunpack.c.l.b16 %v5529
      %v5594 = vunpack.c.l.b16 %v5530
      %v5595 = vunpack.c.l.b16 %v5531
      %v5596 = vunpack.c.l.b16 %v5532
      %v5597 = vunpack.c.l.b16 %v5533
      %v5598 = vunpack.c.l.b16 %v5534
      %v5599 = vpack.c.b16 %v5584, %v5583
      %v5600 = vpack.c.b16 %v5586, %v5585
      %v5601 = vpack.c.b16 %v5588, %v5587
      %v5602 = vpack.c.b16 %v5590, %v5589
      %v5603 = vpack.c.b16 %v5592, %v5591
      %v5604 = vpack.c.b16 %v5594, %v5593
      %v5605 = vpack.c.b16 %v5596, %v5595
      %v5606 = vpack.c.b16 %v5598, %v5597
      %5615 = vmatprep.subr.bf16.mxu0 0
      %5616 = vmatpush1.bf16.msra.mxu0 %v5606
      %5617 = vmatprep.subr.bf16.mxu0 0
      %5618 = vmatpush1.bf16.msra.mxu0 %v5605
      %5619 = vmatprep.subr.bf16.mxu0 0
      %5620 = vmatpush1.bf16.msra.mxu0 %v5604
      %5621 = vmatprep.subr.bf16.mxu0 0
      %5622 = vmatpush1.bf16.msra.mxu0 %v5603
      %5623 = vmatprep.subr.bf16.mxu0 0
      %5624 = vmatpush1.bf16.msra.mxu0 %v5602
      %5625 = vmatprep.subr.bf16.mxu0 0
      %5626 = vmatpush1.bf16.msra.mxu0 %v5601
      %5627 = vmatprep.subr.bf16.mxu0 0
      %5628 = vmatpush1.bf16.msra.mxu0 %v5600
      %5629 = vmatprep.subr.bf16.mxu0 0
      %5630 = vmatpush1.bf16.msra.mxu0 %v5599
      %5631 = vmatprep.subr.bf16.mxu0 0
      %5632 = vmatpush2.bf16.msra.mxu0 0
      %5633 = vmatprep.subr.bf16.mxu0 0
      %5634 = vmatpush2.bf16.msra.mxu0 0
      %5635 = vmatprep.subr.bf16.mxu0 0
      %5636 = vmatpush2.bf16.msra.mxu0 0
      %5637 = vmatprep.subr.bf16.mxu0 0
      %5638 = vmatpush2.bf16.msra.mxu0 0
      %5639 = vmatprep.subr.bf16.mxu0 0
      %5640 = vmatpush2.bf16.msra.mxu0 0
      %5641 = vmatprep.subr.bf16.mxu0 0
      %5642 = vmatpush2.bf16.msra.mxu0 0
      %5643 = vmatprep.subr.bf16.mxu0 0
      %5644 = vmatpush2.bf16.msra.mxu0 0
      %5645 = vmatprep.subr.bf16.mxu0 0
      %5646 = vmatpush2.bf16.msra.mxu0 0
      %5647 = vmatprep.mubr.bf16.mxu0 0
      %5648 = vmatmul.mubr.bf16.gmra.mxu0 %v5551
      %v5649 = vpop.f32.mrf.mxu0
      %v5650 = vadd.f32 0.0, %v5649
      %v5651 = vpop.f32.mrf.mxu0
      %v5652 = vpop.f32.mrf.mxu0
      %v5653 = vadd.f32 0.0, %v5652
      %v5654 = vpop.f32.mrf.mxu0
      %5655 = vmatprep.mubr.bf16.mxu0 0
      %5656 = vmatmul.mubr.bf16.gmra.mxu0 %v5552
      %v5657 = vpop.f32.mrf.mxu0
      %v5658 = vadd.f32 0.0, %v5657
      %v5659 = vpop.f32.mrf.mxu0
      %v5660 = vpop.f32.mrf.mxu0
      %v5661 = vadd.f32 0.0, %v5660
      %v5662 = vpop.f32.mrf.mxu0
      %5663 = vmatprep.mubr.bf16.mxu0 0
      %5664 = vmatmul.mubr.bf16.gmra.mxu0 %v5553
      %v5665 = vpop.f32.mrf.mxu0
      %v5666 = vadd.f32 0.0, %v5665
      %v5667 = vpop.f32.mrf.mxu0
      %v5668 = vpop.f32.mrf.mxu0
      %v5669 = vadd.f32 0.0, %v5668
      %v5670 = vpop.f32.mrf.mxu0
      %5671 = vmatprep.mubr.bf16.mxu0 0
      %5672 = vmatmul.mubr.bf16.gmra.mxu0 %v5554
      %v5673 = vpop.f32.mrf.mxu0
      %v5674 = vadd.f32 0.0, %v5673
      %v5675 = vpop.f32.mrf.mxu0
      %v5676 = vpop.f32.mrf.mxu0
      %v5677 = vadd.f32 0.0, %v5676
      %v5678 = vpop.f32.mrf.mxu0
      %5679 = vmatprep.mubr.bf16.mxu0 0
      %5680 = vmatmul.mubr.bf16.gmra.mxu0 %v5555
      %v5681 = vpop.f32.mrf.mxu0
      %v5682 = vadd.f32 0.0, %v5681
      %v5683 = vpop.f32.mrf.mxu0
      %v5684 = vpop.f32.mrf.mxu0
      %v5685 = vadd.f32 0.0, %v5684
      %v5686 = vpop.f32.mrf.mxu0
      %5687 = vmatprep.mubr.bf16.mxu0 0
      %5688 = vmatmul.mubr.bf16.gmra.mxu0 %v5556
      %v5689 = vpop.f32.mrf.mxu0
      %v5690 = vadd.f32 0.0, %v5689
      %v5691 = vpop.f32.mrf.mxu0
      %v5692 = vpop.f32.mrf.mxu0
      %v5693 = vadd.f32 0.0, %v5692
      %v5694 = vpop.f32.mrf.mxu0
      %5695 = vmatprep.mubr.bf16.mxu0 0
      %5696 = vmatmul.mubr.bf16.gmra.mxu0 %v5557
      %v5697 = vpop.f32.mrf.mxu0
      %v5698 = vadd.f32 0.0, %v5697
      %v5699 = vpop.f32.mrf.mxu0
      %v5700 = vpop.f32.mrf.mxu0
      %v5701 = vadd.f32 0.0, %v5700
      %v5702 = vpop.f32.mrf.mxu0
      %5703 = vmatprep.mubr.bf16.mxu0 0
      %5704 = vmatmul.mubr.bf16.gmra.mxu0 %v5558
      %v5705 = vpop.f32.mrf.mxu0
      %v5706 = vadd.f32 0.0, %v5705
      %v5707 = vpop.f32.mrf.mxu0
      %v5708 = vpop.f32.mrf.mxu0
      %v5709 = vadd.f32 0.0, %v5708
      %v5710 = vpop.f32.mrf.mxu0
      %5711 = vdwg.mxu0
      %v5712 = vadd.f32 %v5414, %v5650
      %v5713 = vadd.f32 %v5415, %v5653
      %v5714 = vadd.f32 %v5416, %v5658
      %v5715 = vadd.f32 %v5417, %v5661
      %v5716 = vadd.f32 %v5418, %v5666
      %v5717 = vadd.f32 %v5419, %v5669
      %v5718 = vadd.f32 %v5420, %v5674
      %v5719 = vadd.f32 %v5421, %v5677
      %v5720 = vadd.f32 %v5422, %v5682
      %v5721 = vadd.f32 %v5423, %v5685
      %v5722 = vadd.f32 %v5424, %v5690
      %v5723 = vadd.f32 %v5425, %v5693
      %v5724 = vadd.f32 %v5426, %v5698
      %v5725 = vadd.f32 %v5427, %v5701
      %v5726 = vadd.f32 %v5428, %v5706
      %v5727 = vadd.f32 %v5429, %v5709
      %v5728 = vld [vmem:[%s5115 + $0x4] sm:$0xe]
      %v5729 = vld [vmem:[%s5115 + $0x8] sm:$0xf]
      %v5730 = vld [vmem:[%s5115 + $0xc] sm:$0x1]
      %v5731 = vld [vmem:[%s5115 + $0x14] sm:$0xe]
      %v5732 = vld [vmem:[%s5115 + $0x18] sm:$0xf]
      %v5733 = vld [vmem:[%s5115 + $0x1c] sm:$0x1]
      %v5734 = vld [vmem:[%s5115 + $0x24] sm:$0xe]
      %v5735 = vld [vmem:[%s5115 + $0x28] sm:$0xf]
      %v5736 = vld [vmem:[%s5115 + $0x2c] sm:$0x1]
      %v5737 = vld [vmem:[%s5115 + $0x34] sm:$0xe]
      %v5738 = vld [vmem:[%s5115 + $0x38] sm:$0xf]
      %v5739 = vld [vmem:[%s5115 + $0x3c] sm:$0x1]
      %v5740 = vld [vmem:[%s5115 + $0x44] sm:$0xe]
      %v5741 = vld [vmem:[%s5115 + $0x48] sm:$0xf]
      %v5742 = vld [vmem:[%s5115 + $0x4c] sm:$0x1]
      %v5743 = vld [vmem:[%s5115 + $0x54] sm:$0xe]
      %v5744 = vld [vmem:[%s5115 + $0x58] sm:$0xf]
      %v5745 = vld [vmem:[%s5115 + $0x5c] sm:$0x1]
      %v5746 = vld [vmem:[%s5115 + $0x64] sm:$0xe]
      %v5747 = vld [vmem:[%s5115 + $0x68] sm:$0xf]
      %v5748 = vld [vmem:[%s5115 + $0x6c] sm:$0x1]
      %v5749 = vld [vmem:[%s5115 + $0x74] sm:$0xe]
      %v5750 = vld [vmem:[%s5115 + $0x78] sm:$0xf]
      %v5751 = vld [vmem:[%s5115 + $0x7c] sm:$0x1]
      %v5776 = vrot.slane %v5728, 5
      %v5777 = vrot.slane %v5776, 4
      %v5778 = vrot.slane %v5729, 5
      %v5779 = vsel %vm3457, %v5777, %v5778
      %v5780 = vrot.slane %v5778, 4
      %v5781 = vrot.slane %v5730, 5
      %v5782 = vsel %vm3457, %v5780, %v5781
      %v5783 = vrot.slane %v5731, 5
      %v5784 = vrot.slane %v5783, 4
      %v5785 = vrot.slane %v5732, 5
      %v5786 = vsel %vm3457, %v5784, %v5785
      %v5787 = vrot.slane %v5785, 4
      %v5788 = vrot.slane %v5733, 5
      %v5789 = vsel %vm3457, %v5787, %v5788
      %v5790 = vrot.slane %v5734, 5
      %v5791 = vrot.slane %v5790, 4
      %v5792 = vrot.slane %v5735, 5
      %v5793 = vsel %vm3457, %v5791, %v5792
      %v5794 = vrot.slane %v5792, 4
      %v5795 = vrot.slane %v5736, 5
      %v5796 = vsel %vm3457, %v5794, %v5795
      %v5797 = vrot.slane %v5737, 5
      %v5798 = vrot.slane %v5797, 4
      %v5799 = vrot.slane %v5738, 5
      %v5800 = vsel %vm3457, %v5798, %v5799
      %v5801 = vrot.slane %v5799, 4
      %v5802 = vrot.slane %v5739, 5
      %v5803 = vsel %vm3457, %v5801, %v5802
      %v5804 = vrot.slane %v5740, 5
      %v5805 = vrot.slane %v5804, 4
      %v5806 = vrot.slane %v5741, 5
      %v5807 = vsel %vm3457, %v5805, %v5806
      %v5808 = vrot.slane %v5806, 4
      %v5809 = vrot.slane %v5742, 5
      %v5810 = vsel %vm3457, %v5808, %v5809
      %v5811 = vrot.slane %v5743, 5
      %v5812 = vrot.slane %v5811, 4
      %v5813 = vrot.slane %v5744, 5
      %v5814 = vsel %vm3457, %v5812, %v5813
      %v5815 = vrot.slane %v5813, 4
      %v5816 = vrot.slane %v5745, 5
      %v5817 = vsel %vm3457, %v5815, %v5816
      %v5818 = vrot.slane %v5746, 5
      %v5819 = vrot.slane %v5818, 4
      %v5820 = vrot.slane %v5747, 5
      %v5821 = vsel %vm3457, %v5819, %v5820
      %v5822 = vrot.slane %v5820, 4
      %v5823 = vrot.slane %v5748, 5
      %v5824 = vsel %vm3457, %v5822, %v5823
      %v5825 = vrot.slane %v5749, 5
      %v5826 = vrot.slane %v5825, 4
      %v5827 = vrot.slane %v5750, 5
      %v5828 = vsel %vm3457, %v5826, %v5827
      %v5829 = vrot.slane %v5827, 4
      %v5830 = vrot.slane %v5751, 5
      %v5831 = vsel %vm3457, %v5829, %v5830
      %s5832 = scalar_lea.vmem %s3, 1088
      %v5833 = vld [vmem:[%s5832] sm:$0xf]
      %v5834 = vld [vmem:[%s5832 + $0x4] sm:$0xf]
      %v5835 = vld [vmem:[%s5832 + $0x8] sm:$0xf]
      %v5836 = vld [vmem:[%s5832 + $0xc] sm:$0xf]
      %v5837 = vld [vmem:[%s5832 + $0x10] sm:$0xf]
      %v5838 = vld [vmem:[%s5832 + $0x14] sm:$0xf]
      %v5839 = vld [vmem:[%s5832 + $0x18] sm:$0xf]
      %v5840 = vld [vmem:[%s5832 + $0x1c] sm:$0xf]
      %v5841 = vld [vmem:[%s5832 + $0x20] sm:$0xf]
      %v5842 = vld [vmem:[%s5832 + $0x24] sm:$0xf]
      %v5843 = vld [vmem:[%s5832 + $0x28] sm:$0xf]
      %v5844 = vld [vmem:[%s5832 + $0x2c] sm:$0xf]
      %v5845 = vld [vmem:[%s5832 + $0x30] sm:$0xf]
      %v5846 = vld [vmem:[%s5832 + $0x34] sm:$0xf]
      %v5847 = vld [vmem:[%s5832 + $0x38] sm:$0xf]
      %v5848 = vld [vmem:[%s5832 + $0x3c] sm:$0xf]
      %v5849 = vunpack.c.l.b16 %v5779
      %v5850 = vunpack.c.l.b16 %v5782
      %v5851 = vunpack.c.l.b16 %v5786
      %v5852 = vunpack.c.l.b16 %v5789
      %v5853 = vunpack.c.l.b16 %v5793
      %v5854 = vunpack.c.l.b16 %v5796
      %v5855 = vunpack.c.l.b16 %v5800
      %v5856 = vunpack.c.l.b16 %v5803
      %v5857 = vunpack.c.l.b16 %v5807
      %v5858 = vunpack.c.l.b16 %v5810
      %v5859 = vunpack.c.l.b16 %v5814
      %v5860 = vunpack.c.l.b16 %v5817
      %v5861 = vunpack.c.l.b16 %v5821
      %v5862 = vunpack.c.l.b16 %v5824
      %v5863 = vunpack.c.l.b16 %v5828
      %v5864 = vunpack.c.l.b16 %v5831
      %v5865 = vpack.c.b16 %v5850, %v5849
      %v5866 = vpack.c.b16 %v5852, %v5851
      %v5867 = vpack.c.b16 %v5854, %v5853
      %v5868 = vpack.c.b16 %v5856, %v5855
      %v5869 = vpack.c.b16 %v5858, %v5857
      %v5870 = vpack.c.b16 %v5860, %v5859
      %v5871 = vpack.c.b16 %v5862, %v5861
      %v5872 = vpack.c.b16 %v5864, %v5863
      %v5897 = vunpack.c.l.b16 %v5833
      %v5898 = vunpack.c.l.b16 %v5834
      %v5899 = vunpack.c.l.b16 %v5835
      %v5900 = vunpack.c.l.b16 %v5836
      %v5901 = vunpack.c.l.b16 %v5837
      %v5902 = vunpack.c.l.b16 %v5838
      %v5903 = vunpack.c.l.b16 %v5839
      %v5904 = vunpack.c.l.b16 %v5840
      %v5905 = vunpack.c.l.b16 %v5841
      %v5906 = vunpack.c.l.b16 %v5842
      %v5907 = vunpack.c.l.b16 %v5843
      %v5908 = vunpack.c.l.b16 %v5844
      %v5909 = vunpack.c.l.b16 %v5845
      %v5910 = vunpack.c.l.b16 %v5846
      %v5911 = vunpack.c.l.b16 %v5847
      %v5912 = vunpack.c.l.b16 %v5848
      %v5913 = vpack.c.b16 %v5898, %v5897
      %v5914 = vpack.c.b16 %v5900, %v5899
      %v5915 = vpack.c.b16 %v5902, %v5901
      %v5916 = vpack.c.b16 %v5904, %v5903
      %v5917 = vpack.c.b16 %v5906, %v5905
      %v5918 = vpack.c.b16 %v5908, %v5907
      %v5919 = vpack.c.b16 %v5910, %v5909
      %v5920 = vpack.c.b16 %v5912, %v5911
      %5929 = vmatprep.subr.bf16.mxu0 0
      %5930 = vmatpush1.bf16.msra.mxu0 %v5920
      %5931 = vmatprep.subr.bf16.mxu0 0
      %5932 = vmatpush1.bf16.msra.mxu0 %v5919
      %5933 = vmatprep.subr.bf16.mxu0 0
      %5934 = vmatpush1.bf16.msra.mxu0 %v5918
      %5935 = vmatprep.subr.bf16.mxu0 0
      %5936 = vmatpush1.bf16.msra.mxu0 %v5917
      %5937 = vmatprep.subr.bf16.mxu0 0
      %5938 = vmatpush1.bf16.msra.mxu0 %v5916
      %5939 = vmatprep.subr.bf16.mxu0 0
      %5940 = vmatpush1.bf16.msra.mxu0 %v5915
      %5941 = vmatprep.subr.bf16.mxu0 0
      %5942 = vmatpush1.bf16.msra.mxu0 %v5914
      %5943 = vmatprep.subr.bf16.mxu0 0
      %5944 = vmatpush1.bf16.msra.mxu0 %v5913
      %5945 = vmatprep.subr.bf16.mxu0 0
      %5946 = vmatpush2.bf16.msra.mxu0 0
      %5947 = vmatprep.subr.bf16.mxu0 0
      %5948 = vmatpush2.bf16.msra.mxu0 0
      %5949 = vmatprep.subr.bf16.mxu0 0
      %5950 = vmatpush2.bf16.msra.mxu0 0
      %5951 = vmatprep.subr.bf16.mxu0 0
      %5952 = vmatpush2.bf16.msra.mxu0 0
      %5953 = vmatprep.subr.bf16.mxu0 0
      %5954 = vmatpush2.bf16.msra.mxu0 0
      %5955 = vmatprep.subr.bf16.mxu0 0
      %5956 = vmatpush2.bf16.msra.mxu0 0
      %5957 = vmatprep.subr.bf16.mxu0 0
      %5958 = vmatpush2.bf16.msra.mxu0 0
      %5959 = vmatprep.subr.bf16.mxu0 0
      %5960 = vmatpush2.bf16.msra.mxu0 0
      %5961 = vmatprep.mubr.bf16.mxu0 0
      %5962 = vmatmul.mubr.bf16.gmra.mxu0 %v5865
      %v5963 = vpop.f32.mrf.mxu0
      %v5964 = vadd.f32 0.0, %v5963
      %v5965 = vpop.f32.mrf.mxu0
      %v5966 = vpop.f32.mrf.mxu0
      %v5967 = vadd.f32 0.0, %v5966
      %v5968 = vpop.f32.mrf.mxu0
      %5969 = vmatprep.mubr.bf16.mxu0 0
      %5970 = vmatmul.mubr.bf16.gmra.mxu0 %v5866
      %v5971 = vpop.f32.mrf.mxu0
      %v5972 = vadd.f32 0.0, %v5971
      %v5973 = vpop.f32.mrf.mxu0
      %v5974 = vpop.f32.mrf.mxu0
      %v5975 = vadd.f32 0.0, %v5974
      %v5976 = vpop.f32.mrf.mxu0
      %5977 = vmatprep.mubr.bf16.mxu0 0
      %5978 = vmatmul.mubr.bf16.gmra.mxu0 %v5867
      %v5979 = vpop.f32.mrf.mxu0
      %v5980 = vadd.f32 0.0, %v5979
      %v5981 = vpop.f32.mrf.mxu0
      %v5982 = vpop.f32.mrf.mxu0
      %v5983 = vadd.f32 0.0, %v5982
      %v5984 = vpop.f32.mrf.mxu0
      %5985 = vmatprep.mubr.bf16.mxu0 0
      %5986 = vmatmul.mubr.bf16.gmra.mxu0 %v5868
      %v5987 = vpop.f32.mrf.mxu0
      %v5988 = vadd.f32 0.0, %v5987
      %v5989 = vpop.f32.mrf.mxu0
      %v5990 = vpop.f32.mrf.mxu0
      %v5991 = vadd.f32 0.0, %v5990
      %v5992 = vpop.f32.mrf.mxu0
      %5993 = vmatprep.mubr.bf16.mxu0 0
      %5994 = vmatmul.mubr.bf16.gmra.mxu0 %v5869
      %v5995 = vpop.f32.mrf.mxu0
      %v5996 = vadd.f32 0.0, %v5995
      %v5997 = vpop.f32.mrf.mxu0
      %v5998 = vpop.f32.mrf.mxu0
      %v5999 = vadd.f32 0.0, %v5998
      %v6000 = vpop.f32.mrf.mxu0
      %6001 = vmatprep.mubr.bf16.mxu0 0
      %6002 = vmatmul.mubr.bf16.gmra.mxu0 %v5870
      %v6003 = vpop.f32.mrf.mxu0
      %v6004 = vadd.f32 0.0, %v6003
      %v6005 = vpop.f32.mrf.mxu0
      %v6006 = vpop.f32.mrf.mxu0
      %v6007 = vadd.f32 0.0, %v6006
      %v6008 = vpop.f32.mrf.mxu0
      %6009 = vmatprep.mubr.bf16.mxu0 0
      %6010 = vmatmul.mubr.bf16.gmra.mxu0 %v5871
      %v6011 = vpop.f32.mrf.mxu0
      %v6012 = vadd.f32 0.0, %v6011
      %v6013 = vpop.f32.mrf.mxu0
      %v6014 = vpop.f32.mrf.mxu0
      %v6015 = vadd.f32 0.0, %v6014
      %v6016 = vpop.f32.mrf.mxu0
      %6017 = vmatprep.mubr.bf16.mxu0 0
      %6018 = vmatmul.mubr.bf16.gmra.mxu0 %v5872
      %v6019 = vpop.f32.mrf.mxu0
      %v6020 = vadd.f32 0.0, %v6019
      %v6021 = vpop.f32.mrf.mxu0
      %v6022 = vpop.f32.mrf.mxu0
      %v6023 = vadd.f32 0.0, %v6022
      %v6024 = vpop.f32.mrf.mxu0
      %6025 = vdwg.mxu0
      %v6026 = vadd.f32 %v5712, %v5964
      %v6027 = vadd.f32 %v5713, %v5967
      %v6028 = vadd.f32 %v5714, %v5972
      %v6029 = vadd.f32 %v5715, %v5975
      %v6030 = vadd.f32 %v5716, %v5980
      %v6031 = vadd.f32 %v5717, %v5983
      %v6032 = vadd.f32 %v5718, %v5988
      %v6033 = vadd.f32 %v5719, %v5991
      %v6034 = vadd.f32 %v5720, %v5996
      %v6035 = vadd.f32 %v5721, %v5999
      %v6036 = vadd.f32 %v5722, %v6004
      %v6037 = vadd.f32 %v5723, %v6007
      %v6038 = vadd.f32 %v5724, %v6012
      %v6039 = vadd.f32 %v5725, %v6015
      %v6040 = vadd.f32 %v5726, %v6020
      %v6041 = vadd.f32 %v5727, %v6023
      %v6042 = vmax.f32 %v6026, 0.0
      %v6043 = vmax.f32 %v6027, 0.0
      %v6044 = vmax.f32 %v6028, 0.0
      %v6045 = vmax.f32 %v6029, 0.0
      %v6046 = vmax.f32 %v6030, 0.0
      %v6047 = vmax.f32 %v6031, 0.0
      %v6048 = vmax.f32 %v6032, 0.0
      %v6049 = vmax.f32 %v6033, 0.0
      %v6050 = vmax.f32 %v6034, 0.0
      %v6051 = vmax.f32 %v6035, 0.0
      %v6052 = vmax.f32 %v6036, 0.0
      %v6053 = vmax.f32 %v6037, 0.0
      %v6054 = vmax.f32 %v6038, 0.0
      %v6055 = vmax.f32 %v6039, 0.0
      %v6056 = vmax.f32 %v6040, 0.0
      %v6057 = vmax.f32 %v6041, 0.0
      %v6058 = vpack.c.bf16 %v6043, %v6042
      %v6059 = vpack.c.bf16 %v6045, %v6044
      %v6060 = vpack.c.bf16 %v6047, %v6046
      %v6061 = vpack.c.bf16 %v6049, %v6048
      %v6062 = vpack.c.bf16 %v6051, %v6050
      %v6063 = vpack.c.bf16 %v6053, %v6052
      %v6064 = vpack.c.bf16 %v6055, %v6054
      %v6065 = vpack.c.bf16 %v6057, %v6056
      %s6066 = scalar_lea.vmem %s5, 128
      %v6067 = vld [vmem:[%s6066] sm:$0xf]
      %v6068 = vld [vmem:[%s6066 + $0x4] sm:$0xf]
      %v6069 = vld [vmem:[%s6066 + $0x8] sm:$0xf]
      %v6070 = vld [vmem:[%s6066 + $0xc] sm:$0xf]
      %v6071 = vld [vmem:[%s6066 + $0x10] sm:$0xf]
      %v6072 = vld [vmem:[%s6066 + $0x14] sm:$0xf]
      %v6073 = vld [vmem:[%s6066 + $0x18] sm:$0xf]
      %v6074 = vld [vmem:[%s6066 + $0x1c] sm:$0xf]
      %v6075 = vld [vmem:[%s6066 + $0x20] sm:$0xf]
      %v6076 = vld [vmem:[%s6066 + $0x24] sm:$0xf]
      %v6077 = vld [vmem:[%s6066 + $0x28] sm:$0xf]
      %v6078 = vld [vmem:[%s6066 + $0x2c] sm:$0xf]
      %v6079 = vld [vmem:[%s6066 + $0x30] sm:$0xf]
      %v6080 = vld [vmem:[%s6066 + $0x34] sm:$0xf]
      %v6081 = vld [vmem:[%s6066 + $0x38] sm:$0xf]
      %v6082 = vld [vmem:[%s6066 + $0x3c] sm:$0xf]
      %v6099 = vunpack.c.l.b16 %v6067
      %v6100 = vunpack.c.l.b16 %v6068
      %v6101 = vunpack.c.l.b16 %v6069
      %v6102 = vunpack.c.l.b16 %v6070
      %v6103 = vunpack.c.l.b16 %v6071
      %v6104 = vunpack.c.l.b16 %v6072
      %v6105 = vunpack.c.l.b16 %v6073
      %v6106 = vunpack.c.l.b16 %v6074
      %v6107 = vunpack.c.l.b16 %v6075
      %v6108 = vunpack.c.l.b16 %v6076
      %v6109 = vunpack.c.l.b16 %v6077
      %v6110 = vunpack.c.l.b16 %v6078
      %v6111 = vunpack.c.l.b16 %v6079
      %v6112 = vunpack.c.l.b16 %v6080
      %v6113 = vunpack.c.l.b16 %v6081
      %v6114 = vunpack.c.l.b16 %v6082
      %v6115 = vpack.c.b16 %v6100, %v6099
      %v6116 = vpack.c.b16 %v6102, %v6101
      %v6117 = vpack.c.b16 %v6104, %v6103
      %v6118 = vpack.c.b16 %v6106, %v6105
      %v6119 = vpack.c.b16 %v6108, %v6107
      %v6120 = vpack.c.b16 %v6110, %v6109
      %v6121 = vpack.c.b16 %v6112, %v6111
      %v6122 = vpack.c.b16 %v6114, %v6113
      %6131 = vmatprep.subr.bf16.mxu0 0
      %6132 = vmatpush1.bf16.msra.mxu0 %v6122
      %6133 = vmatprep.subr.bf16.mxu0 0
      %6134 = vmatpush1.bf16.msra.mxu0 %v6121
      %6135 = vmatprep.subr.bf16.mxu0 0
      %6136 = vmatpush1.bf16.msra.mxu0 %v6120
      %6137 = vmatprep.subr.bf16.mxu0 0
      %6138 = vmatpush1.bf16.msra.mxu0 %v6119
      %6139 = vmatprep.subr.bf16.mxu0 0
      %6140 = vmatpush1.bf16.msra.mxu0 %v6118
      %6141 = vmatprep.subr.bf16.mxu0 0
      %6142 = vmatpush1.bf16.msra.mxu0 %v6117
      %6143 = vmatprep.subr.bf16.mxu0 0
      %6144 = vmatpush1.bf16.msra.mxu0 %v6116
      %6145 = vmatprep.subr.bf16.mxu0 0
      %6146 = vmatpush1.bf16.msra.mxu0 %v6115
      %6147 = vmatprep.subr.bf16.mxu0 0
      %6148 = vmatpush2.bf16.msra.mxu0 0
      %6149 = vmatprep.subr.bf16.mxu0 0
      %6150 = vmatpush2.bf16.msra.mxu0 0
      %6151 = vmatprep.subr.bf16.mxu0 0
      %6152 = vmatpush2.bf16.msra.mxu0 0
      %6153 = vmatprep.subr.bf16.mxu0 0
      %6154 = vmatpush2.bf16.msra.mxu0 0
      %6155 = vmatprep.subr.bf16.mxu0 0
      %6156 = vmatpush2.bf16.msra.mxu0 0
      %6157 = vmatprep.subr.bf16.mxu0 0
      %6158 = vmatpush2.bf16.msra.mxu0 0
      %6159 = vmatprep.subr.bf16.mxu0 0
      %6160 = vmatpush2.bf16.msra.mxu0 0
      %6161 = vmatprep.subr.bf16.mxu0 0
      %6162 = vmatpush2.bf16.msra.mxu0 0
      %6163 = vmatprep.mubr.bf16.mxu0 0
      %6164 = vmatmul.mubr.bf16.gmra.mxu0 %v6058
      %v6165 = vpop.f32.mrf.mxu0
      %v6166 = vadd.f32 0.0, %v6165
      %v6167 = vpop.f32.mrf.mxu0
      %v6168 = vpop.f32.mrf.mxu0
      %v6169 = vadd.f32 0.0, %v6168
      %v6170 = vpop.f32.mrf.mxu0
      %6171 = vmatprep.mubr.bf16.mxu0 0
      %6172 = vmatmul.mubr.bf16.gmra.mxu0 %v6059
      %v6173 = vpop.f32.mrf.mxu0
      %v6174 = vadd.f32 0.0, %v6173
      %v6175 = vpop.f32.mrf.mxu0
      %v6176 = vpop.f32.mrf.mxu0
      %v6177 = vadd.f32 0.0, %v6176
      %v6178 = vpop.f32.mrf.mxu0
      %6179 = vmatprep.mubr.bf16.mxu0 0
      %6180 = vmatmul.mubr.bf16.gmra.mxu0 %v6060
      %v6181 = vpop.f32.mrf.mxu0
      %v6182 = vadd.f32 0.0, %v6181
      %v6183 = vpop.f32.mrf.mxu0
      %v6184 = vpop.f32.mrf.mxu0
      %v6185 = vadd.f32 0.0, %v6184
      %v6186 = vpop.f32.mrf.mxu0
      %6187 = vmatprep.mubr.bf16.mxu0 0
      %6188 = vmatmul.mubr.bf16.gmra.mxu0 %v6061
      %v6189 = vpop.f32.mrf.mxu0
      %v6190 = vadd.f32 0.0, %v6189
      %v6191 = vpop.f32.mrf.mxu0
      %v6192 = vpop.f32.mrf.mxu0
      %v6193 = vadd.f32 0.0, %v6192
      %v6194 = vpop.f32.mrf.mxu0
      %6195 = vmatprep.mubr.bf16.mxu0 0
      %6196 = vmatmul.mubr.bf16.gmra.mxu0 %v6062
      %v6197 = vpop.f32.mrf.mxu0
      %v6198 = vadd.f32 0.0, %v6197
      %v6199 = vpop.f32.mrf.mxu0
      %v6200 = vpop.f32.mrf.mxu0
      %v6201 = vadd.f32 0.0, %v6200
      %v6202 = vpop.f32.mrf.mxu0
      %6203 = vmatprep.mubr.bf16.mxu0 0
      %6204 = vmatmul.mubr.bf16.gmra.mxu0 %v6063
      %v6205 = vpop.f32.mrf.mxu0
      %v6206 = vadd.f32 0.0, %v6205
      %v6207 = vpop.f32.mrf.mxu0
      %v6208 = vpop.f32.mrf.mxu0
      %v6209 = vadd.f32 0.0, %v6208
      %v6210 = vpop.f32.mrf.mxu0
      %6211 = vmatprep.mubr.bf16.mxu0 0
      %6212 = vmatmul.mubr.bf16.gmra.mxu0 %v6064
      %v6213 = vpop.f32.mrf.mxu0
      %v6214 = vadd.f32 0.0, %v6213
      %v6215 = vpop.f32.mrf.mxu0
      %v6216 = vpop.f32.mrf.mxu0
      %v6217 = vadd.f32 0.0, %v6216
      %v6218 = vpop.f32.mrf.mxu0
      %6219 = vmatprep.mubr.bf16.mxu0 0
      %6220 = vmatmul.mubr.bf16.gmra.mxu0 %v6065
      %v6221 = vpop.f32.mrf.mxu0
      %v6222 = vadd.f32 0.0, %v6221
      %v6223 = vpop.f32.mrf.mxu0
      %v6224 = vpop.f32.mrf.mxu0
      %v6225 = vadd.f32 0.0, %v6224
      %v6226 = vpop.f32.mrf.mxu0
      %6227 = vdwg.mxu0
      %v6228 = vadd.f32 %v3390, %v6166
      %v6229 = vadd.f32 %v3391, %v6169
      %v6230 = vadd.f32 %v3392, %v6174
      %v6231 = vadd.f32 %v3393, %v6177
      %v6232 = vadd.f32 %v3394, %v6182
      %v6233 = vadd.f32 %v3395, %v6185
      %v6234 = vadd.f32 %v3396, %v6190
      %v6235 = vadd.f32 %v3397, %v6193
      %v6236 = vadd.f32 %v3398, %v6198
      %v6237 = vadd.f32 %v3399, %v6201
      %v6238 = vadd.f32 %v3400, %v6206
      %v6239 = vadd.f32 %v3401, %v6209
      %v6240 = vadd.f32 %v3402, %v6214
      %v6241 = vadd.f32 %v3403, %v6217
      %v6242 = vadd.f32 %v3404, %v6222
      %v6243 = vadd.f32 %v3405, %v6225
      %v6244 = vld [vmem:[%s317] sm:$0xf]
      %v6245 = vld [vmem:[%s317 + $0x4] sm:$0xf]
      %v6246 = vld [vmem:[%s317 + $0x10] sm:$0xf]
      %v6247 = vld [vmem:[%s317 + $0x14] sm:$0xf]
      %v6248 = vld [vmem:[%s317 + $0x20] sm:$0xf]
      %v6249 = vld [vmem:[%s317 + $0x24] sm:$0xf]
      %v6250 = vld [vmem:[%s317 + $0x30] sm:$0xf]
      %v6251 = vld [vmem:[%s317 + $0x34] sm:$0xf]
      %v6252 = vld [vmem:[%s317 + $0x40] sm:$0xf]
      %v6253 = vld [vmem:[%s317 + $0x44] sm:$0xf]
      %v6254 = vld [vmem:[%s317 + $0x50] sm:$0xf]
      %v6255 = vld [vmem:[%s317 + $0x54] sm:$0xf]
      %v6256 = vld [vmem:[%s317 + $0x60] sm:$0xf]
      %v6257 = vld [vmem:[%s317 + $0x64] sm:$0xf]
      %v6258 = vld [vmem:[%s317 + $0x70] sm:$0xf]
      %v6259 = vld [vmem:[%s317 + $0x74] sm:$0xf]
      %s6260 = scalar_lea.vmem %s3, 1152
      %v6261 = vld [vmem:[%s6260] sm:$0xf]
      %v6262 = vld [vmem:[%s6260 + $0x4] sm:$0xf]
      %v6263 = vld [vmem:[%s6260 + $0x8] sm:$0xf]
      %v6264 = vld [vmem:[%s6260 + $0xc] sm:$0xf]
      %v6265 = vld [vmem:[%s6260 + $0x10] sm:$0xf]
      %v6266 = vld [vmem:[%s6260 + $0x14] sm:$0xf]
      %v6267 = vld [vmem:[%s6260 + $0x18] sm:$0xf]
      %v6268 = vld [vmem:[%s6260 + $0x1c] sm:$0xf]
      %v6269 = vld [vmem:[%s6260 + $0x20] sm:$0xf]
      %v6270 = vld [vmem:[%s6260 + $0x24] sm:$0xf]
      %v6271 = vld [vmem:[%s6260 + $0x28] sm:$0xf]
      %v6272 = vld [vmem:[%s6260 + $0x2c] sm:$0xf]
      %v6273 = vld [vmem:[%s6260 + $0x30] sm:$0xf]
      %v6274 = vld [vmem:[%s6260 + $0x34] sm:$0xf]
      %v6275 = vld [vmem:[%s6260 + $0x38] sm:$0xf]
      %v6276 = vld [vmem:[%s6260 + $0x3c] sm:$0xf]
      %v6277 = vld [vmem:[%s4 + $0x2] sm:$0x1]
      %v6278 = vlaneseq
      %v6279 = vshrl.u32 %v6278, 7
      %v6280 = vsub.s32 0, %v6279
      %v6281 = vrot.slane %v6277, %v6280
      %v6298 = vunpack.c.l.b16 %v6244
      %v6299 = vunpack.c.l.b16 %v6245
      %v6300 = vunpack.c.l.b16 %v6246
      %v6301 = vunpack.c.l.b16 %v6247
      %v6302 = vunpack.c.l.b16 %v6248
      %v6303 = vunpack.c.l.b16 %v6249
      %v6304 = vunpack.c.l.b16 %v6250
      %v6305 = vunpack.c.l.b16 %v6251
      %v6306 = vunpack.c.l.b16 %v6252
      %v6307 = vunpack.c.l.b16 %v6253
      %v6308 = vunpack.c.l.b16 %v6254
      %v6309 = vunpack.c.l.b16 %v6255
      %v6310 = vunpack.c.l.b16 %v6256
      %v6311 = vunpack.c.l.b16 %v6257
      %v6312 = vunpack.c.l.b16 %v6258
      %v6313 = vunpack.c.l.b16 %v6259
      %v6314 = vpack.c.b16 %v6299, %v6298
      %v6315 = vpack.c.b16 %v6301, %v6300
      %v6316 = vpack.c.b16 %v6303, %v6302
      %v6317 = vpack.c.b16 %v6305, %v6304
      %v6318 = vpack.c.b16 %v6307, %v6306
      %v6319 = vpack.c.b16 %v6309, %v6308
      %v6320 = vpack.c.b16 %v6311, %v6310
      %v6321 = vpack.c.b16 %v6313, %v6312
      %v6346 = vunpack.c.l.b16 %v6261
      %v6347 = vunpack.c.l.b16 %v6262
      %v6348 = vunpack.c.l.b16 %v6263
      %v6349 = vunpack.c.l.b16 %v6264
      %v6350 = vunpack.c.l.b16 %v6265
      %v6351 = vunpack.c.l.b16 %v6266
      %v6352 = vunpack.c.l.b16 %v6267
      %v6353 = vunpack.c.l.b16 %v6268
      %v6354 = vunpack.c.l.b16 %v6269
      %v6355 = vunpack.c.l.b16 %v6270
      %v6356 = vunpack.c.l.b16 %v6271
      %v6357 = vunpack.c.l.b16 %v6272
      %v6358 = vunpack.c.l.b16 %v6273
      %v6359 = vunpack.c.l.b16 %v6274
      %v6360 = vunpack.c.l.b16 %v6275
      %v6361 = vunpack.c.l.b16 %v6276
      %v6362 = vpack.c.b16 %v6347, %v6346
      %v6363 = vpack.c.b16 %v6349, %v6348
      %v6364 = vpack.c.b16 %v6351, %v6350
      %v6365 = vpack.c.b16 %v6353, %v6352
      %v6366 = vpack.c.b16 %v6355, %v6354
      %v6367 = vpack.c.b16 %v6357, %v6356
      %v6368 = vpack.c.b16 %v6359, %v6358
      %v6369 = vpack.c.b16 %v6361, %v6360
      %6378 = vmatprep.subr.bf16.mxu0 0
      %6379 = vmatpush1.bf16.msra.mxu0 %v6369
      %6380 = vmatprep.subr.bf16.mxu0 0
      %6381 = vmatpush1.bf16.msra.mxu0 %v6368
      %6382 = vmatprep.subr.bf16.mxu0 0
      %6383 = vmatpush1.bf16.msra.mxu0 %v6367
      %6384 = vmatprep.subr.bf16.mxu0 0
      %6385 = vmatpush1.bf16.msra.mxu0 %v6366
      %6386 = vmatprep.subr.bf16.mxu0 0
      %6387 = vmatpush1.bf16.msra.mxu0 %v6365
      %6388 = vmatprep.subr.bf16.mxu0 0
      %6389 = vmatpush1.bf16.msra.mxu0 %v6364
      %6390 = vmatprep.subr.bf16.mxu0 0
      %6391 = vmatpush1.bf16.msra.mxu0 %v6363
      %6392 = vmatprep.subr.bf16.mxu0 0
      %6393 = vmatpush1.bf16.msra.mxu0 %v6362
      %6394 = vmatprep.subr.bf16.mxu0 0
      %6395 = vmatpush2.bf16.msra.mxu0 0
      %6396 = vmatprep.subr.bf16.mxu0 0
      %6397 = vmatpush2.bf16.msra.mxu0 0
      %6398 = vmatprep.subr.bf16.mxu0 0
      %6399 = vmatpush2.bf16.msra.mxu0 0
      %6400 = vmatprep.subr.bf16.mxu0 0
      %6401 = vmatpush2.bf16.msra.mxu0 0
      %6402 = vmatprep.subr.bf16.mxu0 0
      %6403 = vmatpush2.bf16.msra.mxu0 0
      %6404 = vmatprep.subr.bf16.mxu0 0
      %6405 = vmatpush2.bf16.msra.mxu0 0
      %6406 = vmatprep.subr.bf16.mxu0 0
      %6407 = vmatpush2.bf16.msra.mxu0 0
      %6408 = vmatprep.subr.bf16.mxu0 0
      %6409 = vmatpush2.bf16.msra.mxu0 0
      %6410 = vmatprep.mubr.bf16.mxu0 0
      %6411 = vmatmul.mubr.bf16.gmra.mxu0 %v6314
      %v6412 = vpop.f32.mrf.mxu0
      %v6413 = vadd.f32 %v6281, %v6412
      %v6414 = vpop.f32.mrf.mxu0
      %v6415 = vpop.f32.mrf.mxu0
      %v6416 = vadd.f32 %v6281, %v6415
      %v6417 = vpop.f32.mrf.mxu0
      %6418 = vmatprep.mubr.bf16.mxu0 0
      %6419 = vmatmul.mubr.bf16.gmra.mxu0 %v6315
      %v6420 = vpop.f32.mrf.mxu0
      %v6421 = vadd.f32 %v6281, %v6420
      %v6422 = vpop.f32.mrf.mxu0
      %v6423 = vpop.f32.mrf.mxu0
      %v6424 = vadd.f32 %v6281, %v6423
      %v6425 = vpop.f32.mrf.mxu0
      %6426 = vmatprep.mubr.bf16.mxu0 0
      %6427 = vmatmul.mubr.bf16.gmra.mxu0 %v6316
      %v6428 = vpop.f32.mrf.mxu0
      %v6429 = vadd.f32 %v6281, %v6428
      %v6430 = vpop.f32.mrf.mxu0
      %v6431 = vpop.f32.mrf.mxu0
      %v6432 = vadd.f32 %v6281, %v6431
      %v6433 = vpop.f32.mrf.mxu0
      %6434 = vmatprep.mubr.bf16.mxu0 0
      %6435 = vmatmul.mubr.bf16.gmra.mxu0 %v6317
      %v6436 = vpop.f32.mrf.mxu0
      %v6437 = vadd.f32 %v6281, %v6436
      %v6438 = vpop.f32.mrf.mxu0
      %v6439 = vpop.f32.mrf.mxu0
      %v6440 = vadd.f32 %v6281, %v6439
      %v6441 = vpop.f32.mrf.mxu0
      %6442 = vmatprep.mubr.bf16.mxu0 0
      %6443 = vmatmul.mubr.bf16.gmra.mxu0 %v6318
      %v6444 = vpop.f32.mrf.mxu0
      %v6445 = vadd.f32 %v6281, %v6444
      %v6446 = vpop.f32.mrf.mxu0
      %v6447 = vpop.f32.mrf.mxu0
      %v6448 = vadd.f32 %v6281, %v6447
      %v6449 = vpop.f32.mrf.mxu0
      %6450 = vmatprep.mubr.bf16.mxu0 0
      %6451 = vmatmul.mubr.bf16.gmra.mxu0 %v6319
      %v6452 = vpop.f32.mrf.mxu0
      %v6453 = vadd.f32 %v6281, %v6452
      %v6454 = vpop.f32.mrf.mxu0
      %v6455 = vpop.f32.mrf.mxu0
      %v6456 = vadd.f32 %v6281, %v6455
      %v6457 = vpop.f32.mrf.mxu0
      %6458 = vmatprep.mubr.bf16.mxu0 0
      %6459 = vmatmul.mubr.bf16.gmra.mxu0 %v6320
      %v6460 = vpop.f32.mrf.mxu0
      %v6461 = vadd.f32 %v6281, %v6460
      %v6462 = vpop.f32.mrf.mxu0
      %v6463 = vpop.f32.mrf.mxu0
      %v6464 = vadd.f32 %v6281, %v6463
      %v6465 = vpop.f32.mrf.mxu0
      %6466 = vmatprep.mubr.bf16.mxu0 0
      %6467 = vmatmul.mubr.bf16.gmra.mxu0 %v6321
      %v6468 = vpop.f32.mrf.mxu0
      %v6469 = vadd.f32 %v6281, %v6468
      %v6470 = vpop.f32.mrf.mxu0
      %v6471 = vpop.f32.mrf.mxu0
      %v6472 = vadd.f32 %v6281, %v6471
      %v6473 = vpop.f32.mrf.mxu0
      %6474 = vdwg.mxu0
      %v6475 = vld [vmem:[%s317] sm:$0x8]
      %v6476 = vld [vmem:[%s317 + $0x4] sm:$0xf]
      %v6477 = vld [vmem:[%s317 + $0x8] sm:$0x7]
      %v6478 = vld [vmem:[%s317 + $0x10] sm:$0x8]
      %v6479 = vld [vmem:[%s317 + $0x14] sm:$0xf]
      %v6480 = vld [vmem:[%s317 + $0x18] sm:$0x7]
      %v6481 = vld [vmem:[%s317 + $0x20] sm:$0x8]
      %v6482 = vld [vmem:[%s317 + $0x24] sm:$0xf]
      %v6483 = vld [vmem:[%s317 + $0x28] sm:$0x7]
      %v6484 = vld [vmem:[%s317 + $0x30] sm:$0x8]
      %v6485 = vld [vmem:[%s317 + $0x34] sm:$0xf]
      %v6486 = vld [vmem:[%s317 + $0x38] sm:$0x7]
      %v6487 = vld [vmem:[%s317 + $0x40] sm:$0x8]
      %v6488 = vld [vmem:[%s317 + $0x44] sm:$0xf]
      %v6489 = vld [vmem:[%s317 + $0x48] sm:$0x7]
      %v6490 = vld [vmem:[%s317 + $0x50] sm:$0x8]
      %v6491 = vld [vmem:[%s317 + $0x54] sm:$0xf]
      %v6492 = vld [vmem:[%s317 + $0x58] sm:$0x7]
      %v6493 = vld [vmem:[%s317 + $0x60] sm:$0x8]
      %v6494 = vld [vmem:[%s317 + $0x64] sm:$0xf]
      %v6495 = vld [vmem:[%s317 + $0x68] sm:$0x7]
      %v6496 = vld [vmem:[%s317 + $0x70] sm:$0x8]
      %v6497 = vld [vmem:[%s317 + $0x74] sm:$0xf]
      %v6498 = vld [vmem:[%s317 + $0x78] sm:$0x7]
      %v6523 = vrot.slane %v6475, 7
      %v6524 = vrot.slane %v6523, 4
      %v6525 = vrot.slane %v6476, 7
      %v6526 = vsel %vm384, %v6524, %v6525
      %v6527 = vrot.slane %v6525, 4
      %v6528 = vrot.slane %v6477, 7
      %v6529 = vsel %vm384, %v6527, %v6528
      %v6530 = vrot.slane %v6478, 7
      %v6531 = vrot.slane %v6530, 4
      %v6532 = vrot.slane %v6479, 7
      %v6533 = vsel %vm384, %v6531, %v6532
      %v6534 = vrot.slane %v6532, 4
      %v6535 = vrot.slane %v6480, 7
      %v6536 = vsel %vm384, %v6534, %v6535
      %v6537 = vrot.slane %v6481, 7
      %v6538 = vrot.slane %v6537, 4
      %v6539 = vrot.slane %v6482, 7
      %v6540 = vsel %vm384, %v6538, %v6539
      %v6541 = vrot.slane %v6539, 4
      %v6542 = vrot.slane %v6483, 7
      %v6543 = vsel %vm384, %v6541, %v6542
      %v6544 = vrot.slane %v6484, 7
      %v6545 = vrot.slane %v6544, 4
      %v6546 = vrot.slane %v6485, 7
      %v6547 = vsel %vm384, %v6545, %v6546
      %v6548 = vrot.slane %v6546, 4
      %v6549 = vrot.slane %v6486, 7
      %v6550 = vsel %vm384, %v6548, %v6549
      %v6551 = vrot.slane %v6487, 7
      %v6552 = vrot.slane %v6551, 4
      %v6553 = vrot.slane %v6488, 7
      %v6554 = vsel %vm384, %v6552, %v6553
      %v6555 = vrot.slane %v6553, 4
      %v6556 = vrot.slane %v6489, 7
      %v6557 = vsel %vm384, %v6555, %v6556
      %v6558 = vrot.slane %v6490, 7
      %v6559 = vrot.slane %v6558, 4
      %v6560 = vrot.slane %v6491, 7
      %v6561 = vsel %vm384, %v6559, %v6560
      %v6562 = vrot.slane %v6560, 4
      %v6563 = vrot.slane %v6492, 7
      %v6564 = vsel %vm384, %v6562, %v6563
      %v6565 = vrot.slane %v6493, 7
      %v6566 = vrot.slane %v6565, 4
      %v6567 = vrot.slane %v6494, 7
      %v6568 = vsel %vm384, %v6566, %v6567
      %v6569 = vrot.slane %v6567, 4
      %v6570 = vrot.slane %v6495, 7
      %v6571 = vsel %vm384, %v6569, %v6570
      %v6572 = vrot.slane %v6496, 7
      %v6573 = vrot.slane %v6572, 4
      %v6574 = vrot.slane %v6497, 7
      %v6575 = vsel %vm384, %v6573, %v6574
      %v6576 = vrot.slane %v6574, 4
      %v6577 = vrot.slane %v6498, 7
      %v6578 = vsel %vm384, %v6576, %v6577
      %s6579 = scalar_lea.vmem %s3, 1216
      %v6580 = vld [vmem:[%s6579] sm:$0xf]
      %v6581 = vld [vmem:[%s6579 + $0x4] sm:$0xf]
      %v6582 = vld [vmem:[%s6579 + $0x8] sm:$0xf]
      %v6583 = vld [vmem:[%s6579 + $0xc] sm:$0xf]
      %v6584 = vld [vmem:[%s6579 + $0x10] sm:$0xf]
      %v6585 = vld [vmem:[%s6579 + $0x14] sm:$0xf]
      %v6586 = vld [vmem:[%s6579 + $0x18] sm:$0xf]
      %v6587 = vld [vmem:[%s6579 + $0x1c] sm:$0xf]
      %v6588 = vld [vmem:[%s6579 + $0x20] sm:$0xf]
      %v6589 = vld [vmem:[%s6579 + $0x24] sm:$0xf]
      %v6590 = vld [vmem:[%s6579 + $0x28] sm:$0xf]
      %v6591 = vld [vmem:[%s6579 + $0x2c] sm:$0xf]
      %v6592 = vld [vmem:[%s6579 + $0x30] sm:$0xf]
      %v6593 = vld [vmem:[%s6579 + $0x34] sm:$0xf]
      %v6594 = vld [vmem:[%s6579 + $0x38] sm:$0xf]
      %v6595 = vld [vmem:[%s6579 + $0x3c] sm:$0xf]
      %v6596 = vunpack.c.l.b16 %v6526
      %v6597 = vunpack.c.l.b16 %v6529
      %v6598 = vunpack.c.l.b16 %v6533
      %v6599 = vunpack.c.l.b16 %v6536
      %v6600 = vunpack.c.l.b16 %v6540
      %v6601 = vunpack.c.l.b16 %v6543
      %v6602 = vunpack.c.l.b16 %v6547
      %v6603 = vunpack.c.l.b16 %v6550
      %v6604 = vunpack.c.l.b16 %v6554
      %v6605 = vunpack.c.l.b16 %v6557
      %v6606 = vunpack.c.l.b16 %v6561
      %v6607 = vunpack.c.l.b16 %v6564
      %v6608 = vunpack.c.l.b16 %v6568
      %v6609 = vunpack.c.l.b16 %v6571
      %v6610 = vunpack.c.l.b16 %v6575
      %v6611 = vunpack.c.l.b16 %v6578
      %v6612 = vpack.c.b16 %v6597, %v6596
      %v6613 = vpack.c.b16 %v6599, %v6598
      %v6614 = vpack.c.b16 %v6601, %v6600
      %v6615 = vpack.c.b16 %v6603, %v6602
      %v6616 = vpack.c.b16 %v6605, %v6604
      %v6617 = vpack.c.b16 %v6607, %v6606
      %v6618 = vpack.c.b16 %v6609, %v6608
      %v6619 = vpack.c.b16 %v6611, %v6610
      %v6644 = vunpack.c.l.b16 %v6580
      %v6645 = vunpack.c.l.b16 %v6581
      %v6646 = vunpack.c.l.b16 %v6582
      %v6647 = vunpack.c.l.b16 %v6583
      %v6648 = vunpack.c.l.b16 %v6584
      %v6649 = vunpack.c.l.b16 %v6585
      %v6650 = vunpack.c.l.b16 %v6586
      %v6651 = vunpack.c.l.b16 %v6587
      %v6652 = vunpack.c.l.b16 %v6588
      %v6653 = vunpack.c.l.b16 %v6589
      %v6654 = vunpack.c.l.b16 %v6590
      %v6655 = vunpack.c.l.b16 %v6591
      %v6656 = vunpack.c.l.b16 %v6592
      %v6657 = vunpack.c.l.b16 %v6593
      %v6658 = vunpack.c.l.b16 %v6594
      %v6659 = vunpack.c.l.b16 %v6595
      %v6660 = vpack.c.b16 %v6645, %v6644
      %v6661 = vpack.c.b16 %v6647, %v6646
      %v6662 = vpack.c.b16 %v6649, %v6648
      %v6663 = vpack.c.b16 %v6651, %v6650
      %v6664 = vpack.c.b16 %v6653, %v6652
      %v6665 = vpack.c.b16 %v6655, %v6654
      %v6666 = vpack.c.b16 %v6657, %v6656
      %v6667 = vpack.c.b16 %v6659, %v6658
      %6676 = vmatprep.subr.bf16.mxu0 0
      %6677 = vmatpush1.bf16.msra.mxu0 %v6667
      %6678 = vmatprep.subr.bf16.mxu0 0
      %6679 = vmatpush1.bf16.msra.mxu0 %v6666
      %6680 = vmatprep.subr.bf16.mxu0 0
      %6681 = vmatpush1.bf16.msra.mxu0 %v6665
      %6682 = vmatprep.subr.bf16.mxu0 0
      %6683 = vmatpush1.bf16.msra.mxu0 %v6664
      %6684 = vmatprep.subr.bf16.mxu0 0
      %6685 = vmatpush1.bf16.msra.mxu0 %v6663
      %6686 = vmatprep.subr.bf16.mxu0 0
      %6687 = vmatpush1.bf16.msra.mxu0 %v6662
      %6688 = vmatprep.subr.bf16.mxu0 0
      %6689 = vmatpush1.bf16.msra.mxu0 %v6661
      %6690 = vmatprep.subr.bf16.mxu0 0
      %6691 = vmatpush1.bf16.msra.mxu0 %v6660
      %6692 = vmatprep.subr.bf16.mxu0 0
      %6693 = vmatpush2.bf16.msra.mxu0 0
      %6694 = vmatprep.subr.bf16.mxu0 0
      %6695 = vmatpush2.bf16.msra.mxu0 0
      %6696 = vmatprep.subr.bf16.mxu0 0
      %6697 = vmatpush2.bf16.msra.mxu0 0
      %6698 = vmatprep.subr.bf16.mxu0 0
      %6699 = vmatpush2.bf16.msra.mxu0 0
      %6700 = vmatprep.subr.bf16.mxu0 0
      %6701 = vmatpush2.bf16.msra.mxu0 0
      %6702 = vmatprep.subr.bf16.mxu0 0
      %6703 = vmatpush2.bf16.msra.mxu0 0
      %6704 = vmatprep.subr.bf16.mxu0 0
      %6705 = vmatpush2.bf16.msra.mxu0 0
      %6706 = vmatprep.subr.bf16.mxu0 0
      %6707 = vmatpush2.bf16.msra.mxu0 0
      %6708 = vmatprep.mubr.bf16.mxu0 0
      %6709 = vmatmul.mubr.bf16.gmra.mxu0 %v6612
      %v6710 = vpop.f32.mrf.mxu0
      %v6711 = vadd.f32 0.0, %v6710
      %v6712 = vpop.f32.mrf.mxu0
      %v6713 = vpop.f32.mrf.mxu0
      %v6714 = vadd.f32 0.0, %v6713
      %v6715 = vpop.f32.mrf.mxu0
      %6716 = vmatprep.mubr.bf16.mxu0 0
      %6717 = vmatmul.mubr.bf16.gmra.mxu0 %v6613
      %v6718 = vpop.f32.mrf.mxu0
      %v6719 = vadd.f32 0.0, %v6718
      %v6720 = vpop.f32.mrf.mxu0
      %v6721 = vpop.f32.mrf.mxu0
      %v6722 = vadd.f32 0.0, %v6721
      %v6723 = vpop.f32.mrf.mxu0
      %6724 = vmatprep.mubr.bf16.mxu0 0
      %6725 = vmatmul.mubr.bf16.gmra.mxu0 %v6614
      %v6726 = vpop.f32.mrf.mxu0
      %v6727 = vadd.f32 0.0, %v6726
      %v6728 = vpop.f32.mrf.mxu0
      %v6729 = vpop.f32.mrf.mxu0
      %v6730 = vadd.f32 0.0, %v6729
      %v6731 = vpop.f32.mrf.mxu0
      %6732 = vmatprep.mubr.bf16.mxu0 0
      %6733 = vmatmul.mubr.bf16.gmra.mxu0 %v6615
      %v6734 = vpop.f32.mrf.mxu0
      %v6735 = vadd.f32 0.0, %v6734
      %v6736 = vpop.f32.mrf.mxu0
      %v6737 = vpop.f32.mrf.mxu0
      %v6738 = vadd.f32 0.0, %v6737
      %v6739 = vpop.f32.mrf.mxu0
      %6740 = vmatprep.mubr.bf16.mxu0 0
      %6741 = vmatmul.mubr.bf16.gmra.mxu0 %v6616
      %v6742 = vpop.f32.mrf.mxu0
      %v6743 = vadd.f32 0.0, %v6742
      %v6744 = vpop.f32.mrf.mxu0
      %v6745 = vpop.f32.mrf.mxu0
      %v6746 = vadd.f32 0.0, %v6745
      %v6747 = vpop.f32.mrf.mxu0
      %6748 = vmatprep.mubr.bf16.mxu0 0
      %6749 = vmatmul.mubr.bf16.gmra.mxu0 %v6617
      %v6750 = vpop.f32.mrf.mxu0
      %v6751 = vadd.f32 0.0, %v6750
      %v6752 = vpop.f32.mrf.mxu0
      %v6753 = vpop.f32.mrf.mxu0
      %v6754 = vadd.f32 0.0, %v6753
      %v6755 = vpop.f32.mrf.mxu0
      %6756 = vmatprep.mubr.bf16.mxu0 0
      %6757 = vmatmul.mubr.bf16.gmra.mxu0 %v6618
      %v6758 = vpop.f32.mrf.mxu0
      %v6759 = vadd.f32 0.0, %v6758
      %v6760 = vpop.f32.mrf.mxu0
      %v6761 = vpop.f32.mrf.mxu0
      %v6762 = vadd.f32 0.0, %v6761
      %v6763 = vpop.f32.mrf.mxu0
      %6764 = vmatprep.mubr.bf16.mxu0 0
      %6765 = vmatmul.mubr.bf16.gmra.mxu0 %v6619
      %v6766 = vpop.f32.mrf.mxu0
      %v6767 = vadd.f32 0.0, %v6766
      %v6768 = vpop.f32.mrf.mxu0
      %v6769 = vpop.f32.mrf.mxu0
      %v6770 = vadd.f32 0.0, %v6769
      %v6771 = vpop.f32.mrf.mxu0
      %6772 = vdwg.mxu0
      %v6773 = vadd.f32 %v6413, %v6711
      %v6774 = vadd.f32 %v6416, %v6714
      %v6775 = vadd.f32 %v6421, %v6719
      %v6776 = vadd.f32 %v6424, %v6722
      %v6777 = vadd.f32 %v6429, %v6727
      %v6778 = vadd.f32 %v6432, %v6730
      %v6779 = vadd.f32 %v6437, %v6735
      %v6780 = vadd.f32 %v6440, %v6738
      %v6781 = vadd.f32 %v6445, %v6743
      %v6782 = vadd.f32 %v6448, %v6746
      %v6783 = vadd.f32 %v6453, %v6751
      %v6784 = vadd.f32 %v6456, %v6754
      %v6785 = vadd.f32 %v6461, %v6759
      %v6786 = vadd.f32 %v6464, %v6762
      %v6787 = vadd.f32 %v6469, %v6767
      %v6788 = vadd.f32 %v6472, %v6770
      %v6789 = vld [vmem:[%s317 + $0x4] sm:$0xc]
      %v6790 = vld [vmem:[%s317 + $0x8] sm:$0xf]
      %v6791 = vld [vmem:[%s317 + $0xc] sm:$0x3]
      %v6792 = vld [vmem:[%s317 + $0x14] sm:$0xc]
      %v6793 = vld [vmem:[%s317 + $0x18] sm:$0xf]
      %v6794 = vld [vmem:[%s317 + $0x1c] sm:$0x3]
      %v6795 = vld [vmem:[%s317 + $0x24] sm:$0xc]
      %v6796 = vld [vmem:[%s317 + $0x28] sm:$0xf]
      %v6797 = vld [vmem:[%s317 + $0x2c] sm:$0x3]
      %v6798 = vld [vmem:[%s317 + $0x34] sm:$0xc]
      %v6799 = vld [vmem:[%s317 + $0x38] sm:$0xf]
      %v6800 = vld [vmem:[%s317 + $0x3c] sm:$0x3]
      %v6801 = vld [vmem:[%s317 + $0x44] sm:$0xc]
      %v6802 = vld [vmem:[%s317 + $0x48] sm:$0xf]
      %v6803 = vld [vmem:[%s317 + $0x4c] sm:$0x3]
      %v6804 = vld [vmem:[%s317 + $0x54] sm:$0xc]
      %v6805 = vld [vmem:[%s317 + $0x58] sm:$0xf]
      %v6806 = vld [vmem:[%s317 + $0x5c] sm:$0x3]
      %v6807 = vld [vmem:[%s317 + $0x64] sm:$0xc]
      %v6808 = vld [vmem:[%s317 + $0x68] sm:$0xf]
      %v6809 = vld [vmem:[%s317 + $0x6c] sm:$0x3]
      %v6810 = vld [vmem:[%s317 + $0x74] sm:$0xc]
      %v6811 = vld [vmem:[%s317 + $0x78] sm:$0xf]
      %v6812 = vld [vmem:[%s317 + $0x7c] sm:$0x3]
      %v6837 = vrot.slane %v6789, 6
      %v6838 = vrot.slane %v6837, 4
      %v6839 = vrot.slane %v6790, 6
      %v6840 = vsel %vm884, %v6838, %v6839
      %v6841 = vrot.slane %v6839, 4
      %v6842 = vrot.slane %v6791, 6
      %v6843 = vsel %vm884, %v6841, %v6842
      %v6844 = vrot.slane %v6792, 6
      %v6845 = vrot.slane %v6844, 4
      %v6846 = vrot.slane %v6793, 6
      %v6847 = vsel %vm884, %v6845, %v6846
      %v6848 = vrot.slane %v6846, 4
      %v6849 = vrot.slane %v6794, 6
      %v6850 = vsel %vm884, %v6848, %v6849
      %v6851 = vrot.slane %v6795, 6
      %v6852 = vrot.slane %v6851, 4
      %v6853 = vrot.slane %v6796, 6
      %v6854 = vsel %vm884, %v6852, %v6853
      %v6855 = vrot.slane %v6853, 4
      %v6856 = vrot.slane %v6797, 6
      %v6857 = vsel %vm884, %v6855, %v6856
      %v6858 = vrot.slane %v6798, 6
      %v6859 = vrot.slane %v6858, 4
      %v6860 = vrot.slane %v6799, 6
      %v6861 = vsel %vm884, %v6859, %v6860
      %v6862 = vrot.slane %v6860, 4
      %v6863 = vrot.slane %v6800, 6
      %v6864 = vsel %vm884, %v6862, %v6863
      %v6865 = vrot.slane %v6801, 6
      %v6866 = vrot.slane %v6865, 4
      %v6867 = vrot.slane %v6802, 6
      %v6868 = vsel %vm884, %v6866, %v6867
      %v6869 = vrot.slane %v6867, 4
      %v6870 = vrot.slane %v6803, 6
      %v6871 = vsel %vm884, %v6869, %v6870
      %v6872 = vrot.slane %v6804, 6
      %v6873 = vrot.slane %v6872, 4
      %v6874 = vrot.slane %v6805, 6
      %v6875 = vsel %vm884, %v6873, %v6874
      %v6876 = vrot.slane %v6874, 4
      %v6877 = vrot.slane %v6806, 6
      %v6878 = vsel %vm884, %v6876, %v6877
      %v6879 = vrot.slane %v6807, 6
      %v6880 = vrot.slane %v6879, 4
      %v6881 = vrot.slane %v6808, 6
      %v6882 = vsel %vm884, %v6880, %v6881
      %v6883 = vrot.slane %v6881, 4
      %v6884 = vrot.slane %v6809, 6
      %v6885 = vsel %vm884, %v6883, %v6884
      %v6886 = vrot.slane %v6810, 6
      %v6887 = vrot.slane %v6886, 4
      %v6888 = vrot.slane %v6811, 6
      %v6889 = vsel %vm884, %v6887, %v6888
      %v6890 = vrot.slane %v6888, 4
      %v6891 = vrot.slane %v6812, 6
      %v6892 = vsel %vm884, %v6890, %v6891
      %s6893 = scalar_lea.vmem %s3, 1280
      %v6894 = vld [vmem:[%s6893] sm:$0xf]
      %v6895 = vld [vmem:[%s6893 + $0x4] sm:$0xf]
      %v6896 = vld [vmem:[%s6893 + $0x8] sm:$0xf]
      %v6897 = vld [vmem:[%s6893 + $0xc] sm:$0xf]
      %v6898 = vld [vmem:[%s6893 + $0x10] sm:$0xf]
      %v6899 = vld [vmem:[%s6893 + $0x14] sm:$0xf]
      %v6900 = vld [vmem:[%s6893 + $0x18] sm:$0xf]
      %v6901 = vld [vmem:[%s6893 + $0x1c] sm:$0xf]
      %v6902 = vld [vmem:[%s6893 + $0x20] sm:$0xf]
      %v6903 = vld [vmem:[%s6893 + $0x24] sm:$0xf]
      %v6904 = vld [vmem:[%s6893 + $0x28] sm:$0xf]
      %v6905 = vld [vmem:[%s6893 + $0x2c] sm:$0xf]
      %v6906 = vld [vmem:[%s6893 + $0x30] sm:$0xf]
      %v6907 = vld [vmem:[%s6893 + $0x34] sm:$0xf]
      %v6908 = vld [vmem:[%s6893 + $0x38] sm:$0xf]
      %v6909 = vld [vmem:[%s6893 + $0x3c] sm:$0xf]
      %v6910 = vunpack.c.l.b16 %v6840
      %v6911 = vunpack.c.l.b16 %v6843
      %v6912 = vunpack.c.l.b16 %v6847
      %v6913 = vunpack.c.l.b16 %v6850
      %v6914 = vunpack.c.l.b16 %v6854
      %v6915 = vunpack.c.l.b16 %v6857
      %v6916 = vunpack.c.l.b16 %v6861
      %v6917 = vunpack.c.l.b16 %v6864
      %v6918 = vunpack.c.l.b16 %v6868
      %v6919 = vunpack.c.l.b16 %v6871
      %v6920 = vunpack.c.l.b16 %v6875
      %v6921 = vunpack.c.l.b16 %v6878
      %v6922 = vunpack.c.l.b16 %v6882
      %v6923 = vunpack.c.l.b16 %v6885
      %v6924 = vunpack.c.l.b16 %v6889
      %v6925 = vunpack.c.l.b16 %v6892
      %v6926 = vpack.c.b16 %v6911, %v6910
      %v6927 = vpack.c.b16 %v6913, %v6912
      %v6928 = vpack.c.b16 %v6915, %v6914
      %v6929 = vpack.c.b16 %v6917, %v6916
      %v6930 = vpack.c.b16 %v6919, %v6918
      %v6931 = vpack.c.b16 %v6921, %v6920
      %v6932 = vpack.c.b16 %v6923, %v6922
      %v6933 = vpack.c.b16 %v6925, %v6924
      %v6958 = vunpack.c.l.b16 %v6894
      %v6959 = vunpack.c.l.b16 %v6895
      %v6960 = vunpack.c.l.b16 %v6896
      %v6961 = vunpack.c.l.b16 %v6897
      %v6962 = vunpack.c.l.b16 %v6898
      %v6963 = vunpack.c.l.b16 %v6899
      %v6964 = vunpack.c.l.b16 %v6900
      %v6965 = vunpack.c.l.b16 %v6901
      %v6966 = vunpack.c.l.b16 %v6902
      %v6967 = vunpack.c.l.b16 %v6903
      %v6968 = vunpack.c.l.b16 %v6904
      %v6969 = vunpack.c.l.b16 %v6905
      %v6970 = vunpack.c.l.b16 %v6906
      %v6971 = vunpack.c.l.b16 %v6907
      %v6972 = vunpack.c.l.b16 %v6908
      %v6973 = vunpack.c.l.b16 %v6909
      %v6974 = vpack.c.b16 %v6959, %v6958
      %v6975 = vpack.c.b16 %v6961, %v6960
      %v6976 = vpack.c.b16 %v6963, %v6962
      %v6977 = vpack.c.b16 %v6965, %v6964
      %v6978 = vpack.c.b16 %v6967, %v6966
      %v6979 = vpack.c.b16 %v6969, %v6968
      %v6980 = vpack.c.b16 %v6971, %v6970
      %v6981 = vpack.c.b16 %v6973, %v6972
      %6990 = vmatprep.subr.bf16.mxu0 0
      %6991 = vmatpush1.bf16.msra.mxu0 %v6981
      %6992 = vmatprep.subr.bf16.mxu0 0
      %6993 = vmatpush1.bf16.msra.mxu0 %v6980
      %6994 = vmatprep.subr.bf16.mxu0 0
      %6995 = vmatpush1.bf16.msra.mxu0 %v6979
      %6996 = vmatprep.subr.bf16.mxu0 0
      %6997 = vmatpush1.bf16.msra.mxu0 %v6978
      %6998 = vmatprep.subr.bf16.mxu0 0
      %6999 = vmatpush1.bf16.msra.mxu0 %v6977
      %7000 = vmatprep.subr.bf16.mxu0 0
      %7001 = vmatpush1.bf16.msra.mxu0 %v6976
      %7002 = vmatprep.subr.bf16.mxu0 0
      %7003 = vmatpush1.bf16.msra.mxu0 %v6975
      %7004 = vmatprep.subr.bf16.mxu0 0
      %7005 = vmatpush1.bf16.msra.mxu0 %v6974
      %7006 = vmatprep.subr.bf16.mxu0 0
      %7007 = vmatpush2.bf16.msra.mxu0 0
      %7008 = vmatprep.subr.bf16.mxu0 0
      %7009 = vmatpush2.bf16.msra.mxu0 0
      %7010 = vmatprep.subr.bf16.mxu0 0
      %7011 = vmatpush2.bf16.msra.mxu0 0
      %7012 = vmatprep.subr.bf16.mxu0 0
      %7013 = vmatpush2.bf16.msra.mxu0 0
      %7014 = vmatprep.subr.bf16.mxu0 0
      %7015 = vmatpush2.bf16.msra.mxu0 0
      %7016 = vmatprep.subr.bf16.mxu0 0
      %7017 = vmatpush2.bf16.msra.mxu0 0
      %7018 = vmatprep.subr.bf16.mxu0 0
      %7019 = vmatpush2.bf16.msra.mxu0 0
      %7020 = vmatprep.subr.bf16.mxu0 0
      %7021 = vmatpush2.bf16.msra.mxu0 0
      %7022 = vmatprep.mubr.bf16.mxu0 0
      %7023 = vmatmul.mubr.bf16.gmra.mxu0 %v6926
      %v7024 = vpop.f32.mrf.mxu0
      %v7025 = vadd.f32 0.0, %v7024
      %v7026 = vpop.f32.mrf.mxu0
      %v7027 = vpop.f32.mrf.mxu0
      %v7028 = vadd.f32 0.0, %v7027
      %v7029 = vpop.f32.mrf.mxu0
      %7030 = vmatprep.mubr.bf16.mxu0 0
      %7031 = vmatmul.mubr.bf16.gmra.mxu0 %v6927
      %v7032 = vpop.f32.mrf.mxu0
      %v7033 = vadd.f32 0.0, %v7032
      %v7034 = vpop.f32.mrf.mxu0
      %v7035 = vpop.f32.mrf.mxu0
      %v7036 = vadd.f32 0.0, %v7035
      %v7037 = vpop.f32.mrf.mxu0
      %7038 = vmatprep.mubr.bf16.mxu0 0
      %7039 = vmatmul.mubr.bf16.gmra.mxu0 %v6928
      %v7040 = vpop.f32.mrf.mxu0
      %v7041 = vadd.f32 0.0, %v7040
      %v7042 = vpop.f32.mrf.mxu0
      %v7043 = vpop.f32.mrf.mxu0
      %v7044 = vadd.f32 0.0, %v7043
      %v7045 = vpop.f32.mrf.mxu0
      %7046 = vmatprep.mubr.bf16.mxu0 0
      %7047 = vmatmul.mubr.bf16.gmra.mxu0 %v6929
      %v7048 = vpop.f32.mrf.mxu0
      %v7049 = vadd.f32 0.0, %v7048
      %v7050 = vpop.f32.mrf.mxu0
      %v7051 = vpop.f32.mrf.mxu0
      %v7052 = vadd.f32 0.0, %v7051
      %v7053 = vpop.f32.mrf.mxu0
      %7054 = vmatprep.mubr.bf16.mxu0 0
      %7055 = vmatmul.mubr.bf16.gmra.mxu0 %v6930
      %v7056 = vpop.f32.mrf.mxu0
      %v7057 = vadd.f32 0.0, %v7056
      %v7058 = vpop.f32.mrf.mxu0
      %v7059 = vpop.f32.mrf.mxu0
      %v7060 = vadd.f32 0.0, %v7059
      %v7061 = vpop.f32.mrf.mxu0
      %7062 = vmatprep.mubr.bf16.mxu0 0
      %7063 = vmatmul.mubr.bf16.gmra.mxu0 %v6931
      %v7064 = vpop.f32.mrf.mxu0
      %v7065 = vadd.f32 0.0, %v7064
      %v7066 = vpop.f32.mrf.mxu0
      %v7067 = vpop.f32.mrf.mxu0
      %v7068 = vadd.f32 0.0, %v7067
      %v7069 = vpop.f32.mrf.mxu0
      %7070 = vmatprep.mubr.bf16.mxu0 0
      %7071 = vmatmul.mubr.bf16.gmra.mxu0 %v6932
      %v7072 = vpop.f32.mrf.mxu0
      %v7073 = vadd.f32 0.0, %v7072
      %v7074 = vpop.f32.mrf.mxu0
      %v7075 = vpop.f32.mrf.mxu0
      %v7076 = vadd.f32 0.0, %v7075
      %v7077 = vpop.f32.mrf.mxu0
      %7078 = vmatprep.mubr.bf16.mxu0 0
      %7079 = vmatmul.mubr.bf16.gmra.mxu0 %v6933
      %v7080 = vpop.f32.mrf.mxu0
      %v7081 = vadd.f32 0.0, %v7080
      %v7082 = vpop.f32.mrf.mxu0
      %v7083 = vpop.f32.mrf.mxu0
      %v7084 = vadd.f32 0.0, %v7083
      %v7085 = vpop.f32.mrf.mxu0
      %7086 = vdwg.mxu0
      %v7087 = vadd.f32 %v6773, %v7025
      %v7088 = vadd.f32 %v6774, %v7028
      %v7089 = vadd.f32 %v6775, %v7033
      %v7090 = vadd.f32 %v6776, %v7036
      %v7091 = vadd.f32 %v6777, %v7041
      %v7092 = vadd.f32 %v6778, %v7044
      %v7093 = vadd.f32 %v6779, %v7049
      %v7094 = vadd.f32 %v6780, %v7052
      %v7095 = vadd.f32 %v6781, %v7057
      %v7096 = vadd.f32 %v6782, %v7060
      %v7097 = vadd.f32 %v6783, %v7065
      %v7098 = vadd.f32 %v6784, %v7068
      %v7099 = vadd.f32 %v6785, %v7073
      %v7100 = vadd.f32 %v6786, %v7076
      %v7101 = vadd.f32 %v6787, %v7081
      %v7102 = vadd.f32 %v6788, %v7084
      %v7103 = vld [vmem:[%s333] sm:$0xf]
      %v7104 = vld [vmem:[%s333 + $0x4] sm:$0xf]
      %v7105 = vld [vmem:[%s333 + $0x10] sm:$0xf]
      %v7106 = vld [vmem:[%s333 + $0x14] sm:$0xf]
      %v7107 = vld [vmem:[%s333 + $0x20] sm:$0xf]
      %v7108 = vld [vmem:[%s333 + $0x24] sm:$0xf]
      %v7109 = vld [vmem:[%s333 + $0x30] sm:$0xf]
      %v7110 = vld [vmem:[%s333 + $0x34] sm:$0xf]
      %v7111 = vld [vmem:[%s333 + $0x40] sm:$0xf]
      %v7112 = vld [vmem:[%s333 + $0x44] sm:$0xf]
      %v7113 = vld [vmem:[%s333 + $0x50] sm:$0xf]
      %v7114 = vld [vmem:[%s333 + $0x54] sm:$0xf]
      %v7115 = vld [vmem:[%s333 + $0x60] sm:$0xf]
      %v7116 = vld [vmem:[%s333 + $0x64] sm:$0xf]
      %v7117 = vld [vmem:[%s333 + $0x70] sm:$0xf]
      %v7118 = vld [vmem:[%s333 + $0x74] sm:$0xf]
      %s7119 = scalar_lea.vmem %s3, 1344
      %v7120 = vld [vmem:[%s7119] sm:$0xf]
      %v7121 = vld [vmem:[%s7119 + $0x4] sm:$0xf]
      %v7122 = vld [vmem:[%s7119 + $0x8] sm:$0xf]
      %v7123 = vld [vmem:[%s7119 + $0xc] sm:$0xf]
      %v7124 = vld [vmem:[%s7119 + $0x10] sm:$0xf]
      %v7125 = vld [vmem:[%s7119 + $0x14] sm:$0xf]
      %v7126 = vld [vmem:[%s7119 + $0x18] sm:$0xf]
      %v7127 = vld [vmem:[%s7119 + $0x1c] sm:$0xf]
      %v7128 = vld [vmem:[%s7119 + $0x20] sm:$0xf]
      %v7129 = vld [vmem:[%s7119 + $0x24] sm:$0xf]
      %v7130 = vld [vmem:[%s7119 + $0x28] sm:$0xf]
      %v7131 = vld [vmem:[%s7119 + $0x2c] sm:$0xf]
      %v7132 = vld [vmem:[%s7119 + $0x30] sm:$0xf]
      %v7133 = vld [vmem:[%s7119 + $0x34] sm:$0xf]
      %v7134 = vld [vmem:[%s7119 + $0x38] sm:$0xf]
      %v7135 = vld [vmem:[%s7119 + $0x3c] sm:$0xf]
      %v7152 = vunpack.c.l.b16 %v7103
      %v7153 = vunpack.c.l.b16 %v7104
      %v7154 = vunpack.c.l.b16 %v7105
      %v7155 = vunpack.c.l.b16 %v7106
      %v7156 = vunpack.c.l.b16 %v7107
      %v7157 = vunpack.c.l.b16 %v7108
      %v7158 = vunpack.c.l.b16 %v7109
      %v7159 = vunpack.c.l.b16 %v7110
      %v7160 = vunpack.c.l.b16 %v7111
      %v7161 = vunpack.c.l.b16 %v7112
      %v7162 = vunpack.c.l.b16 %v7113
      %v7163 = vunpack.c.l.b16 %v7114
      %v7164 = vunpack.c.l.b16 %v7115
      %v7165 = vunpack.c.l.b16 %v7116
      %v7166 = vunpack.c.l.b16 %v7117
      %v7167 = vunpack.c.l.b16 %v7118
      %v7168 = vpack.c.b16 %v7153, %v7152
      %v7169 = vpack.c.b16 %v7155, %v7154
      %v7170 = vpack.c.b16 %v7157, %v7156
      %v7171 = vpack.c.b16 %v7159, %v7158
      %v7172 = vpack.c.b16 %v7161, %v7160
      %v7173 = vpack.c.b16 %v7163, %v7162
      %v7174 = vpack.c.b16 %v7165, %v7164
      %v7175 = vpack.c.b16 %v7167, %v7166
      %v7200 = vunpack.c.l.b16 %v7120
      %v7201 = vunpack.c.l.b16 %v7121
      %v7202 = vunpack.c.l.b16 %v7122
      %v7203 = vunpack.c.l.b16 %v7123
      %v7204 = vunpack.c.l.b16 %v7124
      %v7205 = vunpack.c.l.b16 %v7125
      %v7206 = vunpack.c.l.b16 %v7126
      %v7207 = vunpack.c.l.b16 %v7127
      %v7208 = vunpack.c.l.b16 %v7128
      %v7209 = vunpack.c.l.b16 %v7129
      %v7210 = vunpack.c.l.b16 %v7130
      %v7211 = vunpack.c.l.b16 %v7131
      %v7212 = vunpack.c.l.b16 %v7132
      %v7213 = vunpack.c.l.b16 %v7133
      %v7214 = vunpack.c.l.b16 %v7134
      %v7215 = vunpack.c.l.b16 %v7135
      %v7216 = vpack.c.b16 %v7201, %v7200
      %v7217 = vpack.c.b16 %v7203, %v7202
      %v7218 = vpack.c.b16 %v7205, %v7204
      %v7219 = vpack.c.b16 %v7207, %v7206
      %v7220 = vpack.c.b16 %v7209, %v7208
      %v7221 = vpack.c.b16 %v7211, %v7210
      %v7222 = vpack.c.b16 %v7213, %v7212
      %v7223 = vpack.c.b16 %v7215, %v7214
      %7232 = vmatprep.subr.bf16.mxu0 0
      %7233 = vmatpush1.bf16.msra.mxu0 %v7223
      %7234 = vmatprep.subr.bf16.mxu0 0
      %7235 = vmatpush1.bf16.msra.mxu0 %v7222
      %7236 = vmatprep.subr.bf16.mxu0 0
      %7237 = vmatpush1.bf16.msra.mxu0 %v7221
      %7238 = vmatprep.subr.bf16.mxu0 0
      %7239 = vmatpush1.bf16.msra.mxu0 %v7220
      %7240 = vmatprep.subr.bf16.mxu0 0
      %7241 = vmatpush1.bf16.msra.mxu0 %v7219
      %7242 = vmatprep.subr.bf16.mxu0 0
      %7243 = vmatpush1.bf16.msra.mxu0 %v7218
      %7244 = vmatprep.subr.bf16.mxu0 0
      %7245 = vmatpush1.bf16.msra.mxu0 %v7217
      %7246 = vmatprep.subr.bf16.mxu0 0
      %7247 = vmatpush1.bf16.msra.mxu0 %v7216
      %7248 = vmatprep.subr.bf16.mxu0 0
      %7249 = vmatpush2.bf16.msra.mxu0 0
      %7250 = vmatprep.subr.bf16.mxu0 0
      %7251 = vmatpush2.bf16.msra.mxu0 0
      %7252 = vmatprep.subr.bf16.mxu0 0
      %7253 = vmatpush2.bf16.msra.mxu0 0
      %7254 = vmatprep.subr.bf16.mxu0 0
      %7255 = vmatpush2.bf16.msra.mxu0 0
      %7256 = vmatprep.subr.bf16.mxu0 0
      %7257 = vmatpush2.bf16.msra.mxu0 0
      %7258 = vmatprep.subr.bf16.mxu0 0
      %7259 = vmatpush2.bf16.msra.mxu0 0
      %7260 = vmatprep.subr.bf16.mxu0 0
      %7261 = vmatpush2.bf16.msra.mxu0 0
      %7262 = vmatprep.subr.bf16.mxu0 0
      %7263 = vmatpush2.bf16.msra.mxu0 0
      %7264 = vmatprep.mubr.bf16.mxu0 0
      %7265 = vmatmul.mubr.bf16.gmra.mxu0 %v7168
      %v7266 = vpop.f32.mrf.mxu0
      %v7267 = vadd.f32 0.0, %v7266
      %v7268 = vpop.f32.mrf.mxu0
      %v7269 = vpop.f32.mrf.mxu0
      %v7270 = vadd.f32 0.0, %v7269
      %v7271 = vpop.f32.mrf.mxu0
      %7272 = vmatprep.mubr.bf16.mxu0 0
      %7273 = vmatmul.mubr.bf16.gmra.mxu0 %v7169
      %v7274 = vpop.f32.mrf.mxu0
      %v7275 = vadd.f32 0.0, %v7274
      %v7276 = vpop.f32.mrf.mxu0
      %v7277 = vpop.f32.mrf.mxu0
      %v7278 = vadd.f32 0.0, %v7277
      %v7279 = vpop.f32.mrf.mxu0
      %7280 = vmatprep.mubr.bf16.mxu0 0
      %7281 = vmatmul.mubr.bf16.gmra.mxu0 %v7170
      %v7282 = vpop.f32.mrf.mxu0
      %v7283 = vadd.f32 0.0, %v7282
      %v7284 = vpop.f32.mrf.mxu0
      %v7285 = vpop.f32.mrf.mxu0
      %v7286 = vadd.f32 0.0, %v7285
      %v7287 = vpop.f32.mrf.mxu0
      %7288 = vmatprep.mubr.bf16.mxu0 0
      %7289 = vmatmul.mubr.bf16.gmra.mxu0 %v7171
      %v7290 = vpop.f32.mrf.mxu0
      %v7291 = vadd.f32 0.0, %v7290
      %v7292 = vpop.f32.mrf.mxu0
      %v7293 = vpop.f32.mrf.mxu0
      %v7294 = vadd.f32 0.0, %v7293
      %v7295 = vpop.f32.mrf.mxu0
      %7296 = vmatprep.mubr.bf16.mxu0 0
      %7297 = vmatmul.mubr.bf16.gmra.mxu0 %v7172
      %v7298 = vpop.f32.mrf.mxu0
      %v7299 = vadd.f32 0.0, %v7298
      %v7300 = vpop.f32.mrf.mxu0
      %v7301 = vpop.f32.mrf.mxu0
      %v7302 = vadd.f32 0.0, %v7301
      %v7303 = vpop.f32.mrf.mxu0
      %7304 = vmatprep.mubr.bf16.mxu0 0
      %7305 = vmatmul.mubr.bf16.gmra.mxu0 %v7173
      %v7306 = vpop.f32.mrf.mxu0
      %v7307 = vadd.f32 0.0, %v7306
      %v7308 = vpop.f32.mrf.mxu0
      %v7309 = vpop.f32.mrf.mxu0
      %v7310 = vadd.f32 0.0, %v7309
      %v7311 = vpop.f32.mrf.mxu0
      %7312 = vmatprep.mubr.bf16.mxu0 0
      %7313 = vmatmul.mubr.bf16.gmra.mxu0 %v7174
      %v7314 = vpop.f32.mrf.mxu0
      %v7315 = vadd.f32 0.0, %v7314
      %v7316 = vpop.f32.mrf.mxu0
      %v7317 = vpop.f32.mrf.mxu0
      %v7318 = vadd.f32 0.0, %v7317
      %v7319 = vpop.f32.mrf.mxu0
      %7320 = vmatprep.mubr.bf16.mxu0 0
      %7321 = vmatmul.mubr.bf16.gmra.mxu0 %v7175
      %v7322 = vpop.f32.mrf.mxu0
      %v7323 = vadd.f32 0.0, %v7322
      %v7324 = vpop.f32.mrf.mxu0
      %v7325 = vpop.f32.mrf.mxu0
      %v7326 = vadd.f32 0.0, %v7325
      %v7327 = vpop.f32.mrf.mxu0
      %7328 = vdwg.mxu0
      %v7329 = vadd.f32 %v7087, %v7267
      %v7330 = vadd.f32 %v7088, %v7270
      %v7331 = vadd.f32 %v7089, %v7275
      %v7332 = vadd.f32 %v7090, %v7278
      %v7333 = vadd.f32 %v7091, %v7283
      %v7334 = vadd.f32 %v7092, %v7286
      %v7335 = vadd.f32 %v7093, %v7291
      %v7336 = vadd.f32 %v7094, %v7294
      %v7337 = vadd.f32 %v7095, %v7299
      %v7338 = vadd.f32 %v7096, %v7302
      %v7339 = vadd.f32 %v7097, %v7307
      %v7340 = vadd.f32 %v7098, %v7310
      %v7341 = vadd.f32 %v7099, %v7315
      %v7342 = vadd.f32 %v7100, %v7318
      %v7343 = vadd.f32 %v7101, %v7323
      %v7344 = vadd.f32 %v7102, %v7326
      %s7345 = scalar_lea.vmem %s3, 1408
      %v7346 = vld [vmem:[%s7345] sm:$0xf]
      %v7347 = vld [vmem:[%s7345 + $0x4] sm:$0xf]
      %v7348 = vld [vmem:[%s7345 + $0x8] sm:$0xf]
      %v7349 = vld [vmem:[%s7345 + $0xc] sm:$0xf]
      %v7350 = vld [vmem:[%s7345 + $0x10] sm:$0xf]
      %v7351 = vld [vmem:[%s7345 + $0x14] sm:$0xf]
      %v7352 = vld [vmem:[%s7345 + $0x18] sm:$0xf]
      %v7353 = vld [vmem:[%s7345 + $0x1c] sm:$0xf]
      %v7354 = vld [vmem:[%s7345 + $0x20] sm:$0xf]
      %v7355 = vld [vmem:[%s7345 + $0x24] sm:$0xf]
      %v7356 = vld [vmem:[%s7345 + $0x28] sm:$0xf]
      %v7357 = vld [vmem:[%s7345 + $0x2c] sm:$0xf]
      %v7358 = vld [vmem:[%s7345 + $0x30] sm:$0xf]
      %v7359 = vld [vmem:[%s7345 + $0x34] sm:$0xf]
      %v7360 = vld [vmem:[%s7345 + $0x38] sm:$0xf]
      %v7361 = vld [vmem:[%s7345 + $0x3c] sm:$0xf]
      %v7378 = vunpack.c.l.b16 %v7346
      %v7379 = vunpack.c.l.b16 %v7347
      %v7380 = vunpack.c.l.b16 %v7348
      %v7381 = vunpack.c.l.b16 %v7349
      %v7382 = vunpack.c.l.b16 %v7350
      %v7383 = vunpack.c.l.b16 %v7351
      %v7384 = vunpack.c.l.b16 %v7352
      %v7385 = vunpack.c.l.b16 %v7353
      %v7386 = vunpack.c.l.b16 %v7354
      %v7387 = vunpack.c.l.b16 %v7355
      %v7388 = vunpack.c.l.b16 %v7356
      %v7389 = vunpack.c.l.b16 %v7357
      %v7390 = vunpack.c.l.b16 %v7358
      %v7391 = vunpack.c.l.b16 %v7359
      %v7392 = vunpack.c.l.b16 %v7360
      %v7393 = vunpack.c.l.b16 %v7361
      %v7394 = vpack.c.b16 %v7379, %v7378
      %v7395 = vpack.c.b16 %v7381, %v7380
      %v7396 = vpack.c.b16 %v7383, %v7382
      %v7397 = vpack.c.b16 %v7385, %v7384
      %v7398 = vpack.c.b16 %v7387, %v7386
      %v7399 = vpack.c.b16 %v7389, %v7388
      %v7400 = vpack.c.b16 %v7391, %v7390
      %v7401 = vpack.c.b16 %v7393, %v7392
      %7410 = vmatprep.subr.bf16.mxu0 0
      %7411 = vmatpush1.bf16.msra.mxu0 %v7401
      %7412 = vmatprep.subr.bf16.mxu0 0
      %7413 = vmatpush1.bf16.msra.mxu0 %v7400
      %7414 = vmatprep.subr.bf16.mxu0 0
      %7415 = vmatpush1.bf16.msra.mxu0 %v7399
      %7416 = vmatprep.subr.bf16.mxu0 0
      %7417 = vmatpush1.bf16.msra.mxu0 %v7398
      %7418 = vmatprep.subr.bf16.mxu0 0
      %7419 = vmatpush1.bf16.msra.mxu0 %v7397
      %7420 = vmatprep.subr.bf16.mxu0 0
      %7421 = vmatpush1.bf16.msra.mxu0 %v7396
      %7422 = vmatprep.subr.bf16.mxu0 0
      %7423 = vmatpush1.bf16.msra.mxu0 %v7395
      %7424 = vmatprep.subr.bf16.mxu0 0
      %7425 = vmatpush1.bf16.msra.mxu0 %v7394
      %7426 = vmatprep.subr.bf16.mxu0 0
      %7427 = vmatpush2.bf16.msra.mxu0 0
      %7428 = vmatprep.subr.bf16.mxu0 0
      %7429 = vmatpush2.bf16.msra.mxu0 0
      %7430 = vmatprep.subr.bf16.mxu0 0
      %7431 = vmatpush2.bf16.msra.mxu0 0
      %7432 = vmatprep.subr.bf16.mxu0 0
      %7433 = vmatpush2.bf16.msra.mxu0 0
      %7434 = vmatprep.subr.bf16.mxu0 0
      %7435 = vmatpush2.bf16.msra.mxu0 0
      %7436 = vmatprep.subr.bf16.mxu0 0
      %7437 = vmatpush2.bf16.msra.mxu0 0
      %7438 = vmatprep.subr.bf16.mxu0 0
      %7439 = vmatpush2.bf16.msra.mxu0 0
      %7440 = vmatprep.subr.bf16.mxu0 0
      %7441 = vmatpush2.bf16.msra.mxu0 0
      %7442 = vmatprep.mubr.bf16.mxu0 0
      %7443 = vmatmul.mubr.bf16.gmra.mxu0 %v480
      %v7444 = vpop.f32.mrf.mxu0
      %v7445 = vadd.f32 0.0, %v7444
      %v7446 = vpop.f32.mrf.mxu0
      %v7447 = vpop.f32.mrf.mxu0
      %v7448 = vadd.f32 0.0, %v7447
      %v7449 = vpop.f32.mrf.mxu0
      %7450 = vmatprep.mubr.bf16.mxu0 0
      %7451 = vmatmul.mubr.bf16.gmra.mxu0 %v481
      %v7452 = vpop.f32.mrf.mxu0
      %v7453 = vadd.f32 0.0, %v7452
      %v7454 = vpop.f32.mrf.mxu0
      %v7455 = vpop.f32.mrf.mxu0
      %v7456 = vadd.f32 0.0, %v7455
      %v7457 = vpop.f32.mrf.mxu0
      %7458 = vmatprep.mubr.bf16.mxu0 0
      %7459 = vmatmul.mubr.bf16.gmra.mxu0 %v482
      %v7460 = vpop.f32.mrf.mxu0
      %v7461 = vadd.f32 0.0, %v7460
      %v7462 = vpop.f32.mrf.mxu0
      %v7463 = vpop.f32.mrf.mxu0
      %v7464 = vadd.f32 0.0, %v7463
      %v7465 = vpop.f32.mrf.mxu0
      %7466 = vmatprep.mubr.bf16.mxu0 0
      %7467 = vmatmul.mubr.bf16.gmra.mxu0 %v483
      %v7468 = vpop.f32.mrf.mxu0
      %v7469 = vadd.f32 0.0, %v7468
      %v7470 = vpop.f32.mrf.mxu0
      %v7471 = vpop.f32.mrf.mxu0
      %v7472 = vadd.f32 0.0, %v7471
      %v7473 = vpop.f32.mrf.mxu0
      %7474 = vmatprep.mubr.bf16.mxu0 0
      %7475 = vmatmul.mubr.bf16.gmra.mxu0 %v484
      %v7476 = vpop.f32.mrf.mxu0
      %v7477 = vadd.f32 0.0, %v7476
      %v7478 = vpop.f32.mrf.mxu0
      %v7479 = vpop.f32.mrf.mxu0
      %v7480 = vadd.f32 0.0, %v7479
      %v7481 = vpop.f32.mrf.mxu0
      %7482 = vmatprep.mubr.bf16.mxu0 0
      %7483 = vmatmul.mubr.bf16.gmra.mxu0 %v485
      %v7484 = vpop.f32.mrf.mxu0
      %v7485 = vadd.f32 0.0, %v7484
      %v7486 = vpop.f32.mrf.mxu0
      %v7487 = vpop.f32.mrf.mxu0
      %v7488 = vadd.f32 0.0, %v7487
      %v7489 = vpop.f32.mrf.mxu0
      %7490 = vmatprep.mubr.bf16.mxu0 0
      %7491 = vmatmul.mubr.bf16.gmra.mxu0 %v486
      %v7492 = vpop.f32.mrf.mxu0
      %v7493 = vadd.f32 0.0, %v7492
      %v7494 = vpop.f32.mrf.mxu0
      %v7495 = vpop.f32.mrf.mxu0
      %v7496 = vadd.f32 0.0, %v7495
      %v7497 = vpop.f32.mrf.mxu0
      %7498 = vmatprep.mubr.bf16.mxu0 0
      %7499 = vmatmul.mubr.bf16.gmra.mxu0 %v487
      %v7500 = vpop.f32.mrf.mxu0
      %v7501 = vadd.f32 0.0, %v7500
      %v7502 = vpop.f32.mrf.mxu0
      %v7503 = vpop.f32.mrf.mxu0
      %v7504 = vadd.f32 0.0, %v7503
      %v7505 = vpop.f32.mrf.mxu0
      %7506 = vdwg.mxu0
      %v7507 = vadd.f32 %v7329, %v7445
      %v7508 = vadd.f32 %v7330, %v7448
      %v7509 = vadd.f32 %v7331, %v7453
      %v7510 = vadd.f32 %v7332, %v7456
      %v7511 = vadd.f32 %v7333, %v7461
      %v7512 = vadd.f32 %v7334, %v7464
      %v7513 = vadd.f32 %v7335, %v7469
      %v7514 = vadd.f32 %v7336, %v7472
      %v7515 = vadd.f32 %v7337, %v7477
      %v7516 = vadd.f32 %v7338, %v7480
      %v7517 = vadd.f32 %v7339, %v7485
      %v7518 = vadd.f32 %v7340, %v7488
      %v7519 = vadd.f32 %v7341, %v7493
      %v7520 = vadd.f32 %v7342, %v7496
      %v7521 = vadd.f32 %v7343, %v7501
      %v7522 = vadd.f32 %v7344, %v7504
      %v7523 = vld [vmem:[%s333 + $0x4] sm:$0xc]
      %v7524 = vld [vmem:[%s333 + $0xc] sm:$0x3]
      %v7525 = vld [vmem:[%s333 + $0x14] sm:$0xc]
      %v7526 = vld [vmem:[%s333 + $0x1c] sm:$0x3]
      %v7527 = vld [vmem:[%s333 + $0x24] sm:$0xc]
      %v7528 = vld [vmem:[%s333 + $0x2c] sm:$0x3]
      %v7529 = vld [vmem:[%s333 + $0x34] sm:$0xc]
      %v7530 = vld [vmem:[%s333 + $0x3c] sm:$0x3]
      %v7531 = vld [vmem:[%s333 + $0x44] sm:$0xc]
      %v7532 = vld [vmem:[%s333 + $0x4c] sm:$0x3]
      %v7533 = vld [vmem:[%s333 + $0x54] sm:$0xc]
      %v7534 = vld [vmem:[%s333 + $0x5c] sm:$0x3]
      %v7535 = vld [vmem:[%s333 + $0x64] sm:$0xc]
      %v7536 = vld [vmem:[%s333 + $0x6c] sm:$0x3]
      %v7537 = vld [vmem:[%s333 + $0x74] sm:$0xc]
      %v7538 = vld [vmem:[%s333 + $0x7c] sm:$0x3]
      %v7555 = vrot.slane %v7523, 6
      %v7556 = vrot.slane %v7555, 4
      %v7557 = vrot.slane %v4802, 6
      %v7558 = vsel %vm884, %v7556, %v7557
      %v7559 = vrot.slane %v7557, 4
      %v7560 = vrot.slane %v7524, 6
      %v7561 = vsel %vm884, %v7559, %v7560
      %v7562 = vrot.slane %v7525, 6
      %v7563 = vrot.slane %v7562, 4
      %v7564 = vrot.slane %v4805, 6
      %v7565 = vsel %vm884, %v7563, %v7564
      %v7566 = vrot.slane %v7564, 4
      %v7567 = vrot.slane %v7526, 6
      %v7568 = vsel %vm884, %v7566, %v7567
      %v7569 = vrot.slane %v7527, 6
      %v7570 = vrot.slane %v7569, 4
      %v7571 = vrot.slane %v4808, 6
      %v7572 = vsel %vm884, %v7570, %v7571
      %v7573 = vrot.slane %v7571, 4
      %v7574 = vrot.slane %v7528, 6
      %v7575 = vsel %vm884, %v7573, %v7574
      %v7576 = vrot.slane %v7529, 6
      %v7577 = vrot.slane %v7576, 4
      %v7578 = vrot.slane %v4811, 6
      %v7579 = vsel %vm884, %v7577, %v7578
      %v7580 = vrot.slane %v7578, 4
      %v7581 = vrot.slane %v7530, 6
      %v7582 = vsel %vm884, %v7580, %v7581
      %v7583 = vrot.slane %v7531, 6
      %v7584 = vrot.slane %v7583, 4
      %v7585 = vrot.slane %v4814, 6
      %v7586 = vsel %vm884, %v7584, %v7585
      %v7587 = vrot.slane %v7585, 4
      %v7588 = vrot.slane %v7532, 6
      %v7589 = vsel %vm884, %v7587, %v7588
      %v7590 = vrot.slane %v7533, 6
      %v7591 = vrot.slane %v7590, 4
      %v7592 = vrot.slane %v4817, 6
      %v7593 = vsel %vm884, %v7591, %v7592
      %v7594 = vrot.slane %v7592, 4
      %v7595 = vrot.slane %v7534, 6
      %v7596 = vsel %vm884, %v7594, %v7595
      %v7597 = vrot.slane %v7535, 6
      %v7598 = vrot.slane %v7597, 4
      %v7599 = vrot.slane %v4820, 6
      %v7600 = vsel %vm884, %v7598, %v7599
      %v7601 = vrot.slane %v7599, 4
      %v7602 = vrot.slane %v7536, 6
      %v7603 = vsel %vm884, %v7601, %v7602
      %v7604 = vrot.slane %v7537, 6
      %v7605 = vrot.slane %v7604, 4
      %v7606 = vrot.slane %v4823, 6
      %v7607 = vsel %vm884, %v7605, %v7606
      %v7608 = vrot.slane %v7606, 4
      %v7609 = vrot.slane %v7538, 6
      %v7610 = vsel %vm884, %v7608, %v7609
      %s7611 = scalar_lea.vmem %s3, 1472
      %v7612 = vld [vmem:[%s7611] sm:$0xf]
      %v7613 = vld [vmem:[%s7611 + $0x4] sm:$0xf]
      %v7614 = vld [vmem:[%s7611 + $0x8] sm:$0xf]
      %v7615 = vld [vmem:[%s7611 + $0xc] sm:$0xf]
      %v7616 = vld [vmem:[%s7611 + $0x10] sm:$0xf]
      %v7617 = vld [vmem:[%s7611 + $0x14] sm:$0xf]
      %v7618 = vld [vmem:[%s7611 + $0x18] sm:$0xf]
      %v7619 = vld [vmem:[%s7611 + $0x1c] sm:$0xf]
      %v7620 = vld [vmem:[%s7611 + $0x20] sm:$0xf]
      %v7621 = vld [vmem:[%s7611 + $0x24] sm:$0xf]
      %v7622 = vld [vmem:[%s7611 + $0x28] sm:$0xf]
      %v7623 = vld [vmem:[%s7611 + $0x2c] sm:$0xf]
      %v7624 = vld [vmem:[%s7611 + $0x30] sm:$0xf]
      %v7625 = vld [vmem:[%s7611 + $0x34] sm:$0xf]
      %v7626 = vld [vmem:[%s7611 + $0x38] sm:$0xf]
      %v7627 = vld [vmem:[%s7611 + $0x3c] sm:$0xf]
      %v7628 = vunpack.c.l.b16 %v7558
      %v7629 = vunpack.c.l.b16 %v7561
      %v7630 = vunpack.c.l.b16 %v7565
      %v7631 = vunpack.c.l.b16 %v7568
      %v7632 = vunpack.c.l.b16 %v7572
      %v7633 = vunpack.c.l.b16 %v7575
      %v7634 = vunpack.c.l.b16 %v7579
      %v7635 = vunpack.c.l.b16 %v7582
      %v7636 = vunpack.c.l.b16 %v7586
      %v7637 = vunpack.c.l.b16 %v7589
      %v7638 = vunpack.c.l.b16 %v7593
      %v7639 = vunpack.c.l.b16 %v7596
      %v7640 = vunpack.c.l.b16 %v7600
      %v7641 = vunpack.c.l.b16 %v7603
      %v7642 = vunpack.c.l.b16 %v7607
      %v7643 = vunpack.c.l.b16 %v7610
      %v7644 = vpack.c.b16 %v7629, %v7628
      %v7645 = vpack.c.b16 %v7631, %v7630
      %v7646 = vpack.c.b16 %v7633, %v7632
      %v7647 = vpack.c.b16 %v7635, %v7634
      %v7648 = vpack.c.b16 %v7637, %v7636
      %v7649 = vpack.c.b16 %v7639, %v7638
      %v7650 = vpack.c.b16 %v7641, %v7640
      %v7651 = vpack.c.b16 %v7643, %v7642
      %v7676 = vunpack.c.l.b16 %v7612
      %v7677 = vunpack.c.l.b16 %v7613
      %v7678 = vunpack.c.l.b16 %v7614
      %v7679 = vunpack.c.l.b16 %v7615
      %v7680 = vunpack.c.l.b16 %v7616
      %v7681 = vunpack.c.l.b16 %v7617
      %v7682 = vunpack.c.l.b16 %v7618
      %v7683 = vunpack.c.l.b16 %v7619
      %v7684 = vunpack.c.l.b16 %v7620
      %v7685 = vunpack.c.l.b16 %v7621
      %v7686 = vunpack.c.l.b16 %v7622
      %v7687 = vunpack.c.l.b16 %v7623
      %v7688 = vunpack.c.l.b16 %v7624
      %v7689 = vunpack.c.l.b16 %v7625
      %v7690 = vunpack.c.l.b16 %v7626
      %v7691 = vunpack.c.l.b16 %v7627
      %v7692 = vpack.c.b16 %v7677, %v7676
      %v7693 = vpack.c.b16 %v7679, %v7678
      %v7694 = vpack.c.b16 %v7681, %v7680
      %v7695 = vpack.c.b16 %v7683, %v7682
      %v7696 = vpack.c.b16 %v7685, %v7684
      %v7697 = vpack.c.b16 %v7687, %v7686
      %v7698 = vpack.c.b16 %v7689, %v7688
      %v7699 = vpack.c.b16 %v7691, %v7690
      %7708 = vmatprep.subr.bf16.mxu0 0
      %7709 = vmatpush1.bf16.msra.mxu0 %v7699
      %7710 = vmatprep.subr.bf16.mxu0 0
      %7711 = vmatpush1.bf16.msra.mxu0 %v7698
      %7712 = vmatprep.subr.bf16.mxu0 0
      %7713 = vmatpush1.bf16.msra.mxu0 %v7697
      %7714 = vmatprep.subr.bf16.mxu0 0
      %7715 = vmatpush1.bf16.msra.mxu0 %v7696
      %7716 = vmatprep.subr.bf16.mxu0 0
      %7717 = vmatpush1.bf16.msra.mxu0 %v7695
      %7718 = vmatprep.subr.bf16.mxu0 0
      %7719 = vmatpush1.bf16.msra.mxu0 %v7694
      %7720 = vmatprep.subr.bf16.mxu0 0
      %7721 = vmatpush1.bf16.msra.mxu0 %v7693
      %7722 = vmatprep.subr.bf16.mxu0 0
      %7723 = vmatpush1.bf16.msra.mxu0 %v7692
      %7724 = vmatprep.subr.bf16.mxu0 0
      %7725 = vmatpush2.bf16.msra.mxu0 0
      %7726 = vmatprep.subr.bf16.mxu0 0
      %7727 = vmatpush2.bf16.msra.mxu0 0
      %7728 = vmatprep.subr.bf16.mxu0 0
      %7729 = vmatpush2.bf16.msra.mxu0 0
      %7730 = vmatprep.subr.bf16.mxu0 0
      %7731 = vmatpush2.bf16.msra.mxu0 0
      %7732 = vmatprep.subr.bf16.mxu0 0
      %7733 = vmatpush2.bf16.msra.mxu0 0
      %7734 = vmatprep.subr.bf16.mxu0 0
      %7735 = vmatpush2.bf16.msra.mxu0 0
      %7736 = vmatprep.subr.bf16.mxu0 0
      %7737 = vmatpush2.bf16.msra.mxu0 0
      %7738 = vmatprep.subr.bf16.mxu0 0
      %7739 = vmatpush2.bf16.msra.mxu0 0
      %7740 = vmatprep.mubr.bf16.mxu0 0
      %7741 = vmatmul.mubr.bf16.gmra.mxu0 %v7644
      %v7742 = vpop.f32.mrf.mxu0
      %v7743 = vadd.f32 0.0, %v7742
      %v7744 = vpop.f32.mrf.mxu0
      %v7745 = vpop.f32.mrf.mxu0
      %v7746 = vadd.f32 0.0, %v7745
      %v7747 = vpop.f32.mrf.mxu0
      %7748 = vmatprep.mubr.bf16.mxu0 0
      %7749 = vmatmul.mubr.bf16.gmra.mxu0 %v7645
      %v7750 = vpop.f32.mrf.mxu0
      %v7751 = vadd.f32 0.0, %v7750
      %v7752 = vpop.f32.mrf.mxu0
      %v7753 = vpop.f32.mrf.mxu0
      %v7754 = vadd.f32 0.0, %v7753
      %v7755 = vpop.f32.mrf.mxu0
      %7756 = vmatprep.mubr.bf16.mxu0 0
      %7757 = vmatmul.mubr.bf16.gmra.mxu0 %v7646
      %v7758 = vpop.f32.mrf.mxu0
      %v7759 = vadd.f32 0.0, %v7758
      %v7760 = vpop.f32.mrf.mxu0
      %v7761 = vpop.f32.mrf.mxu0
      %v7762 = vadd.f32 0.0, %v7761
      %v7763 = vpop.f32.mrf.mxu0
      %7764 = vmatprep.mubr.bf16.mxu0 0
      %7765 = vmatmul.mubr.bf16.gmra.mxu0 %v7647
      %v7766 = vpop.f32.mrf.mxu0
      %v7767 = vadd.f32 0.0, %v7766
      %v7768 = vpop.f32.mrf.mxu0
      %v7769 = vpop.f32.mrf.mxu0
      %v7770 = vadd.f32 0.0, %v7769
      %v7771 = vpop.f32.mrf.mxu0
      %7772 = vmatprep.mubr.bf16.mxu0 0
      %7773 = vmatmul.mubr.bf16.gmra.mxu0 %v7648
      %v7774 = vpop.f32.mrf.mxu0
      %v7775 = vadd.f32 0.0, %v7774
      %v7776 = vpop.f32.mrf.mxu0
      %v7777 = vpop.f32.mrf.mxu0
      %v7778 = vadd.f32 0.0, %v7777
      %v7779 = vpop.f32.mrf.mxu0
      %7780 = vmatprep.mubr.bf16.mxu0 0
      %7781 = vmatmul.mubr.bf16.gmra.mxu0 %v7649
      %v7782 = vpop.f32.mrf.mxu0
      %v7783 = vadd.f32 0.0, %v7782
      %v7784 = vpop.f32.mrf.mxu0
      %v7785 = vpop.f32.mrf.mxu0
      %v7786 = vadd.f32 0.0, %v7785
      %v7787 = vpop.f32.mrf.mxu0
      %7788 = vmatprep.mubr.bf16.mxu0 0
      %7789 = vmatmul.mubr.bf16.gmra.mxu0 %v7650
      %v7790 = vpop.f32.mrf.mxu0
      %v7791 = vadd.f32 0.0, %v7790
      %v7792 = vpop.f32.mrf.mxu0
      %v7793 = vpop.f32.mrf.mxu0
      %v7794 = vadd.f32 0.0, %v7793
      %v7795 = vpop.f32.mrf.mxu0
      %7796 = vmatprep.mubr.bf16.mxu0 0
      %7797 = vmatmul.mubr.bf16.gmra.mxu0 %v7651
      %v7798 = vpop.f32.mrf.mxu0
      %v7799 = vadd.f32 0.0, %v7798
      %v7800 = vpop.f32.mrf.mxu0
      %v7801 = vpop.f32.mrf.mxu0
      %v7802 = vadd.f32 0.0, %v7801
      %v7803 = vpop.f32.mrf.mxu0
      %7804 = vdwg.mxu0
      %v7805 = vadd.f32 %v7507, %v7743
      %v7806 = vadd.f32 %v7508, %v7746
      %v7807 = vadd.f32 %v7509, %v7751
      %v7808 = vadd.f32 %v7510, %v7754
      %v7809 = vadd.f32 %v7511, %v7759
      %v7810 = vadd.f32 %v7512, %v7762
      %v7811 = vadd.f32 %v7513, %v7767
      %v7812 = vadd.f32 %v7514, %v7770
      %v7813 = vadd.f32 %v7515, %v7775
      %v7814 = vadd.f32 %v7516, %v7778
      %v7815 = vadd.f32 %v7517, %v7783
      %v7816 = vadd.f32 %v7518, %v7786
      %v7817 = vadd.f32 %v7519, %v7791
      %v7818 = vadd.f32 %v7520, %v7794
      %v7819 = vadd.f32 %v7521, %v7799
      %v7820 = vadd.f32 %v7522, %v7802
      %s7821 = scalar_lea.vmem %s317, 192
      %v7822 = vld [vmem:[%s7821] sm:$0xf]
      %v7823 = vld [vmem:[%s7821 + $0x4] sm:$0xf]
      %v7824 = vld [vmem:[%s7821 + $0x10] sm:$0xf]
      %v7825 = vld [vmem:[%s7821 + $0x14] sm:$0xf]
      %v7826 = vld [vmem:[%s7821 + $0x20] sm:$0xf]
      %v7827 = vld [vmem:[%s7821 + $0x24] sm:$0xf]
      %v7828 = vld [vmem:[%s7821 + $0x30] sm:$0xf]
      %v7829 = vld [vmem:[%s7821 + $0x34] sm:$0xf]
      %v7830 = vld [vmem:[%s7821 + $0x40] sm:$0xf]
      %v7831 = vld [vmem:[%s7821 + $0x44] sm:$0xf]
      %v7832 = vld [vmem:[%s7821 + $0x50] sm:$0xf]
      %v7833 = vld [vmem:[%s7821 + $0x54] sm:$0xf]
      %v7834 = vld [vmem:[%s7821 + $0x60] sm:$0xf]
      %v7835 = vld [vmem:[%s7821 + $0x64] sm:$0xf]
      %v7836 = vld [vmem:[%s7821 + $0x70] sm:$0xf]
      %v7837 = vld [vmem:[%s7821 + $0x74] sm:$0xf]
      %s7838 = scalar_lea.vmem %s3, 1536
      %v7839 = vld [vmem:[%s7838] sm:$0xf]
      %v7840 = vld [vmem:[%s7838 + $0x4] sm:$0xf]
      %v7841 = vld [vmem:[%s7838 + $0x8] sm:$0xf]
      %v7842 = vld [vmem:[%s7838 + $0xc] sm:$0xf]
      %v7843 = vld [vmem:[%s7838 + $0x10] sm:$0xf]
      %v7844 = vld [vmem:[%s7838 + $0x14] sm:$0xf]
      %v7845 = vld [vmem:[%s7838 + $0x18] sm:$0xf]
      %v7846 = vld [vmem:[%s7838 + $0x1c] sm:$0xf]
      %v7847 = vld [vmem:[%s7838 + $0x20] sm:$0xf]
      %v7848 = vld [vmem:[%s7838 + $0x24] sm:$0xf]
      %v7849 = vld [vmem:[%s7838 + $0x28] sm:$0xf]
      %v7850 = vld [vmem:[%s7838 + $0x2c] sm:$0xf]
      %v7851 = vld [vmem:[%s7838 + $0x30] sm:$0xf]
      %v7852 = vld [vmem:[%s7838 + $0x34] sm:$0xf]
      %v7853 = vld [vmem:[%s7838 + $0x38] sm:$0xf]
      %v7854 = vld [vmem:[%s7838 + $0x3c] sm:$0xf]
      %v7871 = vunpack.c.l.b16 %v7822
      %v7872 = vunpack.c.l.b16 %v7823
      %v7873 = vunpack.c.l.b16 %v7824
      %v7874 = vunpack.c.l.b16 %v7825
      %v7875 = vunpack.c.l.b16 %v7826
      %v7876 = vunpack.c.l.b16 %v7827
      %v7877 = vunpack.c.l.b16 %v7828
      %v7878 = vunpack.c.l.b16 %v7829
      %v7879 = vunpack.c.l.b16 %v7830
      %v7880 = vunpack.c.l.b16 %v7831
      %v7881 = vunpack.c.l.b16 %v7832
      %v7882 = vunpack.c.l.b16 %v7833
      %v7883 = vunpack.c.l.b16 %v7834
      %v7884 = vunpack.c.l.b16 %v7835
      %v7885 = vunpack.c.l.b16 %v7836
      %v7886 = vunpack.c.l.b16 %v7837
      %v7887 = vpack.c.b16 %v7872, %v7871
      %v7888 = vpack.c.b16 %v7874, %v7873
      %v7889 = vpack.c.b16 %v7876, %v7875
      %v7890 = vpack.c.b16 %v7878, %v7877
      %v7891 = vpack.c.b16 %v7880, %v7879
      %v7892 = vpack.c.b16 %v7882, %v7881
      %v7893 = vpack.c.b16 %v7884, %v7883
      %v7894 = vpack.c.b16 %v7886, %v7885
      %v7919 = vunpack.c.l.b16 %v7839
      %v7920 = vunpack.c.l.b16 %v7840
      %v7921 = vunpack.c.l.b16 %v7841
      %v7922 = vunpack.c.l.b16 %v7842
      %v7923 = vunpack.c.l.b16 %v7843
      %v7924 = vunpack.c.l.b16 %v7844
      %v7925 = vunpack.c.l.b16 %v7845
      %v7926 = vunpack.c.l.b16 %v7846
      %v7927 = vunpack.c.l.b16 %v7847
      %v7928 = vunpack.c.l.b16 %v7848
      %v7929 = vunpack.c.l.b16 %v7849
      %v7930 = vunpack.c.l.b16 %v7850
      %v7931 = vunpack.c.l.b16 %v7851
      %v7932 = vunpack.c.l.b16 %v7852
      %v7933 = vunpack.c.l.b16 %v7853
      %v7934 = vunpack.c.l.b16 %v7854
      %v7935 = vpack.c.b16 %v7920, %v7919
      %v7936 = vpack.c.b16 %v7922, %v7921
      %v7937 = vpack.c.b16 %v7924, %v7923
      %v7938 = vpack.c.b16 %v7926, %v7925
      %v7939 = vpack.c.b16 %v7928, %v7927
      %v7940 = vpack.c.b16 %v7930, %v7929
      %v7941 = vpack.c.b16 %v7932, %v7931
      %v7942 = vpack.c.b16 %v7934, %v7933
      %7951 = vmatprep.subr.bf16.mxu0 0
      %7952 = vmatpush1.bf16.msra.mxu0 %v7942
      %7953 = vmatprep.subr.bf16.mxu0 0
      %7954 = vmatpush1.bf16.msra.mxu0 %v7941
      %7955 = vmatprep.subr.bf16.mxu0 0
      %7956 = vmatpush1.bf16.msra.mxu0 %v7940
      %7957 = vmatprep.subr.bf16.mxu0 0
      %7958 = vmatpush1.bf16.msra.mxu0 %v7939
      %7959 = vmatprep.subr.bf16.mxu0 0
      %7960 = vmatpush1.bf16.msra.mxu0 %v7938
      %7961 = vmatprep.subr.bf16.mxu0 0
      %7962 = vmatpush1.bf16.msra.mxu0 %v7937
      %7963 = vmatprep.subr.bf16.mxu0 0
      %7964 = vmatpush1.bf16.msra.mxu0 %v7936
      %7965 = vmatprep.subr.bf16.mxu0 0
      %7966 = vmatpush1.bf16.msra.mxu0 %v7935
      %7967 = vmatprep.subr.bf16.mxu0 0
      %7968 = vmatpush2.bf16.msra.mxu0 0
      %7969 = vmatprep.subr.bf16.mxu0 0
      %7970 = vmatpush2.bf16.msra.mxu0 0
      %7971 = vmatprep.subr.bf16.mxu0 0
      %7972 = vmatpush2.bf16.msra.mxu0 0
      %7973 = vmatprep.subr.bf16.mxu0 0
      %7974 = vmatpush2.bf16.msra.mxu0 0
      %7975 = vmatprep.subr.bf16.mxu0 0
      %7976 = vmatpush2.bf16.msra.mxu0 0
      %7977 = vmatprep.subr.bf16.mxu0 0
      %7978 = vmatpush2.bf16.msra.mxu0 0
      %7979 = vmatprep.subr.bf16.mxu0 0
      %7980 = vmatpush2.bf16.msra.mxu0 0
      %7981 = vmatprep.subr.bf16.mxu0 0
      %7982 = vmatpush2.bf16.msra.mxu0 0
      %7983 = vmatprep.mubr.bf16.mxu0 0
      %7984 = vmatmul.mubr.bf16.gmra.mxu0 %v7887
      %v7985 = vpop.f32.mrf.mxu0
      %v7986 = vadd.f32 0.0, %v7985
      %v7987 = vpop.f32.mrf.mxu0
      %v7988 = vpop.f32.mrf.mxu0
      %v7989 = vadd.f32 0.0, %v7988
      %v7990 = vpop.f32.mrf.mxu0
      %7991 = vmatprep.mubr.bf16.mxu0 0
      %7992 = vmatmul.mubr.bf16.gmra.mxu0 %v7888
      %v7993 = vpop.f32.mrf.mxu0
      %v7994 = vadd.f32 0.0, %v7993
      %v7995 = vpop.f32.mrf.mxu0
      %v7996 = vpop.f32.mrf.mxu0
      %v7997 = vadd.f32 0.0, %v7996
      %v7998 = vpop.f32.mrf.mxu0
      %7999 = vmatprep.mubr.bf16.mxu0 0
      %8000 = vmatmul.mubr.bf16.gmra.mxu0 %v7889
      %v8001 = vpop.f32.mrf.mxu0
      %v8002 = vadd.f32 0.0, %v8001
      %v8003 = vpop.f32.mrf.mxu0
      %v8004 = vpop.f32.mrf.mxu0
      %v8005 = vadd.f32 0.0, %v8004
      %v8006 = vpop.f32.mrf.mxu0
      %8007 = vmatprep.mubr.bf16.mxu0 0
      %8008 = vmatmul.mubr.bf16.gmra.mxu0 %v7890
      %v8009 = vpop.f32.mrf.mxu0
      %v8010 = vadd.f32 0.0, %v8009
      %v8011 = vpop.f32.mrf.mxu0
      %v8012 = vpop.f32.mrf.mxu0
      %v8013 = vadd.f32 0.0, %v8012
      %v8014 = vpop.f32.mrf.mxu0
      %8015 = vmatprep.mubr.bf16.mxu0 0
      %8016 = vmatmul.mubr.bf16.gmra.mxu0 %v7891
      %v8017 = vpop.f32.mrf.mxu0
      %v8018 = vadd.f32 0.0, %v8017
      %v8019 = vpop.f32.mrf.mxu0
      %v8020 = vpop.f32.mrf.mxu0
      %v8021 = vadd.f32 0.0, %v8020
      %v8022 = vpop.f32.mrf.mxu0
      %8023 = vmatprep.mubr.bf16.mxu0 0
      %8024 = vmatmul.mubr.bf16.gmra.mxu0 %v7892
      %v8025 = vpop.f32.mrf.mxu0
      %v8026 = vadd.f32 0.0, %v8025
      %v8027 = vpop.f32.mrf.mxu0
      %v8028 = vpop.f32.mrf.mxu0
      %v8029 = vadd.f32 0.0, %v8028
      %v8030 = vpop.f32.mrf.mxu0
      %8031 = vmatprep.mubr.bf16.mxu0 0
      %8032 = vmatmul.mubr.bf16.gmra.mxu0 %v7893
      %v8033 = vpop.f32.mrf.mxu0
      %v8034 = vadd.f32 0.0, %v8033
      %v8035 = vpop.f32.mrf.mxu0
      %v8036 = vpop.f32.mrf.mxu0
      %v8037 = vadd.f32 0.0, %v8036
      %v8038 = vpop.f32.mrf.mxu0
      %8039 = vmatprep.mubr.bf16.mxu0 0
      %8040 = vmatmul.mubr.bf16.gmra.mxu0 %v7894
      %v8041 = vpop.f32.mrf.mxu0
      %v8042 = vadd.f32 0.0, %v8041
      %v8043 = vpop.f32.mrf.mxu0
      %v8044 = vpop.f32.mrf.mxu0
      %v8045 = vadd.f32 0.0, %v8044
      %v8046 = vpop.f32.mrf.mxu0
      %8047 = vdwg.mxu0
      %v8048 = vadd.f32 %v7805, %v7986
      %v8049 = vadd.f32 %v7806, %v7989
      %v8050 = vadd.f32 %v7807, %v7994
      %v8051 = vadd.f32 %v7808, %v7997
      %v8052 = vadd.f32 %v7809, %v8002
      %v8053 = vadd.f32 %v7810, %v8005
      %v8054 = vadd.f32 %v7811, %v8010
      %v8055 = vadd.f32 %v7812, %v8013
      %v8056 = vadd.f32 %v7813, %v8018
      %v8057 = vadd.f32 %v7814, %v8021
      %v8058 = vadd.f32 %v7815, %v8026
      %v8059 = vadd.f32 %v7816, %v8029
      %v8060 = vadd.f32 %v7817, %v8034
      %v8061 = vadd.f32 %v7818, %v8037
      %v8062 = vadd.f32 %v7819, %v8042
      %v8063 = vadd.f32 %v7820, %v8045
      %v8064 = vld [vmem:[%s7821] sm:$0x8]
      %v8065 = vld [vmem:[%s7821 + $0x4] sm:$0xf]
      %v8066 = vld [vmem:[%s7821 + $0x8] sm:$0x7]
      %v8067 = vld [vmem:[%s7821 + $0x10] sm:$0x8]
      %v8068 = vld [vmem:[%s7821 + $0x14] sm:$0xf]
      %v8069 = vld [vmem:[%s7821 + $0x18] sm:$0x7]
      %v8070 = vld [vmem:[%s7821 + $0x20] sm:$0x8]
      %v8071 = vld [vmem:[%s7821 + $0x24] sm:$0xf]
      %v8072 = vld [vmem:[%s7821 + $0x28] sm:$0x7]
      %v8073 = vld [vmem:[%s7821 + $0x30] sm:$0x8]
      %v8074 = vld [vmem:[%s7821 + $0x34] sm:$0xf]
      %v8075 = vld [vmem:[%s7821 + $0x38] sm:$0x7]
      %v8076 = vld [vmem:[%s7821 + $0x40] sm:$0x8]
      %v8077 = vld [vmem:[%s7821 + $0x44] sm:$0xf]
      %v8078 = vld [vmem:[%s7821 + $0x48] sm:$0x7]
      %v8079 = vld [vmem:[%s7821 + $0x50] sm:$0x8]
      %v8080 = vld [vmem:[%s7821 + $0x54] sm:$0xf]
      %v8081 = vld [vmem:[%s7821 + $0x58] sm:$0x7]
      %v8082 = vld [vmem:[%s7821 + $0x60] sm:$0x8]
      %v8083 = vld [vmem:[%s7821 + $0x64] sm:$0xf]
      %v8084 = vld [vmem:[%s7821 + $0x68] sm:$0x7]
      %v8085 = vld [vmem:[%s7821 + $0x70] sm:$0x8]
      %v8086 = vld [vmem:[%s7821 + $0x74] sm:$0xf]
      %v8087 = vld [vmem:[%s7821 + $0x78] sm:$0x7]
      %v8112 = vrot.slane %v8064, 7
      %v8113 = vrot.slane %v8112, 4
      %v8114 = vrot.slane %v8065, 7
      %v8115 = vsel %vm384, %v8113, %v8114
      %v8116 = vrot.slane %v8114, 4
      %v8117 = vrot.slane %v8066, 7
      %v8118 = vsel %vm384, %v8116, %v8117
      %v8119 = vrot.slane %v8067, 7
      %v8120 = vrot.slane %v8119, 4
      %v8121 = vrot.slane %v8068, 7
      %v8122 = vsel %vm384, %v8120, %v8121
      %v8123 = vrot.slane %v8121, 4
      %v8124 = vrot.slane %v8069, 7
      %v8125 = vsel %vm384, %v8123, %v8124
      %v8126 = vrot.slane %v8070, 7
      %v8127 = vrot.slane %v8126, 4
      %v8128 = vrot.slane %v8071, 7
      %v8129 = vsel %vm384, %v8127, %v8128
      %v8130 = vrot.slane %v8128, 4
      %v8131 = vrot.slane %v8072, 7
      %v8132 = vsel %vm384, %v8130, %v8131
      %v8133 = vrot.slane %v8073, 7
      %v8134 = vrot.slane %v8133, 4
      %v8135 = vrot.slane %v8074, 7
      %v8136 = vsel %vm384, %v8134, %v8135
      %v8137 = vrot.slane %v8135, 4
      %v8138 = vrot.slane %v8075, 7
      %v8139 = vsel %vm384, %v8137, %v8138
      %v8140 = vrot.slane %v8076, 7
      %v8141 = vrot.slane %v8140, 4
      %v8142 = vrot.slane %v8077, 7
      %v8143 = vsel %vm384, %v8141, %v8142
      %v8144 = vrot.slane %v8142, 4
      %v8145 = vrot.slane %v8078, 7
      %v8146 = vsel %vm384, %v8144, %v8145
      %v8147 = vrot.slane %v8079, 7
      %v8148 = vrot.slane %v8147, 4
      %v8149 = vrot.slane %v8080, 7
      %v8150 = vsel %vm384, %v8148, %v8149
      %v8151 = vrot.slane %v8149, 4
      %v8152 = vrot.slane %v8081, 7
      %v8153 = vsel %vm384, %v8151, %v8152
      %v8154 = vrot.slane %v8082, 7
      %v8155 = vrot.slane %v8154, 4
      %v8156 = vrot.slane %v8083, 7
      %v8157 = vsel %vm384, %v8155, %v8156
      %v8158 = vrot.slane %v8156, 4
      %v8159 = vrot.slane %v8084, 7
      %v8160 = vsel %vm384, %v8158, %v8159
      %v8161 = vrot.slane %v8085, 7
      %v8162 = vrot.slane %v8161, 4
      %v8163 = vrot.slane %v8086, 7
      %v8164 = vsel %vm384, %v8162, %v8163
      %v8165 = vrot.slane %v8163, 4
      %v8166 = vrot.slane %v8087, 7
      %v8167 = vsel %vm384, %v8165, %v8166
      %s8168 = scalar_lea.vmem %s3, 1600
      %v8169 = vld [vmem:[%s8168] sm:$0xf]
      %v8170 = vld [vmem:[%s8168 + $0x4] sm:$0xf]
      %v8171 = vld [vmem:[%s8168 + $0x8] sm:$0xf]
      %v8172 = vld [vmem:[%s8168 + $0xc] sm:$0xf]
      %v8173 = vld [vmem:[%s8168 + $0x10] sm:$0xf]
      %v8174 = vld [vmem:[%s8168 + $0x14] sm:$0xf]
      %v8175 = vld [vmem:[%s8168 + $0x18] sm:$0xf]
      %v8176 = vld [vmem:[%s8168 + $0x1c] sm:$0xf]
      %v8177 = vld [vmem:[%s8168 + $0x20] sm:$0xf]
      %v8178 = vld [vmem:[%s8168 + $0x24] sm:$0xf]
      %v8179 = vld [vmem:[%s8168 + $0x28] sm:$0xf]
      %v8180 = vld [vmem:[%s8168 + $0x2c] sm:$0xf]
      %v8181 = vld [vmem:[%s8168 + $0x30] sm:$0xf]
      %v8182 = vld [vmem:[%s8168 + $0x34] sm:$0xf]
      %v8183 = vld [vmem:[%s8168 + $0x38] sm:$0xf]
      %v8184 = vld [vmem:[%s8168 + $0x3c] sm:$0xf]
      %v8185 = vunpack.c.l.b16 %v8115
      %v8186 = vunpack.c.l.b16 %v8118
      %v8187 = vunpack.c.l.b16 %v8122
      %v8188 = vunpack.c.l.b16 %v8125
      %v8189 = vunpack.c.l.b16 %v8129
      %v8190 = vunpack.c.l.b16 %v8132
      %v8191 = vunpack.c.l.b16 %v8136
      %v8192 = vunpack.c.l.b16 %v8139
      %v8193 = vunpack.c.l.b16 %v8143
      %v8194 = vunpack.c.l.b16 %v8146
      %v8195 = vunpack.c.l.b16 %v8150
      %v8196 = vunpack.c.l.b16 %v8153
      %v8197 = vunpack.c.l.b16 %v8157
      %v8198 = vunpack.c.l.b16 %v8160
      %v8199 = vunpack.c.l.b16 %v8164
      %v8200 = vunpack.c.l.b16 %v8167
      %v8201 = vpack.c.b16 %v8186, %v8185
      %v8202 = vpack.c.b16 %v8188, %v8187
      %v8203 = vpack.c.b16 %v8190, %v8189
      %v8204 = vpack.c.b16 %v8192, %v8191
      %v8205 = vpack.c.b16 %v8194, %v8193
      %v8206 = vpack.c.b16 %v8196, %v8195
      %v8207 = vpack.c.b16 %v8198, %v8197
      %v8208 = vpack.c.b16 %v8200, %v8199
      %v8233 = vunpack.c.l.b16 %v8169
      %v8234 = vunpack.c.l.b16 %v8170
      %v8235 = vunpack.c.l.b16 %v8171
      %v8236 = vunpack.c.l.b16 %v8172
      %v8237 = vunpack.c.l.b16 %v8173
      %v8238 = vunpack.c.l.b16 %v8174
      %v8239 = vunpack.c.l.b16 %v8175
      %v8240 = vunpack.c.l.b16 %v8176
      %v8241 = vunpack.c.l.b16 %v8177
      %v8242 = vunpack.c.l.b16 %v8178
      %v8243 = vunpack.c.l.b16 %v8179
      %v8244 = vunpack.c.l.b16 %v8180
      %v8245 = vunpack.c.l.b16 %v8181
      %v8246 = vunpack.c.l.b16 %v8182
      %v8247 = vunpack.c.l.b16 %v8183
      %v8248 = vunpack.c.l.b16 %v8184
      %v8249 = vpack.c.b16 %v8234, %v8233
      %v8250 = vpack.c.b16 %v8236, %v8235
      %v8251 = vpack.c.b16 %v8238, %v8237
      %v8252 = vpack.c.b16 %v8240, %v8239
      %v8253 = vpack.c.b16 %v8242, %v8241
      %v8254 = vpack.c.b16 %v8244, %v8243
      %v8255 = vpack.c.b16 %v8246, %v8245
      %v8256 = vpack.c.b16 %v8248, %v8247
      %8265 = vmatprep.subr.bf16.mxu0 0
      %8266 = vmatpush1.bf16.msra.mxu0 %v8256
      %8267 = vmatprep.subr.bf16.mxu0 0
      %8268 = vmatpush1.bf16.msra.mxu0 %v8255
      %8269 = vmatprep.subr.bf16.mxu0 0
      %8270 = vmatpush1.bf16.msra.mxu0 %v8254
      %8271 = vmatprep.subr.bf16.mxu0 0
      %8272 = vmatpush1.bf16.msra.mxu0 %v8253
      %8273 = vmatprep.subr.bf16.mxu0 0
      %8274 = vmatpush1.bf16.msra.mxu0 %v8252
      %8275 = vmatprep.subr.bf16.mxu0 0
      %8276 = vmatpush1.bf16.msra.mxu0 %v8251
      %8277 = vmatprep.subr.bf16.mxu0 0
      %8278 = vmatpush1.bf16.msra.mxu0 %v8250
      %8279 = vmatprep.subr.bf16.mxu0 0
      %8280 = vmatpush1.bf16.msra.mxu0 %v8249
      %8281 = vmatprep.subr.bf16.mxu0 0
      %8282 = vmatpush2.bf16.msra.mxu0 0
      %8283 = vmatprep.subr.bf16.mxu0 0
      %8284 = vmatpush2.bf16.msra.mxu0 0
      %8285 = vmatprep.subr.bf16.mxu0 0
      %8286 = vmatpush2.bf16.msra.mxu0 0
      %8287 = vmatprep.subr.bf16.mxu0 0
      %8288 = vmatpush2.bf16.msra.mxu0 0
      %8289 = vmatprep.subr.bf16.mxu0 0
      %8290 = vmatpush2.bf16.msra.mxu0 0
      %8291 = vmatprep.subr.bf16.mxu0 0
      %8292 = vmatpush2.bf16.msra.mxu0 0
      %8293 = vmatprep.subr.bf16.mxu0 0
      %8294 = vmatpush2.bf16.msra.mxu0 0
      %8295 = vmatprep.subr.bf16.mxu0 0
      %8296 = vmatpush2.bf16.msra.mxu0 0
      %8297 = vmatprep.mubr.bf16.mxu0 0
      %8298 = vmatmul.mubr.bf16.gmra.mxu0 %v8201
      %v8299 = vpop.f32.mrf.mxu0
      %v8300 = vadd.f32 0.0, %v8299
      %v8301 = vpop.f32.mrf.mxu0
      %v8302 = vpop.f32.mrf.mxu0
      %v8303 = vadd.f32 0.0, %v8302
      %v8304 = vpop.f32.mrf.mxu0
      %8305 = vmatprep.mubr.bf16.mxu0 0
      %8306 = vmatmul.mubr.bf16.gmra.mxu0 %v8202
      %v8307 = vpop.f32.mrf.mxu0
      %v8308 = vadd.f32 0.0, %v8307
      %v8309 = vpop.f32.mrf.mxu0
      %v8310 = vpop.f32.mrf.mxu0
      %v8311 = vadd.f32 0.0, %v8310
      %v8312 = vpop.f32.mrf.mxu0
      %8313 = vmatprep.mubr.bf16.mxu0 0
      %8314 = vmatmul.mubr.bf16.gmra.mxu0 %v8203
      %v8315 = vpop.f32.mrf.mxu0
      %v8316 = vadd.f32 0.0, %v8315
      %v8317 = vpop.f32.mrf.mxu0
      %v8318 = vpop.f32.mrf.mxu0
      %v8319 = vadd.f32 0.0, %v8318
      %v8320 = vpop.f32.mrf.mxu0
      %8321 = vmatprep.mubr.bf16.mxu0 0
      %8322 = vmatmul.mubr.bf16.gmra.mxu0 %v8204
      %v8323 = vpop.f32.mrf.mxu0
      %v8324 = vadd.f32 0.0, %v8323
      %v8325 = vpop.f32.mrf.mxu0
      %v8326 = vpop.f32.mrf.mxu0
      %v8327 = vadd.f32 0.0, %v8326
      %v8328 = vpop.f32.mrf.mxu0
      %8329 = vmatprep.mubr.bf16.mxu0 0
      %8330 = vmatmul.mubr.bf16.gmra.mxu0 %v8205
      %v8331 = vpop.f32.mrf.mxu0
      %v8332 = vadd.f32 0.0, %v8331
      %v8333 = vpop.f32.mrf.mxu0
      %v8334 = vpop.f32.mrf.mxu0
      %v8335 = vadd.f32 0.0, %v8334
      %v8336 = vpop.f32.mrf.mxu0
      %8337 = vmatprep.mubr.bf16.mxu0 0
      %8338 = vmatmul.mubr.bf16.gmra.mxu0 %v8206
      %v8339 = vpop.f32.mrf.mxu0
      %v8340 = vadd.f32 0.0, %v8339
      %v8341 = vpop.f32.mrf.mxu0
      %v8342 = vpop.f32.mrf.mxu0
      %v8343 = vadd.f32 0.0, %v8342
      %v8344 = vpop.f32.mrf.mxu0
      %8345 = vmatprep.mubr.bf16.mxu0 0
      %8346 = vmatmul.mubr.bf16.gmra.mxu0 %v8207
      %v8347 = vpop.f32.mrf.mxu0
      %v8348 = vadd.f32 0.0, %v8347
      %v8349 = vpop.f32.mrf.mxu0
      %v8350 = vpop.f32.mrf.mxu0
      %v8351 = vadd.f32 0.0, %v8350
      %v8352 = vpop.f32.mrf.mxu0
      %8353 = vmatprep.mubr.bf16.mxu0 0
      %8354 = vmatmul.mubr.bf16.gmra.mxu0 %v8208
      %v8355 = vpop.f32.mrf.mxu0
      %v8356 = vadd.f32 0.0, %v8355
      %v8357 = vpop.f32.mrf.mxu0
      %v8358 = vpop.f32.mrf.mxu0
      %v8359 = vadd.f32 0.0, %v8358
      %v8360 = vpop.f32.mrf.mxu0
      %8361 = vdwg.mxu0
      %v8362 = vadd.f32 %v8048, %v8300
      %v8363 = vadd.f32 %v8049, %v8303
      %v8364 = vadd.f32 %v8050, %v8308
      %v8365 = vadd.f32 %v8051, %v8311
      %v8366 = vadd.f32 %v8052, %v8316
      %v8367 = vadd.f32 %v8053, %v8319
      %v8368 = vadd.f32 %v8054, %v8324
      %v8369 = vadd.f32 %v8055, %v8327
      %v8370 = vadd.f32 %v8056, %v8332
      %v8371 = vadd.f32 %v8057, %v8335
      %v8372 = vadd.f32 %v8058, %v8340
      %v8373 = vadd.f32 %v8059, %v8343
      %v8374 = vadd.f32 %v8060, %v8348
      %v8375 = vadd.f32 %v8061, %v8351
      %v8376 = vadd.f32 %v8062, %v8356
      %v8377 = vadd.f32 %v8063, %v8359
      %v8378 = vld [vmem:[%s7821 + $0x4] sm:$0xc]
      %v8379 = vld [vmem:[%s7821 + $0x8] sm:$0xf]
      %v8380 = vld [vmem:[%s7821 + $0xc] sm:$0x3]
      %v8381 = vld [vmem:[%s7821 + $0x14] sm:$0xc]
      %v8382 = vld [vmem:[%s7821 + $0x18] sm:$0xf]
      %v8383 = vld [vmem:[%s7821 + $0x1c] sm:$0x3]
      %v8384 = vld [vmem:[%s7821 + $0x24] sm:$0xc]
      %v8385 = vld [vmem:[%s7821 + $0x28] sm:$0xf]
      %v8386 = vld [vmem:[%s7821 + $0x2c] sm:$0x3]
      %v8387 = vld [vmem:[%s7821 + $0x34] sm:$0xc]
      %v8388 = vld [vmem:[%s7821 + $0x38] sm:$0xf]
      %v8389 = vld [vmem:[%s7821 + $0x3c] sm:$0x3]
      %v8390 = vld [vmem:[%s7821 + $0x44] sm:$0xc]
      %v8391 = vld [vmem:[%s7821 + $0x48] sm:$0xf]
      %v8392 = vld [vmem:[%s7821 + $0x4c] sm:$0x3]
      %v8393 = vld [vmem:[%s7821 + $0x54] sm:$0xc]
      %v8394 = vld [vmem:[%s7821 + $0x58] sm:$0xf]
      %v8395 = vld [vmem:[%s7821 + $0x5c] sm:$0x3]
      %v8396 = vld [vmem:[%s7821 + $0x64] sm:$0xc]
      %v8397 = vld [vmem:[%s7821 + $0x68] sm:$0xf]
      %v8398 = vld [vmem:[%s7821 + $0x6c] sm:$0x3]
      %v8399 = vld [vmem:[%s7821 + $0x74] sm:$0xc]
      %v8400 = vld [vmem:[%s7821 + $0x78] sm:$0xf]
      %v8401 = vld [vmem:[%s7821 + $0x7c] sm:$0x3]
      %v8426 = vrot.slane %v8378, 6
      %v8427 = vrot.slane %v8426, 4
      %v8428 = vrot.slane %v8379, 6
      %v8429 = vsel %vm884, %v8427, %v8428
      %v8430 = vrot.slane %v8428, 4
      %v8431 = vrot.slane %v8380, 6
      %v8432 = vsel %vm884, %v8430, %v8431
      %v8433 = vrot.slane %v8381, 6
      %v8434 = vrot.slane %v8433, 4
      %v8435 = vrot.slane %v8382, 6
      %v8436 = vsel %vm884, %v8434, %v8435
      %v8437 = vrot.slane %v8435, 4
      %v8438 = vrot.slane %v8383, 6
      %v8439 = vsel %vm884, %v8437, %v8438
      %v8440 = vrot.slane %v8384, 6
      %v8441 = vrot.slane %v8440, 4
      %v8442 = vrot.slane %v8385, 6
      %v8443 = vsel %vm884, %v8441, %v8442
      %v8444 = vrot.slane %v8442, 4
      %v8445 = vrot.slane %v8386, 6
      %v8446 = vsel %vm884, %v8444, %v8445
      %v8447 = vrot.slane %v8387, 6
      %v8448 = vrot.slane %v8447, 4
      %v8449 = vrot.slane %v8388, 6
      %v8450 = vsel %vm884, %v8448, %v8449
      %v8451 = vrot.slane %v8449, 4
      %v8452 = vrot.slane %v8389, 6
      %v8453 = vsel %vm884, %v8451, %v8452
      %v8454 = vrot.slane %v8390, 6
      %v8455 = vrot.slane %v8454, 4
      %v8456 = vrot.slane %v8391, 6
      %v8457 = vsel %vm884, %v8455, %v8456
      %v8458 = vrot.slane %v8456, 4
      %v8459 = vrot.slane %v8392, 6
      %v8460 = vsel %vm884, %v8458, %v8459
      %v8461 = vrot.slane %v8393, 6
      %v8462 = vrot.slane %v8461, 4
      %v8463 = vrot.slane %v8394, 6
      %v8464 = vsel %vm884, %v8462, %v8463
      %v8465 = vrot.slane %v8463, 4
      %v8466 = vrot.slane %v8395, 6
      %v8467 = vsel %vm884, %v8465, %v8466
      %v8468 = vrot.slane %v8396, 6
      %v8469 = vrot.slane %v8468, 4
      %v8470 = vrot.slane %v8397, 6
      %v8471 = vsel %vm884, %v8469, %v8470
      %v8472 = vrot.slane %v8470, 4
      %v8473 = vrot.slane %v8398, 6
      %v8474 = vsel %vm884, %v8472, %v8473
      %v8475 = vrot.slane %v8399, 6
      %v8476 = vrot.slane %v8475, 4
      %v8477 = vrot.slane %v8400, 6
      %v8478 = vsel %vm884, %v8476, %v8477
      %v8479 = vrot.slane %v8477, 4
      %v8480 = vrot.slane %v8401, 6
      %v8481 = vsel %vm884, %v8479, %v8480
      %s8482 = scalar_lea.vmem %s3, 1664
      %v8483 = vld [vmem:[%s8482] sm:$0xf]
      %v8484 = vld [vmem:[%s8482 + $0x4] sm:$0xf]
      %v8485 = vld [vmem:[%s8482 + $0x8] sm:$0xf]
      %v8486 = vld [vmem:[%s8482 + $0xc] sm:$0xf]
      %v8487 = vld [vmem:[%s8482 + $0x10] sm:$0xf]
      %v8488 = vld [vmem:[%s8482 + $0x14] sm:$0xf]
      %v8489 = vld [vmem:[%s8482 + $0x18] sm:$0xf]
      %v8490 = vld [vmem:[%s8482 + $0x1c] sm:$0xf]
      %v8491 = vld [vmem:[%s8482 + $0x20] sm:$0xf]
      %v8492 = vld [vmem:[%s8482 + $0x24] sm:$0xf]
      %v8493 = vld [vmem:[%s8482 + $0x28] sm:$0xf]
      %v8494 = vld [vmem:[%s8482 + $0x2c] sm:$0xf]
      %v8495 = vld [vmem:[%s8482 + $0x30] sm:$0xf]
      %v8496 = vld [vmem:[%s8482 + $0x34] sm:$0xf]
      %v8497 = vld [vmem:[%s8482 + $0x38] sm:$0xf]
      %v8498 = vld [vmem:[%s8482 + $0x3c] sm:$0xf]
      %v8499 = vunpack.c.l.b16 %v8429
      %v8500 = vunpack.c.l.b16 %v8432
      %v8501 = vunpack.c.l.b16 %v8436
      %v8502 = vunpack.c.l.b16 %v8439
      %v8503 = vunpack.c.l.b16 %v8443
      %v8504 = vunpack.c.l.b16 %v8446
      %v8505 = vunpack.c.l.b16 %v8450
      %v8506 = vunpack.c.l.b16 %v8453
      %v8507 = vunpack.c.l.b16 %v8457
      %v8508 = vunpack.c.l.b16 %v8460
      %v8509 = vunpack.c.l.b16 %v8464
      %v8510 = vunpack.c.l.b16 %v8467
      %v8511 = vunpack.c.l.b16 %v8471
      %v8512 = vunpack.c.l.b16 %v8474
      %v8513 = vunpack.c.l.b16 %v8478
      %v8514 = vunpack.c.l.b16 %v8481
      %v8515 = vpack.c.b16 %v8500, %v8499
      %v8516 = vpack.c.b16 %v8502, %v8501
      %v8517 = vpack.c.b16 %v8504, %v8503
      %v8518 = vpack.c.b16 %v8506, %v8505
      %v8519 = vpack.c.b16 %v8508, %v8507
      %v8520 = vpack.c.b16 %v8510, %v8509
      %v8521 = vpack.c.b16 %v8512, %v8511
      %v8522 = vpack.c.b16 %v8514, %v8513
      %v8547 = vunpack.c.l.b16 %v8483
      %v8548 = vunpack.c.l.b16 %v8484
      %v8549 = vunpack.c.l.b16 %v8485
      %v8550 = vunpack.c.l.b16 %v8486
      %v8551 = vunpack.c.l.b16 %v8487
      %v8552 = vunpack.c.l.b16 %v8488
      %v8553 = vunpack.c.l.b16 %v8489
      %v8554 = vunpack.c.l.b16 %v8490
      %v8555 = vunpack.c.l.b16 %v8491
      %v8556 = vunpack.c.l.b16 %v8492
      %v8557 = vunpack.c.l.b16 %v8493
      %v8558 = vunpack.c.l.b16 %v8494
      %v8559 = vunpack.c.l.b16 %v8495
      %v8560 = vunpack.c.l.b16 %v8496
      %v8561 = vunpack.c.l.b16 %v8497
      %v8562 = vunpack.c.l.b16 %v8498
      %v8563 = vpack.c.b16 %v8548, %v8547
      %v8564 = vpack.c.b16 %v8550, %v8549
      %v8565 = vpack.c.b16 %v8552, %v8551
      %v8566 = vpack.c.b16 %v8554, %v8553
      %v8567 = vpack.c.b16 %v8556, %v8555
      %v8568 = vpack.c.b16 %v8558, %v8557
      %v8569 = vpack.c.b16 %v8560, %v8559
      %v8570 = vpack.c.b16 %v8562, %v8561
      %8579 = vmatprep.subr.bf16.mxu0 0
      %8580 = vmatpush1.bf16.msra.mxu0 %v8570
      %8581 = vmatprep.subr.bf16.mxu0 0
      %8582 = vmatpush1.bf16.msra.mxu0 %v8569
      %8583 = vmatprep.subr.bf16.mxu0 0
      %8584 = vmatpush1.bf16.msra.mxu0 %v8568
      %8585 = vmatprep.subr.bf16.mxu0 0
      %8586 = vmatpush1.bf16.msra.mxu0 %v8567
      %8587 = vmatprep.subr.bf16.mxu0 0
      %8588 = vmatpush1.bf16.msra.mxu0 %v8566
      %8589 = vmatprep.subr.bf16.mxu0 0
      %8590 = vmatpush1.bf16.msra.mxu0 %v8565
      %8591 = vmatprep.subr.bf16.mxu0 0
      %8592 = vmatpush1.bf16.msra.mxu0 %v8564
      %8593 = vmatprep.subr.bf16.mxu0 0
      %8594 = vmatpush1.bf16.msra.mxu0 %v8563
      %8595 = vmatprep.subr.bf16.mxu0 0
      %8596 = vmatpush2.bf16.msra.mxu0 0
      %8597 = vmatprep.subr.bf16.mxu0 0
      %8598 = vmatpush2.bf16.msra.mxu0 0
      %8599 = vmatprep.subr.bf16.mxu0 0
      %8600 = vmatpush2.bf16.msra.mxu0 0
      %8601 = vmatprep.subr.bf16.mxu0 0
      %8602 = vmatpush2.bf16.msra.mxu0 0
      %8603 = vmatprep.subr.bf16.mxu0 0
      %8604 = vmatpush2.bf16.msra.mxu0 0
      %8605 = vmatprep.subr.bf16.mxu0 0
      %8606 = vmatpush2.bf16.msra.mxu0 0
      %8607 = vmatprep.subr.bf16.mxu0 0
      %8608 = vmatpush2.bf16.msra.mxu0 0
      %8609 = vmatprep.subr.bf16.mxu0 0
      %8610 = vmatpush2.bf16.msra.mxu0 0
      %8611 = vmatprep.mubr.bf16.mxu0 0
      %8612 = vmatmul.mubr.bf16.gmra.mxu0 %v8515
      %v8613 = vpop.f32.mrf.mxu0
      %v8614 = vadd.f32 0.0, %v8613
      %v8615 = vpop.f32.mrf.mxu0
      %v8616 = vpop.f32.mrf.mxu0
      %v8617 = vadd.f32 0.0, %v8616
      %v8618 = vpop.f32.mrf.mxu0
      %8619 = vmatprep.mubr.bf16.mxu0 0
      %8620 = vmatmul.mubr.bf16.gmra.mxu0 %v8516
      %v8621 = vpop.f32.mrf.mxu0
      %v8622 = vadd.f32 0.0, %v8621
      %v8623 = vpop.f32.mrf.mxu0
      %v8624 = vpop.f32.mrf.mxu0
      %v8625 = vadd.f32 0.0, %v8624
      %v8626 = vpop.f32.mrf.mxu0
      %8627 = vmatprep.mubr.bf16.mxu0 0
      %8628 = vmatmul.mubr.bf16.gmra.mxu0 %v8517
      %v8629 = vpop.f32.mrf.mxu0
      %v8630 = vadd.f32 0.0, %v8629
      %v8631 = vpop.f32.mrf.mxu0
      %v8632 = vpop.f32.mrf.mxu0
      %v8633 = vadd.f32 0.0, %v8632
      %v8634 = vpop.f32.mrf.mxu0
      %8635 = vmatprep.mubr.bf16.mxu0 0
      %8636 = vmatmul.mubr.bf16.gmra.mxu0 %v8518
      %v8637 = vpop.f32.mrf.mxu0
      %v8638 = vadd.f32 0.0, %v8637
      %v8639 = vpop.f32.mrf.mxu0
      %v8640 = vpop.f32.mrf.mxu0
      %v8641 = vadd.f32 0.0, %v8640
      %v8642 = vpop.f32.mrf.mxu0
      %8643 = vmatprep.mubr.bf16.mxu0 0
      %8644 = vmatmul.mubr.bf16.gmra.mxu0 %v8519
      %v8645 = vpop.f32.mrf.mxu0
      %v8646 = vadd.f32 0.0, %v8645
      %v8647 = vpop.f32.mrf.mxu0
      %v8648 = vpop.f32.mrf.mxu0
      %v8649 = vadd.f32 0.0, %v8648
      %v8650 = vpop.f32.mrf.mxu0
      %8651 = vmatprep.mubr.bf16.mxu0 0
      %8652 = vmatmul.mubr.bf16.gmra.mxu0 %v8520
      %v8653 = vpop.f32.mrf.mxu0
      %v8654 = vadd.f32 0.0, %v8653
      %v8655 = vpop.f32.mrf.mxu0
      %v8656 = vpop.f32.mrf.mxu0
      %v8657 = vadd.f32 0.0, %v8656
      %v8658 = vpop.f32.mrf.mxu0
      %8659 = vmatprep.mubr.bf16.mxu0 0
      %8660 = vmatmul.mubr.bf16.gmra.mxu0 %v8521
      %v8661 = vpop.f32.mrf.mxu0
      %v8662 = vadd.f32 0.0, %v8661
      %v8663 = vpop.f32.mrf.mxu0
      %v8664 = vpop.f32.mrf.mxu0
      %v8665 = vadd.f32 0.0, %v8664
      %v8666 = vpop.f32.mrf.mxu0
      %8667 = vmatprep.mubr.bf16.mxu0 0
      %8668 = vmatmul.mubr.bf16.gmra.mxu0 %v8522
      %v8669 = vpop.f32.mrf.mxu0
      %v8670 = vadd.f32 0.0, %v8669
      %v8671 = vpop.f32.mrf.mxu0
      %v8672 = vpop.f32.mrf.mxu0
      %v8673 = vadd.f32 0.0, %v8672
      %v8674 = vpop.f32.mrf.mxu0
      %8675 = vdwg.mxu0
      %v8676 = vadd.f32 %v8362, %v8614
      %v8677 = vadd.f32 %v8363, %v8617
      %v8678 = vadd.f32 %v8364, %v8622
      %v8679 = vadd.f32 %v8365, %v8625
      %v8680 = vadd.f32 %v8366, %v8630
      %v8681 = vadd.f32 %v8367, %v8633
      %v8682 = vadd.f32 %v8368, %v8638
      %v8683 = vadd.f32 %v8369, %v8641
      %v8684 = vadd.f32 %v8370, %v8646
      %v8685 = vadd.f32 %v8371, %v8649
      %v8686 = vadd.f32 %v8372, %v8654
      %v8687 = vadd.f32 %v8373, %v8657
      %v8688 = vadd.f32 %v8374, %v8662
      %v8689 = vadd.f32 %v8375, %v8665
      %v8690 = vadd.f32 %v8376, %v8670
      %v8691 = vadd.f32 %v8377, %v8673
      %v8692 = vmax.f32 %v8676, 0.0
      %v8693 = vmax.f32 %v8677, 0.0
      %v8694 = vmax.f32 %v8678, 0.0
      %v8695 = vmax.f32 %v8679, 0.0
      %v8696 = vmax.f32 %v8680, 0.0
      %v8697 = vmax.f32 %v8681, 0.0
      %v8698 = vmax.f32 %v8682, 0.0
      %v8699 = vmax.f32 %v8683, 0.0
      %v8700 = vmax.f32 %v8684, 0.0
      %v8701 = vmax.f32 %v8685, 0.0
      %v8702 = vmax.f32 %v8686, 0.0
      %v8703 = vmax.f32 %v8687, 0.0
      %v8704 = vmax.f32 %v8688, 0.0
      %v8705 = vmax.f32 %v8689, 0.0
      %v8706 = vmax.f32 %v8690, 0.0
      %v8707 = vmax.f32 %v8691, 0.0
      %v8708 = vpack.c.bf16 %v8693, %v8692
      %v8709 = vpack.c.bf16 %v8695, %v8694
      %v8710 = vpack.c.bf16 %v8697, %v8696
      %v8711 = vpack.c.bf16 %v8699, %v8698
      %v8712 = vpack.c.bf16 %v8701, %v8700
      %v8713 = vpack.c.bf16 %v8703, %v8702
      %v8714 = vpack.c.bf16 %v8705, %v8704
      %v8715 = vpack.c.bf16 %v8707, %v8706
      %s8716 = scalar_lea.vmem %s5, 192
      %v8717 = vld [vmem:[%s8716] sm:$0xf]
      %v8718 = vld [vmem:[%s8716 + $0x4] sm:$0xf]
      %v8719 = vld [vmem:[%s8716 + $0x8] sm:$0xf]
      %v8720 = vld [vmem:[%s8716 + $0xc] sm:$0xf]
      %v8721 = vld [vmem:[%s8716 + $0x10] sm:$0xf]
      %v8722 = vld [vmem:[%s8716 + $0x14] sm:$0xf]
      %v8723 = vld [vmem:[%s8716 + $0x18] sm:$0xf]
      %v8724 = vld [vmem:[%s8716 + $0x1c] sm:$0xf]
      %v8725 = vld [vmem:[%s8716 + $0x20] sm:$0xf]
      %v8726 = vld [vmem:[%s8716 + $0x24] sm:$0xf]
      %v8727 = vld [vmem:[%s8716 + $0x28] sm:$0xf]
      %v8728 = vld [vmem:[%s8716 + $0x2c] sm:$0xf]
      %v8729 = vld [vmem:[%s8716 + $0x30] sm:$0xf]
      %v8730 = vld [vmem:[%s8716 + $0x34] sm:$0xf]
      %v8731 = vld [vmem:[%s8716 + $0x38] sm:$0xf]
      %v8732 = vld [vmem:[%s8716 + $0x3c] sm:$0xf]
      %v8749 = vunpack.c.l.b16 %v8717
      %v8750 = vunpack.c.l.b16 %v8718
      %v8751 = vunpack.c.l.b16 %v8719
      %v8752 = vunpack.c.l.b16 %v8720
      %v8753 = vunpack.c.l.b16 %v8721
      %v8754 = vunpack.c.l.b16 %v8722
      %v8755 = vunpack.c.l.b16 %v8723
      %v8756 = vunpack.c.l.b16 %v8724
      %v8757 = vunpack.c.l.b16 %v8725
      %v8758 = vunpack.c.l.b16 %v8726
      %v8759 = vunpack.c.l.b16 %v8727
      %v8760 = vunpack.c.l.b16 %v8728
      %v8761 = vunpack.c.l.b16 %v8729
      %v8762 = vunpack.c.l.b16 %v8730
      %v8763 = vunpack.c.l.b16 %v8731
      %v8764 = vunpack.c.l.b16 %v8732
      %v8765 = vpack.c.b16 %v8750, %v8749
      %v8766 = vpack.c.b16 %v8752, %v8751
      %v8767 = vpack.c.b16 %v8754, %v8753
      %v8768 = vpack.c.b16 %v8756, %v8755
      %v8769 = vpack.c.b16 %v8758, %v8757
      %v8770 = vpack.c.b16 %v8760, %v8759
      %v8771 = vpack.c.b16 %v8762, %v8761
      %v8772 = vpack.c.b16 %v8764, %v8763
      %8781 = vmatprep.subr.bf16.mxu0 0
      %8782 = vmatpush1.bf16.msra.mxu0 %v8772
      %8783 = vmatprep.subr.bf16.mxu0 0
      %8784 = vmatpush1.bf16.msra.mxu0 %v8771
      %8785 = vmatprep.subr.bf16.mxu0 0
      %8786 = vmatpush1.bf16.msra.mxu0 %v8770
      %8787 = vmatprep.subr.bf16.mxu0 0
      %8788 = vmatpush1.bf16.msra.mxu0 %v8769
      %8789 = vmatprep.subr.bf16.mxu0 0
      %8790 = vmatpush1.bf16.msra.mxu0 %v8768
      %8791 = vmatprep.subr.bf16.mxu0 0
      %8792 = vmatpush1.bf16.msra.mxu0 %v8767
      %8793 = vmatprep.subr.bf16.mxu0 0
      %8794 = vmatpush1.bf16.msra.mxu0 %v8766
      %8795 = vmatprep.subr.bf16.mxu0 0
      %8796 = vmatpush1.bf16.msra.mxu0 %v8765
      %8797 = vmatprep.subr.bf16.mxu0 0
      %8798 = vmatpush2.bf16.msra.mxu0 0
      %8799 = vmatprep.subr.bf16.mxu0 0
      %8800 = vmatpush2.bf16.msra.mxu0 0
      %8801 = vmatprep.subr.bf16.mxu0 0
      %8802 = vmatpush2.bf16.msra.mxu0 0
      %8803 = vmatprep.subr.bf16.mxu0 0
      %8804 = vmatpush2.bf16.msra.mxu0 0
      %8805 = vmatprep.subr.bf16.mxu0 0
      %8806 = vmatpush2.bf16.msra.mxu0 0
      %8807 = vmatprep.subr.bf16.mxu0 0
      %8808 = vmatpush2.bf16.msra.mxu0 0
      %8809 = vmatprep.subr.bf16.mxu0 0
      %8810 = vmatpush2.bf16.msra.mxu0 0
      %8811 = vmatprep.subr.bf16.mxu0 0
      %8812 = vmatpush2.bf16.msra.mxu0 0
      %8813 = vmatprep.mubr.bf16.mxu0 0
      %8814 = vmatmul.mubr.bf16.gmra.mxu0 %v8708
      %v8815 = vpop.f32.mrf.mxu0
      %v8816 = vadd.f32 0.0, %v8815
      %v8817 = vpop.f32.mrf.mxu0
      %v8818 = vpop.f32.mrf.mxu0
      %v8819 = vadd.f32 0.0, %v8818
      %v8820 = vpop.f32.mrf.mxu0
      %8821 = vmatprep.mubr.bf16.mxu0 0
      %8822 = vmatmul.mubr.bf16.gmra.mxu0 %v8709
      %v8823 = vpop.f32.mrf.mxu0
      %v8824 = vadd.f32 0.0, %v8823
      %v8825 = vpop.f32.mrf.mxu0
      %v8826 = vpop.f32.mrf.mxu0
      %v8827 = vadd.f32 0.0, %v8826
      %v8828 = vpop.f32.mrf.mxu0
      %8829 = vmatprep.mubr.bf16.mxu0 0
      %8830 = vmatmul.mubr.bf16.gmra.mxu0 %v8710
      %v8831 = vpop.f32.mrf.mxu0
      %v8832 = vadd.f32 0.0, %v8831
      %v8833 = vpop.f32.mrf.mxu0
      %v8834 = vpop.f32.mrf.mxu0
      %v8835 = vadd.f32 0.0, %v8834
      %v8836 = vpop.f32.mrf.mxu0
      %8837 = vmatprep.mubr.bf16.mxu0 0
      %8838 = vmatmul.mubr.bf16.gmra.mxu0 %v8711
      %v8839 = vpop.f32.mrf.mxu0
      %v8840 = vadd.f32 0.0, %v8839
      %v8841 = vpop.f32.mrf.mxu0
      %v8842 = vpop.f32.mrf.mxu0
      %v8843 = vadd.f32 0.0, %v8842
      %v8844 = vpop.f32.mrf.mxu0
      %8845 = vmatprep.mubr.bf16.mxu0 0
      %8846 = vmatmul.mubr.bf16.gmra.mxu0 %v8712
      %v8847 = vpop.f32.mrf.mxu0
      %v8848 = vadd.f32 0.0, %v8847
      %v8849 = vpop.f32.mrf.mxu0
      %v8850 = vpop.f32.mrf.mxu0
      %v8851 = vadd.f32 0.0, %v8850
      %v8852 = vpop.f32.mrf.mxu0
      %8853 = vmatprep.mubr.bf16.mxu0 0
      %8854 = vmatmul.mubr.bf16.gmra.mxu0 %v8713
      %v8855 = vpop.f32.mrf.mxu0
      %v8856 = vadd.f32 0.0, %v8855
      %v8857 = vpop.f32.mrf.mxu0
      %v8858 = vpop.f32.mrf.mxu0
      %v8859 = vadd.f32 0.0, %v8858
      %v8860 = vpop.f32.mrf.mxu0
      %8861 = vmatprep.mubr.bf16.mxu0 0
      %8862 = vmatmul.mubr.bf16.gmra.mxu0 %v8714
      %v8863 = vpop.f32.mrf.mxu0
      %v8864 = vadd.f32 0.0, %v8863
      %v8865 = vpop.f32.mrf.mxu0
      %v8866 = vpop.f32.mrf.mxu0
      %v8867 = vadd.f32 0.0, %v8866
      %v8868 = vpop.f32.mrf.mxu0
      %8869 = vmatprep.mubr.bf16.mxu0 0
      %8870 = vmatmul.mubr.bf16.gmra.mxu0 %v8715
      %v8871 = vpop.f32.mrf.mxu0
      %v8872 = vadd.f32 0.0, %v8871
      %v8873 = vpop.f32.mrf.mxu0
      %v8874 = vpop.f32.mrf.mxu0
      %v8875 = vadd.f32 0.0, %v8874
      %v8876 = vpop.f32.mrf.mxu0
      %8877 = vdwg.mxu0
      %v8878 = vadd.f32 %v6228, %v8816
      %v8879 = vadd.f32 %v6229, %v8819
      %v8880 = vadd.f32 %v6230, %v8824
      %v8881 = vadd.f32 %v6231, %v8827
      %v8882 = vadd.f32 %v6232, %v8832
      %v8883 = vadd.f32 %v6233, %v8835
      %v8884 = vadd.f32 %v6234, %v8840
      %v8885 = vadd.f32 %v6235, %v8843
      %v8886 = vadd.f32 %v6236, %v8848
      %v8887 = vadd.f32 %v6237, %v8851
      %v8888 = vadd.f32 %v6238, %v8856
      %v8889 = vadd.f32 %v6239, %v8859
      %v8890 = vadd.f32 %v6240, %v8864
      %v8891 = vadd.f32 %v6241, %v8867
      %v8892 = vadd.f32 %v6242, %v8872
      %v8893 = vadd.f32 %v6243, %v8875
      %v8894 = vmax.f32 %v8878, 0.0
      %v8895 = vmax.f32 %v8879, 0.0
      %v8896 = vmax.f32 %v8880, 0.0
      %v8897 = vmax.f32 %v8881, 0.0
      %v8898 = vmax.f32 %v8882, 0.0
      %v8899 = vmax.f32 %v8883, 0.0
      %v8900 = vmax.f32 %v8884, 0.0
      %v8901 = vmax.f32 %v8885, 0.0
      %v8902 = vmax.f32 %v8886, 0.0
      %v8903 = vmax.f32 %v8887, 0.0
      %v8904 = vmax.f32 %v8888, 0.0
      %v8905 = vmax.f32 %v8889, 0.0
      %v8906 = vmax.f32 %v8890, 0.0
      %v8907 = vmax.f32 %v8891, 0.0
      %v8908 = vmax.f32 %v8892, 0.0
      %v8909 = vmax.f32 %v8893, 0.0
      %8910 = vst [vmem:[%s330] sm:$0xff] %v8894
      %8911 = vst [vmem:[%s330 + $0x8] sm:$0xff] %v8895
      %8912 = vst [vmem:[%s330 + $0x10] sm:$0xff] %v8896
      %8913 = vst [vmem:[%s330 + $0x18] sm:$0xff] %v8897
      %8914 = vst [vmem:[%s330 + $0x20] sm:$0xff] %v8898
      %8915 = vst [vmem:[%s330 + $0x28] sm:$0xff] %v8899
      %8916 = vst [vmem:[%s330 + $0x30] sm:$0xff] %v8900
      %8917 = vst [vmem:[%s330 + $0x38] sm:$0xff] %v8901
      %8918 = vst [vmem:[%s330 + $0x40] sm:$0xff] %v8902
      %8919 = vst [vmem:[%s330 + $0x48] sm:$0xff] %v8903
      %8920 = vst [vmem:[%s330 + $0x50] sm:$0xff] %v8904
      %8921 = vst [vmem:[%s330 + $0x58] sm:$0xff] %v8905
      %8922 = vst [vmem:[%s330 + $0x60] sm:$0xff] %v8906
      %8923 = vst [vmem:[%s330 + $0x68] sm:$0xff] %v8907
      %8924 = vst [vmem:[%s330 + $0x70] sm:$0xff] %v8908
      %8925 = vst [vmem:[%s330 + $0x78] sm:$0xff] %v8909
      %s8926 = smul.u32 8, %s23
      %p8927 = scmp.lt.s32.totalorder %s22, 1
      %s8928 = scalar_select %p8927, %s22, 1
      %p8929 = scmp.lt.s32.totalorder %s8926, 15
      %s8930 = scalar_select %p8929, %s8926, 15
      %s8931 = smul.addr %s8930, 2
      %s8932 = smul.addr %s8928, 32
      %s8933 = sadd.s32 %s8931, %s8932
      %s8934 = smul.addr %s8933, 8
      %s8935 = scalar_lea.vmem %s7, %s8934
      // Predicated region
      $region49: #{forward.1} parent=47 // pred_check
        %p8936 = pneg %p209
      $region50: #{forward.1} parent=47 // pred_check_branch
        %8938 = sbr.rel (%p8936) target = $region52
      $region51: #{forward.1} parent=47 // pred_region
        %s8939 = smul.u32 8, %s23
      $region52: #{forward.1} parent=47 // pred_fallthru
        _
    $region48: #{forward.1} parent=5 // pred_fallthru
      _
    %p8940 = scmp.le.s32.totalorder 2, %s13
    // Predicated region
    $region53: #{forward.1} parent=5 // pred_check
      %p8941 = pneg %p8940
    $region54: #{forward.1} parent=5 // pred_check_branch
      %8943 = sbr.rel (%p8941) target = $region56
    $region55: #{forward.1} parent=5 // pred_region
      %s8944 = ssub.s32 %s13, 2
      // Predicated region
      $region57: #{forward.1} parent=55 // pred_check
        %p8945 = pneg %p215
      $region58: #{forward.1} parent=55 // pred_check_branch
        %8947 = sbr.rel (%p8945) target = $region60
      $region59: #{forward.1} parent=55 // pred_region
        %s8948 = smul.u32 8, %s25
        %p8949 = scmp.lt.s32.totalorder %s24, 1
        %s8950 = scalar_select %p8949, %s24, 1
        %p8951 = scmp.lt.s32.totalorder %s8948, 15
        %s8952 = scalar_select %p8951, %s8948, 15
        %s8953 = smul.addr %s8952, 2
        %s8954 = smul.addr %s8950, 32
        %s8955 = sadd.s32 %s8953, %s8954
        %s8956 = smul.addr %s8955, 8
        %s8957 = scalar_lea.vmem %s7, %s8956
      $region60: #{forward.1} parent=55 // pred_fallthru
        _
    $region56: #{forward.1} parent=5 // pred_fallthru
      _
  $region6: #{forward.1} parent=0 // loop_footer
    %s17 = sadd.s32 1, %s13
  $region7: #{forward.1} parent=0 // loop_footer_branch
    %12 = sbr.rel target = $region3
  $region8: #{forward.1} parent=0 // loop_exit
    _

</llo_original>
